<compile_context>
chip_gen: v7x
topology: tpu7x:2x2x1
jax: 0.10.0
libtpu: 0.0.40
codegen_flags: <defaults>
</compile_context>

<pallas_src>
import math

import jax
import jax.numpy as jnp
from jax import lax
from jax.experimental import pallas as pl
from jax.experimental.pallas import tpu as pltpu  # noqa: F401  (kept for TPU-specific tuning hooks)


# ----------------------------------------------------------------------------
# Fused transformer kernel (single invocation, whole batch resident in VMEM)
# ----------------------------------------------------------------------------

_N_ENC_PARAMS = 10   # per-layer-stacked encoder params
_N_DEC_PARAMS = 15   # per-layer-stacked decoder params

_LN_EPS = 1e-5       # PyTorch nn.LayerNorm default


def _make_kernel(n_enc, n_dec, batch, n_src, n_trg, d):
    def kernel(*refs):
        src_ref, trg_ref = refs[0], refs[1]
        params = refs[2:-1]
        out_ref = refs[-1]

        (e_wqkv, e_wo, e_g1, e_be1,
         e_w1, e_bb1, e_w2, e_bb2, e_g2, e_be2) = params[:_N_ENC_PARAMS]
        (d_wqkv, d_wo, d_g1, d_be1,
         c_wq, c_wkv, c_wo, d_g2, d_be2,
         d_w1, d_bb1, d_w2, d_bb2, d_g3, d_be3) = params[_N_ENC_PARAMS:]

        # Fold the batch into the row dim for all weight matmuls / LN / FFN.
        x = src_ref[...].astype(jnp.float32).reshape(batch * n_src, d)
        y = trg_ref[...].astype(jnp.float32).reshape(batch * n_trg, d)

        def layer_norm(z, g, b):
            mu = jnp.mean(z, axis=-1, keepdims=True)
            zc = z - mu
            var = jnp.mean(zc * zc, axis=-1, keepdims=True)
            return zc * lax.rsqrt(var + _LN_EPS) * g + b

        def mm(a, w):
            # bf16 x bf16 on the MXU, f32 accumulation.
            return jnp.dot(a.astype(jnp.bfloat16), w,
                           preferred_element_type=jnp.float32)

        def softmax_av(q, k, v, nq, nk):
            # q: (B*nq, d); k, v: (B*nk, d)  ->  (B*nq, d)
            q3 = q.reshape(batch, nq, d)
            k3 = k.reshape(batch, nk, d)
            v3 = v.reshape(batch, nk, d)
            # Batched contraction on the feature dim: no explicit k transpose.
            s = jnp.einsum('bqd,bkd->bqk', q3, k3,
                           preferred_element_type=jnp.float32)
            m = jnp.max(s, axis=-1, keepdims=True)
            e = jnp.exp(s - m)
            inv = pl.reciprocal(jnp.sum(e, axis=-1, keepdims=True), approx=True)
            a = jnp.einsum('bqk,bkd->bqd', e * inv, v3,
                           preferred_element_type=jnp.float32)
            return a.reshape(batch * nq, d)

        def ffn(z, w1, b1, w2, b2):
            h = mm(z, w1) + b1
            h = jnp.maximum(h, 0.0)
            return mm(h, w2) + b2

        # ----- Encoder: n_enc post-LN self-attention blocks -----------------
        for l in range(n_enc):
            qkv = mm(x, e_wqkv[l])                       # (B*Ns, 3d), one dot
            a = softmax_av(qkv[:, :d], qkv[:, d:2 * d], qkv[:, 2 * d:],
                           n_src, n_src)
            x = layer_norm(x + mm(a, e_wo[l]), e_g1[l], e_be1[l])
            x = layer_norm(x + ffn(x, e_w1[l], e_bb1[l], e_w2[l], e_bb2[l]),
                           e_g2[l], e_be2[l])

        # ----- Decoder: n_dec blocks (self-attn, cross-attn, FFN) -----------
        for l in range(n_dec):
            qkv = mm(y, d_wqkv[l])                       # (B*Nt, 3d)
            a = softmax_av(qkv[:, :d], qkv[:, d:2 * d], qkv[:, 2 * d:],
                           n_trg, n_trg)
            y = layer_norm(y + mm(a, d_wo[l]), d_g1[l], d_be1[l])

            q = mm(y, c_wq[l])                           # (B*Nt, d)
            kv = mm(x, c_wkv[l])                         # (B*Ns, 2d) lane-dense
            a = softmax_av(q, kv[:, :d], kv[:, d:], n_trg, n_src)
            y = layer_norm(y + mm(a, c_wo[l]), d_g2[l], d_be2[l])

            y = layer_norm(y + ffn(y, d_w1[l], d_bb1[l], d_w2[l], d_bb2[l]),
                           d_g3[l], d_be3[l])

        out_ref[...] = y.reshape(batch, n_trg, d).astype(out_ref.dtype)

    return kernel


def _cost_estimate(batch, n_src, n_trg, d, d_inner, n_enc, n_dec, params,
                   src, trg):
    ms, mt = batch * n_src, batch * n_trg
    enc_flops = n_enc * (
        2 * ms * d * (3 * d)                 # fused qkv
        + 4 * batch * n_src * n_src * d      # scores + AV
        + 2 * ms * d * d                     # output proj
        + 4 * ms * d * d_inner)              # FFN (two matmuls)
    dec_flops = n_dec * (
        2 * mt * d * (3 * d)                 # self qkv
        + 4 * batch * n_trg * n_trg * d      # self scores + AV
        + 2 * mt * d * d                     # self output proj
        + 2 * mt * d * d                     # cross q
        + 2 * ms * d * (2 * d)               # cross kv
        + 4 * batch * n_trg * n_src * d      # cross scores + AV
        + 2 * mt * d * d                     # cross output proj
        + 4 * mt * d * d_inner)              # FFN
    trans = (n_enc * batch * n_src * n_src
             + n_dec * batch * (n_trg * n_trg + n_trg * n_src))
    bytes_acc = (src.nbytes + trg.nbytes + batch * n_trg * d * 4
                 + sum(int(p.nbytes) for p in params))
    return pl.CostEstimate(flops=int(enc_flops + dec_flops),
                           transcendentals=int(trans),
                           bytes_accessed=int(bytes_acc))


def transformer_forward(src, trg, enc_params, dec_params, n_enc, n_dec,
                        d_inner, flip=False):
    """src, trg: (B, N, d_model) -> dec_output (B, N_trg, d_model)."""
    if flip:
        src, trg = trg, src
    B, n_src, d = src.shape
    _, n_trg, _ = trg.shape

    flat_params = list(enc_params) + list(dec_params)

    return pl.pallas_call(
        _make_kernel(n_enc, n_dec, B, n_src, n_trg, d),
        out_shape=jax.ShapeDtypeStruct((B, n_trg, d), jnp.float32),
        cost_estimate=_cost_estimate(B, n_src, n_trg, d, d_inner,
                                     n_enc, n_dec, flat_params, src, trg),
    )(src, trg, *flat_params)


# ----------------------------------------------------------------------------
# Parameter construction (deterministic, in-script).  Weights are bf16,
# LayerNorm / bias params stay f32.
# ----------------------------------------------------------------------------

def _randw(key, n, fan_in, fan_out):
    keys = jax.random.split(key, n)
    s = 1.0 / math.sqrt(fan_in)
    return jnp.stack([jax.random.normal(k, (fan_in, fan_out), jnp.float32) * s
                      for k in keys])


def _stack_w(key, n, fan_in, fan_out):
    return _randw(key, n, fan_in, fan_out).astype(jnp.bfloat16)


def _fused_qkv(key, n, d_model, scale):
    """wq|wk|wv stacked on the output dim; 1/sqrt(d_k) folded into wq."""
    kq, kk, kv = jax.random.split(key, 3)
    wq = _randw(kq, n, d_model, d_model) * scale
    wk = _randw(kk, n, d_model, d_model)
    wv = _randw(kv, n, d_model, d_model)
    return jnp.concatenate([wq, wk, wv], axis=-1).astype(jnp.bfloat16)


def _fused_kv(key, n, d_model):
    kk, kv = jax.random.split(key, 2)
    wk = _randw(kk, n, d_model, d_model)
    wv = _randw(kv, n, d_model, d_model)
    return jnp.concatenate([wk, wv], axis=-1).astype(jnp.bfloat16)


def _zeros(n, dim):
    return jnp.zeros((n, 1, dim), jnp.float32)


def _ones(n, dim):
    return jnp.ones((n, 1, dim), jnp.float32)


def _make_encoder_params(key, n_layers, d_model, d_inner):
    ks = jax.random.split(key, 4)
    scale = d_model ** -0.5
    return [
        _fused_qkv(ks[0], n_layers, d_model, scale),        # wqkv (L,d,3d) bf16
        _stack_w(ks[1], n_layers, d_model, d_model),        # wo
        _ones(n_layers, d_model), _zeros(n_layers, d_model),  # ln1
        _stack_w(ks[2], n_layers, d_model, d_inner),         # w1
        _zeros(n_layers, d_inner),                            # b1
        _stack_w(ks[3], n_layers, d_inner, d_model),         # w2
        _zeros(n_layers, d_model),                            # b2
        _ones(n_layers, d_model), _zeros(n_layers, d_model),  # ln2
    ]


def _make_decoder_params(key, n_layers, d_model, d_inner):
    ks = jax.random.split(key, 7)
    scale = d_model ** -0.5
    return [
        _fused_qkv(ks[0], n_layers, d_model, scale),          # self wqkv
        _stack_w(ks[1], n_layers, d_model, d_model),          # self wo
        _ones(n_layers, d_model), _zeros(n_layers, d_model),  # ln1
        (_randw(ks[2], n_layers, d_model, d_model) * scale
         ).astype(jnp.bfloat16),                              # cross wq (scaled)
        _fused_kv(ks[3], n_layers, d_model),                  # cross wkv (L,d,2d)
        _stack_w(ks[4], n_layers, d_model, d_model),          # cross wo
        _ones(n_layers, d_model), _zeros(n_layers, d_model),  # ln2
        _stack_w(ks[5], n_layers, d_model, d_inner),          # w1
        _zeros(n_layers, d_inner),                             # b1
        _stack_w(ks[6], n_layers, d_inner, d_model),          # w2
        _zeros(n_layers, d_model),                             # b2
        _ones(n_layers, d_model), _zeros(n_layers, d_model),   # ln3
    ]


# ----------------------------------------------------------------------------
# Transformer (JAX/Pallas version of the PyTorch module)
# ----------------------------------------------------------------------------

class Transformer:
    """Sequence-to-sequence model with attention (fused Pallas forward)."""

    def __init__(self, key, d_model=64, n_layers_enc=3, n_layers_dec=2,
                 d_inner=128, flip=False):
        self.d_model = d_model
        self.d_input = d_model
        self.d_output = d_model
        self.n_layers_enc = n_layers_enc
        self.n_layers_dec = n_layers_dec
        self.d_inner = d_inner
        self.flip = flip
        k_enc, k_dec = jax.random.split(key)
        self.encoder_params = _make_encoder_params(
            k_enc, n_layers_enc, d_model, d_inner)
        self.decoder_params = _make_decoder_params(
            k_dec, n_layers_dec, d_model, d_inner)

    def forward(self, src_seq, trg_seq, return_attns=False):
        # TODO(synk): return_attns not supported by the fused kernel.
        del return_attns
        return transformer_forward(
            src_seq, trg_seq,
            self.encoder_params, self.decoder_params,
            self.n_layers_enc, self.n_layers_dec, self.d_inner,
            flip=self.flip)

    __call__ = forward


# ----------------------------------------------------------------------------
# Main
# ----------------------------------------------------------------------------

if __name__ == "__main__":
    key = jax.random.PRNGKey(0)
    k_model, k_src, k_trg = jax.random.split(key, 3)

    B, N_SRC, N_TRG, D_MODEL = 2, 8, 8, 64

    model = Transformer(k_model, d_model=D_MODEL,
                        n_layers_enc=3, n_layers_dec=2, d_inner=128)

    src_seq = jax.random.normal(k_src, (B, N_SRC, D_MODEL), jnp.float32)
    trg_seq = jax.random.normal(k_trg, (B, N_TRG, D_MODEL), jnp.float32)

    dec_output = model(src_seq, trg_seq)
    jax.block_until_ready(dec_output)

    assert dec_output.shape == (B, N_TRG, D_MODEL), dec_output.shape
    assert bool(jnp.all(jnp.isfinite(dec_output)))

    print("KERNEL_OK")
</pallas_src>

<mosaic_0001>
module attributes {stable_mosaic.version = 11 : i64} {
  func.func @kernel(%arg0: memref<2x8x64xf32, #tpu.memory_space<vmem>>, %arg1: memref<2x8x64xf32, #tpu.memory_space<vmem>>, %arg2: memref<3x64x192xbf16, #tpu.memory_space<vmem>>, %arg3: memref<3x64x64xbf16, #tpu.memory_space<vmem>>, %arg4: memref<3x1x64xf32, #tpu.memory_space<vmem>>, %arg5: memref<3x1x64xf32, #tpu.memory_space<vmem>>, %arg6: memref<3x64x128xbf16, #tpu.memory_space<vmem>>, %arg7: memref<3x1x128xf32, #tpu.memory_space<vmem>>, %arg8: memref<3x128x64xbf16, #tpu.memory_space<vmem>>, %arg9: memref<3x1x64xf32, #tpu.memory_space<vmem>>, %arg10: memref<3x1x64xf32, #tpu.memory_space<vmem>>, %arg11: memref<3x1x64xf32, #tpu.memory_space<vmem>>, %arg12: memref<2x64x192xbf16, #tpu.memory_space<vmem>>, %arg13: memref<2x64x64xbf16, #tpu.memory_space<vmem>>, %arg14: memref<2x1x64xf32, #tpu.memory_space<vmem>>, %arg15: memref<2x1x64xf32, #tpu.memory_space<vmem>>, %arg16: memref<2x64x64xbf16, #tpu.memory_space<vmem>>, %arg17: memref<2x64x128xbf16, #tpu.memory_space<vmem>>, %arg18: memref<2x64x64xbf16, #tpu.memory_space<vmem>>, %arg19: memref<2x1x64xf32, #tpu.memory_space<vmem>>, %arg20: memref<2x1x64xf32, #tpu.memory_space<vmem>>, %arg21: memref<2x64x128xbf16, #tpu.memory_space<vmem>>, %arg22: memref<2x1x128xf32, #tpu.memory_space<vmem>>, %arg23: memref<2x128x64xbf16, #tpu.memory_space<vmem>>, %arg24: memref<2x1x64xf32, #tpu.memory_space<vmem>>, %arg25: memref<2x1x64xf32, #tpu.memory_space<vmem>>, %arg26: memref<2x1x64xf32, #tpu.memory_space<vmem>>, %arg27: memref<2x8x64xf32, #tpu.memory_space<vmem>>) attributes {dimension_semantics = [], scalar_prefetch = 0 : i64, scratch_operands = 0 : i64, tpu.core_type = #tpu.core_type<tc>} {
    %c0 = arith.constant 0 : index
    %c0_0 = arith.constant 0 : index
    %c0_1 = arith.constant 0 : index
    %0 = vector.load %arg0[%c0, %c0_0, %c0_1] : memref<2x8x64xf32, #tpu.memory_space<vmem>>, vector<2x8x64xf32>
    %1 = vector.shape_cast %0 : vector<2x8x64xf32> to vector<16x64xf32>
    %c0_2 = arith.constant 0 : index
    %c0_3 = arith.constant 0 : index
    %c0_4 = arith.constant 0 : index
    %2 = vector.load %arg1[%c0_2, %c0_3, %c0_4] : memref<2x8x64xf32, #tpu.memory_space<vmem>>, vector<2x8x64xf32>
    %3 = vector.shape_cast %2 : vector<2x8x64xf32> to vector<16x64xf32>
    %c0_5 = arith.constant 0 : index
    %c0_6 = arith.constant 0 : index
    %c0_7 = arith.constant 0 : index
    %4 = vector.load %arg2[%c0_5, %c0_6, %c0_7] : memref<3x64x192xbf16, #tpu.memory_space<vmem>>, vector<1x64x192xbf16>
    %5 = vector.shape_cast %4 : vector<1x64x192xbf16> to vector<64x192xbf16>
    %6 = arith.truncf %1 : vector<16x64xf32> to vector<16x64xbf16>
    %cst = arith.constant dense<0.000000e+00> : vector<16x192xf32>
    %7 = tpu.matmul %6, %5, %cst {dimension_numbers = #tpu.dot_dimension_numbers<[1], [0], [0], [1], [0, 0, 1, 1], [], []>} : vector<16x64xbf16>, vector<64x192xbf16>, vector<16x192xf32> -> vector<16x192xf32>
    %8 = vector.extract_strided_slice %7 {offsets = [0, 0], sizes = [16, 64], strides = [1, 1]} : vector<16x192xf32> to vector<16x64xf32>
    %9 = vector.extract_strided_slice %7 {offsets = [0, 64], sizes = [16, 64], strides = [1, 1]} : vector<16x192xf32> to vector<16x64xf32>
    %10 = vector.extract_strided_slice %7 {offsets = [0, 128], sizes = [16, 64], strides = [1, 1]} : vector<16x192xf32> to vector<16x64xf32>
    %11 = vector.shape_cast %8 : vector<16x64xf32> to vector<2x8x64xf32>
    %12 = vector.shape_cast %9 : vector<16x64xf32> to vector<2x8x64xf32>
    %13 = vector.shape_cast %10 : vector<16x64xf32> to vector<2x8x64xf32>
    "tpu.trace_start"() <{level = 10 : i32, message = "bqd,bkd->bqk"}> : () -> ()
    %cst_8 = arith.constant dense<0.000000e+00> : vector<2x8x8xf32>
    %14 = tpu.matmul %11, %12, %cst_8 {dimension_numbers = #tpu.dot_dimension_numbers<[2], [2], [1], [1], [0, 0, 0, 1, 1, 1], [0], [0]>} : vector<2x8x64xf32>, vector<2x8x64xf32>, vector<2x8x8xf32> -> vector<2x8x8xf32>
    "tpu.trace_stop"() : () -> ()
    %cst_9 = arith.constant dense<0xFF800000> : vector<2x8xf32>
    %15 = vector.multi_reduction <maximumf>, %14, %cst_9 [2] : vector<2x8x8xf32> to vector<2x8xf32>
    %16 = vector.shape_cast %15 : vector<2x8xf32> to vector<2x8x1xf32>
    %17 = vector.broadcast %16 : vector<2x8x1xf32> to vector<2x8x8xf32>
    %18 = arith.subf %14, %17 : vector<2x8x8xf32>
    %19 = math.exp %18 : vector<2x8x8xf32>
    %cst_10 = arith.constant dense<0.000000e+00> : vector<2x8xf32>
    %20 = vector.multi_reduction <add>, %19, %cst_10 [2] : vector<2x8x8xf32> to vector<2x8xf32>
    %21 = vector.shape_cast %20 : vector<2x8xf32> to vector<2x8x1xf32>
    %22 = tpu.reciprocal %21 {approx = true} : vector<2x8x1xf32> -> vector<2x8x1xf32>
    %23 = vector.broadcast %22 : vector<2x8x1xf32> to vector<2x8x8xf32>
    %24 = arith.mulf %19, %23 : vector<2x8x8xf32>
    "tpu.trace_start"() <{level = 10 : i32, message = "bqk,bkd->bqd"}> : () -> ()
    %cst_11 = arith.constant dense<0.000000e+00> : vector<2x8x64xf32>
    %25 = tpu.matmul %24, %13, %cst_11 {dimension_numbers = #tpu.dot_dimension_numbers<[2], [1], [1], [2], [0, 0, 0, 1, 1, 2], [0], [0]>} : vector<2x8x8xf32>, vector<2x8x64xf32>, vector<2x8x64xf32> -> vector<2x8x64xf32>
    "tpu.trace_stop"() : () -> ()
    %26 = vector.shape_cast %25 : vector<2x8x64xf32> to vector<16x64xf32>
    %c0_12 = arith.constant 0 : index
    %c0_13 = arith.constant 0 : index
    %c0_14 = arith.constant 0 : index
    %27 = vector.load %arg3[%c0_12, %c0_13, %c0_14] : memref<3x64x64xbf16, #tpu.memory_space<vmem>>, vector<1x64x64xbf16>
    %28 = vector.shape_cast %27 : vector<1x64x64xbf16> to vector<64x64xbf16>
    %29 = arith.truncf %26 : vector<16x64xf32> to vector<16x64xbf16>
    %cst_15 = arith.constant dense<0.000000e+00> : vector<16x64xf32>
    %30 = tpu.matmul %29, %28, %cst_15 {dimension_numbers = #tpu.dot_dimension_numbers<[1], [0], [0], [1], [0, 0, 1, 1], [], []>} : vector<16x64xbf16>, vector<64x64xbf16>, vector<16x64xf32> -> vector<16x64xf32>
    %31 = arith.addf %1, %30 : vector<16x64xf32>
    %c0_16 = arith.constant 0 : index
    %c0_17 = arith.constant 0 : index
    %c0_18 = arith.constant 0 : index
    %32 = vector.load %arg4[%c0_16, %c0_17, %c0_18] : memref<3x1x64xf32, #tpu.memory_space<vmem>>, vector<1x1x64xf32>
    %33 = vector.shape_cast %32 : vector<1x1x64xf32> to vector<1x64xf32>
    %c0_19 = arith.constant 0 : index
    %c0_20 = arith.constant 0 : index
    %c0_21 = arith.constant 0 : index
    %34 = vector.load %arg5[%c0_19, %c0_20, %c0_21] : memref<3x1x64xf32, #tpu.memory_space<vmem>>, vector<1x1x64xf32>
    %35 = vector.shape_cast %34 : vector<1x1x64xf32> to vector<1x64xf32>
    %cst_22 = arith.constant dense<0.000000e+00> : vector<16xf32>
    %36 = vector.multi_reduction <add>, %31, %cst_22 [1] : vector<16x64xf32> to vector<16xf32>
    %37 = vector.shape_cast %36 : vector<16xf32> to vector<16x1xf32>
    %cst_23 = arith.constant 6.400000e+01 : f32
    %38 = vector.broadcast %cst_23 : f32 to vector<16x1xf32>
    %39 = arith.divf %37, %38 : vector<16x1xf32>
    %40 = vector.broadcast %39 : vector<16x1xf32> to vector<16x64xf32>
    %41 = arith.subf %31, %40 : vector<16x64xf32>
    %42 = arith.mulf %41, %41 : vector<16x64xf32>
    %cst_24 = arith.constant dense<0.000000e+00> : vector<16xf32>
    %43 = vector.multi_reduction <add>, %42, %cst_24 [1] : vector<16x64xf32> to vector<16xf32>
    %44 = vector.shape_cast %43 : vector<16xf32> to vector<16x1xf32>
    %cst_25 = arith.constant 6.400000e+01 : f32
    %45 = vector.broadcast %cst_25 : f32 to vector<16x1xf32>
    %46 = arith.divf %44, %45 : vector<16x1xf32>
    %cst_26 = arith.constant 9.99999974E-6 : f32
    %47 = vector.broadcast %cst_26 : f32 to vector<16x1xf32>
    %48 = arith.addf %46, %47 : vector<16x1xf32>
    %49 = math.rsqrt %48 : vector<16x1xf32>
    %50 = vector.broadcast %49 : vector<16x1xf32> to vector<16x64xf32>
    %51 = arith.mulf %41, %50 : vector<16x64xf32>
    %52 = vector.broadcast %33 : vector<1x64xf32> to vector<16x64xf32>
    %53 = arith.mulf %51, %52 : vector<16x64xf32>
    %54 = vector.broadcast %35 : vector<1x64xf32> to vector<16x64xf32>
    %55 = arith.addf %53, %54 : vector<16x64xf32>
    %c0_27 = arith.constant 0 : index
    %c0_28 = arith.constant 0 : index
    %c0_29 = arith.constant 0 : index
    %56 = vector.load %arg6[%c0_27, %c0_28, %c0_29] : memref<3x64x128xbf16, #tpu.memory_space<vmem>>, vector<1x64x128xbf16>
    %57 = vector.shape_cast %56 : vector<1x64x128xbf16> to vector<64x128xbf16>
    %c0_30 = arith.constant 0 : index
    %c0_31 = arith.constant 0 : index
    %c0_32 = arith.constant 0 : index
    %58 = vector.load %arg7[%c0_30, %c0_31, %c0_32] : memref<3x1x128xf32, #tpu.memory_space<vmem>>, vector<1x1x128xf32>
    %59 = vector.shape_cast %58 : vector<1x1x128xf32> to vector<1x128xf32>
    %c0_33 = arith.constant 0 : index
    %c0_34 = arith.constant 0 : index
    %c0_35 = arith.constant 0 : index
    %60 = vector.load %arg8[%c0_33, %c0_34, %c0_35] : memref<3x128x64xbf16, #tpu.memory_space<vmem>>, vector<1x128x64xbf16>
    %61 = vector.shape_cast %60 : vector<1x128x64xbf16> to vector<128x64xbf16>
    %c0_36 = arith.constant 0 : index
    %c0_37 = arith.constant 0 : index
    %c0_38 = arith.constant 0 : index
    %62 = vector.load %arg9[%c0_36, %c0_37, %c0_38] : memref<3x1x64xf32, #tpu.memory_space<vmem>>, vector<1x1x64xf32>
    %63 = vector.shape_cast %62 : vector<1x1x64xf32> to vector<1x64xf32>
    %64 = arith.truncf %55 : vector<16x64xf32> to vector<16x64xbf16>
    %cst_39 = arith.constant dense<0.000000e+00> : vector<16x128xf32>
    %65 = tpu.matmul %64, %57, %cst_39 {dimension_numbers = #tpu.dot_dimension_numbers<[1], [0], [0], [1], [0, 0, 1, 1], [], []>} : vector<16x64xbf16>, vector<64x128xbf16>, vector<16x128xf32> -> vector<16x128xf32>
    %66 = vector.broadcast %59 : vector<1x128xf32> to vector<16x128xf32>
    %67 = arith.addf %65, %66 : vector<16x128xf32>
    %cst_40 = arith.constant 0.000000e+00 : f32
    %68 = vector.broadcast %cst_40 : f32 to vector<16x128xf32>
    %69 = arith.maximumf %67, %68 : vector<16x128xf32>
    %70 = arith.truncf %69 : vector<16x128xf32> to vector<16x128xbf16>
    %cst_41 = arith.constant dense<0.000000e+00> : vector<16x64xf32>
    %71 = tpu.matmul %70, %61, %cst_41 {dimension_numbers = #tpu.dot_dimension_numbers<[1], [0], [0], [1], [0, 0, 1, 1], [], []>} : vector<16x128xbf16>, vector<128x64xbf16>, vector<16x64xf32> -> vector<16x64xf32>
    %72 = vector.broadcast %63 : vector<1x64xf32> to vector<16x64xf32>
    %73 = arith.addf %71, %72 : vector<16x64xf32>
    %74 = arith.addf %55, %73 : vector<16x64xf32>
    %c0_42 = arith.constant 0 : index
    %c0_43 = arith.constant 0 : index
    %c0_44 = arith.constant 0 : index
    %75 = vector.load %arg10[%c0_42, %c0_43, %c0_44] : memref<3x1x64xf32, #tpu.memory_space<vmem>>, vector<1x1x64xf32>
    %76 = vector.shape_cast %75 : vector<1x1x64xf32> to vector<1x64xf32>
    %c0_45 = arith.constant 0 : index
    %c0_46 = arith.constant 0 : index
    %c0_47 = arith.constant 0 : index
    %77 = vector.load %arg11[%c0_45, %c0_46, %c0_47] : memref<3x1x64xf32, #tpu.memory_space<vmem>>, vector<1x1x64xf32>
    %78 = vector.shape_cast %77 : vector<1x1x64xf32> to vector<1x64xf32>
    %cst_48 = arith.constant dense<0.000000e+00> : vector<16xf32>
    %79 = vector.multi_reduction <add>, %74, %cst_48 [1] : vector<16x64xf32> to vector<16xf32>
    %80 = vector.shape_cast %79 : vector<16xf32> to vector<16x1xf32>
    %cst_49 = arith.constant 6.400000e+01 : f32
    %81 = vector.broadcast %cst_49 : f32 to vector<16x1xf32>
    %82 = arith.divf %80, %81 : vector<16x1xf32>
    %83 = vector.broadcast %82 : vector<16x1xf32> to vector<16x64xf32>
    %84 = arith.subf %74, %83 : vector<16x64xf32>
    %85 = arith.mulf %84, %84 : vector<16x64xf32>
    %cst_50 = arith.constant dense<0.000000e+00> : vector<16xf32>
    %86 = vector.multi_reduction <add>, %85, %cst_50 [1] : vector<16x64xf32> to vector<16xf32>
    %87 = vector.shape_cast %86 : vector<16xf32> to vector<16x1xf32>
    %cst_51 = arith.constant 6.400000e+01 : f32
    %88 = vector.broadcast %cst_51 : f32 to vector<16x1xf32>
    %89 = arith.divf %87, %88 : vector<16x1xf32>
    %cst_52 = arith.constant 9.99999974E-6 : f32
    %90 = vector.broadcast %cst_52 : f32 to vector<16x1xf32>
    %91 = arith.addf %89, %90 : vector<16x1xf32>
    %92 = math.rsqrt %91 : vector<16x1xf32>
    %93 = vector.broadcast %92 : vector<16x1xf32> to vector<16x64xf32>
    %94 = arith.mulf %84, %93 : vector<16x64xf32>
    %95 = vector.broadcast %76 : vector<1x64xf32> to vector<16x64xf32>
    %96 = arith.mulf %94, %95 : vector<16x64xf32>
    %97 = vector.broadcast %78 : vector<1x64xf32> to vector<16x64xf32>
    %98 = arith.addf %96, %97 : vector<16x64xf32>
    %c1 = arith.constant 1 : index
    %c0_53 = arith.constant 0 : index
    %c0_54 = arith.constant 0 : index
    %99 = vector.load %arg2[%c1, %c0_53, %c0_54] : memref<3x64x192xbf16, #tpu.memory_space<vmem>>, vector<1x64x192xbf16>
    %100 = vector.shape_cast %99 : vector<1x64x192xbf16> to vector<64x192xbf16>
    %101 = arith.truncf %98 : vector<16x64xf32> to vector<16x64xbf16>
    %cst_55 = arith.constant dense<0.000000e+00> : vector<16x192xf32>
    %102 = tpu.matmul %101, %100, %cst_55 {dimension_numbers = #tpu.dot_dimension_numbers<[1], [0], [0], [1], [0, 0, 1, 1], [], []>} : vector<16x64xbf16>, vector<64x192xbf16>, vector<16x192xf32> -> vector<16x192xf32>
    %103 = vector.extract_strided_slice %102 {offsets = [0, 0], sizes = [16, 64], strides = [1, 1]} : vector<16x192xf32> to vector<16x64xf32>
    %104 = vector.extract_strided_slice %102 {offsets = [0, 64], sizes = [16, 64], strides = [1, 1]} : vector<16x192xf32> to vector<16x64xf32>
    %105 = vector.extract_strided_slice %102 {offsets = [0, 128], sizes = [16, 64], strides = [1, 1]} : vector<16x192xf32> to vector<16x64xf32>
    %106 = vector.shape_cast %103 : vector<16x64xf32> to vector<2x8x64xf32>
    %107 = vector.shape_cast %104 : vector<16x64xf32> to vector<2x8x64xf32>
    %108 = vector.shape_cast %105 : vector<16x64xf32> to vector<2x8x64xf32>
    "tpu.trace_start"() <{level = 10 : i32, message = "bqd,bkd->bqk"}> : () -> ()
    %cst_56 = arith.constant dense<0.000000e+00> : vector<2x8x8xf32>
    %109 = tpu.matmul %106, %107, %cst_56 {dimension_numbers = #tpu.dot_dimension_numbers<[2], [2], [1], [1], [0, 0, 0, 1, 1, 1], [0], [0]>} : vector<2x8x64xf32>, vector<2x8x64xf32>, vector<2x8x8xf32> -> vector<2x8x8xf32>
    "tpu.trace_stop"() : () -> ()
    %cst_57 = arith.constant dense<0xFF800000> : vector<2x8xf32>
    %110 = vector.multi_reduction <maximumf>, %109, %cst_57 [2] : vector<2x8x8xf32> to vector<2x8xf32>
    %111 = vector.shape_cast %110 : vector<2x8xf32> to vector<2x8x1xf32>
    %112 = vector.broadcast %111 : vector<2x8x1xf32> to vector<2x8x8xf32>
    %113 = arith.subf %109, %112 : vector<2x8x8xf32>
    %114 = math.exp %113 : vector<2x8x8xf32>
    %cst_58 = arith.constant dense<0.000000e+00> : vector<2x8xf32>
    %115 = vector.multi_reduction <add>, %114, %cst_58 [2] : vector<2x8x8xf32> to vector<2x8xf32>
    %116 = vector.shape_cast %115 : vector<2x8xf32> to vector<2x8x1xf32>
    %117 = tpu.reciprocal %116 {approx = true} : vector<2x8x1xf32> -> vector<2x8x1xf32>
    %118 = vector.broadcast %117 : vector<2x8x1xf32> to vector<2x8x8xf32>
    %119 = arith.mulf %114, %118 : vector<2x8x8xf32>
    "tpu.trace_start"() <{level = 10 : i32, message = "bqk,bkd->bqd"}> : () -> ()
    %cst_59 = arith.constant dense<0.000000e+00> : vector<2x8x64xf32>
    %120 = tpu.matmul %119, %108, %cst_59 {dimension_numbers = #tpu.dot_dimension_numbers<[2], [1], [1], [2], [0, 0, 0, 1, 1, 2], [0], [0]>} : vector<2x8x8xf32>, vector<2x8x64xf32>, vector<2x8x64xf32> -> vector<2x8x64xf32>
    "tpu.trace_stop"() : () -> ()
    %121 = vector.shape_cast %120 : vector<2x8x64xf32> to vector<16x64xf32>
    %c1_60 = arith.constant 1 : index
    %c0_61 = arith.constant 0 : index
    %c0_62 = arith.constant 0 : index
    %122 = vector.load %arg3[%c1_60, %c0_61, %c0_62] : memref<3x64x64xbf16, #tpu.memory_space<vmem>>, vector<1x64x64xbf16>
    %123 = vector.shape_cast %122 : vector<1x64x64xbf16> to vector<64x64xbf16>
    %124 = arith.truncf %121 : vector<16x64xf32> to vector<16x64xbf16>
    %cst_63 = arith.constant dense<0.000000e+00> : vector<16x64xf32>
    %125 = tpu.matmul %124, %123, %cst_63 {dimension_numbers = #tpu.dot_dimension_numbers<[1], [0], [0], [1], [0, 0, 1, 1], [], []>} : vector<16x64xbf16>, vector<64x64xbf16>, vector<16x64xf32> -> vector<16x64xf32>
    %126 = arith.addf %98, %125 : vector<16x64xf32>
    %c1_64 = arith.constant 1 : index
    %c0_65 = arith.constant 0 : index
    %c0_66 = arith.constant 0 : index
    %127 = vector.load %arg4[%c1_64, %c0_65, %c0_66] : memref<3x1x64xf32, #tpu.memory_space<vmem>>, vector<1x1x64xf32>
    %128 = vector.shape_cast %127 : vector<1x1x64xf32> to vector<1x64xf32>
    %c1_67 = arith.constant 1 : index
    %c0_68 = arith.constant 0 : index
    %c0_69 = arith.constant 0 : index
    %129 = vector.load %arg5[%c1_67, %c0_68, %c0_69] : memref<3x1x64xf32, #tpu.memory_space<vmem>>, vector<1x1x64xf32>
    %130 = vector.shape_cast %129 : vector<1x1x64xf32> to vector<1x64xf32>
    %cst_70 = arith.constant dense<0.000000e+00> : vector<16xf32>
    %131 = vector.multi_reduction <add>, %126, %cst_70 [1] : vector<16x64xf32> to vector<16xf32>
    %132 = vector.shape_cast %131 : vector<16xf32> to vector<16x1xf32>
    %cst_71 = arith.constant 6.400000e+01 : f32
    %133 = vector.broadcast %cst_71 : f32 to vector<16x1xf32>
    %134 = arith.divf %132, %133 : vector<16x1xf32>
    %135 = vector.broadcast %134 : vector<16x1xf32> to vector<16x64xf32>
    %136 = arith.subf %126, %135 : vector<16x64xf32>
    %137 = arith.mulf %136, %136 : vector<16x64xf32>
    %cst_72 = arith.constant dense<0.000000e+00> : vector<16xf32>
    %138 = vector.multi_reduction <add>, %137, %cst_72 [1] : vector<16x64xf32> to vector<16xf32>
    %139 = vector.shape_cast %138 : vector<16xf32> to vector<16x1xf32>
    %cst_73 = arith.constant 6.400000e+01 : f32
    %140 = vector.broadcast %cst_73 : f32 to vector<16x1xf32>
    %141 = arith.divf %139, %140 : vector<16x1xf32>
    %cst_74 = arith.constant 9.99999974E-6 : f32
    %142 = vector.broadcast %cst_74 : f32 to vector<16x1xf32>
    %143 = arith.addf %141, %142 : vector<16x1xf32>
    %144 = math.rsqrt %143 : vector<16x1xf32>
    %145 = vector.broadcast %144 : vector<16x1xf32> to vector<16x64xf32>
    %146 = arith.mulf %136, %145 : vector<16x64xf32>
    %147 = vector.broadcast %128 : vector<1x64xf32> to vector<16x64xf32>
    %148 = arith.mulf %146, %147 : vector<16x64xf32>
    %149 = vector.broadcast %130 : vector<1x64xf32> to vector<16x64xf32>
    %150 = arith.addf %148, %149 : vector<16x64xf32>
    %c1_75 = arith.constant 1 : index
    %c0_76 = arith.constant 0 : index
    %c0_77 = arith.constant 0 : index
    %151 = vector.load %arg6[%c1_75, %c0_76, %c0_77] : memref<3x64x128xbf16, #tpu.memory_space<vmem>>, vector<1x64x128xbf16>
    %152 = vector.shape_cast %151 : vector<1x64x128xbf16> to vector<64x128xbf16>
    %c1_78 = arith.constant 1 : index
    %c0_79 = arith.constant 0 : index
    %c0_80 = arith.constant 0 : index
    %153 = vector.load %arg7[%c1_78, %c0_79, %c0_80] : memref<3x1x128xf32, #tpu.memory_space<vmem>>, vector<1x1x128xf32>
    %154 = vector.shape_cast %153 : vector<1x1x128xf32> to vector<1x128xf32>
    %c1_81 = arith.constant 1 : index
    %c0_82 = arith.constant 0 : index
    %c0_83 = arith.constant 0 : index
    %155 = vector.load %arg8[%c1_81, %c0_82, %c0_83] : memref<3x128x64xbf16, #tpu.memory_space<vmem>>, vector<1x128x64xbf16>
    %156 = vector.shape_cast %155 : vector<1x128x64xbf16> to vector<128x64xbf16>
    %c1_84 = arith.constant 1 : index
    %c0_85 = arith.constant 0 : index
    %c0_86 = arith.constant 0 : index
    %157 = vector.load %arg9[%c1_84, %c0_85, %c0_86] : memref<3x1x64xf32, #tpu.memory_space<vmem>>, vector<1x1x64xf32>
    %158 = vector.shape_cast %157 : vector<1x1x64xf32> to vector<1x64xf32>
    %159 = arith.truncf %150 : vector<16x64xf32> to vector<16x64xbf16>
    %cst_87 = arith.constant dense<0.000000e+00> : vector<16x128xf32>
    %160 = tpu.matmul %159, %152, %cst_87 {dimension_numbers = #tpu.dot_dimension_numbers<[1], [0], [0], [1], [0, 0, 1, 1], [], []>} : vector<16x64xbf16>, vector<64x128xbf16>, vector<16x128xf32> -> vector<16x128xf32>
    %161 = vector.broadcast %154 : vector<1x128xf32> to vector<16x128xf32>
    %162 = arith.addf %160, %161 : vector<16x128xf32>
    %cst_88 = arith.constant 0.000000e+00 : f32
    %163 = vector.broadcast %cst_88 : f32 to vector<16x128xf32>
    %164 = arith.maximumf %162, %163 : vector<16x128xf32>
    %165 = arith.truncf %164 : vector<16x128xf32> to vector<16x128xbf16>
    %cst_89 = arith.constant dense<0.000000e+00> : vector<16x64xf32>
    %166 = tpu.matmul %165, %156, %cst_89 {dimension_numbers = #tpu.dot_dimension_numbers<[1], [0], [0], [1], [0, 0, 1, 1], [], []>} : vector<16x128xbf16>, vector<128x64xbf16>, vector<16x64xf32> -> vector<16x64xf32>
    %167 = vector.broadcast %158 : vector<1x64xf32> to vector<16x64xf32>
    %168 = arith.addf %166, %167 : vector<16x64xf32>
    %169 = arith.addf %150, %168 : vector<16x64xf32>
    %c1_90 = arith.constant 1 : index
    %c0_91 = arith.constant 0 : index
    %c0_92 = arith.constant 0 : index
    %170 = vector.load %arg10[%c1_90, %c0_91, %c0_92] : memref<3x1x64xf32, #tpu.memory_space<vmem>>, vector<1x1x64xf32>
    %171 = vector.shape_cast %170 : vector<1x1x64xf32> to vector<1x64xf32>
    %c1_93 = arith.constant 1 : index
    %c0_94 = arith.constant 0 : index
    %c0_95 = arith.constant 0 : index
    %172 = vector.load %arg11[%c1_93, %c0_94, %c0_95] : memref<3x1x64xf32, #tpu.memory_space<vmem>>, vector<1x1x64xf32>
    %173 = vector.shape_cast %172 : vector<1x1x64xf32> to vector<1x64xf32>
    %cst_96 = arith.constant dense<0.000000e+00> : vector<16xf32>
    %174 = vector.multi_reduction <add>, %169, %cst_96 [1] : vector<16x64xf32> to vector<16xf32>
    %175 = vector.shape_cast %174 : vector<16xf32> to vector<16x1xf32>
    %cst_97 = arith.constant 6.400000e+01 : f32
    %176 = vector.broadcast %cst_97 : f32 to vector<16x1xf32>
    %177 = arith.divf %175, %176 : vector<16x1xf32>
    %178 = vector.broadcast %177 : vector<16x1xf32> to vector<16x64xf32>
    %179 = arith.subf %169, %178 : vector<16x64xf32>
    %180 = arith.mulf %179, %179 : vector<16x64xf32>
    %cst_98 = arith.constant dense<0.000000e+00> : vector<16xf32>
    %181 = vector.multi_reduction <add>, %180, %cst_98 [1] : vector<16x64xf32> to vector<16xf32>
    %182 = vector.shape_cast %181 : vector<16xf32> to vector<16x1xf32>
    %cst_99 = arith.constant 6.400000e+01 : f32
    %183 = vector.broadcast %cst_99 : f32 to vector<16x1xf32>
    %184 = arith.divf %182, %183 : vector<16x1xf32>
    %cst_100 = arith.constant 9.99999974E-6 : f32
    %185 = vector.broadcast %cst_100 : f32 to vector<16x1xf32>
    %186 = arith.addf %184, %185 : vector<16x1xf32>
    %187 = math.rsqrt %186 : vector<16x1xf32>
    %188 = vector.broadcast %187 : vector<16x1xf32> to vector<16x64xf32>
    %189 = arith.mulf %179, %188 : vector<16x64xf32>
    %190 = vector.broadcast %171 : vector<1x64xf32> to vector<16x64xf32>
    %191 = arith.mulf %189, %190 : vector<16x64xf32>
    %192 = vector.broadcast %173 : vector<1x64xf32> to vector<16x64xf32>
    %193 = arith.addf %191, %192 : vector<16x64xf32>
    %c2 = arith.constant 2 : index
    %c0_101 = arith.constant 0 : index
    %c0_102 = arith.constant 0 : index
    %194 = vector.load %arg2[%c2, %c0_101, %c0_102] : memref<3x64x192xbf16, #tpu.memory_space<vmem>>, vector<1x64x192xbf16>
    %195 = vector.shape_cast %194 : vector<1x64x192xbf16> to vector<64x192xbf16>
    %196 = arith.truncf %193 : vector<16x64xf32> to vector<16x64xbf16>
    %cst_103 = arith.constant dense<0.000000e+00> : vector<16x192xf32>
    %197 = tpu.matmul %196, %195, %cst_103 {dimension_numbers = #tpu.dot_dimension_numbers<[1], [0], [0], [1], [0, 0, 1, 1], [], []>} : vector<16x64xbf16>, vector<64x192xbf16>, vector<16x192xf32> -> vector<16x192xf32>
    %198 = vector.extract_strided_slice %197 {offsets = [0, 0], sizes = [16, 64], strides = [1, 1]} : vector<16x192xf32> to vector<16x64xf32>
    %199 = vector.extract_strided_slice %197 {offsets = [0, 64], sizes = [16, 64], strides = [1, 1]} : vector<16x192xf32> to vector<16x64xf32>
    %200 = vector.extract_strided_slice %197 {offsets = [0, 128], sizes = [16, 64], strides = [1, 1]} : vector<16x192xf32> to vector<16x64xf32>
    %201 = vector.shape_cast %198 : vector<16x64xf32> to vector<2x8x64xf32>
    %202 = vector.shape_cast %199 : vector<16x64xf32> to vector<2x8x64xf32>
    %203 = vector.shape_cast %200 : vector<16x64xf32> to vector<2x8x64xf32>
    "tpu.trace_start"() <{level = 10 : i32, message = "bqd,bkd->bqk"}> : () -> ()
    %cst_104 = arith.constant dense<0.000000e+00> : vector<2x8x8xf32>
    %204 = tpu.matmul %201, %202, %cst_104 {dimension_numbers = #tpu.dot_dimension_numbers<[2], [2], [1], [1], [0, 0, 0, 1, 1, 1], [0], [0]>} : vector<2x8x64xf32>, vector<2x8x64xf32>, vector<2x8x8xf32> -> vector<2x8x8xf32>
    "tpu.trace_stop"() : () -> ()
    %cst_105 = arith.constant dense<0xFF800000> : vector<2x8xf32>
    %205 = vector.multi_reduction <maximumf>, %204, %cst_105 [2] : vector<2x8x8xf32> to vector<2x8xf32>
    %206 = vector.shape_cast %205 : vector<2x8xf32> to vector<2x8x1xf32>
    %207 = vector.broadcast %206 : vector<2x8x1xf32> to vector<2x8x8xf32>
    %208 = arith.subf %204, %207 : vector<2x8x8xf32>
    %209 = math.exp %208 : vector<2x8x8xf32>
    %cst_106 = arith.constant dense<0.000000e+00> : vector<2x8xf32>
    %210 = vector.multi_reduction <add>, %209, %cst_106 [2] : vector<2x8x8xf32> to vector<2x8xf32>
    %211 = vector.shape_cast %210 : vector<2x8xf32> to vector<2x8x1xf32>
    %212 = tpu.reciprocal %211 {approx = true} : vector<2x8x1xf32> -> vector<2x8x1xf32>
    %213 = vector.broadcast %212 : vector<2x8x1xf32> to vector<2x8x8xf32>
    %214 = arith.mulf %209, %213 : vector<2x8x8xf32>
    "tpu.trace_start"() <{level = 10 : i32, message = "bqk,bkd->bqd"}> : () -> ()
    %cst_107 = arith.constant dense<0.000000e+00> : vector<2x8x64xf32>
    %215 = tpu.matmul %214, %203, %cst_107 {dimension_numbers = #tpu.dot_dimension_numbers<[2], [1], [1], [2], [0, 0, 0, 1, 1, 2], [0], [0]>} : vector<2x8x8xf32>, vector<2x8x64xf32>, vector<2x8x64xf32> -> vector<2x8x64xf32>
    "tpu.trace_stop"() : () -> ()
    %216 = vector.shape_cast %215 : vector<2x8x64xf32> to vector<16x64xf32>
    %c2_108 = arith.constant 2 : index
    %c0_109 = arith.constant 0 : index
    %c0_110 = arith.constant 0 : index
    %217 = vector.load %arg3[%c2_108, %c0_109, %c0_110] : memref<3x64x64xbf16, #tpu.memory_space<vmem>>, vector<1x64x64xbf16>
    %218 = vector.shape_cast %217 : vector<1x64x64xbf16> to vector<64x64xbf16>
    %219 = arith.truncf %216 : vector<16x64xf32> to vector<16x64xbf16>
    %cst_111 = arith.constant dense<0.000000e+00> : vector<16x64xf32>
    %220 = tpu.matmul %219, %218, %cst_111 {dimension_numbers = #tpu.dot_dimension_numbers<[1], [0], [0], [1], [0, 0, 1, 1], [], []>} : vector<16x64xbf16>, vector<64x64xbf16>, vector<16x64xf32> -> vector<16x64xf32>
    %221 = arith.addf %193, %220 : vector<16x64xf32>
    %c2_112 = arith.constant 2 : index
    %c0_113 = arith.constant 0 : index
    %c0_114 = arith.constant 0 : index
    %222 = vector.load %arg4[%c2_112, %c0_113, %c0_114] : memref<3x1x64xf32, #tpu.memory_space<vmem>>, vector<1x1x64xf32>
    %223 = vector.shape_cast %222 : vector<1x1x64xf32> to vector<1x64xf32>
    %c2_115 = arith.constant 2 : index
    %c0_116 = arith.constant 0 : index
    %c0_117 = arith.constant 0 : index
    %224 = vector.load %arg5[%c2_115, %c0_116, %c0_117] : memref<3x1x64xf32, #tpu.memory_space<vmem>>, vector<1x1x64xf32>
    %225 = vector.shape_cast %224 : vector<1x1x64xf32> to vector<1x64xf32>
    %cst_118 = arith.constant dense<0.000000e+00> : vector<16xf32>
    %226 = vector.multi_reduction <add>, %221, %cst_118 [1] : vector<16x64xf32> to vector<16xf32>
    %227 = vector.shape_cast %226 : vector<16xf32> to vector<16x1xf32>
    %cst_119 = arith.constant 6.400000e+01 : f32
    %228 = vector.broadcast %cst_119 : f32 to vector<16x1xf32>
    %229 = arith.divf %227, %228 : vector<16x1xf32>
    %230 = vector.broadcast %229 : vector<16x1xf32> to vector<16x64xf32>
    %231 = arith.subf %221, %230 : vector<16x64xf32>
    %232 = arith.mulf %231, %231 : vector<16x64xf32>
    %cst_120 = arith.constant dense<0.000000e+00> : vector<16xf32>
    %233 = vector.multi_reduction <add>, %232, %cst_120 [1] : vector<16x64xf32> to vector<16xf32>
    %234 = vector.shape_cast %233 : vector<16xf32> to vector<16x1xf32>
    %cst_121 = arith.constant 6.400000e+01 : f32
    %235 = vector.broadcast %cst_121 : f32 to vector<16x1xf32>
    %236 = arith.divf %234, %235 : vector<16x1xf32>
    %cst_122 = arith.constant 9.99999974E-6 : f32
    %237 = vector.broadcast %cst_122 : f32 to vector<16x1xf32>
    %238 = arith.addf %236, %237 : vector<16x1xf32>
    %239 = math.rsqrt %238 : vector<16x1xf32>
    %240 = vector.broadcast %239 : vector<16x1xf32> to vector<16x64xf32>
    %241 = arith.mulf %231, %240 : vector<16x64xf32>
    %242 = vector.broadcast %223 : vector<1x64xf32> to vector<16x64xf32>
    %243 = arith.mulf %241, %242 : vector<16x64xf32>
    %244 = vector.broadcast %225 : vector<1x64xf32> to vector<16x64xf32>
    %245 = arith.addf %243, %244 : vector<16x64xf32>
    %c2_123 = arith.constant 2 : index
    %c0_124 = arith.constant 0 : index
    %c0_125 = arith.constant 0 : index
    %246 = vector.load %arg6[%c2_123, %c0_124, %c0_125] : memref<3x64x128xbf16, #tpu.memory_space<vmem>>, vector<1x64x128xbf16>
    %247 = vector.shape_cast %246 : vector<1x64x128xbf16> to vector<64x128xbf16>
    %c2_126 = arith.constant 2 : index
    %c0_127 = arith.constant 0 : index
    %c0_128 = arith.constant 0 : index
    %248 = vector.load %arg7[%c2_126, %c0_127, %c0_128] : memref<3x1x128xf32, #tpu.memory_space<vmem>>, vector<1x1x128xf32>
    %249 = vector.shape_cast %248 : vector<1x1x128xf32> to vector<1x128xf32>
    %c2_129 = arith.constant 2 : index
    %c0_130 = arith.constant 0 : index
    %c0_131 = arith.constant 0 : index
    %250 = vector.load %arg8[%c2_129, %c0_130, %c0_131] : memref<3x128x64xbf16, #tpu.memory_space<vmem>>, vector<1x128x64xbf16>
    %251 = vector.shape_cast %250 : vector<1x128x64xbf16> to vector<128x64xbf16>
    %c2_132 = arith.constant 2 : index
    %c0_133 = arith.constant 0 : index
    %c0_134 = arith.constant 0 : index
    %252 = vector.load %arg9[%c2_132, %c0_133, %c0_134] : memref<3x1x64xf32, #tpu.memory_space<vmem>>, vector<1x1x64xf32>
    %253 = vector.shape_cast %252 : vector<1x1x64xf32> to vector<1x64xf32>
    %254 = arith.truncf %245 : vector<16x64xf32> to vector<16x64xbf16>
    %cst_135 = arith.constant dense<0.000000e+00> : vector<16x128xf32>
    %255 = tpu.matmul %254, %247, %cst_135 {dimension_numbers = #tpu.dot_dimension_numbers<[1], [0], [0], [1], [0, 0, 1, 1], [], []>} : vector<16x64xbf16>, vector<64x128xbf16>, vector<16x128xf32> -> vector<16x128xf32>
    %256 = vector.broadcast %249 : vector<1x128xf32> to vector<16x128xf32>
    %257 = arith.addf %255, %256 : vector<16x128xf32>
    %cst_136 = arith.constant 0.000000e+00 : f32
    %258 = vector.broadcast %cst_136 : f32 to vector<16x128xf32>
    %259 = arith.maximumf %257, %258 : vector<16x128xf32>
    %260 = arith.truncf %259 : vector<16x128xf32> to vector<16x128xbf16>
    %cst_137 = arith.constant dense<0.000000e+00> : vector<16x64xf32>
    %261 = tpu.matmul %260, %251, %cst_137 {dimension_numbers = #tpu.dot_dimension_numbers<[1], [0], [0], [1], [0, 0, 1, 1], [], []>} : vector<16x128xbf16>, vector<128x64xbf16>, vector<16x64xf32> -> vector<16x64xf32>
    %262 = vector.broadcast %253 : vector<1x64xf32> to vector<16x64xf32>
    %263 = arith.addf %261, %262 : vector<16x64xf32>
    %264 = arith.addf %245, %263 : vector<16x64xf32>
    %c2_138 = arith.constant 2 : index
    %c0_139 = arith.constant 0 : index
    %c0_140 = arith.constant 0 : index
    %265 = vector.load %arg10[%c2_138, %c0_139, %c0_140] : memref<3x1x64xf32, #tpu.memory_space<vmem>>, vector<1x1x64xf32>
    %266 = vector.shape_cast %265 : vector<1x1x64xf32> to vector<1x64xf32>
    %c2_141 = arith.constant 2 : index
    %c0_142 = arith.constant 0 : index
    %c0_143 = arith.constant 0 : index
    %267 = vector.load %arg11[%c2_141, %c0_142, %c0_143] : memref<3x1x64xf32, #tpu.memory_space<vmem>>, vector<1x1x64xf32>
    %268 = vector.shape_cast %267 : vector<1x1x64xf32> to vector<1x64xf32>
    %cst_144 = arith.constant dense<0.000000e+00> : vector<16xf32>
    %269 = vector.multi_reduction <add>, %264, %cst_144 [1] : vector<16x64xf32> to vector<16xf32>
    %270 = vector.shape_cast %269 : vector<16xf32> to vector<16x1xf32>
    %cst_145 = arith.constant 6.400000e+01 : f32
    %271 = vector.broadcast %cst_145 : f32 to vector<16x1xf32>
    %272 = arith.divf %270, %271 : vector<16x1xf32>
    %273 = vector.broadcast %272 : vector<16x1xf32> to vector<16x64xf32>
    %274 = arith.subf %264, %273 : vector<16x64xf32>
    %275 = arith.mulf %274, %274 : vector<16x64xf32>
    %cst_146 = arith.constant dense<0.000000e+00> : vector<16xf32>
    %276 = vector.multi_reduction <add>, %275, %cst_146 [1] : vector<16x64xf32> to vector<16xf32>
    %277 = vector.shape_cast %276 : vector<16xf32> to vector<16x1xf32>
    %cst_147 = arith.constant 6.400000e+01 : f32
    %278 = vector.broadcast %cst_147 : f32 to vector<16x1xf32>
    %279 = arith.divf %277, %278 : vector<16x1xf32>
    %cst_148 = arith.constant 9.99999974E-6 : f32
    %280 = vector.broadcast %cst_148 : f32 to vector<16x1xf32>
    %281 = arith.addf %279, %280 : vector<16x1xf32>
    %282 = math.rsqrt %281 : vector<16x1xf32>
    %283 = vector.broadcast %282 : vector<16x1xf32> to vector<16x64xf32>
    %284 = arith.mulf %274, %283 : vector<16x64xf32>
    %285 = vector.broadcast %266 : vector<1x64xf32> to vector<16x64xf32>
    %286 = arith.mulf %284, %285 : vector<16x64xf32>
    %287 = vector.broadcast %268 : vector<1x64xf32> to vector<16x64xf32>
    %288 = arith.addf %286, %287 : vector<16x64xf32>
    %c0_149 = arith.constant 0 : index
    %c0_150 = arith.constant 0 : index
    %c0_151 = arith.constant 0 : index
    %289 = vector.load %arg12[%c0_149, %c0_150, %c0_151] : memref<2x64x192xbf16, #tpu.memory_space<vmem>>, vector<1x64x192xbf16>
    %290 = vector.shape_cast %289 : vector<1x64x192xbf16> to vector<64x192xbf16>
    %291 = arith.truncf %3 : vector<16x64xf32> to vector<16x64xbf16>
    %cst_152 = arith.constant dense<0.000000e+00> : vector<16x192xf32>
    %292 = tpu.matmul %291, %290, %cst_152 {dimension_numbers = #tpu.dot_dimension_numbers<[1], [0], [0], [1], [0, 0, 1, 1], [], []>} : vector<16x64xbf16>, vector<64x192xbf16>, vector<16x192xf32> -> vector<16x192xf32>
    %293 = vector.extract_strided_slice %292 {offsets = [0, 0], sizes = [16, 64], strides = [1, 1]} : vector<16x192xf32> to vector<16x64xf32>
    %294 = vector.extract_strided_slice %292 {offsets = [0, 64], sizes = [16, 64], strides = [1, 1]} : vector<16x192xf32> to vector<16x64xf32>
    %295 = vector.extract_strided_slice %292 {offsets = [0, 128], sizes = [16, 64], strides = [1, 1]} : vector<16x192xf32> to vector<16x64xf32>
    %296 = vector.shape_cast %293 : vector<16x64xf32> to vector<2x8x64xf32>
    %297 = vector.shape_cast %294 : vector<16x64xf32> to vector<2x8x64xf32>
    %298 = vector.shape_cast %295 : vector<16x64xf32> to vector<2x8x64xf32>
    "tpu.trace_start"() <{level = 10 : i32, message = "bqd,bkd->bqk"}> : () -> ()
    %cst_153 = arith.constant dense<0.000000e+00> : vector<2x8x8xf32>
    %299 = tpu.matmul %296, %297, %cst_153 {dimension_numbers = #tpu.dot_dimension_numbers<[2], [2], [1], [1], [0, 0, 0, 1, 1, 1], [0], [0]>} : vector<2x8x64xf32>, vector<2x8x64xf32>, vector<2x8x8xf32> -> vector<2x8x8xf32>
    "tpu.trace_stop"() : () -> ()
    %cst_154 = arith.constant dense<0xFF800000> : vector<2x8xf32>
    %300 = vector.multi_reduction <maximumf>, %299, %cst_154 [2] : vector<2x8x8xf32> to vector<2x8xf32>
    %301 = vector.shape_cast %300 : vector<2x8xf32> to vector<2x8x1xf32>
    %302 = vector.broadcast %301 : vector<2x8x1xf32> to vector<2x8x8xf32>
    %303 = arith.subf %299, %302 : vector<2x8x8xf32>
    %304 = math.exp %303 : vector<2x8x8xf32>
    %cst_155 = arith.constant dense<0.000000e+00> : vector<2x8xf32>
    %305 = vector.multi_reduction <add>, %304, %cst_155 [2] : vector<2x8x8xf32> to vector<2x8xf32>
    %306 = vector.shape_cast %305 : vector<2x8xf32> to vector<2x8x1xf32>
    %307 = tpu.reciprocal %306 {approx = true} : vector<2x8x1xf32> -> vector<2x8x1xf32>
    %308 = vector.broadcast %307 : vector<2x8x1xf32> to vector<2x8x8xf32>
    %309 = arith.mulf %304, %308 : vector<2x8x8xf32>
    "tpu.trace_start"() <{level = 10 : i32, message = "bqk,bkd->bqd"}> : () -> ()
    %cst_156 = arith.constant dense<0.000000e+00> : vector<2x8x64xf32>
    %310 = tpu.matmul %309, %298, %cst_156 {dimension_numbers = #tpu.dot_dimension_numbers<[2], [1], [1], [2], [0, 0, 0, 1, 1, 2], [0], [0]>} : vector<2x8x8xf32>, vector<2x8x64xf32>, vector<2x8x64xf32> -> vector<2x8x64xf32>
    "tpu.trace_stop"() : () -> ()
    %311 = vector.shape_cast %310 : vector<2x8x64xf32> to vector<16x64xf32>
    %c0_157 = arith.constant 0 : index
    %c0_158 = arith.constant 0 : index
    %c0_159 = arith.constant 0 : index
    %312 = vector.load %arg13[%c0_157, %c0_158, %c0_159] : memref<2x64x64xbf16, #tpu.memory_space<vmem>>, vector<1x64x64xbf16>
    %313 = vector.shape_cast %312 : vector<1x64x64xbf16> to vector<64x64xbf16>
    %314 = arith.truncf %311 : vector<16x64xf32> to vector<16x64xbf16>
    %cst_160 = arith.constant dense<0.000000e+00> : vector<16x64xf32>
    %315 = tpu.matmul %314, %313, %cst_160 {dimension_numbers = #tpu.dot_dimension_numbers<[1], [0], [0], [1], [0, 0, 1, 1], [], []>} : vector<16x64xbf16>, vector<64x64xbf16>, vector<16x64xf32> -> vector<16x64xf32>
    %316 = arith.addf %3, %315 : vector<16x64xf32>
    %c0_161 = arith.constant 0 : index
    %c0_162 = arith.constant 0 : index
    %c0_163 = arith.constant 0 : index
    %317 = vector.load %arg14[%c0_161, %c0_162, %c0_163] : memref<2x1x64xf32, #tpu.memory_space<vmem>>, vector<1x1x64xf32>
    %318 = vector.shape_cast %317 : vector<1x1x64xf32> to vector<1x64xf32>
    %c0_164 = arith.constant 0 : index
    %c0_165 = arith.constant 0 : index
    %c0_166 = arith.constant 0 : index
    %319 = vector.load %arg15[%c0_164, %c0_165, %c0_166] : memref<2x1x64xf32, #tpu.memory_space<vmem>>, vector<1x1x64xf32>
    %320 = vector.shape_cast %319 : vector<1x1x64xf32> to vector<1x64xf32>
    %cst_167 = arith.constant dense<0.000000e+00> : vector<16xf32>
    %321 = vector.multi_reduction <add>, %316, %cst_167 [1] : vector<16x64xf32> to vector<16xf32>
    %322 = vector.shape_cast %321 : vector<16xf32> to vector<16x1xf32>
    %cst_168 = arith.constant 6.400000e+01 : f32
    %323 = vector.broadcast %cst_168 : f32 to vector<16x1xf32>
    %324 = arith.divf %322, %323 : vector<16x1xf32>
    %325 = vector.broadcast %324 : vector<16x1xf32> to vector<16x64xf32>
    %326 = arith.subf %316, %325 : vector<16x64xf32>
    %327 = arith.mulf %326, %326 : vector<16x64xf32>
    %cst_169 = arith.constant dense<0.000000e+00> : vector<16xf32>
    %328 = vector.multi_reduction <add>, %327, %cst_169 [1] : vector<16x64xf32> to vector<16xf32>
    %329 = vector.shape_cast %328 : vector<16xf32> to vector<16x1xf32>
    %cst_170 = arith.constant 6.400000e+01 : f32
    %330 = vector.broadcast %cst_170 : f32 to vector<16x1xf32>
    %331 = arith.divf %329, %330 : vector<16x1xf32>
    %cst_171 = arith.constant 9.99999974E-6 : f32
    %332 = vector.broadcast %cst_171 : f32 to vector<16x1xf32>
    %333 = arith.addf %331, %332 : vector<16x1xf32>
    %334 = math.rsqrt %333 : vector<16x1xf32>
    %335 = vector.broadcast %334 : vector<16x1xf32> to vector<16x64xf32>
    %336 = arith.mulf %326, %335 : vector<16x64xf32>
    %337 = vector.broadcast %318 : vector<1x64xf32> to vector<16x64xf32>
    %338 = arith.mulf %336, %337 : vector<16x64xf32>
    %339 = vector.broadcast %320 : vector<1x64xf32> to vector<16x64xf32>
    %340 = arith.addf %338, %339 : vector<16x64xf32>
    %c0_172 = arith.constant 0 : index
    %c0_173 = arith.constant 0 : index
    %c0_174 = arith.constant 0 : index
    %341 = vector.load %arg16[%c0_172, %c0_173, %c0_174] : memref<2x64x64xbf16, #tpu.memory_space<vmem>>, vector<1x64x64xbf16>
    %342 = vector.shape_cast %341 : vector<1x64x64xbf16> to vector<64x64xbf16>
    %343 = arith.truncf %340 : vector<16x64xf32> to vector<16x64xbf16>
    %cst_175 = arith.constant dense<0.000000e+00> : vector<16x64xf32>
    %344 = tpu.matmul %343, %342, %cst_175 {dimension_numbers = #tpu.dot_dimension_numbers<[1], [0], [0], [1], [0, 0, 1, 1], [], []>} : vector<16x64xbf16>, vector<64x64xbf16>, vector<16x64xf32> -> vector<16x64xf32>
    %c0_176 = arith.constant 0 : index
    %c0_177 = arith.constant 0 : index
    %c0_178 = arith.constant 0 : index
    %345 = vector.load %arg17[%c0_176, %c0_177, %c0_178] : memref<2x64x128xbf16, #tpu.memory_space<vmem>>, vector<1x64x128xbf16>
    %346 = vector.shape_cast %345 : vector<1x64x128xbf16> to vector<64x128xbf16>
    %347 = arith.truncf %288 : vector<16x64xf32> to vector<16x64xbf16>
    %cst_179 = arith.constant dense<0.000000e+00> : vector<16x128xf32>
    %348 = tpu.matmul %347, %346, %cst_179 {dimension_numbers = #tpu.dot_dimension_numbers<[1], [0], [0], [1], [0, 0, 1, 1], [], []>} : vector<16x64xbf16>, vector<64x128xbf16>, vector<16x128xf32> -> vector<16x128xf32>
    %349 = vector.extract_strided_slice %348 {offsets = [0, 0], sizes = [16, 64], strides = [1, 1]} : vector<16x128xf32> to vector<16x64xf32>
    %350 = vector.extract_strided_slice %348 {offsets = [0, 64], sizes = [16, 64], strides = [1, 1]} : vector<16x128xf32> to vector<16x64xf32>
    %351 = vector.shape_cast %344 : vector<16x64xf32> to vector<2x8x64xf32>
    %352 = vector.shape_cast %349 : vector<16x64xf32> to vector<2x8x64xf32>
    %353 = vector.shape_cast %350 : vector<16x64xf32> to vector<2x8x64xf32>
    "tpu.trace_start"() <{level = 10 : i32, message = "bqd,bkd->bqk"}> : () -> ()
    %cst_180 = arith.constant dense<0.000000e+00> : vector<2x8x8xf32>
    %354 = tpu.matmul %351, %352, %cst_180 {dimension_numbers = #tpu.dot_dimension_numbers<[2], [2], [1], [1], [0, 0, 0, 1, 1, 1], [0], [0]>} : vector<2x8x64xf32>, vector<2x8x64xf32>, vector<2x8x8xf32> -> vector<2x8x8xf32>
    "tpu.trace_stop"() : () -> ()
    %cst_181 = arith.constant dense<0xFF800000> : vector<2x8xf32>
    %355 = vector.multi_reduction <maximumf>, %354, %cst_181 [2] : vector<2x8x8xf32> to vector<2x8xf32>
    %356 = vector.shape_cast %355 : vector<2x8xf32> to vector<2x8x1xf32>
    %357 = vector.broadcast %356 : vector<2x8x1xf32> to vector<2x8x8xf32>
    %358 = arith.subf %354, %357 : vector<2x8x8xf32>
    %359 = math.exp %358 : vector<2x8x8xf32>
    %cst_182 = arith.constant dense<0.000000e+00> : vector<2x8xf32>
    %360 = vector.multi_reduction <add>, %359, %cst_182 [2] : vector<2x8x8xf32> to vector<2x8xf32>
    %361 = vector.shape_cast %360 : vector<2x8xf32> to vector<2x8x1xf32>
    %362 = tpu.reciprocal %361 {approx = true} : vector<2x8x1xf32> -> vector<2x8x1xf32>
    %363 = vector.broadcast %362 : vector<2x8x1xf32> to vector<2x8x8xf32>
    %364 = arith.mulf %359, %363 : vector<2x8x8xf32>
    "tpu.trace_start"() <{level = 10 : i32, message = "bqk,bkd->bqd"}> : () -> ()
    %cst_183 = arith.constant dense<0.000000e+00> : vector<2x8x64xf32>
    %365 = tpu.matmul %364, %353, %cst_183 {dimension_numbers = #tpu.dot_dimension_numbers<[2], [1], [1], [2], [0, 0, 0, 1, 1, 2], [0], [0]>} : vector<2x8x8xf32>, vector<2x8x64xf32>, vector<2x8x64xf32> -> vector<2x8x64xf32>
    "tpu.trace_stop"() : () -> ()
    %366 = vector.shape_cast %365 : vector<2x8x64xf32> to vector<16x64xf32>
    %c0_184 = arith.constant 0 : index
    %c0_185 = arith.constant 0 : index
    %c0_186 = arith.constant 0 : index
    %367 = vector.load %arg18[%c0_184, %c0_185, %c0_186] : memref<2x64x64xbf16, #tpu.memory_space<vmem>>, vector<1x64x64xbf16>
    %368 = vector.shape_cast %367 : vector<1x64x64xbf16> to vector<64x64xbf16>
    %369 = arith.truncf %366 : vector<16x64xf32> to vector<16x64xbf16>
    %cst_187 = arith.constant dense<0.000000e+00> : vector<16x64xf32>
    %370 = tpu.matmul %369, %368, %cst_187 {dimension_numbers = #tpu.dot_dimension_numbers<[1], [0], [0], [1], [0, 0, 1, 1], [], []>} : vector<16x64xbf16>, vector<64x64xbf16>, vector<16x64xf32> -> vector<16x64xf32>
    %371 = arith.addf %340, %370 : vector<16x64xf32>
    %c0_188 = arith.constant 0 : index
    %c0_189 = arith.constant 0 : index
    %c0_190 = arith.constant 0 : index
    %372 = vector.load %arg19[%c0_188, %c0_189, %c0_190] : memref<2x1x64xf32, #tpu.memory_space<vmem>>, vector<1x1x64xf32>
    %373 = vector.shape_cast %372 : vector<1x1x64xf32> to vector<1x64xf32>
    %c0_191 = arith.constant 0 : index
    %c0_192 = arith.constant 0 : index
    %c0_193 = arith.constant 0 : index
    %374 = vector.load %arg20[%c0_191, %c0_192, %c0_193] : memref<2x1x64xf32, #tpu.memory_space<vmem>>, vector<1x1x64xf32>
    %375 = vector.shape_cast %374 : vector<1x1x64xf32> to vector<1x64xf32>
    %cst_194 = arith.constant dense<0.000000e+00> : vector<16xf32>
    %376 = vector.multi_reduction <add>, %371, %cst_194 [1] : vector<16x64xf32> to vector<16xf32>
    %377 = vector.shape_cast %376 : vector<16xf32> to vector<16x1xf32>
    %cst_195 = arith.constant 6.400000e+01 : f32
    %378 = vector.broadcast %cst_195 : f32 to vector<16x1xf32>
    %379 = arith.divf %377, %378 : vector<16x1xf32>
    %380 = vector.broadcast %379 : vector<16x1xf32> to vector<16x64xf32>
    %381 = arith.subf %371, %380 : vector<16x64xf32>
    %382 = arith.mulf %381, %381 : vector<16x64xf32>
    %cst_196 = arith.constant dense<0.000000e+00> : vector<16xf32>
    %383 = vector.multi_reduction <add>, %382, %cst_196 [1] : vector<16x64xf32> to vector<16xf32>
    %384 = vector.shape_cast %383 : vector<16xf32> to vector<16x1xf32>
    %cst_197 = arith.constant 6.400000e+01 : f32
    %385 = vector.broadcast %cst_197 : f32 to vector<16x1xf32>
    %386 = arith.divf %384, %385 : vector<16x1xf32>
    %cst_198 = arith.constant 9.99999974E-6 : f32
    %387 = vector.broadcast %cst_198 : f32 to vector<16x1xf32>
    %388 = arith.addf %386, %387 : vector<16x1xf32>
    %389 = math.rsqrt %388 : vector<16x1xf32>
    %390 = vector.broadcast %389 : vector<16x1xf32> to vector<16x64xf32>
    %391 = arith.mulf %381, %390 : vector<16x64xf32>
    %392 = vector.broadcast %373 : vector<1x64xf32> to vector<16x64xf32>
    %393 = arith.mulf %391, %392 : vector<16x64xf32>
    %394 = vector.broadcast %375 : vector<1x64xf32> to vector<16x64xf32>
    %395 = arith.addf %393, %394 : vector<16x64xf32>
    %c0_199 = arith.constant 0 : index
    %c0_200 = arith.constant 0 : index
    %c0_201 = arith.constant 0 : index
    %396 = vector.load %arg21[%c0_199, %c0_200, %c0_201] : memref<2x64x128xbf16, #tpu.memory_space<vmem>>, vector<1x64x128xbf16>
    %397 = vector.shape_cast %396 : vector<1x64x128xbf16> to vector<64x128xbf16>
    %c0_202 = arith.constant 0 : index
    %c0_203 = arith.constant 0 : index
    %c0_204 = arith.constant 0 : index
    %398 = vector.load %arg22[%c0_202, %c0_203, %c0_204] : memref<2x1x128xf32, #tpu.memory_space<vmem>>, vector<1x1x128xf32>
    %399 = vector.shape_cast %398 : vector<1x1x128xf32> to vector<1x128xf32>
    %c0_205 = arith.constant 0 : index
    %c0_206 = arith.constant 0 : index
    %c0_207 = arith.constant 0 : index
    %400 = vector.load %arg23[%c0_205, %c0_206, %c0_207] : memref<2x128x64xbf16, #tpu.memory_space<vmem>>, vector<1x128x64xbf16>
    %401 = vector.shape_cast %400 : vector<1x128x64xbf16> to vector<128x64xbf16>
    %c0_208 = arith.constant 0 : index
    %c0_209 = arith.constant 0 : index
    %c0_210 = arith.constant 0 : index
    %402 = vector.load %arg24[%c0_208, %c0_209, %c0_210] : memref<2x1x64xf32, #tpu.memory_space<vmem>>, vector<1x1x64xf32>
    %403 = vector.shape_cast %402 : vector<1x1x64xf32> to vector<1x64xf32>
    %404 = arith.truncf %395 : vector<16x64xf32> to vector<16x64xbf16>
    %cst_211 = arith.constant dense<0.000000e+00> : vector<16x128xf32>
    %405 = tpu.matmul %404, %397, %cst_211 {dimension_numbers = #tpu.dot_dimension_numbers<[1], [0], [0], [1], [0, 0, 1, 1], [], []>} : vector<16x64xbf16>, vector<64x128xbf16>, vector<16x128xf32> -> vector<16x128xf32>
    %406 = vector.broadcast %399 : vector<1x128xf32> to vector<16x128xf32>
    %407 = arith.addf %405, %406 : vector<16x128xf32>
    %cst_212 = arith.constant 0.000000e+00 : f32
    %408 = vector.broadcast %cst_212 : f32 to vector<16x128xf32>
    %409 = arith.maximumf %407, %408 : vector<16x128xf32>
    %410 = arith.truncf %409 : vector<16x128xf32> to vector<16x128xbf16>
    %cst_213 = arith.constant dense<0.000000e+00> : vector<16x64xf32>
    %411 = tpu.matmul %410, %401, %cst_213 {dimension_numbers = #tpu.dot_dimension_numbers<[1], [0], [0], [1], [0, 0, 1, 1], [], []>} : vector<16x128xbf16>, vector<128x64xbf16>, vector<16x64xf32> -> vector<16x64xf32>
    %412 = vector.broadcast %403 : vector<1x64xf32> to vector<16x64xf32>
    %413 = arith.addf %411, %412 : vector<16x64xf32>
    %414 = arith.addf %395, %413 : vector<16x64xf32>
    %c0_214 = arith.constant 0 : index
    %c0_215 = arith.constant 0 : index
    %c0_216 = arith.constant 0 : index
    %415 = vector.load %arg25[%c0_214, %c0_215, %c0_216] : memref<2x1x64xf32, #tpu.memory_space<vmem>>, vector<1x1x64xf32>
    %416 = vector.shape_cast %415 : vector<1x1x64xf32> to vector<1x64xf32>
    %c0_217 = arith.constant 0 : index
    %c0_218 = arith.constant 0 : index
    %c0_219 = arith.constant 0 : index
    %417 = vector.load %arg26[%c0_217, %c0_218, %c0_219] : memref<2x1x64xf32, #tpu.memory_space<vmem>>, vector<1x1x64xf32>
    %418 = vector.shape_cast %417 : vector<1x1x64xf32> to vector<1x64xf32>
    %cst_220 = arith.constant dense<0.000000e+00> : vector<16xf32>
    %419 = vector.multi_reduction <add>, %414, %cst_220 [1] : vector<16x64xf32> to vector<16xf32>
    %420 = vector.shape_cast %419 : vector<16xf32> to vector<16x1xf32>
    %cst_221 = arith.constant 6.400000e+01 : f32
    %421 = vector.broadcast %cst_221 : f32 to vector<16x1xf32>
    %422 = arith.divf %420, %421 : vector<16x1xf32>
    %423 = vector.broadcast %422 : vector<16x1xf32> to vector<16x64xf32>
    %424 = arith.subf %414, %423 : vector<16x64xf32>
    %425 = arith.mulf %424, %424 : vector<16x64xf32>
    %cst_222 = arith.constant dense<0.000000e+00> : vector<16xf32>
    %426 = vector.multi_reduction <add>, %425, %cst_222 [1] : vector<16x64xf32> to vector<16xf32>
    %427 = vector.shape_cast %426 : vector<16xf32> to vector<16x1xf32>
    %cst_223 = arith.constant 6.400000e+01 : f32
    %428 = vector.broadcast %cst_223 : f32 to vector<16x1xf32>
    %429 = arith.divf %427, %428 : vector<16x1xf32>
    %cst_224 = arith.constant 9.99999974E-6 : f32
    %430 = vector.broadcast %cst_224 : f32 to vector<16x1xf32>
    %431 = arith.addf %429, %430 : vector<16x1xf32>
    %432 = math.rsqrt %431 : vector<16x1xf32>
    %433 = vector.broadcast %432 : vector<16x1xf32> to vector<16x64xf32>
    %434 = arith.mulf %424, %433 : vector<16x64xf32>
    %435 = vector.broadcast %416 : vector<1x64xf32> to vector<16x64xf32>
    %436 = arith.mulf %434, %435 : vector<16x64xf32>
    %437 = vector.broadcast %418 : vector<1x64xf32> to vector<16x64xf32>
    %438 = arith.addf %436, %437 : vector<16x64xf32>
    %c1_225 = arith.constant 1 : index
    %c0_226 = arith.constant 0 : index
    %c0_227 = arith.constant 0 : index
    %439 = vector.load %arg12[%c1_225, %c0_226, %c0_227] : memref<2x64x192xbf16, #tpu.memory_space<vmem>>, vector<1x64x192xbf16>
    %440 = vector.shape_cast %439 : vector<1x64x192xbf16> to vector<64x192xbf16>
    %441 = arith.truncf %438 : vector<16x64xf32> to vector<16x64xbf16>
    %cst_228 = arith.constant dense<0.000000e+00> : vector<16x192xf32>
    %442 = tpu.matmul %441, %440, %cst_228 {dimension_numbers = #tpu.dot_dimension_numbers<[1], [0], [0], [1], [0, 0, 1, 1], [], []>} : vector<16x64xbf16>, vector<64x192xbf16>, vector<16x192xf32> -> vector<16x192xf32>
    %443 = vector.extract_strided_slice %442 {offsets = [0, 0], sizes = [16, 64], strides = [1, 1]} : vector<16x192xf32> to vector<16x64xf32>
    %444 = vector.extract_strided_slice %442 {offsets = [0, 64], sizes = [16, 64], strides = [1, 1]} : vector<16x192xf32> to vector<16x64xf32>
    %445 = vector.extract_strided_slice %442 {offsets = [0, 128], sizes = [16, 64], strides = [1, 1]} : vector<16x192xf32> to vector<16x64xf32>
    %446 = vector.shape_cast %443 : vector<16x64xf32> to vector<2x8x64xf32>
    %447 = vector.shape_cast %444 : vector<16x64xf32> to vector<2x8x64xf32>
    %448 = vector.shape_cast %445 : vector<16x64xf32> to vector<2x8x64xf32>
    "tpu.trace_start"() <{level = 10 : i32, message = "bqd,bkd->bqk"}> : () -> ()
    %cst_229 = arith.constant dense<0.000000e+00> : vector<2x8x8xf32>
    %449 = tpu.matmul %446, %447, %cst_229 {dimension_numbers = #tpu.dot_dimension_numbers<[2], [2], [1], [1], [0, 0, 0, 1, 1, 1], [0], [0]>} : vector<2x8x64xf32>, vector<2x8x64xf32>, vector<2x8x8xf32> -> vector<2x8x8xf32>
    "tpu.trace_stop"() : () -> ()
    %cst_230 = arith.constant dense<0xFF800000> : vector<2x8xf32>
    %450 = vector.multi_reduction <maximumf>, %449, %cst_230 [2] : vector<2x8x8xf32> to vector<2x8xf32>
    %451 = vector.shape_cast %450 : vector<2x8xf32> to vector<2x8x1xf32>
    %452 = vector.broadcast %451 : vector<2x8x1xf32> to vector<2x8x8xf32>
    %453 = arith.subf %449, %452 : vector<2x8x8xf32>
    %454 = math.exp %453 : vector<2x8x8xf32>
    %cst_231 = arith.constant dense<0.000000e+00> : vector<2x8xf32>
    %455 = vector.multi_reduction <add>, %454, %cst_231 [2] : vector<2x8x8xf32> to vector<2x8xf32>
    %456 = vector.shape_cast %455 : vector<2x8xf32> to vector<2x8x1xf32>
    %457 = tpu.reciprocal %456 {approx = true} : vector<2x8x1xf32> -> vector<2x8x1xf32>
    %458 = vector.broadcast %457 : vector<2x8x1xf32> to vector<2x8x8xf32>
    %459 = arith.mulf %454, %458 : vector<2x8x8xf32>
    "tpu.trace_start"() <{level = 10 : i32, message = "bqk,bkd->bqd"}> : () -> ()
    %cst_232 = arith.constant dense<0.000000e+00> : vector<2x8x64xf32>
    %460 = tpu.matmul %459, %448, %cst_232 {dimension_numbers = #tpu.dot_dimension_numbers<[2], [1], [1], [2], [0, 0, 0, 1, 1, 2], [0], [0]>} : vector<2x8x8xf32>, vector<2x8x64xf32>, vector<2x8x64xf32> -> vector<2x8x64xf32>
    "tpu.trace_stop"() : () -> ()
    %461 = vector.shape_cast %460 : vector<2x8x64xf32> to vector<16x64xf32>
    %c1_233 = arith.constant 1 : index
    %c0_234 = arith.constant 0 : index
    %c0_235 = arith.constant 0 : index
    %462 = vector.load %arg13[%c1_233, %c0_234, %c0_235] : memref<2x64x64xbf16, #tpu.memory_space<vmem>>, vector<1x64x64xbf16>
    %463 = vector.shape_cast %462 : vector<1x64x64xbf16> to vector<64x64xbf16>
    %464 = arith.truncf %461 : vector<16x64xf32> to vector<16x64xbf16>
    %cst_236 = arith.constant dense<0.000000e+00> : vector<16x64xf32>
    %465 = tpu.matmul %464, %463, %cst_236 {dimension_numbers = #tpu.dot_dimension_numbers<[1], [0], [0], [1], [0, 0, 1, 1], [], []>} : vector<16x64xbf16>, vector<64x64xbf16>, vector<16x64xf32> -> vector<16x64xf32>
    %466 = arith.addf %438, %465 : vector<16x64xf32>
    %c1_237 = arith.constant 1 : index
    %c0_238 = arith.constant 0 : index
    %c0_239 = arith.constant 0 : index
    %467 = vector.load %arg14[%c1_237, %c0_238, %c0_239] : memref<2x1x64xf32, #tpu.memory_space<vmem>>, vector<1x1x64xf32>
    %468 = vector.shape_cast %467 : vector<1x1x64xf32> to vector<1x64xf32>
    %c1_240 = arith.constant 1 : index
    %c0_241 = arith.constant 0 : index
    %c0_242 = arith.constant 0 : index
    %469 = vector.load %arg15[%c1_240, %c0_241, %c0_242] : memref<2x1x64xf32, #tpu.memory_space<vmem>>, vector<1x1x64xf32>
    %470 = vector.shape_cast %469 : vector<1x1x64xf32> to vector<1x64xf32>
    %cst_243 = arith.constant dense<0.000000e+00> : vector<16xf32>
    %471 = vector.multi_reduction <add>, %466, %cst_243 [1] : vector<16x64xf32> to vector<16xf32>
    %472 = vector.shape_cast %471 : vector<16xf32> to vector<16x1xf32>
    %cst_244 = arith.constant 6.400000e+01 : f32
    %473 = vector.broadcast %cst_244 : f32 to vector<16x1xf32>
    %474 = arith.divf %472, %473 : vector<16x1xf32>
    %475 = vector.broadcast %474 : vector<16x1xf32> to vector<16x64xf32>
    %476 = arith.subf %466, %475 : vector<16x64xf32>
    %477 = arith.mulf %476, %476 : vector<16x64xf32>
    %cst_245 = arith.constant dense<0.000000e+00> : vector<16xf32>
    %478 = vector.multi_reduction <add>, %477, %cst_245 [1] : vector<16x64xf32> to vector<16xf32>
    %479 = vector.shape_cast %478 : vector<16xf32> to vector<16x1xf32>
    %cst_246 = arith.constant 6.400000e+01 : f32
    %480 = vector.broadcast %cst_246 : f32 to vector<16x1xf32>
    %481 = arith.divf %479, %480 : vector<16x1xf32>
    %cst_247 = arith.constant 9.99999974E-6 : f32
    %482 = vector.broadcast %cst_247 : f32 to vector<16x1xf32>
    %483 = arith.addf %481, %482 : vector<16x1xf32>
    %484 = math.rsqrt %483 : vector<16x1xf32>
    %485 = vector.broadcast %484 : vector<16x1xf32> to vector<16x64xf32>
    %486 = arith.mulf %476, %485 : vector<16x64xf32>
    %487 = vector.broadcast %468 : vector<1x64xf32> to vector<16x64xf32>
    %488 = arith.mulf %486, %487 : vector<16x64xf32>
    %489 = vector.broadcast %470 : vector<1x64xf32> to vector<16x64xf32>
    %490 = arith.addf %488, %489 : vector<16x64xf32>
    %c1_248 = arith.constant 1 : index
    %c0_249 = arith.constant 0 : index
    %c0_250 = arith.constant 0 : index
    %491 = vector.load %arg16[%c1_248, %c0_249, %c0_250] : memref<2x64x64xbf16, #tpu.memory_space<vmem>>, vector<1x64x64xbf16>
    %492 = vector.shape_cast %491 : vector<1x64x64xbf16> to vector<64x64xbf16>
    %493 = arith.truncf %490 : vector<16x64xf32> to vector<16x64xbf16>
    %cst_251 = arith.constant dense<0.000000e+00> : vector<16x64xf32>
    %494 = tpu.matmul %493, %492, %cst_251 {dimension_numbers = #tpu.dot_dimension_numbers<[1], [0], [0], [1], [0, 0, 1, 1], [], []>} : vector<16x64xbf16>, vector<64x64xbf16>, vector<16x64xf32> -> vector<16x64xf32>
    %c1_252 = arith.constant 1 : index
    %c0_253 = arith.constant 0 : index
    %c0_254 = arith.constant 0 : index
    %495 = vector.load %arg17[%c1_252, %c0_253, %c0_254] : memref<2x64x128xbf16, #tpu.memory_space<vmem>>, vector<1x64x128xbf16>
    %496 = vector.shape_cast %495 : vector<1x64x128xbf16> to vector<64x128xbf16>
    %497 = arith.truncf %288 : vector<16x64xf32> to vector<16x64xbf16>
    %cst_255 = arith.constant dense<0.000000e+00> : vector<16x128xf32>
    %498 = tpu.matmul %497, %496, %cst_255 {dimension_numbers = #tpu.dot_dimension_numbers<[1], [0], [0], [1], [0, 0, 1, 1], [], []>} : vector<16x64xbf16>, vector<64x128xbf16>, vector<16x128xf32> -> vector<16x128xf32>
    %499 = vector.extract_strided_slice %498 {offsets = [0, 0], sizes = [16, 64], strides = [1, 1]} : vector<16x128xf32> to vector<16x64xf32>
    %500 = vector.extract_strided_slice %498 {offsets = [0, 64], sizes = [16, 64], strides = [1, 1]} : vector<16x128xf32> to vector<16x64xf32>
    %501 = vector.shape_cast %494 : vector<16x64xf32> to vector<2x8x64xf32>
    %502 = vector.shape_cast %499 : vector<16x64xf32> to vector<2x8x64xf32>
    %503 = vector.shape_cast %500 : vector<16x64xf32> to vector<2x8x64xf32>
    "tpu.trace_start"() <{level = 10 : i32, message = "bqd,bkd->bqk"}> : () -> ()
    %cst_256 = arith.constant dense<0.000000e+00> : vector<2x8x8xf32>
    %504 = tpu.matmul %501, %502, %cst_256 {dimension_numbers = #tpu.dot_dimension_numbers<[2], [2], [1], [1], [0, 0, 0, 1, 1, 1], [0], [0]>} : vector<2x8x64xf32>, vector<2x8x64xf32>, vector<2x8x8xf32> -> vector<2x8x8xf32>
    "tpu.trace_stop"() : () -> ()
    %cst_257 = arith.constant dense<0xFF800000> : vector<2x8xf32>
    %505 = vector.multi_reduction <maximumf>, %504, %cst_257 [2] : vector<2x8x8xf32> to vector<2x8xf32>
    %506 = vector.shape_cast %505 : vector<2x8xf32> to vector<2x8x1xf32>
    %507 = vector.broadcast %506 : vector<2x8x1xf32> to vector<2x8x8xf32>
    %508 = arith.subf %504, %507 : vector<2x8x8xf32>
    %509 = math.exp %508 : vector<2x8x8xf32>
    %cst_258 = arith.constant dense<0.000000e+00> : vector<2x8xf32>
    %510 = vector.multi_reduction <add>, %509, %cst_258 [2] : vector<2x8x8xf32> to vector<2x8xf32>
    %511 = vector.shape_cast %510 : vector<2x8xf32> to vector<2x8x1xf32>
    %512 = tpu.reciprocal %511 {approx = true} : vector<2x8x1xf32> -> vector<2x8x1xf32>
    %513 = vector.broadcast %512 : vector<2x8x1xf32> to vector<2x8x8xf32>
    %514 = arith.mulf %509, %513 : vector<2x8x8xf32>
    "tpu.trace_start"() <{level = 10 : i32, message = "bqk,bkd->bqd"}> : () -> ()
    %cst_259 = arith.constant dense<0.000000e+00> : vector<2x8x64xf32>
    %515 = tpu.matmul %514, %503, %cst_259 {dimension_numbers = #tpu.dot_dimension_numbers<[2], [1], [1], [2], [0, 0, 0, 1, 1, 2], [0], [0]>} : vector<2x8x8xf32>, vector<2x8x64xf32>, vector<2x8x64xf32> -> vector<2x8x64xf32>
    "tpu.trace_stop"() : () -> ()
    %516 = vector.shape_cast %515 : vector<2x8x64xf32> to vector<16x64xf32>
    %c1_260 = arith.constant 1 : index
    %c0_261 = arith.constant 0 : index
    %c0_262 = arith.constant 0 : index
    %517 = vector.load %arg18[%c1_260, %c0_261, %c0_262] : memref<2x64x64xbf16, #tpu.memory_space<vmem>>, vector<1x64x64xbf16>
    %518 = vector.shape_cast %517 : vector<1x64x64xbf16> to vector<64x64xbf16>
    %519 = arith.truncf %516 : vector<16x64xf32> to vector<16x64xbf16>
    %cst_263 = arith.constant dense<0.000000e+00> : vector<16x64xf32>
    %520 = tpu.matmul %519, %518, %cst_263 {dimension_numbers = #tpu.dot_dimension_numbers<[1], [0], [0], [1], [0, 0, 1, 1], [], []>} : vector<16x64xbf16>, vector<64x64xbf16>, vector<16x64xf32> -> vector<16x64xf32>
    %521 = arith.addf %490, %520 : vector<16x64xf32>
    %c1_264 = arith.constant 1 : index
    %c0_265 = arith.constant 0 : index
    %c0_266 = arith.constant 0 : index
    %522 = vector.load %arg19[%c1_264, %c0_265, %c0_266] : memref<2x1x64xf32, #tpu.memory_space<vmem>>, vector<1x1x64xf32>
    %523 = vector.shape_cast %522 : vector<1x1x64xf32> to vector<1x64xf32>
    %c1_267 = arith.constant 1 : index
    %c0_268 = arith.constant 0 : index
    %c0_269 = arith.constant 0 : index
    %524 = vector.load %arg20[%c1_267, %c0_268, %c0_269] : memref<2x1x64xf32, #tpu.memory_space<vmem>>, vector<1x1x64xf32>
    %525 = vector.shape_cast %524 : vector<1x1x64xf32> to vector<1x64xf32>
    %cst_270 = arith.constant dense<0.000000e+00> : vector<16xf32>
    %526 = vector.multi_reduction <add>, %521, %cst_270 [1] : vector<16x64xf32> to vector<16xf32>
    %527 = vector.shape_cast %526 : vector<16xf32> to vector<16x1xf32>
    %cst_271 = arith.constant 6.400000e+01 : f32
    %528 = vector.broadcast %cst_271 : f32 to vector<16x1xf32>
    %529 = arith.divf %527, %528 : vector<16x1xf32>
    %530 = vector.broadcast %529 : vector<16x1xf32> to vector<16x64xf32>
    %531 = arith.subf %521, %530 : vector<16x64xf32>
    %532 = arith.mulf %531, %531 : vector<16x64xf32>
    %cst_272 = arith.constant dense<0.000000e+00> : vector<16xf32>
    %533 = vector.multi_reduction <add>, %532, %cst_272 [1] : vector<16x64xf32> to vector<16xf32>
    %534 = vector.shape_cast %533 : vector<16xf32> to vector<16x1xf32>
    %cst_273 = arith.constant 6.400000e+01 : f32
    %535 = vector.broadcast %cst_273 : f32 to vector<16x1xf32>
    %536 = arith.divf %534, %535 : vector<16x1xf32>
    %cst_274 = arith.constant 9.99999974E-6 : f32
    %537 = vector.broadcast %cst_274 : f32 to vector<16x1xf32>
    %538 = arith.addf %536, %537 : vector<16x1xf32>
    %539 = math.rsqrt %538 : vector<16x1xf32>
    %540 = vector.broadcast %539 : vector<16x1xf32> to vector<16x64xf32>
    %541 = arith.mulf %531, %540 : vector<16x64xf32>
    %542 = vector.broadcast %523 : vector<1x64xf32> to vector<16x64xf32>
    %543 = arith.mulf %541, %542 : vector<16x64xf32>
    %544 = vector.broadcast %525 : vector<1x64xf32> to vector<16x64xf32>
    %545 = arith.addf %543, %544 : vector<16x64xf32>
    %c1_275 = arith.constant 1 : index
    %c0_276 = arith.constant 0 : index
    %c0_277 = arith.constant 0 : index
    %546 = vector.load %arg21[%c1_275, %c0_276, %c0_277] : memref<2x64x128xbf16, #tpu.memory_space<vmem>>, vector<1x64x128xbf16>
    %547 = vector.shape_cast %546 : vector<1x64x128xbf16> to vector<64x128xbf16>
    %c1_278 = arith.constant 1 : index
    %c0_279 = arith.constant 0 : index
    %c0_280 = arith.constant 0 : index
    %548 = vector.load %arg22[%c1_278, %c0_279, %c0_280] : memref<2x1x128xf32, #tpu.memory_space<vmem>>, vector<1x1x128xf32>
    %549 = vector.shape_cast %548 : vector<1x1x128xf32> to vector<1x128xf32>
    %c1_281 = arith.constant 1 : index
    %c0_282 = arith.constant 0 : index
    %c0_283 = arith.constant 0 : index
    %550 = vector.load %arg23[%c1_281, %c0_282, %c0_283] : memref<2x128x64xbf16, #tpu.memory_space<vmem>>, vector<1x128x64xbf16>
    %551 = vector.shape_cast %550 : vector<1x128x64xbf16> to vector<128x64xbf16>
    %c1_284 = arith.constant 1 : index
    %c0_285 = arith.constant 0 : index
    %c0_286 = arith.constant 0 : index
    %552 = vector.load %arg24[%c1_284, %c0_285, %c0_286] : memref<2x1x64xf32, #tpu.memory_space<vmem>>, vector<1x1x64xf32>
    %553 = vector.shape_cast %552 : vector<1x1x64xf32> to vector<1x64xf32>
    %554 = arith.truncf %545 : vector<16x64xf32> to vector<16x64xbf16>
    %cst_287 = arith.constant dense<0.000000e+00> : vector<16x128xf32>
    %555 = tpu.matmul %554, %547, %cst_287 {dimension_numbers = #tpu.dot_dimension_numbers<[1], [0], [0], [1], [0, 0, 1, 1], [], []>} : vector<16x64xbf16>, vector<64x128xbf16>, vector<16x128xf32> -> vector<16x128xf32>
    %556 = vector.broadcast %549 : vector<1x128xf32> to vector<16x128xf32>
    %557 = arith.addf %555, %556 : vector<16x128xf32>
    %cst_288 = arith.constant 0.000000e+00 : f32
    %558 = vector.broadcast %cst_288 : f32 to vector<16x128xf32>
    %559 = arith.maximumf %557, %558 : vector<16x128xf32>
    %560 = arith.truncf %559 : vector<16x128xf32> to vector<16x128xbf16>
    %cst_289 = arith.constant dense<0.000000e+00> : vector<16x64xf32>
    %561 = tpu.matmul %560, %551, %cst_289 {dimension_numbers = #tpu.dot_dimension_numbers<[1], [0], [0], [1], [0, 0, 1, 1], [], []>} : vector<16x128xbf16>, vector<128x64xbf16>, vector<16x64xf32> -> vector<16x64xf32>
    %562 = vector.broadcast %553 : vector<1x64xf32> to vector<16x64xf32>
    %563 = arith.addf %561, %562 : vector<16x64xf32>
    %564 = arith.addf %545, %563 : vector<16x64xf32>
    %c1_290 = arith.constant 1 : index
    %c0_291 = arith.constant 0 : index
    %c0_292 = arith.constant 0 : index
    %565 = vector.load %arg25[%c1_290, %c0_291, %c0_292] : memref<2x1x64xf32, #tpu.memory_space<vmem>>, vector<1x1x64xf32>
    %566 = vector.shape_cast %565 : vector<1x1x64xf32> to vector<1x64xf32>
    %c1_293 = arith.constant 1 : index
    %c0_294 = arith.constant 0 : index
    %c0_295 = arith.constant 0 : index
    %567 = vector.load %arg26[%c1_293, %c0_294, %c0_295] : memref<2x1x64xf32, #tpu.memory_space<vmem>>, vector<1x1x64xf32>
    %568 = vector.shape_cast %567 : vector<1x1x64xf32> to vector<1x64xf32>
    %cst_296 = arith.constant dense<0.000000e+00> : vector<16xf32>
    %569 = vector.multi_reduction <add>, %564, %cst_296 [1] : vector<16x64xf32> to vector<16xf32>
    %570 = vector.shape_cast %569 : vector<16xf32> to vector<16x1xf32>
    %cst_297 = arith.constant 6.400000e+01 : f32
    %571 = vector.broadcast %cst_297 : f32 to vector<16x1xf32>
    %572 = arith.divf %570, %571 : vector<16x1xf32>
    %573 = vector.broadcast %572 : vector<16x1xf32> to vector<16x64xf32>
    %574 = arith.subf %564, %573 : vector<16x64xf32>
    %575 = arith.mulf %574, %574 : vector<16x64xf32>
    %cst_298 = arith.constant dense<0.000000e+00> : vector<16xf32>
    %576 = vector.multi_reduction <add>, %575, %cst_298 [1] : vector<16x64xf32> to vector<16xf32>
    %577 = vector.shape_cast %576 : vector<16xf32> to vector<16x1xf32>
    %cst_299 = arith.constant 6.400000e+01 : f32
    %578 = vector.broadcast %cst_299 : f32 to vector<16x1xf32>
    %579 = arith.divf %577, %578 : vector<16x1xf32>
    %cst_300 = arith.constant 9.99999974E-6 : f32
    %580 = vector.broadcast %cst_300 : f32 to vector<16x1xf32>
    %581 = arith.addf %579, %580 : vector<16x1xf32>
    %582 = math.rsqrt %581 : vector<16x1xf32>
    %583 = vector.broadcast %582 : vector<16x1xf32> to vector<16x64xf32>
    %584 = arith.mulf %574, %583 : vector<16x64xf32>
    %585 = vector.broadcast %566 : vector<1x64xf32> to vector<16x64xf32>
    %586 = arith.mulf %584, %585 : vector<16x64xf32>
    %587 = vector.broadcast %568 : vector<1x64xf32> to vector<16x64xf32>
    %588 = arith.addf %586, %587 : vector<16x64xf32>
    %589 = vector.shape_cast %588 : vector<16x64xf32> to vector<2x8x64xf32>
    %c0_301 = arith.constant 0 : index
    %c0_302 = arith.constant 0 : index
    %c0_303 = arith.constant 0 : index
    %590 = vector.load %arg27[%c0_301, %c0_302, %c0_303] : memref<2x8x64xf32, #tpu.memory_space<vmem>>, vector<2x8x64xf32>
    tpu.vector_store %arg27[%c0_301, %c0_302, %c0_303], %589 {strides = array<i32>} : memref<2x8x64xf32, #tpu.memory_space<vmem>>, vector<2x8x64xf32>,
    return
  }
}

</mosaic_0001>

<llo_original>
// kernel: tpu_custom_call.1
$region0: #{tpu_custom_call.1}
  #allocation0 [shape = 'u32[]', space=smem, size = 0x4, offset = 0x4, fixed_abs, tag = 'smem constant byte address 0x4 - core index']
  #allocation1 [shape = 'u32[144,128]{1,0:T(1,128)}', space=vmem, size = 0x12000, scoped, tag = 'internal scratch']
  %s0 = inlined_call_operand.hbm [shape: f32[2,8,64], index: 0, kind: input, shape index: {}]
  %s1 = inlined_call_operand.hbm [shape: f32[2,8,64], index: 1, kind: input, shape index: {}]
  %s2 = inlined_call_operand.vmem [shape: bf16[3,64,192], index: 2, kind: input, shape index: {}]
  %s3 = inlined_call_operand.vmem [shape: bf16[3,64,64], index: 3, kind: input, shape index: {}]
  %s4 = inlined_call_operand.vmem [shape: f32[3,1,64], index: 4, kind: input, shape index: {}]
  %s5 = inlined_call_operand.vmem [shape: f32[3,1,64], index: 5, kind: input, shape index: {}]
  %s6 = inlined_call_operand.hbm [shape: bf16[3,64,128], index: 6, kind: input, shape index: {}]
  %s7 = inlined_call_operand.vmem [shape: f32[3,1,128], index: 7, kind: input, shape index: {}]
  %s8 = inlined_call_operand.vmem [shape: bf16[3,128,64], index: 8, kind: input, shape index: {}]
  %s9 = inlined_call_operand.vmem [shape: f32[3,1,64], index: 9, kind: input, shape index: {}]
  %s10 = inlined_call_operand.vmem [shape: f32[3,1,64], index: 10, kind: input, shape index: {}]
  %s11 = inlined_call_operand.vmem [shape: f32[3,1,64], index: 11, kind: input, shape index: {}]
  %s12 = inlined_call_operand.vmem [shape: bf16[2,64,192], index: 12, kind: input, shape index: {}]
  %s13 = inlined_call_operand.vmem [shape: bf16[2,64,64], index: 13, kind: input, shape index: {}]
  %s14 = inlined_call_operand.vmem [shape: f32[2,1,64], index: 14, kind: input, shape index: {}]
  %s15 = inlined_call_operand.vmem [shape: f32[2,1,64], index: 15, kind: input, shape index: {}]
  %s16 = inlined_call_operand.hbm [shape: bf16[2,64,64], index: 16, kind: input, shape index: {}]
  %s17 = inlined_call_operand.hbm [shape: bf16[2,64,128], index: 17, kind: input, shape index: {}]
  %s18 = inlined_call_operand.hbm [shape: bf16[2,64,64], index: 18, kind: input, shape index: {}]
  %s19 = inlined_call_operand.hbm [shape: f32[2,1,64], index: 19, kind: input, shape index: {}]
  %s20 = inlined_call_operand.hbm [shape: f32[2,1,64], index: 20, kind: input, shape index: {}]
  %s21 = inlined_call_operand.hbm [shape: bf16[2,64,128], index: 21, kind: input, shape index: {}]
  %s22 = inlined_call_operand.hbm [shape: f32[2,1,128], index: 22, kind: input, shape index: {}]
  %s23 = inlined_call_operand.vmem [shape: bf16[2,128,64], index: 23, kind: input, shape index: {}]
  %s24 = inlined_call_operand.vmem [shape: f32[2,1,64], index: 24, kind: input, shape index: {}]
  %s25 = inlined_call_operand.vmem [shape: f32[2,1,64], index: 25, kind: input, shape index: {}]
  %s26 = inlined_call_operand.vmem [shape: f32[2,1,64], index: 26, kind: input, shape index: {}]
  %s27 = inlined_call_operand.hbm [shape: f32[2,8,64], index: 27, kind: output, shape index: {}]
  %s28 = sld [smem:[#allocation0]]
  $region158: #{tpu_custom_call.1} parent=0
    _
  %s30 = ssub.s32 1, %s28
  %s31 = scalar_select 0, %s30, %s28
  $region1: #{tpu_custom_call.1} parent=0
    #allocation2 [shape = 'u8[8192]{0}', space=vmem, size = 0x2000, scoped, tag = 'input window, operand 0, single buffered']
    #allocation3 [shape = 's32[1]{0}', space=sflag, size = 0x4, scoped, tag = 'scoped memory for tpu_custom_call.1']
    #allocation4 [shape = 's32[1]{0}', space=sflag, size = 0x4, scoped, tag = 'scoped memory for tpu_custom_call.1']
    #allocation5 [shape = 'u8[8192]{0}', space=vmem, size = 0x2000, scoped, tag = 'input window, operand 1, single buffered']
    #allocation6 [shape = 's32[1]{0}', space=sflag, size = 0x4, scoped, tag = 'scoped memory for tpu_custom_call.1']
    #allocation7 [shape = 'u8[49152]{0}', space=vmem, size = 0xc000, scoped, tag = 'input window, operand 6, single buffered']
    #allocation8 [shape = 'u8[32768]{0}', space=vmem, size = 0x8000, scoped, tag = 'input window, operand 16, single buffered']
    #allocation9 [shape = 's32[1]{0}', space=sflag, size = 0x4, scoped, tag = 'scoped memory for tpu_custom_call.1']
    #allocation10 [shape = 'u8[32768]{0}', space=vmem, size = 0x8000, scoped, tag = 'input window, operand 17, single buffered']
    #allocation11 [shape = 'u8[32768]{0}', space=vmem, size = 0x8000, scoped, tag = 'input window, operand 18, single buffered']
    #allocation12 [shape = 's32[1]{0}', space=sflag, size = 0x4, scoped, tag = 'scoped memory for tpu_custom_call.1']
    #allocation13 [shape = 'u8[1024]{0}', space=vmem, size = 0x400, scoped, tag = 'input window, operand 19, single buffered']
    #allocation14 [shape = 'u8[1024]{0}', space=vmem, size = 0x400, scoped, tag = 'input window, operand 20, single buffered']
    #allocation15 [shape = 's32[1]{0}', space=sflag, size = 0x4, scoped, tag = 'scoped memory for tpu_custom_call.1']
    #allocation16 [shape = 'u8[32768]{0}', space=vmem, size = 0x8000, scoped, tag = 'input window, operand 21, single buffered']
    #allocation17 [shape = 'u8[1024]{0}', space=vmem, size = 0x400, scoped, tag = 'input window, operand 22, single buffered']
    #allocation18 [shape = 's32[1]{0}', space=sflag, size = 0x4, scoped, tag = 'scoped memory for tpu_custom_call.1']
    #allocation19 [shape = 'u8[8192]{0}', space=vmem, size = 0x2000, scoped, tag = 'output window, operand 0, single buffered']
    %32 = vsyncpa [#allocation3], 0
    %33 = vsyncpa [#allocation6], 0
    %34 = vsyncpa [#allocation9], 0
    %35 = vsyncpa [#allocation12], 0
    %36 = vsyncpa [#allocation15], 0
    %37 = vsyncpa [#allocation18], 0
    %38 = vsyncpa [#allocation4], 0
    // Predicated region
    $region2: #{tpu_custom_call.1} parent=1 // pred_check
      _
    $region3: #{tpu_custom_call.1} parent=1 // pred_check_branch
      %40 = sbr.rel (0) target = $region5
    $region4: #{tpu_custom_call.1} parent=1 // pred_region
      %s42 = ssub.s32 256, 256
      %43 = vsyncadd [#allocation3], %s42
      %s44 = sshll.u32 [#allocation2], 4
      %s45 = int_to_ptr.vmem [resolvable:$true] %s44
      %50 = dma.hbm_to_vmem [thread:$0]  %s0, 256, %s45, [#allocation3], 128, 128, 8
    $region5: #{tpu_custom_call.1} parent=1 // pred_fallthru
      _
    // Predicated region
    $region6: #{tpu_custom_call.1} parent=1 // pred_check
      _
    $region7: #{tpu_custom_call.1} parent=1 // pred_check_branch
      %52 = sbr.rel (0) target = $region9
    $region8: #{tpu_custom_call.1} parent=1 // pred_region
      %s54 = ssub.s32 256, 256
      %55 = vsyncadd [#allocation6], %s54
      %s56 = sshll.u32 [#allocation5], 4
      %s57 = int_to_ptr.vmem [resolvable:$true] %s56
      %62 = dma.hbm_to_vmem [thread:$0]  %s1, 256, %s57, [#allocation6], 128, 128, 8
    $region9: #{tpu_custom_call.1} parent=1 // pred_fallthru
      _
    // Predicated region
    $region10: #{tpu_custom_call.1} parent=1 // pred_check
      _
    $region11: #{tpu_custom_call.1} parent=1 // pred_check_branch
      %64 = sbr.rel (0) target = $region13
    $region12: #{tpu_custom_call.1} parent=1 // pred_region
      _
    $region13: #{tpu_custom_call.1} parent=1 // pred_fallthru
      _
    // Predicated region
    $region14: #{tpu_custom_call.1} parent=1 // pred_check
      _
    $region15: #{tpu_custom_call.1} parent=1 // pred_check_branch
      %66 = sbr.rel (0) target = $region17
    $region16: #{tpu_custom_call.1} parent=1 // pred_region
      _
    $region17: #{tpu_custom_call.1} parent=1 // pred_fallthru
      _
    // Predicated region
    $region18: #{tpu_custom_call.1} parent=1 // pred_check
      _
    $region19: #{tpu_custom_call.1} parent=1 // pred_check_branch
      %68 = sbr.rel (0) target = $region21
    $region20: #{tpu_custom_call.1} parent=1 // pred_region
      _
    $region21: #{tpu_custom_call.1} parent=1 // pred_fallthru
      _
    // Predicated region
    $region22: #{tpu_custom_call.1} parent=1 // pred_check
      _
    $region23: #{tpu_custom_call.1} parent=1 // pred_check_branch
      %70 = sbr.rel (0) target = $region25
    $region24: #{tpu_custom_call.1} parent=1 // pred_region
      _
    $region25: #{tpu_custom_call.1} parent=1 // pred_fallthru
      _
    // Predicated region
    $region26: #{tpu_custom_call.1} parent=1 // pred_check
      _
    $region27: #{tpu_custom_call.1} parent=1 // pred_check_branch
      %72 = sbr.rel (0) target = $region29
    $region28: #{tpu_custom_call.1} parent=1 // pred_region
      %s74 = ssub.s32 1536, 1536
      %75 = vsyncadd [#allocation6], %s74
      %s76 = sshll.u32 [#allocation7], 4
      %s77 = int_to_ptr.vmem [resolvable:$true] %s76
      %82 = dma.hbm_to_vmem [thread:$0]  %s6, 1536, %s77, [#allocation6], 64, 64, 4
    $region29: #{tpu_custom_call.1} parent=1 // pred_fallthru
      _
    // Predicated region
    $region30: #{tpu_custom_call.1} parent=1 // pred_check
      _
    $region31: #{tpu_custom_call.1} parent=1 // pred_check_branch
      %84 = sbr.rel (0) target = $region33
    $region32: #{tpu_custom_call.1} parent=1 // pred_region
      _
    $region33: #{tpu_custom_call.1} parent=1 // pred_fallthru
      _
    // Predicated region
    $region34: #{tpu_custom_call.1} parent=1 // pred_check
      _
    $region35: #{tpu_custom_call.1} parent=1 // pred_check_branch
      %86 = sbr.rel (0) target = $region37
    $region36: #{tpu_custom_call.1} parent=1 // pred_region
      _
    $region37: #{tpu_custom_call.1} parent=1 // pred_fallthru
      _
    // Predicated region
    $region38: #{tpu_custom_call.1} parent=1 // pred_check
      _
    $region39: #{tpu_custom_call.1} parent=1 // pred_check_branch
      %88 = sbr.rel (0) target = $region41
    $region40: #{tpu_custom_call.1} parent=1 // pred_region
      _
    $region41: #{tpu_custom_call.1} parent=1 // pred_fallthru
      _
    // Predicated region
    $region42: #{tpu_custom_call.1} parent=1 // pred_check
      _
    $region43: #{tpu_custom_call.1} parent=1 // pred_check_branch
      %90 = sbr.rel (0) target = $region45
    $region44: #{tpu_custom_call.1} parent=1 // pred_region
      _
    $region45: #{tpu_custom_call.1} parent=1 // pred_fallthru
      _
    // Predicated region
    $region46: #{tpu_custom_call.1} parent=1 // pred_check
      _
    $region47: #{tpu_custom_call.1} parent=1 // pred_check_branch
      %92 = sbr.rel (0) target = $region49
    $region48: #{tpu_custom_call.1} parent=1 // pred_region
      _
    $region49: #{tpu_custom_call.1} parent=1 // pred_fallthru
      _
    // Predicated region
    $region50: #{tpu_custom_call.1} parent=1 // pred_check
      _
    $region51: #{tpu_custom_call.1} parent=1 // pred_check_branch
      %94 = sbr.rel (0) target = $region53
    $region52: #{tpu_custom_call.1} parent=1 // pred_region
      _
    $region53: #{tpu_custom_call.1} parent=1 // pred_fallthru
      _
    // Predicated region
    $region54: #{tpu_custom_call.1} parent=1 // pred_check
      _
    $region55: #{tpu_custom_call.1} parent=1 // pred_check_branch
      %96 = sbr.rel (0) target = $region57
    $region56: #{tpu_custom_call.1} parent=1 // pred_region
      _
    $region57: #{tpu_custom_call.1} parent=1 // pred_fallthru
      _
    // Predicated region
    $region58: #{tpu_custom_call.1} parent=1 // pred_check
      _
    $region59: #{tpu_custom_call.1} parent=1 // pred_check_branch
      %98 = sbr.rel (0) target = $region61
    $region60: #{tpu_custom_call.1} parent=1 // pred_region
      _
    $region61: #{tpu_custom_call.1} parent=1 // pred_fallthru
      _
    // Predicated region
    $region62: #{tpu_custom_call.1} parent=1 // pred_check
      _
    $region63: #{tpu_custom_call.1} parent=1 // pred_check_branch
      %100 = sbr.rel (0) target = $region65
    $region64: #{tpu_custom_call.1} parent=1 // pred_region
      _
    $region65: #{tpu_custom_call.1} parent=1 // pred_fallthru
      _
    // Predicated region
    $region66: #{tpu_custom_call.1} parent=1 // pred_check
      _
    $region67: #{tpu_custom_call.1} parent=1 // pred_check_branch
      %102 = sbr.rel (0) target = $region69
    $region68: #{tpu_custom_call.1} parent=1 // pred_region
      %s104 = ssub.s32 1024, 1024
      %105 = vsyncadd [#allocation9], %s104
      %s106 = sshll.u32 [#allocation8], 4
      %s107 = int_to_ptr.vmem [resolvable:$true] %s106
      %112 = dma.hbm_to_vmem [thread:$0]  %s16, 1024, %s107, [#allocation9], 64, 64, 4
    $region69: #{tpu_custom_call.1} parent=1 // pred_fallthru
      _
    // Predicated region
    $region70: #{tpu_custom_call.1} parent=1 // pred_check
      _
    $region71: #{tpu_custom_call.1} parent=1 // pred_check_branch
      %114 = sbr.rel (0) target = $region73
    $region72: #{tpu_custom_call.1} parent=1 // pred_region
      %s116 = ssub.s32 1024, 1024
      %117 = vsyncadd [#allocation9], %s116
      %s118 = sshll.u32 [#allocation10], 4
      %s119 = int_to_ptr.vmem [resolvable:$true] %s118
      %124 = dma.hbm_to_vmem [thread:$0]  %s17, 1024, %s119, [#allocation9], 64, 64, 4
    $region73: #{tpu_custom_call.1} parent=1 // pred_fallthru
      _
    // Predicated region
    $region74: #{tpu_custom_call.1} parent=1 // pred_check
      _
    $region75: #{tpu_custom_call.1} parent=1 // pred_check_branch
      %126 = sbr.rel (0) target = $region77
    $region76: #{tpu_custom_call.1} parent=1 // pred_region
      %s128 = ssub.s32 1024, 1024
      %129 = vsyncadd [#allocation12], %s128
      %s130 = sshll.u32 [#allocation11], 4
      %s131 = int_to_ptr.vmem [resolvable:$true] %s130
      %136 = dma.hbm_to_vmem [thread:$0]  %s18, 1024, %s131, [#allocation12], 64, 64, 4
    $region77: #{tpu_custom_call.1} parent=1 // pred_fallthru
      _
    // Predicated region
    $region78: #{tpu_custom_call.1} parent=1 // pred_check
      _
    $region79: #{tpu_custom_call.1} parent=1 // pred_check_branch
      %138 = sbr.rel (0) target = $region81
    $region80: #{tpu_custom_call.1} parent=1 // pred_region
      %s140 = ssub.s32 32, 32
      %141 = vsyncadd [#allocation12], %s140
      %s142 = sshll.u32 [#allocation13], 4
      %s143 = int_to_ptr.vmem [resolvable:$true] %s142
      %148 = dma.hbm_to_vmem [thread:$0]  %s19, 32, %s143, [#allocation12], 16, 16, 1
    $region81: #{tpu_custom_call.1} parent=1 // pred_fallthru
      _
    // Predicated region
    $region82: #{tpu_custom_call.1} parent=1 // pred_check
      _
    $region83: #{tpu_custom_call.1} parent=1 // pred_check_branch
      %150 = sbr.rel (0) target = $region85
    $region84: #{tpu_custom_call.1} parent=1 // pred_region
      %s152 = ssub.s32 32, 32
      %153 = vsyncadd [#allocation15], %s152
      %s154 = sshll.u32 [#allocation14], 4
      %s155 = int_to_ptr.vmem [resolvable:$true] %s154
      %160 = dma.hbm_to_vmem [thread:$0]  %s20, 32, %s155, [#allocation15], 16, 16, 1
    $region85: #{tpu_custom_call.1} parent=1 // pred_fallthru
      _
    // Predicated region
    $region86: #{tpu_custom_call.1} parent=1 // pred_check
      _
    $region87: #{tpu_custom_call.1} parent=1 // pred_check_branch
      %162 = sbr.rel (0) target = $region89
    $region88: #{tpu_custom_call.1} parent=1 // pred_region
      %s164 = ssub.s32 1024, 1024
      %165 = vsyncadd [#allocation15], %s164
      %s166 = sshll.u32 [#allocation16], 4
      %s167 = int_to_ptr.vmem [resolvable:$true] %s166
      %172 = dma.hbm_to_vmem [thread:$0]  %s21, 1024, %s167, [#allocation15], 64, 64, 4
    $region89: #{tpu_custom_call.1} parent=1 // pred_fallthru
      _
    // Predicated region
    $region90: #{tpu_custom_call.1} parent=1 // pred_check
      _
    $region91: #{tpu_custom_call.1} parent=1 // pred_check_branch
      %174 = sbr.rel (0) target = $region93
    $region92: #{tpu_custom_call.1} parent=1 // pred_region
      %s176 = ssub.s32 32, 32
      %177 = vsyncadd [#allocation18], %s176
      %s178 = sshll.u32 [#allocation17], 4
      %s179 = int_to_ptr.vmem [resolvable:$true] %s178
      %184 = dma.hbm_to_vmem [thread:$0]  %s22, 32, %s179, [#allocation18], 16, 16, 1
    $region93: #{tpu_custom_call.1} parent=1 // pred_fallthru
      _
    // Predicated region
    $region94: #{tpu_custom_call.1} parent=1 // pred_check
      _
    $region95: #{tpu_custom_call.1} parent=1 // pred_check_branch
      %186 = sbr.rel (0) target = $region97
    $region96: #{tpu_custom_call.1} parent=1 // pred_region
      _
    $region97: #{tpu_custom_call.1} parent=1 // pred_fallthru
      _
    // Predicated region
    $region98: #{tpu_custom_call.1} parent=1 // pred_check
      _
    $region99: #{tpu_custom_call.1} parent=1 // pred_check_branch
      %188 = sbr.rel (0) target = $region101
    $region100: #{tpu_custom_call.1} parent=1 // pred_region
      _
    $region101: #{tpu_custom_call.1} parent=1 // pred_fallthru
      _
    // Predicated region
    $region102: #{tpu_custom_call.1} parent=1 // pred_check
      _
    $region103: #{tpu_custom_call.1} parent=1 // pred_check_branch
      %190 = sbr.rel (0) target = $region105
    $region104: #{tpu_custom_call.1} parent=1 // pred_region
      _
    $region105: #{tpu_custom_call.1} parent=1 // pred_fallthru
      _
    // Predicated region
    $region106: #{tpu_custom_call.1} parent=1 // pred_check
      _
    $region107: #{tpu_custom_call.1} parent=1 // pred_check_branch
      %192 = sbr.rel (0) target = $region109
    $region108: #{tpu_custom_call.1} parent=1 // pred_region
      _
    $region109: #{tpu_custom_call.1} parent=1 // pred_fallthru
      _
    // Predicated region
    $region110: #{tpu_custom_call.1} parent=1 // pred_check
      _
    $region111: #{tpu_custom_call.1} parent=1 // pred_check_branch
      %194 = sbr.rel (0) target = $region113
    $region112: #{tpu_custom_call.1} parent=1 // pred_region
      %195 = dma.done [#allocation3], 256
    $region113: #{tpu_custom_call.1} parent=1 // pred_fallthru
      _
    // Predicated region
    $region114: #{tpu_custom_call.1} parent=1 // pred_check
      _
    $region115: #{tpu_custom_call.1} parent=1 // pred_check_branch
      %197 = sbr.rel (0) target = $region117
    $region116: #{tpu_custom_call.1} parent=1 // pred_region
      %198 = dma.done [#allocation6], 256
    $region117: #{tpu_custom_call.1} parent=1 // pred_fallthru
      _
    // Predicated region
    $region118: #{tpu_custom_call.1} parent=1 // pred_check
      _
    $region119: #{tpu_custom_call.1} parent=1 // pred_check_branch
      %200 = sbr.rel (0) target = $region121
    $region120: #{tpu_custom_call.1} parent=1 // pred_region
      %201 = dma.done [#allocation6], 1536
    $region121: #{tpu_custom_call.1} parent=1 // pred_fallthru
      _
    // Predicated region
    $region122: #{tpu_custom_call.1} parent=1 // pred_check
      _
    $region123: #{tpu_custom_call.1} parent=1 // pred_check_branch
      %203 = sbr.rel (0) target = $region125
    $region124: #{tpu_custom_call.1} parent=1 // pred_region
      %204 = dma.done [#allocation9], 1024
    $region125: #{tpu_custom_call.1} parent=1 // pred_fallthru
      _
    // Predicated region
    $region126: #{tpu_custom_call.1} parent=1 // pred_check
      _
    $region127: #{tpu_custom_call.1} parent=1 // pred_check_branch
      %206 = sbr.rel (0) target = $region129
    $region128: #{tpu_custom_call.1} parent=1 // pred_region
      %207 = dma.done [#allocation9], 1024
    $region129: #{tpu_custom_call.1} parent=1 // pred_fallthru
      _
    // Predicated region
    $region130: #{tpu_custom_call.1} parent=1 // pred_check
      _
    $region131: #{tpu_custom_call.1} parent=1 // pred_check_branch
      %209 = sbr.rel (0) target = $region133
    $region132: #{tpu_custom_call.1} parent=1 // pred_region
      %210 = dma.done [#allocation12], 1024
    $region133: #{tpu_custom_call.1} parent=1 // pred_fallthru
      _
    // Predicated region
    $region134: #{tpu_custom_call.1} parent=1 // pred_check
      _
    $region135: #{tpu_custom_call.1} parent=1 // pred_check_branch
      %212 = sbr.rel (0) target = $region137
    $region136: #{tpu_custom_call.1} parent=1 // pred_region
      %213 = dma.done [#allocation12], 32
    $region137: #{tpu_custom_call.1} parent=1 // pred_fallthru
      _
    // Predicated region
    $region138: #{tpu_custom_call.1} parent=1 // pred_check
      _
    $region139: #{tpu_custom_call.1} parent=1 // pred_check_branch
      %215 = sbr.rel (0) target = $region141
    $region140: #{tpu_custom_call.1} parent=1 // pred_region
      %216 = dma.done [#allocation15], 32
    $region141: #{tpu_custom_call.1} parent=1 // pred_fallthru
      _
    // Predicated region
    $region142: #{tpu_custom_call.1} parent=1 // pred_check
      _
    $region143: #{tpu_custom_call.1} parent=1 // pred_check_branch
      %218 = sbr.rel (0) target = $region145
    $region144: #{tpu_custom_call.1} parent=1 // pred_region
      %219 = dma.done [#allocation15], 1024
    $region145: #{tpu_custom_call.1} parent=1 // pred_fallthru
      _
    // Predicated region
    $region146: #{tpu_custom_call.1} parent=1 // pred_check
      _
    $region147: #{tpu_custom_call.1} parent=1 // pred_check_branch
      %221 = sbr.rel (0) target = $region149
    $region148: #{tpu_custom_call.1} parent=1 // pred_region
      %222 = dma.done [#allocation18], 32
    $region149: #{tpu_custom_call.1} parent=1 // pred_fallthru
      _
    %v224 = vld [vmem:[#allocation2] sm:$0xff]
    %v225 = vld [vmem:[#allocation2 + $0x8] sm:$0xff]
    %v226 = vld [vmem:[#allocation5] sm:$0xff]
    %v227 = vld [vmem:[#allocation5 + $0x8] sm:$0xff]
    %v228 = vld [vmem:[%s2] sm:$0xff]
    %v229 = vld [vmem:[%s2 + $0x8] sm:$0xff]
    %v230 = vld [vmem:[%s2 + $0x10] sm:$0xff]
    %v231 = vld [vmem:[%s2 + $0x18] sm:$0xff]
    %v232 = vld [vmem:[%s2 + $0x20] sm:$0xff]
    %v233 = vld [vmem:[%s2 + $0x28] sm:$0xff]
    %v234 = vld [vmem:[%s2 + $0x30] sm:$0xff]
    %v235 = vld [vmem:[%s2 + $0x38] sm:$0xff]
    %v236 = vpack.c.bf16 %v225, %v224
    %v245 = vunpack.c.l.b16 %v228
    %v246 = vunpack.c.h.b16 %v228
    %v247 = vunpack.c.l.b16 %v229
    %v248 = vunpack.c.h.b16 %v229
    %v249 = vunpack.c.l.b16 %v230
    %v250 = vunpack.c.h.b16 %v230
    %v251 = vunpack.c.l.b16 %v231
    %v252 = vunpack.c.h.b16 %v231
    %v253 = vunpack.c.l.b16 %v232
    %v254 = vunpack.c.h.b16 %v232
    %v255 = vunpack.c.l.b16 %v233
    %v256 = vunpack.c.h.b16 %v233
    %v257 = vunpack.c.l.b16 %v234
    %v258 = vunpack.c.h.b16 %v234
    %v259 = vunpack.c.l.b16 %v235
    %v260 = vunpack.c.h.b16 %v235
    %v261 = vpack.c.b16 %v247, %v245
    %v262 = vpack.c.b16 %v248, %v246
    %v263 = vpack.c.b16 %v251, %v249
    %v264 = vpack.c.b16 %v252, %v250
    %v265 = vpack.c.b16 %v255, %v253
    %v266 = vpack.c.b16 %v256, %v254
    %v267 = vpack.c.b16 %v259, %v257
    %v268 = vpack.c.b16 %v260, %v258
    %vm277 = vcmask 523264
    %v279 = vsel %vm277, %v236, 0
    %281 = vmatprep.subr.bf16.mxu0 %v262
    %282 = vmatpush1.bf16.msra.mxu0 %v261
    %283 = vmatprep.subr.bf16.mxu0 %v264
    %284 = vmatpush1.bf16.msra.mxu0 %v263
    %285 = vmatprep.subr.bf16.mxu0 %v266
    %286 = vmatpush1.bf16.msra.mxu0 %v265
    %287 = vmatprep.subr.bf16.mxu0 %v268
    %288 = vmatpush1.bf16.msra.mxu0 %v267
    %289 = vmatprep.subr.bf16.mxu0 0
    %290 = vmatpush1.bf16.msra.mxu0 0
    %291 = vmatprep.subr.bf16.mxu0 0
    %292 = vmatpush1.bf16.msra.mxu0 0
    %293 = vmatprep.subr.bf16.mxu0 0
    %294 = vmatpush1.bf16.msra.mxu0 0
    %295 = vmatprep.subr.bf16.mxu0 0
    %296 = vmatpush1.bf16.msra.mxu0 0
    %297 = vmatprep.subr.bf16.mxu0 0
    %298 = vmatpush1.bf16.msra.mxu0 0
    %299 = vmatprep.subr.bf16.mxu0 0
    %300 = vmatpush1.bf16.msra.mxu0 0
    %301 = vmatprep.subr.bf16.mxu0 0
    %302 = vmatpush1.bf16.msra.mxu0 0
    %303 = vmatprep.subr.bf16.mxu0 0
    %304 = vmatpush1.bf16.msra.mxu0 0
    %305 = vmatprep.subr.bf16.mxu0 0
    %306 = vmatpush1.bf16.msra.mxu0 0
    %307 = vmatprep.subr.bf16.mxu0 0
    %308 = vmatpush1.bf16.msra.mxu0 0
    %309 = vmatprep.subr.bf16.mxu0 0
    %310 = vmatpush1.bf16.msra.mxu0 0
    %311 = vmatprep.subr.bf16.mxu0 0
    %312 = vmatpush1.bf16.msra.mxu0 0
    %313 = vmatprep.mubr.bf16.mxu0 0
    %314 = vmatmul.mubr.bf16.gmra.mrb[0].mxu0 %v279
    %v315 = vpop.f32.mrb[0].mxu0
    %v316 = vadd.f32 0.0, %v315
    %v317 = vpop.f32.mrb[0].mxu0
    %v318 = vadd.f32 0.0, %v317
    %v319 = vpop.f32.mrb[0].mxu0
    %v320 = vadd.f32 0.0, %v319
    %v321 = vpop.f32.mrb[0].mxu0
    %v322 = vadd.f32 0.0, %v321
    %323 = vdwg.mxu0
    %325 = vrot.lane.b32.xlu0 %v316, 64
    %v326 = vpop.permute.xlu0 %325
    %v327 = vsel %vm277, %v316, 0
    %v329 = vsel %vm277, %v326, 0
    %331 = vmatprep.subr.mxu0 0.0
    %332 = vmatpush1.xpose.msra.mxu0 %v329
    %333 = vmatprep.subr.mxu0 0.0
    %334 = vmatpush1.xpose.msra.mxu0 0.0
    %335 = vmatprep.subr.mxu0 0.0
    %336 = vmatpush1.xpose.msra.mxu0 0.0
    %337 = vmatprep.subr.mxu0 0.0
    %338 = vmatpush1.xpose.msra.mxu0 0.0
    %339 = vmatprep.subr.mxu0 0.0
    %340 = vmatpush1.xpose.msra.mxu0 0.0
    %341 = vmatprep.subr.mxu0 0.0
    %342 = vmatpush1.xpose.msra.mxu0 0.0
    %343 = vmatprep.subr.mxu0 0.0
    %344 = vmatpush1.xpose.msra.mxu0 0.0
    %345 = vmatprep.subr.mxu0 0.0
    %346 = vmatpush1.xpose.msra.mxu0 0.0
    %347 = vmatprep.subr.mxu0 0.0
    %348 = vmatpush1.xpose.msra.mxu0 0.0
    %349 = vmatprep.subr.mxu0 0.0
    %350 = vmatpush1.xpose.msra.mxu0 0.0
    %351 = vmatprep.subr.mxu0 0.0
    %352 = vmatpush1.xpose.msra.mxu0 0.0
    %353 = vmatprep.subr.mxu0 0.0
    %354 = vmatpush1.xpose.msra.mxu0 0.0
    %355 = vmatprep.subr.mxu0 0.0
    %356 = vmatpush1.xpose.msra.mxu0 0.0
    %357 = vmatprep.subr.mxu0 0.0
    %358 = vmatpush1.xpose.msra.mxu0 0.0
    %359 = vmatprep.subr.mxu0 0.0
    %360 = vmatpush1.xpose.msra.mxu0 0.0
    %361 = vmatprep.subr.mxu0 0.0
    %362 = vmatpush1.xpose.msra.mxu0 0.0
    %363 = vmatprep.subr.mxu0 0.0
    %364 = vmatpush1.xpose.msra.mxu0 0.0
    %365 = vmatprep.subr.mxu0 0.0
    %366 = vmatpush1.xpose.msra.mxu0 0.0
    %367 = vmatprep.subr.mxu0 0.0
    %368 = vmatpush1.xpose.msra.mxu0 0.0
    %369 = vmatprep.subr.mxu0 0.0
    %370 = vmatpush1.xpose.msra.mxu0 0.0
    %371 = vmatprep.subr.mxu0 0.0
    %372 = vmatpush1.xpose.msra.mxu0 0.0
    %373 = vmatprep.subr.mxu0 0.0
    %374 = vmatpush1.xpose.msra.mxu0 0.0
    %375 = vmatprep.subr.mxu0 0.0
    %376 = vmatpush1.xpose.msra.mxu0 0.0
    %377 = vmatprep.subr.mxu0 0.0
    %378 = vmatpush1.xpose.msra.mxu0 0.0
    %379 = vmatprep.subr.mxu0 0.0
    %380 = vmatpush1.xpose.msra.mxu0 0.0
    %381 = vmatprep.subr.mxu0 0.0
    %382 = vmatpush1.xpose.msra.mxu0 0.0
    %383 = vmatprep.subr.mxu0 0.0
    %384 = vmatpush1.xpose.msra.mxu0 0.0
    %385 = vmatprep.subr.mxu0 0.0
    %386 = vmatpush1.xpose.msra.mxu0 0.0
    %387 = vmatprep.subr.mxu0 0.0
    %388 = vmatpush1.xpose.msra.mxu0 0.0
    %389 = vmatprep.subr.mxu0 0.0
    %390 = vmatpush1.xpose.msra.mxu0 0.0
    %391 = vmatprep.subr.mxu0 0.0
    %392 = vmatpush1.xpose.msra.mxu0 0.0
    %393 = vmatprep.subr.mxu0 0.0
    %394 = vmatpush1.xpose.msra.mxu0 0.0
    %395 = vmatprep.mubr.f32.mxu0 0.0
    %396 = vmatmul.mubr.f32.gmra.mrb[0].mxu0 %v327
    %v397 = vpop.f32.mrb[0].mxu0
    %v398 = vadd.f32 0.0, %v397
    %v399 = vpop.f32.mrb[0].mxu0
    %400 = vdwg.mxu0
    %402 = vrot.lane.b32.xlu0 %v320, 64
    %v403 = vpop.permute.xlu0 %402
    %v404 = vsel %vm277, %v320, 0
    %v406 = vsel %vm277, %v403, 0
    %408 = vmatprep.subr.mxu0 0.0
    %409 = vmatpush1.xpose.msra.mxu0 %v406
    %410 = vmatprep.subr.mxu0 0.0
    %411 = vmatpush1.xpose.msra.mxu0 0.0
    %412 = vmatprep.subr.mxu0 0.0
    %413 = vmatpush1.xpose.msra.mxu0 0.0
    %414 = vmatprep.subr.mxu0 0.0
    %415 = vmatpush1.xpose.msra.mxu0 0.0
    %416 = vmatprep.subr.mxu0 0.0
    %417 = vmatpush1.xpose.msra.mxu0 0.0
    %418 = vmatprep.subr.mxu0 0.0
    %419 = vmatpush1.xpose.msra.mxu0 0.0
    %420 = vmatprep.subr.mxu0 0.0
    %421 = vmatpush1.xpose.msra.mxu0 0.0
    %422 = vmatprep.subr.mxu0 0.0
    %423 = vmatpush1.xpose.msra.mxu0 0.0
    %424 = vmatprep.subr.mxu0 0.0
    %425 = vmatpush1.xpose.msra.mxu0 0.0
    %426 = vmatprep.subr.mxu0 0.0
    %427 = vmatpush1.xpose.msra.mxu0 0.0
    %428 = vmatprep.subr.mxu0 0.0
    %429 = vmatpush1.xpose.msra.mxu0 0.0
    %430 = vmatprep.subr.mxu0 0.0
    %431 = vmatpush1.xpose.msra.mxu0 0.0
    %432 = vmatprep.subr.mxu0 0.0
    %433 = vmatpush1.xpose.msra.mxu0 0.0
    %434 = vmatprep.subr.mxu0 0.0
    %435 = vmatpush1.xpose.msra.mxu0 0.0
    %436 = vmatprep.subr.mxu0 0.0
    %437 = vmatpush1.xpose.msra.mxu0 0.0
    %438 = vmatprep.subr.mxu0 0.0
    %439 = vmatpush1.xpose.msra.mxu0 0.0
    %440 = vmatprep.subr.mxu0 0.0
    %441 = vmatpush1.xpose.msra.mxu0 0.0
    %442 = vmatprep.subr.mxu0 0.0
    %443 = vmatpush1.xpose.msra.mxu0 0.0
    %444 = vmatprep.subr.mxu0 0.0
    %445 = vmatpush1.xpose.msra.mxu0 0.0
    %446 = vmatprep.subr.mxu0 0.0
    %447 = vmatpush1.xpose.msra.mxu0 0.0
    %448 = vmatprep.subr.mxu0 0.0
    %449 = vmatpush1.xpose.msra.mxu0 0.0
    %450 = vmatprep.subr.mxu0 0.0
    %451 = vmatpush1.xpose.msra.mxu0 0.0
    %452 = vmatprep.subr.mxu0 0.0
    %453 = vmatpush1.xpose.msra.mxu0 0.0
    %454 = vmatprep.subr.mxu0 0.0
    %455 = vmatpush1.xpose.msra.mxu0 0.0
    %456 = vmatprep.subr.mxu0 0.0
    %457 = vmatpush1.xpose.msra.mxu0 0.0
    %458 = vmatprep.subr.mxu0 0.0
    %459 = vmatpush1.xpose.msra.mxu0 0.0
    %460 = vmatprep.subr.mxu0 0.0
    %461 = vmatpush1.xpose.msra.mxu0 0.0
    %462 = vmatprep.subr.mxu0 0.0
    %463 = vmatpush1.xpose.msra.mxu0 0.0
    %464 = vmatprep.subr.mxu0 0.0
    %465 = vmatpush1.xpose.msra.mxu0 0.0
    %466 = vmatprep.subr.mxu0 0.0
    %467 = vmatpush1.xpose.msra.mxu0 0.0
    %468 = vmatprep.subr.mxu0 0.0
    %469 = vmatpush1.xpose.msra.mxu0 0.0
    %470 = vmatprep.subr.mxu0 0.0
    %471 = vmatpush1.xpose.msra.mxu0 0.0
    %472 = vmatprep.mubr.f32.mxu0 0.0
    %473 = vmatmul.mubr.f32.gmra.mrb[0].mxu0 %v404
    %v474 = vpop.f32.mrb[0].mxu0
    %v475 = vadd.f32 0.0, %v474
    %v476 = vpop.f32.mrb[0].mxu0
    %477 = vdwg.mxu0
    %vm478 = vcmask 64512
    %v479 = vsel %vm478, %v398, -inf
    %480 = vmax.xlane.f32.xlu0 %v479
    %v481 = vpop.xlane.xlu0 %480
    %v482 = vsel %vm478, %v475, -inf
    %483 = vmax.xlane.f32.xlu0 %v482
    %v484 = vpop.xlane.xlu0 %483
    %v485 = vsub.f32 %v398, %v481
    %v486 = vsub.f32 %v475, %v484
    %v487 = vmul.f32 %v485, 1.442695
    %v488 = vpow.pop %v487
    %v489 = vmul.f32 %v486, 1.442695
    %v490 = vpow.pop %v489
    %v491 = vsel %vm478, %v488, 0.0
    %492 = vadd.xlane.f32.xlu0 %v491
    %v493 = vpop.xlane.xlu0 %492
    %v494 = vsel %vm478, %v490, 0.0
    %495 = vadd.xlane.f32.xlu0 %v494
    %v496 = vpop.xlane.xlu0 %495
    %v497 = vrcp.pop %v493
    %v498 = vrcp.pop %v496
    %v499 = vmul.f32 %v488, %v497
    %v500 = vmul.f32 %v490, %v498
    %v502 = vsel %vm478, %v499, 0
    %504 = vmatprep.subr.mxu0 0.0
    %505 = vmatpush1.msra.mxu0 %v318
    %506 = vmatprep.subr.mxu0 0.0
    %507 = vmatpush1.msra.mxu0 0.0
    %508 = vmatprep.subr.mxu0 0.0
    %509 = vmatpush1.msra.mxu0 0.0
    %510 = vmatprep.subr.mxu0 0.0
    %511 = vmatpush1.msra.mxu0 0.0
    %512 = vmatprep.subr.mxu0 0.0
    %513 = vmatpush1.msra.mxu0 0.0
    %514 = vmatprep.subr.mxu0 0.0
    %515 = vmatpush1.msra.mxu0 0.0
    %516 = vmatprep.subr.mxu0 0.0
    %517 = vmatpush1.msra.mxu0 0.0
    %518 = vmatprep.subr.mxu0 0.0
    %519 = vmatpush1.msra.mxu0 0.0
    %520 = vmatprep.subr.mxu0 0.0
    %521 = vmatpush1.msra.mxu0 0.0
    %522 = vmatprep.subr.mxu0 0.0
    %523 = vmatpush1.msra.mxu0 0.0
    %524 = vmatprep.subr.mxu0 0.0
    %525 = vmatpush1.msra.mxu0 0.0
    %526 = vmatprep.subr.mxu0 0.0
    %527 = vmatpush1.msra.mxu0 0.0
    %528 = vmatprep.subr.mxu0 0.0
    %529 = vmatpush1.msra.mxu0 0.0
    %530 = vmatprep.subr.mxu0 0.0
    %531 = vmatpush1.msra.mxu0 0.0
    %532 = vmatprep.subr.mxu0 0.0
    %533 = vmatpush1.msra.mxu0 0.0
    %534 = vmatprep.subr.mxu0 0.0
    %535 = vmatpush1.msra.mxu0 0.0
    %536 = vmatprep.subr.mxu0 0.0
    %537 = vmatpush1.msra.mxu0 0.0
    %538 = vmatprep.subr.mxu0 0.0
    %539 = vmatpush1.msra.mxu0 0.0
    %540 = vmatprep.subr.mxu0 0.0
    %541 = vmatpush1.msra.mxu0 0.0
    %542 = vmatprep.subr.mxu0 0.0
    %543 = vmatpush1.msra.mxu0 0.0
    %544 = vmatprep.subr.mxu0 0.0
    %545 = vmatpush1.msra.mxu0 0.0
    %546 = vmatprep.subr.mxu0 0.0
    %547 = vmatpush1.msra.mxu0 0.0
    %548 = vmatprep.subr.mxu0 0.0
    %549 = vmatpush1.msra.mxu0 0.0
    %550 = vmatprep.subr.mxu0 0.0
    %551 = vmatpush1.msra.mxu0 0.0
    %552 = vmatprep.subr.mxu0 0.0
    %553 = vmatpush1.msra.mxu0 0.0
    %554 = vmatprep.subr.mxu0 0.0
    %555 = vmatpush1.msra.mxu0 0.0
    %556 = vmatprep.subr.mxu0 0.0
    %557 = vmatpush1.msra.mxu0 0.0
    %558 = vmatprep.subr.mxu0 0.0
    %559 = vmatpush1.msra.mxu0 0.0
    %560 = vmatprep.subr.mxu0 0.0
    %561 = vmatpush1.msra.mxu0 0.0
    %562 = vmatprep.subr.mxu0 0.0
    %563 = vmatpush1.msra.mxu0 0.0
    %564 = vmatprep.subr.mxu0 0.0
    %565 = vmatpush1.msra.mxu0 0.0
    %566 = vmatprep.subr.mxu0 0.0
    %567 = vmatpush1.msra.mxu0 0.0
    %568 = vmatprep.mubr.f32.mxu0 0.0
    %569 = vmatmul.mubr.f32.gmra.mrb[0].mxu0 %v502
    %v570 = vpop.f32.mrb[0].mxu0
    %v571 = vadd.f32 0.0, %v570
    %v572 = vpop.f32.mrb[0].mxu0
    %573 = vdwg.mxu0
    %v575 = vsel %vm478, %v500, 0
    %577 = vmatprep.subr.mxu0 0.0
    %578 = vmatpush1.msra.mxu0 %v322
    %579 = vmatprep.subr.mxu0 0.0
    %580 = vmatpush1.msra.mxu0 0.0
    %581 = vmatprep.subr.mxu0 0.0
    %582 = vmatpush1.msra.mxu0 0.0
    %583 = vmatprep.subr.mxu0 0.0
    %584 = vmatpush1.msra.mxu0 0.0
    %585 = vmatprep.subr.mxu0 0.0
    %586 = vmatpush1.msra.mxu0 0.0
    %587 = vmatprep.subr.mxu0 0.0
    %588 = vmatpush1.msra.mxu0 0.0
    %589 = vmatprep.subr.mxu0 0.0
    %590 = vmatpush1.msra.mxu0 0.0
    %591 = vmatprep.subr.mxu0 0.0
    %592 = vmatpush1.msra.mxu0 0.0
    %593 = vmatprep.subr.mxu0 0.0
    %594 = vmatpush1.msra.mxu0 0.0
    %595 = vmatprep.subr.mxu0 0.0
    %596 = vmatpush1.msra.mxu0 0.0
    %597 = vmatprep.subr.mxu0 0.0
    %598 = vmatpush1.msra.mxu0 0.0
    %599 = vmatprep.subr.mxu0 0.0
    %600 = vmatpush1.msra.mxu0 0.0
    %601 = vmatprep.subr.mxu0 0.0
    %602 = vmatpush1.msra.mxu0 0.0
    %603 = vmatprep.subr.mxu0 0.0
    %604 = vmatpush1.msra.mxu0 0.0
    %605 = vmatprep.subr.mxu0 0.0
    %606 = vmatpush1.msra.mxu0 0.0
    %607 = vmatprep.subr.mxu0 0.0
    %608 = vmatpush1.msra.mxu0 0.0
    %609 = vmatprep.subr.mxu0 0.0
    %610 = vmatpush1.msra.mxu0 0.0
    %611 = vmatprep.subr.mxu0 0.0
    %612 = vmatpush1.msra.mxu0 0.0
    %613 = vmatprep.subr.mxu0 0.0
    %614 = vmatpush1.msra.mxu0 0.0
    %615 = vmatprep.subr.mxu0 0.0
    %616 = vmatpush1.msra.mxu0 0.0
    %617 = vmatprep.subr.mxu0 0.0
    %618 = vmatpush1.msra.mxu0 0.0
    %619 = vmatprep.subr.mxu0 0.0
    %620 = vmatpush1.msra.mxu0 0.0
    %621 = vmatprep.subr.mxu0 0.0
    %622 = vmatpush1.msra.mxu0 0.0
    %623 = vmatprep.subr.mxu0 0.0
    %624 = vmatpush1.msra.mxu0 0.0
    %625 = vmatprep.subr.mxu0 0.0
    %626 = vmatpush1.msra.mxu0 0.0
    %627 = vmatprep.subr.mxu0 0.0
    %628 = vmatpush1.msra.mxu0 0.0
    %629 = vmatprep.subr.mxu0 0.0
    %630 = vmatpush1.msra.mxu0 0.0
    %631 = vmatprep.subr.mxu0 0.0
    %632 = vmatpush1.msra.mxu0 0.0
    %633 = vmatprep.subr.mxu0 0.0
    %634 = vmatpush1.msra.mxu0 0.0
    %635 = vmatprep.subr.mxu0 0.0
    %636 = vmatpush1.msra.mxu0 0.0
    %637 = vmatprep.subr.mxu0 0.0
    %638 = vmatpush1.msra.mxu0 0.0
    %639 = vmatprep.subr.mxu0 0.0
    %640 = vmatpush1.msra.mxu0 0.0
    %641 = vmatprep.mubr.f32.mxu0 0.0
    %642 = vmatmul.mubr.f32.gmra.mrb[0].mxu0 %v575
    %v643 = vpop.f32.mrb[0].mxu0
    %v644 = vadd.f32 0.0, %v643
    %v645 = vpop.f32.mrb[0].mxu0
    %646 = vdwg.mxu0
    %v647 = vld [vmem:[%s3] sm:$0xf]
    %v648 = vld [vmem:[%s3 + $0x4] sm:$0xf]
    %v649 = vld [vmem:[%s3 + $0x8] sm:$0xf]
    %v650 = vld [vmem:[%s3 + $0xc] sm:$0xf]
    %v651 = vld [vmem:[%s3 + $0x10] sm:$0xf]
    %v652 = vld [vmem:[%s3 + $0x14] sm:$0xf]
    %v653 = vld [vmem:[%s3 + $0x18] sm:$0xf]
    %v654 = vld [vmem:[%s3 + $0x1c] sm:$0xf]
    %v655 = vpack.c.bf16 %v644, %v571
    %v664 = vunpack.c.l.b16 %v647
    %v665 = vunpack.c.l.b16 %v648
    %v666 = vunpack.c.l.b16 %v649
    %v667 = vunpack.c.l.b16 %v650
    %v668 = vunpack.c.l.b16 %v651
    %v669 = vunpack.c.l.b16 %v652
    %v670 = vunpack.c.l.b16 %v653
    %v671 = vunpack.c.l.b16 %v654
    %v672 = vpack.c.b16 %v665, %v664
    %v673 = vpack.c.b16 %v667, %v666
    %v674 = vpack.c.b16 %v669, %v668
    %v675 = vpack.c.b16 %v671, %v670
    %v681 = vsel %vm277, %v655, 0
    %683 = vmatprep.subr.bf16.mxu0 0
    %684 = vmatpush1.bf16.msra.mxu0 %v672
    %685 = vmatprep.subr.bf16.mxu0 0
    %686 = vmatpush1.bf16.msra.mxu0 %v673
    %687 = vmatprep.subr.bf16.mxu0 0
    %688 = vmatpush1.bf16.msra.mxu0 %v674
    %689 = vmatprep.subr.bf16.mxu0 0
    %690 = vmatpush1.bf16.msra.mxu0 %v675
    %691 = vmatprep.subr.bf16.mxu0 0
    %692 = vmatpush1.bf16.msra.mxu0 0
    %693 = vmatprep.subr.bf16.mxu0 0
    %694 = vmatpush1.bf16.msra.mxu0 0
    %695 = vmatprep.subr.bf16.mxu0 0
    %696 = vmatpush1.bf16.msra.mxu0 0
    %697 = vmatprep.subr.bf16.mxu0 0
    %698 = vmatpush1.bf16.msra.mxu0 0
    %699 = vmatprep.subr.bf16.mxu0 0
    %700 = vmatpush1.bf16.msra.mxu0 0
    %701 = vmatprep.subr.bf16.mxu0 0
    %702 = vmatpush1.bf16.msra.mxu0 0
    %703 = vmatprep.subr.bf16.mxu0 0
    %704 = vmatpush1.bf16.msra.mxu0 0
    %705 = vmatprep.subr.bf16.mxu0 0
    %706 = vmatpush1.bf16.msra.mxu0 0
    %707 = vmatprep.subr.bf16.mxu0 0
    %708 = vmatpush1.bf16.msra.mxu0 0
    %709 = vmatprep.subr.bf16.mxu0 0
    %710 = vmatpush1.bf16.msra.mxu0 0
    %711 = vmatprep.subr.bf16.mxu0 0
    %712 = vmatpush1.bf16.msra.mxu0 0
    %713 = vmatprep.subr.bf16.mxu0 0
    %714 = vmatpush1.bf16.msra.mxu0 0
    %715 = vmatprep.mubr.bf16.mxu0 0
    %716 = vmatmul.mubr.bf16.gmra.mrb[0].mxu0 %v681
    %v717 = vpop.f32.mrb[0].mxu0
    %v718 = vadd.f32 0.0, %v717
    %v719 = vpop.f32.mrb[0].mxu0
    %v720 = vpop.f32.mrb[0].mxu0
    %v721 = vadd.f32 0.0, %v720
    %v722 = vpop.f32.mrb[0].mxu0
    %723 = vdwg.mxu0
    %v724 = vadd.f32 %v224, %v718
    %v725 = vadd.f32 %v225, %v721
    %v726 = vld [vmem:[%s4] sm:$0x1]
    %v727 = vld [vmem:[%s5] sm:$0x1]
    %v728 = vsel %vm277, %v724, 0.0
    %729 = vadd.xlane.f32.xlu0 %v728
    %v730 = vpop.xlane.xlu0 %729
    %v731 = vsel %vm277, %v725, 0.0
    %732 = vadd.xlane.f32.xlu0 %v731
    %v733 = vpop.xlane.xlu0 %732
    %v734 = vrcp.pop 64.0
    %v735 = vmul.f32 %v730, %v734
    %v736 = vmul.f32 %v733, %v734
    %v737 = vsub.f32 %v724, %v735
    %v738 = vsub.f32 %v725, %v736
    %v739 = vmul.f32 %v737, %v737
    %v740 = vmul.f32 %v738, %v738
    %v741 = vsel %vm277, %v739, 0.0
    %742 = vadd.xlane.f32.xlu0 %v741
    %v743 = vpop.xlane.xlu0 %742
    %v744 = vsel %vm277, %v740, 0.0
    %745 = vadd.xlane.f32.xlu0 %v744
    %v746 = vpop.xlane.xlu0 %745
    %v747 = vmul.f32 %v743, %v734
    %v748 = vmul.f32 %v746, %v734
    %v749 = vadd.f32 %v747, 1e-05
    %v750 = vadd.f32 %v748, 1e-05
    %v751 = vrsqrt.pop %v749
    %v752 = vrsqrt.pop %v750
    %v753 = vmul.f32 %v737, %v751
    %v754 = vmul.f32 %v738, %v752
    %v756 = vlaneseq
    %v757 = vshrl.u32 %v756, 7
    %v758 = vsub.s32 0, %v757
    %v759 = vrot.slane %v726, %v758
    %v761 = vmul.f32 %v753, %v759
    %v762 = vmul.f32 %v754, %v759
    %v764 = vlaneseq
    %v765 = vshrl.u32 %v764, 7
    %v766 = vsub.s32 0, %v765
    %v767 = vrot.slane %v727, %v766
    %v769 = vadd.f32 %v761, %v767
    %v770 = vadd.f32 %v762, %v767
    %v771 = vld [vmem:[#allocation7] sm:$0xf]
    %v772 = vld [vmem:[#allocation7 + $0x4] sm:$0xf]
    %v773 = vld [vmem:[#allocation7 + $0x8] sm:$0xf]
    %v774 = vld [vmem:[#allocation7 + $0xc] sm:$0xf]
    %v775 = vld [vmem:[#allocation7 + $0x10] sm:$0xf]
    %v776 = vld [vmem:[#allocation7 + $0x14] sm:$0xf]
    %v777 = vld [vmem:[#allocation7 + $0x18] sm:$0xf]
    %v778 = vld [vmem:[#allocation7 + $0x1c] sm:$0xf]
    %v779 = vld [vmem:[%s7] sm:$0x1]
    %v780 = vld [vmem:[%s8] sm:$0xf]
    %v781 = vld [vmem:[%s8 + $0x4] sm:$0xf]
    %v782 = vld [vmem:[%s8 + $0x8] sm:$0xf]
    %v783 = vld [vmem:[%s8 + $0xc] sm:$0xf]
    %v784 = vld [vmem:[%s8 + $0x10] sm:$0xf]
    %v785 = vld [vmem:[%s8 + $0x14] sm:$0xf]
    %v786 = vld [vmem:[%s8 + $0x18] sm:$0xf]
    %v787 = vld [vmem:[%s8 + $0x1c] sm:$0xf]
    %v788 = vld [vmem:[%s8 + $0x20] sm:$0xf]
    %v789 = vld [vmem:[%s8 + $0x24] sm:$0xf]
    %v790 = vld [vmem:[%s8 + $0x28] sm:$0xf]
    %v791 = vld [vmem:[%s8 + $0x2c] sm:$0xf]
    %v792 = vld [vmem:[%s8 + $0x30] sm:$0xf]
    %v793 = vld [vmem:[%s8 + $0x34] sm:$0xf]
    %v794 = vld [vmem:[%s8 + $0x38] sm:$0xf]
    %v795 = vld [vmem:[%s8 + $0x3c] sm:$0xf]
    %v796 = vld [vmem:[%s9] sm:$0x1]
    %v797 = vpack.c.bf16 %v770, %v769
    %v799 = vlaneseq
    %v800 = vshrl.u32 %v799, 7
    %v801 = vsub.s32 0, %v800
    %v802 = vrot.slane %v779, %v801
    %v812 = vunpack.c.l.b16 %v771
    %v813 = vunpack.c.l.b16 %v772
    %v814 = vunpack.c.l.b16 %v773
    %v815 = vunpack.c.l.b16 %v774
    %v816 = vunpack.c.l.b16 %v775
    %v817 = vunpack.c.l.b16 %v776
    %v818 = vunpack.c.l.b16 %v777
    %v819 = vunpack.c.l.b16 %v778
    %v820 = vpack.c.b16 %v813, %v812
    %v821 = vpack.c.b16 %v815, %v814
    %v822 = vpack.c.b16 %v817, %v816
    %v823 = vpack.c.b16 %v819, %v818
    %v829 = vsel %vm277, %v797, 0
    %831 = vmatprep.subr.bf16.mxu0 0
    %832 = vmatpush1.bf16.msra.mxu0 %v820
    %833 = vmatprep.subr.bf16.mxu0 0
    %834 = vmatpush1.bf16.msra.mxu0 %v821
    %835 = vmatprep.subr.bf16.mxu0 0
    %836 = vmatpush1.bf16.msra.mxu0 %v822
    %837 = vmatprep.subr.bf16.mxu0 0
    %838 = vmatpush1.bf16.msra.mxu0 %v823
    %839 = vmatprep.subr.bf16.mxu0 0
    %840 = vmatpush1.bf16.msra.mxu0 0
    %841 = vmatprep.subr.bf16.mxu0 0
    %842 = vmatpush1.bf16.msra.mxu0 0
    %843 = vmatprep.subr.bf16.mxu0 0
    %844 = vmatpush1.bf16.msra.mxu0 0
    %845 = vmatprep.subr.bf16.mxu0 0
    %846 = vmatpush1.bf16.msra.mxu0 0
    %847 = vmatprep.subr.bf16.mxu0 0
    %848 = vmatpush1.bf16.msra.mxu0 0
    %849 = vmatprep.subr.bf16.mxu0 0
    %850 = vmatpush1.bf16.msra.mxu0 0
    %851 = vmatprep.subr.bf16.mxu0 0
    %852 = vmatpush1.bf16.msra.mxu0 0
    %853 = vmatprep.subr.bf16.mxu0 0
    %854 = vmatpush1.bf16.msra.mxu0 0
    %855 = vmatprep.subr.bf16.mxu0 0
    %856 = vmatpush1.bf16.msra.mxu0 0
    %857 = vmatprep.subr.bf16.mxu0 0
    %858 = vmatpush1.bf16.msra.mxu0 0
    %859 = vmatprep.subr.bf16.mxu0 0
    %860 = vmatpush1.bf16.msra.mxu0 0
    %861 = vmatprep.subr.bf16.mxu0 0
    %862 = vmatpush1.bf16.msra.mxu0 0
    %863 = vmatprep.mubr.bf16.mxu0 0
    %864 = vmatmul.mubr.bf16.gmra.mrb[0].mxu0 %v829
    %v865 = vpop.f32.mrb[0].mxu0
    %v866 = vadd.f32 %v802, %v865
    %v867 = vpop.f32.mrb[0].mxu0
    %v868 = vpop.f32.mrb[0].mxu0
    %v869 = vadd.f32 %v802, %v868
    %v870 = vpop.f32.mrb[0].mxu0
    %871 = vdwg.mxu0
    %v872 = vmax.f32 %v866, 0.0
    %v873 = vmax.f32 %v869, 0.0
    %v874 = vpack.c.bf16 %v873, %v872
    %v876 = vlaneseq
    %v877 = vshrl.u32 %v876, 7
    %v878 = vsub.s32 0, %v877
    %v879 = vrot.slane %v796, %v878
    %v897 = vunpack.c.l.b16 %v780
    %v898 = vunpack.c.l.b16 %v781
    %v899 = vunpack.c.l.b16 %v782
    %v900 = vunpack.c.l.b16 %v783
    %v901 = vunpack.c.l.b16 %v784
    %v902 = vunpack.c.l.b16 %v785
    %v903 = vunpack.c.l.b16 %v786
    %v904 = vunpack.c.l.b16 %v787
    %v905 = vunpack.c.l.b16 %v788
    %v906 = vunpack.c.l.b16 %v789
    %v907 = vunpack.c.l.b16 %v790
    %v908 = vunpack.c.l.b16 %v791
    %v909 = vunpack.c.l.b16 %v792
    %v910 = vunpack.c.l.b16 %v793
    %v911 = vunpack.c.l.b16 %v794
    %v912 = vunpack.c.l.b16 %v795
    %v913 = vpack.c.b16 %v898, %v897
    %v914 = vpack.c.b16 %v900, %v899
    %v915 = vpack.c.b16 %v902, %v901
    %v916 = vpack.c.b16 %v904, %v903
    %v917 = vpack.c.b16 %v906, %v905
    %v918 = vpack.c.b16 %v908, %v907
    %v919 = vpack.c.b16 %v910, %v909
    %v920 = vpack.c.b16 %v912, %v911
    %929 = vmatprep.subr.bf16.mxu0 0
    %930 = vmatpush1.bf16.msra.mxu0 %v913
    %931 = vmatprep.subr.bf16.mxu0 0
    %932 = vmatpush1.bf16.msra.mxu0 %v914
    %933 = vmatprep.subr.bf16.mxu0 0
    %934 = vmatpush1.bf16.msra.mxu0 %v915
    %935 = vmatprep.subr.bf16.mxu0 0
    %936 = vmatpush1.bf16.msra.mxu0 %v916
    %937 = vmatprep.subr.bf16.mxu0 0
    %938 = vmatpush1.bf16.msra.mxu0 %v917
    %939 = vmatprep.subr.bf16.mxu0 0
    %940 = vmatpush1.bf16.msra.mxu0 %v918
    %941 = vmatprep.subr.bf16.mxu0 0
    %942 = vmatpush1.bf16.msra.mxu0 %v919
    %943 = vmatprep.subr.bf16.mxu0 0
    %944 = vmatpush1.bf16.msra.mxu0 %v920
    %945 = vmatprep.subr.bf16.mxu0 0
    %946 = vmatpush1.bf16.msra.mxu0 0
    %947 = vmatprep.subr.bf16.mxu0 0
    %948 = vmatpush1.bf16.msra.mxu0 0
    %949 = vmatprep.subr.bf16.mxu0 0
    %950 = vmatpush1.bf16.msra.mxu0 0
    %951 = vmatprep.subr.bf16.mxu0 0
    %952 = vmatpush1.bf16.msra.mxu0 0
    %953 = vmatprep.subr.bf16.mxu0 0
    %954 = vmatpush1.bf16.msra.mxu0 0
    %955 = vmatprep.subr.bf16.mxu0 0
    %956 = vmatpush1.bf16.msra.mxu0 0
    %957 = vmatprep.subr.bf16.mxu0 0
    %958 = vmatpush1.bf16.msra.mxu0 0
    %959 = vmatprep.subr.bf16.mxu0 0
    %960 = vmatpush1.bf16.msra.mxu0 0
    %961 = vmatprep.mubr.bf16.mxu0 0
    %962 = vmatmul.mubr.bf16.gmra.mrb[0].mxu0 %v874
    %v963 = vpop.f32.mrb[0].mxu0
    %v964 = vadd.f32 %v879, %v963
    %v965 = vpop.f32.mrb[0].mxu0
    %v966 = vpop.f32.mrb[0].mxu0
    %v967 = vadd.f32 %v879, %v966
    %v968 = vpop.f32.mrb[0].mxu0
    %969 = vdwg.mxu0
    %v970 = vadd.f32 %v769, %v964
    %v971 = vadd.f32 %v770, %v967
    %v972 = vld [vmem:[%s10] sm:$0x1]
    %v973 = vld [vmem:[%s11] sm:$0x1]
    %v974 = vsel %vm277, %v970, 0.0
    %975 = vadd.xlane.f32.xlu0 %v974
    %v976 = vpop.xlane.xlu0 %975
    %v977 = vsel %vm277, %v971, 0.0
    %978 = vadd.xlane.f32.xlu0 %v977
    %v979 = vpop.xlane.xlu0 %978
    %v980 = vmul.f32 %v976, %v734
    %v981 = vmul.f32 %v979, %v734
    %v982 = vsub.f32 %v970, %v980
    %v983 = vsub.f32 %v971, %v981
    %v984 = vmul.f32 %v982, %v982
    %v985 = vmul.f32 %v983, %v983
    %v986 = vsel %vm277, %v984, 0.0
    %987 = vadd.xlane.f32.xlu0 %v986
    %v988 = vpop.xlane.xlu0 %987
    %v989 = vsel %vm277, %v985, 0.0
    %990 = vadd.xlane.f32.xlu0 %v989
    %v991 = vpop.xlane.xlu0 %990
    %v992 = vmul.f32 %v988, %v734
    %v993 = vmul.f32 %v991, %v734
    %v994 = vadd.f32 %v992, 1e-05
    %v995 = vadd.f32 %v993, 1e-05
    %v996 = vrsqrt.pop %v994
    %v997 = vrsqrt.pop %v995
    %v998 = vmul.f32 %v982, %v996
    %v999 = vmul.f32 %v983, %v997
    %v1001 = vlaneseq
    %v1002 = vshrl.u32 %v1001, 7
    %v1003 = vsub.s32 0, %v1002
    %v1004 = vrot.slane %v972, %v1003
    %v1006 = vmul.f32 %v998, %v1004
    %v1007 = vmul.f32 %v999, %v1004
    %v1009 = vlaneseq
    %v1010 = vshrl.u32 %v1009, 7
    %v1011 = vsub.s32 0, %v1010
    %v1012 = vrot.slane %v973, %v1011
    %v1014 = vadd.f32 %v1006, %v1012
    %v1015 = vadd.f32 %v1007, %v1012
    %s1016 = scalar_lea.vmem %s2, 64
    %v1017 = vld [vmem:[%s1016] sm:$0xff]
    %v1018 = vld [vmem:[%s1016 + $0x8] sm:$0xff]
    %v1019 = vld [vmem:[%s1016 + $0x10] sm:$0xff]
    %v1020 = vld [vmem:[%s1016 + $0x18] sm:$0xff]
    %v1021 = vld [vmem:[%s1016 + $0x20] sm:$0xff]
    %v1022 = vld [vmem:[%s1016 + $0x28] sm:$0xff]
    %v1023 = vld [vmem:[%s1016 + $0x30] sm:$0xff]
    %v1024 = vld [vmem:[%s1016 + $0x38] sm:$0xff]
    %v1025 = vpack.c.bf16 %v1015, %v1014
    %v1034 = vunpack.c.l.b16 %v1017
    %v1035 = vunpack.c.h.b16 %v1017
    %v1036 = vunpack.c.l.b16 %v1018
    %v1037 = vunpack.c.h.b16 %v1018
    %v1038 = vunpack.c.l.b16 %v1019
    %v1039 = vunpack.c.h.b16 %v1019
    %v1040 = vunpack.c.l.b16 %v1020
    %v1041 = vunpack.c.h.b16 %v1020
    %v1042 = vunpack.c.l.b16 %v1021
    %v1043 = vunpack.c.h.b16 %v1021
    %v1044 = vunpack.c.l.b16 %v1022
    %v1045 = vunpack.c.h.b16 %v1022
    %v1046 = vunpack.c.l.b16 %v1023
    %v1047 = vunpack.c.h.b16 %v1023
    %v1048 = vunpack.c.l.b16 %v1024
    %v1049 = vunpack.c.h.b16 %v1024
    %v1050 = vpack.c.b16 %v1036, %v1034
    %v1051 = vpack.c.b16 %v1037, %v1035
    %v1052 = vpack.c.b16 %v1040, %v1038
    %v1053 = vpack.c.b16 %v1041, %v1039
    %v1054 = vpack.c.b16 %v1044, %v1042
    %v1055 = vpack.c.b16 %v1045, %v1043
    %v1056 = vpack.c.b16 %v1048, %v1046
    %v1057 = vpack.c.b16 %v1049, %v1047
    %v1067 = vsel %vm277, %v1025, 0
    %1069 = vmatprep.subr.bf16.mxu0 %v1051
    %1070 = vmatpush1.bf16.msra.mxu0 %v1050
    %1071 = vmatprep.subr.bf16.mxu0 %v1053
    %1072 = vmatpush1.bf16.msra.mxu0 %v1052
    %1073 = vmatprep.subr.bf16.mxu0 %v1055
    %1074 = vmatpush1.bf16.msra.mxu0 %v1054
    %1075 = vmatprep.subr.bf16.mxu0 %v1057
    %1076 = vmatpush1.bf16.msra.mxu0 %v1056
    %1077 = vmatprep.subr.bf16.mxu0 0
    %1078 = vmatpush1.bf16.msra.mxu0 0
    %1079 = vmatprep.subr.bf16.mxu0 0
    %1080 = vmatpush1.bf16.msra.mxu0 0
    %1081 = vmatprep.subr.bf16.mxu0 0
    %1082 = vmatpush1.bf16.msra.mxu0 0
    %1083 = vmatprep.subr.bf16.mxu0 0
    %1084 = vmatpush1.bf16.msra.mxu0 0
    %1085 = vmatprep.subr.bf16.mxu0 0
    %1086 = vmatpush1.bf16.msra.mxu0 0
    %1087 = vmatprep.subr.bf16.mxu0 0
    %1088 = vmatpush1.bf16.msra.mxu0 0
    %1089 = vmatprep.subr.bf16.mxu0 0
    %1090 = vmatpush1.bf16.msra.mxu0 0
    %1091 = vmatprep.subr.bf16.mxu0 0
    %1092 = vmatpush1.bf16.msra.mxu0 0
    %1093 = vmatprep.subr.bf16.mxu0 0
    %1094 = vmatpush1.bf16.msra.mxu0 0
    %1095 = vmatprep.subr.bf16.mxu0 0
    %1096 = vmatpush1.bf16.msra.mxu0 0
    %1097 = vmatprep.subr.bf16.mxu0 0
    %1098 = vmatpush1.bf16.msra.mxu0 0
    %1099 = vmatprep.subr.bf16.mxu0 0
    %1100 = vmatpush1.bf16.msra.mxu0 0
    %1101 = vmatprep.mubr.bf16.mxu0 0
    %1102 = vmatmul.mubr.bf16.gmra.mrb[0].mxu0 %v1067
    %v1103 = vpop.f32.mrb[0].mxu0
    %v1104 = vadd.f32 0.0, %v1103
    %v1105 = vpop.f32.mrb[0].mxu0
    %v1106 = vadd.f32 0.0, %v1105
    %v1107 = vpop.f32.mrb[0].mxu0
    %v1108 = vadd.f32 0.0, %v1107
    %v1109 = vpop.f32.mrb[0].mxu0
    %v1110 = vadd.f32 0.0, %v1109
    %1111 = vdwg.mxu0
    %1113 = vrot.lane.b32.xlu0 %v1104, 64
    %v1114 = vpop.permute.xlu0 %1113
    %v1115 = vsel %vm277, %v1104, 0
    %v1117 = vsel %vm277, %v1114, 0
    %1119 = vmatprep.subr.mxu0 0.0
    %1120 = vmatpush1.xpose.msra.mxu0 %v1117
    %1121 = vmatprep.subr.mxu0 0.0
    %1122 = vmatpush1.xpose.msra.mxu0 0.0
    %1123 = vmatprep.subr.mxu0 0.0
    %1124 = vmatpush1.xpose.msra.mxu0 0.0
    %1125 = vmatprep.subr.mxu0 0.0
    %1126 = vmatpush1.xpose.msra.mxu0 0.0
    %1127 = vmatprep.subr.mxu0 0.0
    %1128 = vmatpush1.xpose.msra.mxu0 0.0
    %1129 = vmatprep.subr.mxu0 0.0
    %1130 = vmatpush1.xpose.msra.mxu0 0.0
    %1131 = vmatprep.subr.mxu0 0.0
    %1132 = vmatpush1.xpose.msra.mxu0 0.0
    %1133 = vmatprep.subr.mxu0 0.0
    %1134 = vmatpush1.xpose.msra.mxu0 0.0
    %1135 = vmatprep.subr.mxu0 0.0
    %1136 = vmatpush1.xpose.msra.mxu0 0.0
    %1137 = vmatprep.subr.mxu0 0.0
    %1138 = vmatpush1.xpose.msra.mxu0 0.0
    %1139 = vmatprep.subr.mxu0 0.0
    %1140 = vmatpush1.xpose.msra.mxu0 0.0
    %1141 = vmatprep.subr.mxu0 0.0
    %1142 = vmatpush1.xpose.msra.mxu0 0.0
    %1143 = vmatprep.subr.mxu0 0.0
    %1144 = vmatpush1.xpose.msra.mxu0 0.0
    %1145 = vmatprep.subr.mxu0 0.0
    %1146 = vmatpush1.xpose.msra.mxu0 0.0
    %1147 = vmatprep.subr.mxu0 0.0
    %1148 = vmatpush1.xpose.msra.mxu0 0.0
    %1149 = vmatprep.subr.mxu0 0.0
    %1150 = vmatpush1.xpose.msra.mxu0 0.0
    %1151 = vmatprep.subr.mxu0 0.0
    %1152 = vmatpush1.xpose.msra.mxu0 0.0
    %1153 = vmatprep.subr.mxu0 0.0
    %1154 = vmatpush1.xpose.msra.mxu0 0.0
    %1155 = vmatprep.subr.mxu0 0.0
    %1156 = vmatpush1.xpose.msra.mxu0 0.0
    %1157 = vmatprep.subr.mxu0 0.0
    %1158 = vmatpush1.xpose.msra.mxu0 0.0
    %1159 = vmatprep.subr.mxu0 0.0
    %1160 = vmatpush1.xpose.msra.mxu0 0.0
    %1161 = vmatprep.subr.mxu0 0.0
    %1162 = vmatpush1.xpose.msra.mxu0 0.0
    %1163 = vmatprep.subr.mxu0 0.0
    %1164 = vmatpush1.xpose.msra.mxu0 0.0
    %1165 = vmatprep.subr.mxu0 0.0
    %1166 = vmatpush1.xpose.msra.mxu0 0.0
    %1167 = vmatprep.subr.mxu0 0.0
    %1168 = vmatpush1.xpose.msra.mxu0 0.0
    %1169 = vmatprep.subr.mxu0 0.0
    %1170 = vmatpush1.xpose.msra.mxu0 0.0
    %1171 = vmatprep.subr.mxu0 0.0
    %1172 = vmatpush1.xpose.msra.mxu0 0.0
    %1173 = vmatprep.subr.mxu0 0.0
    %1174 = vmatpush1.xpose.msra.mxu0 0.0
    %1175 = vmatprep.subr.mxu0 0.0
    %1176 = vmatpush1.xpose.msra.mxu0 0.0
    %1177 = vmatprep.subr.mxu0 0.0
    %1178 = vmatpush1.xpose.msra.mxu0 0.0
    %1179 = vmatprep.subr.mxu0 0.0
    %1180 = vmatpush1.xpose.msra.mxu0 0.0
    %1181 = vmatprep.subr.mxu0 0.0
    %1182 = vmatpush1.xpose.msra.mxu0 0.0
    %1183 = vmatprep.mubr.f32.mxu0 0.0
    %1184 = vmatmul.mubr.f32.gmra.mrb[0].mxu0 %v1115
    %v1185 = vpop.f32.mrb[0].mxu0
    %v1186 = vadd.f32 0.0, %v1185
    %v1187 = vpop.f32.mrb[0].mxu0
    %1188 = vdwg.mxu0
    %1190 = vrot.lane.b32.xlu0 %v1108, 64
    %v1191 = vpop.permute.xlu0 %1190
    %v1192 = vsel %vm277, %v1108, 0
    %v1194 = vsel %vm277, %v1191, 0
    %1196 = vmatprep.subr.mxu0 0.0
    %1197 = vmatpush1.xpose.msra.mxu0 %v1194
    %1198 = vmatprep.subr.mxu0 0.0
    %1199 = vmatpush1.xpose.msra.mxu0 0.0
    %1200 = vmatprep.subr.mxu0 0.0
    %1201 = vmatpush1.xpose.msra.mxu0 0.0
    %1202 = vmatprep.subr.mxu0 0.0
    %1203 = vmatpush1.xpose.msra.mxu0 0.0
    %1204 = vmatprep.subr.mxu0 0.0
    %1205 = vmatpush1.xpose.msra.mxu0 0.0
    %1206 = vmatprep.subr.mxu0 0.0
    %1207 = vmatpush1.xpose.msra.mxu0 0.0
    %1208 = vmatprep.subr.mxu0 0.0
    %1209 = vmatpush1.xpose.msra.mxu0 0.0
    %1210 = vmatprep.subr.mxu0 0.0
    %1211 = vmatpush1.xpose.msra.mxu0 0.0
    %1212 = vmatprep.subr.mxu0 0.0
    %1213 = vmatpush1.xpose.msra.mxu0 0.0
    %1214 = vmatprep.subr.mxu0 0.0
    %1215 = vmatpush1.xpose.msra.mxu0 0.0
    %1216 = vmatprep.subr.mxu0 0.0
    %1217 = vmatpush1.xpose.msra.mxu0 0.0
    %1218 = vmatprep.subr.mxu0 0.0
    %1219 = vmatpush1.xpose.msra.mxu0 0.0
    %1220 = vmatprep.subr.mxu0 0.0
    %1221 = vmatpush1.xpose.msra.mxu0 0.0
    %1222 = vmatprep.subr.mxu0 0.0
    %1223 = vmatpush1.xpose.msra.mxu0 0.0
    %1224 = vmatprep.subr.mxu0 0.0
    %1225 = vmatpush1.xpose.msra.mxu0 0.0
    %1226 = vmatprep.subr.mxu0 0.0
    %1227 = vmatpush1.xpose.msra.mxu0 0.0
    %1228 = vmatprep.subr.mxu0 0.0
    %1229 = vmatpush1.xpose.msra.mxu0 0.0
    %1230 = vmatprep.subr.mxu0 0.0
    %1231 = vmatpush1.xpose.msra.mxu0 0.0
    %1232 = vmatprep.subr.mxu0 0.0
    %1233 = vmatpush1.xpose.msra.mxu0 0.0
    %1234 = vmatprep.subr.mxu0 0.0
    %1235 = vmatpush1.xpose.msra.mxu0 0.0
    %1236 = vmatprep.subr.mxu0 0.0
    %1237 = vmatpush1.xpose.msra.mxu0 0.0
    %1238 = vmatprep.subr.mxu0 0.0
    %1239 = vmatpush1.xpose.msra.mxu0 0.0
    %1240 = vmatprep.subr.mxu0 0.0
    %1241 = vmatpush1.xpose.msra.mxu0 0.0
    %1242 = vmatprep.subr.mxu0 0.0
    %1243 = vmatpush1.xpose.msra.mxu0 0.0
    %1244 = vmatprep.subr.mxu0 0.0
    %1245 = vmatpush1.xpose.msra.mxu0 0.0
    %1246 = vmatprep.subr.mxu0 0.0
    %1247 = vmatpush1.xpose.msra.mxu0 0.0
    %1248 = vmatprep.subr.mxu0 0.0
    %1249 = vmatpush1.xpose.msra.mxu0 0.0
    %1250 = vmatprep.subr.mxu0 0.0
    %1251 = vmatpush1.xpose.msra.mxu0 0.0
    %1252 = vmatprep.subr.mxu0 0.0
    %1253 = vmatpush1.xpose.msra.mxu0 0.0
    %1254 = vmatprep.subr.mxu0 0.0
    %1255 = vmatpush1.xpose.msra.mxu0 0.0
    %1256 = vmatprep.subr.mxu0 0.0
    %1257 = vmatpush1.xpose.msra.mxu0 0.0
    %1258 = vmatprep.subr.mxu0 0.0
    %1259 = vmatpush1.xpose.msra.mxu0 0.0
    %1260 = vmatprep.mubr.f32.mxu0 0.0
    %1261 = vmatmul.mubr.f32.gmra.mrb[0].mxu0 %v1192
    %v1262 = vpop.f32.mrb[0].mxu0
    %v1263 = vadd.f32 0.0, %v1262
    %v1264 = vpop.f32.mrb[0].mxu0
    %1265 = vdwg.mxu0
    %v1266 = vsel %vm478, %v1186, -inf
    %1267 = vmax.xlane.f32.xlu0 %v1266
    %v1268 = vpop.xlane.xlu0 %1267
    %v1269 = vsel %vm478, %v1263, -inf
    %1270 = vmax.xlane.f32.xlu0 %v1269
    %v1271 = vpop.xlane.xlu0 %1270
    %v1272 = vsub.f32 %v1186, %v1268
    %v1273 = vsub.f32 %v1263, %v1271
    %v1274 = vmul.f32 %v1272, 1.442695
    %v1275 = vpow.pop %v1274
    %v1276 = vmul.f32 %v1273, 1.442695
    %v1277 = vpow.pop %v1276
    %v1278 = vsel %vm478, %v1275, 0.0
    %1279 = vadd.xlane.f32.xlu0 %v1278
    %v1280 = vpop.xlane.xlu0 %1279
    %v1281 = vsel %vm478, %v1277, 0.0
    %1282 = vadd.xlane.f32.xlu0 %v1281
    %v1283 = vpop.xlane.xlu0 %1282
    %v1284 = vrcp.pop %v1280
    %v1285 = vrcp.pop %v1283
    %v1286 = vmul.f32 %v1275, %v1284
    %v1287 = vmul.f32 %v1277, %v1285
    %v1289 = vsel %vm478, %v1286, 0
    %1291 = vmatprep.subr.mxu0 0.0
    %1292 = vmatpush1.msra.mxu0 %v1106
    %1293 = vmatprep.subr.mxu0 0.0
    %1294 = vmatpush1.msra.mxu0 0.0
    %1295 = vmatprep.subr.mxu0 0.0
    %1296 = vmatpush1.msra.mxu0 0.0
    %1297 = vmatprep.subr.mxu0 0.0
    %1298 = vmatpush1.msra.mxu0 0.0
    %1299 = vmatprep.subr.mxu0 0.0
    %1300 = vmatpush1.msra.mxu0 0.0
    %1301 = vmatprep.subr.mxu0 0.0
    %1302 = vmatpush1.msra.mxu0 0.0
    %1303 = vmatprep.subr.mxu0 0.0
    %1304 = vmatpush1.msra.mxu0 0.0
    %1305 = vmatprep.subr.mxu0 0.0
    %1306 = vmatpush1.msra.mxu0 0.0
    %1307 = vmatprep.subr.mxu0 0.0
    %1308 = vmatpush1.msra.mxu0 0.0
    %1309 = vmatprep.subr.mxu0 0.0
    %1310 = vmatpush1.msra.mxu0 0.0
    %1311 = vmatprep.subr.mxu0 0.0
    %1312 = vmatpush1.msra.mxu0 0.0
    %1313 = vmatprep.subr.mxu0 0.0
    %1314 = vmatpush1.msra.mxu0 0.0
    %1315 = vmatprep.subr.mxu0 0.0
    %1316 = vmatpush1.msra.mxu0 0.0
    %1317 = vmatprep.subr.mxu0 0.0
    %1318 = vmatpush1.msra.mxu0 0.0
    %1319 = vmatprep.subr.mxu0 0.0
    %1320 = vmatpush1.msra.mxu0 0.0
    %1321 = vmatprep.subr.mxu0 0.0
    %1322 = vmatpush1.msra.mxu0 0.0
    %1323 = vmatprep.subr.mxu0 0.0
    %1324 = vmatpush1.msra.mxu0 0.0
    %1325 = vmatprep.subr.mxu0 0.0
    %1326 = vmatpush1.msra.mxu0 0.0
    %1327 = vmatprep.subr.mxu0 0.0
    %1328 = vmatpush1.msra.mxu0 0.0
    %1329 = vmatprep.subr.mxu0 0.0
    %1330 = vmatpush1.msra.mxu0 0.0
    %1331 = vmatprep.subr.mxu0 0.0
    %1332 = vmatpush1.msra.mxu0 0.0
    %1333 = vmatprep.subr.mxu0 0.0
    %1334 = vmatpush1.msra.mxu0 0.0
    %1335 = vmatprep.subr.mxu0 0.0
    %1336 = vmatpush1.msra.mxu0 0.0
    %1337 = vmatprep.subr.mxu0 0.0
    %1338 = vmatpush1.msra.mxu0 0.0
    %1339 = vmatprep.subr.mxu0 0.0
    %1340 = vmatpush1.msra.mxu0 0.0
    %1341 = vmatprep.subr.mxu0 0.0
    %1342 = vmatpush1.msra.mxu0 0.0
    %1343 = vmatprep.subr.mxu0 0.0
    %1344 = vmatpush1.msra.mxu0 0.0
    %1345 = vmatprep.subr.mxu0 0.0
    %1346 = vmatpush1.msra.mxu0 0.0
    %1347 = vmatprep.subr.mxu0 0.0
    %1348 = vmatpush1.msra.mxu0 0.0
    %1349 = vmatprep.subr.mxu0 0.0
    %1350 = vmatpush1.msra.mxu0 0.0
    %1351 = vmatprep.subr.mxu0 0.0
    %1352 = vmatpush1.msra.mxu0 0.0
    %1353 = vmatprep.subr.mxu0 0.0
    %1354 = vmatpush1.msra.mxu0 0.0
    %1355 = vmatprep.mubr.f32.mxu0 0.0
    %1356 = vmatmul.mubr.f32.gmra.mrb[0].mxu0 %v1289
    %v1357 = vpop.f32.mrb[0].mxu0
    %v1358 = vadd.f32 0.0, %v1357
    %v1359 = vpop.f32.mrb[0].mxu0
    %1360 = vdwg.mxu0
    %v1362 = vsel %vm478, %v1287, 0
    %1364 = vmatprep.subr.mxu0 0.0
    %1365 = vmatpush1.msra.mxu0 %v1110
    %1366 = vmatprep.subr.mxu0 0.0
    %1367 = vmatpush1.msra.mxu0 0.0
    %1368 = vmatprep.subr.mxu0 0.0
    %1369 = vmatpush1.msra.mxu0 0.0
    %1370 = vmatprep.subr.mxu0 0.0
    %1371 = vmatpush1.msra.mxu0 0.0
    %1372 = vmatprep.subr.mxu0 0.0
    %1373 = vmatpush1.msra.mxu0 0.0
    %1374 = vmatprep.subr.mxu0 0.0
    %1375 = vmatpush1.msra.mxu0 0.0
    %1376 = vmatprep.subr.mxu0 0.0
    %1377 = vmatpush1.msra.mxu0 0.0
    %1378 = vmatprep.subr.mxu0 0.0
    %1379 = vmatpush1.msra.mxu0 0.0
    %1380 = vmatprep.subr.mxu0 0.0
    %1381 = vmatpush1.msra.mxu0 0.0
    %1382 = vmatprep.subr.mxu0 0.0
    %1383 = vmatpush1.msra.mxu0 0.0
    %1384 = vmatprep.subr.mxu0 0.0
    %1385 = vmatpush1.msra.mxu0 0.0
    %1386 = vmatprep.subr.mxu0 0.0
    %1387 = vmatpush1.msra.mxu0 0.0
    %1388 = vmatprep.subr.mxu0 0.0
    %1389 = vmatpush1.msra.mxu0 0.0
    %1390 = vmatprep.subr.mxu0 0.0
    %1391 = vmatpush1.msra.mxu0 0.0
    %1392 = vmatprep.subr.mxu0 0.0
    %1393 = vmatpush1.msra.mxu0 0.0
    %1394 = vmatprep.subr.mxu0 0.0
    %1395 = vmatpush1.msra.mxu0 0.0
    %1396 = vmatprep.subr.mxu0 0.0
    %1397 = vmatpush1.msra.mxu0 0.0
    %1398 = vmatprep.subr.mxu0 0.0
    %1399 = vmatpush1.msra.mxu0 0.0
    %1400 = vmatprep.subr.mxu0 0.0
    %1401 = vmatpush1.msra.mxu0 0.0
    %1402 = vmatprep.subr.mxu0 0.0
    %1403 = vmatpush1.msra.mxu0 0.0
    %1404 = vmatprep.subr.mxu0 0.0
    %1405 = vmatpush1.msra.mxu0 0.0
    %1406 = vmatprep.subr.mxu0 0.0
    %1407 = vmatpush1.msra.mxu0 0.0
    %1408 = vmatprep.subr.mxu0 0.0
    %1409 = vmatpush1.msra.mxu0 0.0
    %1410 = vmatprep.subr.mxu0 0.0
    %1411 = vmatpush1.msra.mxu0 0.0
    %1412 = vmatprep.subr.mxu0 0.0
    %1413 = vmatpush1.msra.mxu0 0.0
    %1414 = vmatprep.subr.mxu0 0.0
    %1415 = vmatpush1.msra.mxu0 0.0
    %1416 = vmatprep.subr.mxu0 0.0
    %1417 = vmatpush1.msra.mxu0 0.0
    %1418 = vmatprep.subr.mxu0 0.0
    %1419 = vmatpush1.msra.mxu0 0.0
    %1420 = vmatprep.subr.mxu0 0.0
    %1421 = vmatpush1.msra.mxu0 0.0
    %1422 = vmatprep.subr.mxu0 0.0
    %1423 = vmatpush1.msra.mxu0 0.0
    %1424 = vmatprep.subr.mxu0 0.0
    %1425 = vmatpush1.msra.mxu0 0.0
    %1426 = vmatprep.subr.mxu0 0.0
    %1427 = vmatpush1.msra.mxu0 0.0
    %1428 = vmatprep.mubr.f32.mxu0 0.0
    %1429 = vmatmul.mubr.f32.gmra.mrb[0].mxu0 %v1362
    %v1430 = vpop.f32.mrb[0].mxu0
    %v1431 = vadd.f32 0.0, %v1430
    %v1432 = vpop.f32.mrb[0].mxu0
    %1433 = vdwg.mxu0
    %s1434 = scalar_lea.vmem %s3, 32
    %v1435 = vld [vmem:[%s1434] sm:$0xf]
    %v1436 = vld [vmem:[%s1434 + $0x4] sm:$0xf]
    %v1437 = vld [vmem:[%s1434 + $0x8] sm:$0xf]
    %v1438 = vld [vmem:[%s1434 + $0xc] sm:$0xf]
    %v1439 = vld [vmem:[%s1434 + $0x10] sm:$0xf]
    %v1440 = vld [vmem:[%s1434 + $0x14] sm:$0xf]
    %v1441 = vld [vmem:[%s1434 + $0x18] sm:$0xf]
    %v1442 = vld [vmem:[%s1434 + $0x1c] sm:$0xf]
    %v1443 = vpack.c.bf16 %v1431, %v1358
    %v1452 = vunpack.c.l.b16 %v1435
    %v1453 = vunpack.c.l.b16 %v1436
    %v1454 = vunpack.c.l.b16 %v1437
    %v1455 = vunpack.c.l.b16 %v1438
    %v1456 = vunpack.c.l.b16 %v1439
    %v1457 = vunpack.c.l.b16 %v1440
    %v1458 = vunpack.c.l.b16 %v1441
    %v1459 = vunpack.c.l.b16 %v1442
    %v1460 = vpack.c.b16 %v1453, %v1452
    %v1461 = vpack.c.b16 %v1455, %v1454
    %v1462 = vpack.c.b16 %v1457, %v1456
    %v1463 = vpack.c.b16 %v1459, %v1458
    %v1469 = vsel %vm277, %v1443, 0
    %1471 = vmatprep.subr.bf16.mxu0 0
    %1472 = vmatpush1.bf16.msra.mxu0 %v1460
    %1473 = vmatprep.subr.bf16.mxu0 0
    %1474 = vmatpush1.bf16.msra.mxu0 %v1461
    %1475 = vmatprep.subr.bf16.mxu0 0
    %1476 = vmatpush1.bf16.msra.mxu0 %v1462
    %1477 = vmatprep.subr.bf16.mxu0 0
    %1478 = vmatpush1.bf16.msra.mxu0 %v1463
    %1479 = vmatprep.subr.bf16.mxu0 0
    %1480 = vmatpush1.bf16.msra.mxu0 0
    %1481 = vmatprep.subr.bf16.mxu0 0
    %1482 = vmatpush1.bf16.msra.mxu0 0
    %1483 = vmatprep.subr.bf16.mxu0 0
    %1484 = vmatpush1.bf16.msra.mxu0 0
    %1485 = vmatprep.subr.bf16.mxu0 0
    %1486 = vmatpush1.bf16.msra.mxu0 0
    %1487 = vmatprep.subr.bf16.mxu0 0
    %1488 = vmatpush1.bf16.msra.mxu0 0
    %1489 = vmatprep.subr.bf16.mxu0 0
    %1490 = vmatpush1.bf16.msra.mxu0 0
    %1491 = vmatprep.subr.bf16.mxu0 0
    %1492 = vmatpush1.bf16.msra.mxu0 0
    %1493 = vmatprep.subr.bf16.mxu0 0
    %1494 = vmatpush1.bf16.msra.mxu0 0
    %1495 = vmatprep.subr.bf16.mxu0 0
    %1496 = vmatpush1.bf16.msra.mxu0 0
    %1497 = vmatprep.subr.bf16.mxu0 0
    %1498 = vmatpush1.bf16.msra.mxu0 0
    %1499 = vmatprep.subr.bf16.mxu0 0
    %1500 = vmatpush1.bf16.msra.mxu0 0
    %1501 = vmatprep.subr.bf16.mxu0 0
    %1502 = vmatpush1.bf16.msra.mxu0 0
    %1503 = vmatprep.mubr.bf16.mxu0 0
    %1504 = vmatmul.mubr.bf16.gmra.mrb[0].mxu0 %v1469
    %v1505 = vpop.f32.mrb[0].mxu0
    %v1506 = vadd.f32 0.0, %v1505
    %v1507 = vpop.f32.mrb[0].mxu0
    %v1508 = vpop.f32.mrb[0].mxu0
    %v1509 = vadd.f32 0.0, %v1508
    %v1510 = vpop.f32.mrb[0].mxu0
    %1511 = vdwg.mxu0
    %v1512 = vadd.f32 %v1014, %v1506
    %v1513 = vadd.f32 %v1015, %v1509
    %s1514 = scalar_lea.vmem %s4, 1
    %v1515 = vld [vmem:[%s1514] sm:$0x1]
    %s1516 = scalar_lea.vmem %s5, 1
    %v1517 = vld [vmem:[%s1516] sm:$0x1]
    %v1518 = vsel %vm277, %v1512, 0.0
    %1519 = vadd.xlane.f32.xlu0 %v1518
    %v1520 = vpop.xlane.xlu0 %1519
    %v1521 = vsel %vm277, %v1513, 0.0
    %1522 = vadd.xlane.f32.xlu0 %v1521
    %v1523 = vpop.xlane.xlu0 %1522
    %v1524 = vmul.f32 %v1520, %v734
    %v1525 = vmul.f32 %v1523, %v734
    %v1526 = vsub.f32 %v1512, %v1524
    %v1527 = vsub.f32 %v1513, %v1525
    %v1528 = vmul.f32 %v1526, %v1526
    %v1529 = vmul.f32 %v1527, %v1527
    %v1530 = vsel %vm277, %v1528, 0.0
    %1531 = vadd.xlane.f32.xlu0 %v1530
    %v1532 = vpop.xlane.xlu0 %1531
    %v1533 = vsel %vm277, %v1529, 0.0
    %1534 = vadd.xlane.f32.xlu0 %v1533
    %v1535 = vpop.xlane.xlu0 %1534
    %v1536 = vmul.f32 %v1532, %v734
    %v1537 = vmul.f32 %v1535, %v734
    %v1538 = vadd.f32 %v1536, 1e-05
    %v1539 = vadd.f32 %v1537, 1e-05
    %v1540 = vrsqrt.pop %v1538
    %v1541 = vrsqrt.pop %v1539
    %v1542 = vmul.f32 %v1526, %v1540
    %v1543 = vmul.f32 %v1527, %v1541
    %v1545 = vlaneseq
    %v1546 = vshrl.u32 %v1545, 7
    %v1547 = vsub.s32 0, %v1546
    %v1548 = vrot.slane %v1515, %v1547
    %v1550 = vmul.f32 %v1542, %v1548
    %v1551 = vmul.f32 %v1543, %v1548
    %v1553 = vlaneseq
    %v1554 = vshrl.u32 %v1553, 7
    %v1555 = vsub.s32 0, %v1554
    %v1556 = vrot.slane %v1517, %v1555
    %v1558 = vadd.f32 %v1550, %v1556
    %v1559 = vadd.f32 %v1551, %v1556
    %s1560 = scalar_lea.vmem [#allocation7], 32
    %v1561 = vld [vmem:[%s1560] sm:$0xf]
    %v1562 = vld [vmem:[%s1560 + $0x4] sm:$0xf]
    %v1563 = vld [vmem:[%s1560 + $0x8] sm:$0xf]
    %v1564 = vld [vmem:[%s1560 + $0xc] sm:$0xf]
    %v1565 = vld [vmem:[%s1560 + $0x10] sm:$0xf]
    %v1566 = vld [vmem:[%s1560 + $0x14] sm:$0xf]
    %v1567 = vld [vmem:[%s1560 + $0x18] sm:$0xf]
    %v1568 = vld [vmem:[%s1560 + $0x1c] sm:$0xf]
    %s1569 = scalar_lea.vmem %s7, 1
    %v1570 = vld [vmem:[%s1569] sm:$0x1]
    %s1571 = scalar_lea.vmem %s8, 64
    %v1572 = vld [vmem:[%s1571] sm:$0xf]
    %v1573 = vld [vmem:[%s1571 + $0x4] sm:$0xf]
    %v1574 = vld [vmem:[%s1571 + $0x8] sm:$0xf]
    %v1575 = vld [vmem:[%s1571 + $0xc] sm:$0xf]
    %v1576 = vld [vmem:[%s1571 + $0x10] sm:$0xf]
    %v1577 = vld [vmem:[%s1571 + $0x14] sm:$0xf]
    %v1578 = vld [vmem:[%s1571 + $0x18] sm:$0xf]
    %v1579 = vld [vmem:[%s1571 + $0x1c] sm:$0xf]
    %v1580 = vld [vmem:[%s1571 + $0x20] sm:$0xf]
    %v1581 = vld [vmem:[%s1571 + $0x24] sm:$0xf]
    %v1582 = vld [vmem:[%s1571 + $0x28] sm:$0xf]
    %v1583 = vld [vmem:[%s1571 + $0x2c] sm:$0xf]
    %v1584 = vld [vmem:[%s1571 + $0x30] sm:$0xf]
    %v1585 = vld [vmem:[%s1571 + $0x34] sm:$0xf]
    %v1586 = vld [vmem:[%s1571 + $0x38] sm:$0xf]
    %v1587 = vld [vmem:[%s1571 + $0x3c] sm:$0xf]
    %s1588 = scalar_lea.vmem %s9, 1
    %v1589 = vld [vmem:[%s1588] sm:$0x1]
    %v1590 = vpack.c.bf16 %v1559, %v1558
    %v1592 = vlaneseq
    %v1593 = vshrl.u32 %v1592, 7
    %v1594 = vsub.s32 0, %v1593
    %v1595 = vrot.slane %v1570, %v1594
    %v1605 = vunpack.c.l.b16 %v1561
    %v1606 = vunpack.c.l.b16 %v1562
    %v1607 = vunpack.c.l.b16 %v1563
    %v1608 = vunpack.c.l.b16 %v1564
    %v1609 = vunpack.c.l.b16 %v1565
    %v1610 = vunpack.c.l.b16 %v1566
    %v1611 = vunpack.c.l.b16 %v1567
    %v1612 = vunpack.c.l.b16 %v1568
    %v1613 = vpack.c.b16 %v1606, %v1605
    %v1614 = vpack.c.b16 %v1608, %v1607
    %v1615 = vpack.c.b16 %v1610, %v1609
    %v1616 = vpack.c.b16 %v1612, %v1611
    %v1622 = vsel %vm277, %v1590, 0
    %1624 = vmatprep.subr.bf16.mxu0 0
    %1625 = vmatpush1.bf16.msra.mxu0 %v1613
    %1626 = vmatprep.subr.bf16.mxu0 0
    %1627 = vmatpush1.bf16.msra.mxu0 %v1614
    %1628 = vmatprep.subr.bf16.mxu0 0
    %1629 = vmatpush1.bf16.msra.mxu0 %v1615
    %1630 = vmatprep.subr.bf16.mxu0 0
    %1631 = vmatpush1.bf16.msra.mxu0 %v1616
    %1632 = vmatprep.subr.bf16.mxu0 0
    %1633 = vmatpush1.bf16.msra.mxu0 0
    %1634 = vmatprep.subr.bf16.mxu0 0
    %1635 = vmatpush1.bf16.msra.mxu0 0
    %1636 = vmatprep.subr.bf16.mxu0 0
    %1637 = vmatpush1.bf16.msra.mxu0 0
    %1638 = vmatprep.subr.bf16.mxu0 0
    %1639 = vmatpush1.bf16.msra.mxu0 0
    %1640 = vmatprep.subr.bf16.mxu0 0
    %1641 = vmatpush1.bf16.msra.mxu0 0
    %1642 = vmatprep.subr.bf16.mxu0 0
    %1643 = vmatpush1.bf16.msra.mxu0 0
    %1644 = vmatprep.subr.bf16.mxu0 0
    %1645 = vmatpush1.bf16.msra.mxu0 0
    %1646 = vmatprep.subr.bf16.mxu0 0
    %1647 = vmatpush1.bf16.msra.mxu0 0
    %1648 = vmatprep.subr.bf16.mxu0 0
    %1649 = vmatpush1.bf16.msra.mxu0 0
    %1650 = vmatprep.subr.bf16.mxu0 0
    %1651 = vmatpush1.bf16.msra.mxu0 0
    %1652 = vmatprep.subr.bf16.mxu0 0
    %1653 = vmatpush1.bf16.msra.mxu0 0
    %1654 = vmatprep.subr.bf16.mxu0 0
    %1655 = vmatpush1.bf16.msra.mxu0 0
    %1656 = vmatprep.mubr.bf16.mxu0 0
    %1657 = vmatmul.mubr.bf16.gmra.mrb[0].mxu0 %v1622
    %v1658 = vpop.f32.mrb[0].mxu0
    %v1659 = vadd.f32 %v1595, %v1658
    %v1660 = vpop.f32.mrb[0].mxu0
    %v1661 = vpop.f32.mrb[0].mxu0
    %v1662 = vadd.f32 %v1595, %v1661
    %v1663 = vpop.f32.mrb[0].mxu0
    %1664 = vdwg.mxu0
    %v1665 = vmax.f32 %v1659, 0.0
    %v1666 = vmax.f32 %v1662, 0.0
    %v1667 = vpack.c.bf16 %v1666, %v1665
    %v1669 = vlaneseq
    %v1670 = vshrl.u32 %v1669, 7
    %v1671 = vsub.s32 0, %v1670
    %v1672 = vrot.slane %v1589, %v1671
    %v1690 = vunpack.c.l.b16 %v1572
    %v1691 = vunpack.c.l.b16 %v1573
    %v1692 = vunpack.c.l.b16 %v1574
    %v1693 = vunpack.c.l.b16 %v1575
    %v1694 = vunpack.c.l.b16 %v1576
    %v1695 = vunpack.c.l.b16 %v1577
    %v1696 = vunpack.c.l.b16 %v1578
    %v1697 = vunpack.c.l.b16 %v1579
    %v1698 = vunpack.c.l.b16 %v1580
    %v1699 = vunpack.c.l.b16 %v1581
    %v1700 = vunpack.c.l.b16 %v1582
    %v1701 = vunpack.c.l.b16 %v1583
    %v1702 = vunpack.c.l.b16 %v1584
    %v1703 = vunpack.c.l.b16 %v1585
    %v1704 = vunpack.c.l.b16 %v1586
    %v1705 = vunpack.c.l.b16 %v1587
    %v1706 = vpack.c.b16 %v1691, %v1690
    %v1707 = vpack.c.b16 %v1693, %v1692
    %v1708 = vpack.c.b16 %v1695, %v1694
    %v1709 = vpack.c.b16 %v1697, %v1696
    %v1710 = vpack.c.b16 %v1699, %v1698
    %v1711 = vpack.c.b16 %v1701, %v1700
    %v1712 = vpack.c.b16 %v1703, %v1702
    %v1713 = vpack.c.b16 %v1705, %v1704
    %1722 = vmatprep.subr.bf16.mxu0 0
    %1723 = vmatpush1.bf16.msra.mxu0 %v1706
    %1724 = vmatprep.subr.bf16.mxu0 0
    %1725 = vmatpush1.bf16.msra.mxu0 %v1707
    %1726 = vmatprep.subr.bf16.mxu0 0
    %1727 = vmatpush1.bf16.msra.mxu0 %v1708
    %1728 = vmatprep.subr.bf16.mxu0 0
    %1729 = vmatpush1.bf16.msra.mxu0 %v1709
    %1730 = vmatprep.subr.bf16.mxu0 0
    %1731 = vmatpush1.bf16.msra.mxu0 %v1710
    %1732 = vmatprep.subr.bf16.mxu0 0
    %1733 = vmatpush1.bf16.msra.mxu0 %v1711
    %1734 = vmatprep.subr.bf16.mxu0 0
    %1735 = vmatpush1.bf16.msra.mxu0 %v1712
    %1736 = vmatprep.subr.bf16.mxu0 0
    %1737 = vmatpush1.bf16.msra.mxu0 %v1713
    %1738 = vmatprep.subr.bf16.mxu0 0
    %1739 = vmatpush1.bf16.msra.mxu0 0
    %1740 = vmatprep.subr.bf16.mxu0 0
    %1741 = vmatpush1.bf16.msra.mxu0 0
    %1742 = vmatprep.subr.bf16.mxu0 0
    %1743 = vmatpush1.bf16.msra.mxu0 0
    %1744 = vmatprep.subr.bf16.mxu0 0
    %1745 = vmatpush1.bf16.msra.mxu0 0
    %1746 = vmatprep.subr.bf16.mxu0 0
    %1747 = vmatpush1.bf16.msra.mxu0 0
    %1748 = vmatprep.subr.bf16.mxu0 0
    %1749 = vmatpush1.bf16.msra.mxu0 0
    %1750 = vmatprep.subr.bf16.mxu0 0
    %1751 = vmatpush1.bf16.msra.mxu0 0
    %1752 = vmatprep.subr.bf16.mxu0 0
    %1753 = vmatpush1.bf16.msra.mxu0 0
    %1754 = vmatprep.mubr.bf16.mxu0 0
    %1755 = vmatmul.mubr.bf16.gmra.mrb[0].mxu0 %v1667
    %v1756 = vpop.f32.mrb[0].mxu0
    %v1757 = vadd.f32 %v1672, %v1756
    %v1758 = vpop.f32.mrb[0].mxu0
    %v1759 = vpop.f32.mrb[0].mxu0
    %v1760 = vadd.f32 %v1672, %v1759
    %v1761 = vpop.f32.mrb[0].mxu0
    %1762 = vdwg.mxu0
    %v1763 = vadd.f32 %v1558, %v1757
    %v1764 = vadd.f32 %v1559, %v1760
    %s1765 = scalar_lea.vmem %s10, 1
    %v1766 = vld [vmem:[%s1765] sm:$0x1]
    %s1767 = scalar_lea.vmem %s11, 1
    %v1768 = vld [vmem:[%s1767] sm:$0x1]
    %v1769 = vsel %vm277, %v1763, 0.0
    %1770 = vadd.xlane.f32.xlu0 %v1769
    %v1771 = vpop.xlane.xlu0 %1770
    %v1772 = vsel %vm277, %v1764, 0.0
    %1773 = vadd.xlane.f32.xlu0 %v1772
    %v1774 = vpop.xlane.xlu0 %1773
    %v1775 = vmul.f32 %v1771, %v734
    %v1776 = vmul.f32 %v1774, %v734
    %v1777 = vsub.f32 %v1763, %v1775
    %v1778 = vsub.f32 %v1764, %v1776
    %v1779 = vmul.f32 %v1777, %v1777
    %v1780 = vmul.f32 %v1778, %v1778
    %v1781 = vsel %vm277, %v1779, 0.0
    %1782 = vadd.xlane.f32.xlu0 %v1781
    %v1783 = vpop.xlane.xlu0 %1782
    %v1784 = vsel %vm277, %v1780, 0.0
    %1785 = vadd.xlane.f32.xlu0 %v1784
    %v1786 = vpop.xlane.xlu0 %1785
    %v1787 = vmul.f32 %v1783, %v734
    %v1788 = vmul.f32 %v1786, %v734
    %v1789 = vadd.f32 %v1787, 1e-05
    %v1790 = vadd.f32 %v1788, 1e-05
    %v1791 = vrsqrt.pop %v1789
    %v1792 = vrsqrt.pop %v1790
    %v1793 = vmul.f32 %v1777, %v1791
    %v1794 = vmul.f32 %v1778, %v1792
    %v1796 = vlaneseq
    %v1797 = vshrl.u32 %v1796, 7
    %v1798 = vsub.s32 0, %v1797
    %v1799 = vrot.slane %v1766, %v1798
    %v1801 = vmul.f32 %v1793, %v1799
    %v1802 = vmul.f32 %v1794, %v1799
    %v1804 = vlaneseq
    %v1805 = vshrl.u32 %v1804, 7
    %v1806 = vsub.s32 0, %v1805
    %v1807 = vrot.slane %v1768, %v1806
    %v1809 = vadd.f32 %v1801, %v1807
    %v1810 = vadd.f32 %v1802, %v1807
    %s1811 = scalar_lea.vmem %s2, 128
    %v1812 = vld [vmem:[%s1811] sm:$0xff]
    %v1813 = vld [vmem:[%s1811 + $0x8] sm:$0xff]
    %v1814 = vld [vmem:[%s1811 + $0x10] sm:$0xff]
    %v1815 = vld [vmem:[%s1811 + $0x18] sm:$0xff]
    %v1816 = vld [vmem:[%s1811 + $0x20] sm:$0xff]
    %v1817 = vld [vmem:[%s1811 + $0x28] sm:$0xff]
    %v1818 = vld [vmem:[%s1811 + $0x30] sm:$0xff]
    %v1819 = vld [vmem:[%s1811 + $0x38] sm:$0xff]
    %v1820 = vpack.c.bf16 %v1810, %v1809
    %v1829 = vunpack.c.l.b16 %v1812
    %v1830 = vunpack.c.h.b16 %v1812
    %v1831 = vunpack.c.l.b16 %v1813
    %v1832 = vunpack.c.h.b16 %v1813
    %v1833 = vunpack.c.l.b16 %v1814
    %v1834 = vunpack.c.h.b16 %v1814
    %v1835 = vunpack.c.l.b16 %v1815
    %v1836 = vunpack.c.h.b16 %v1815
    %v1837 = vunpack.c.l.b16 %v1816
    %v1838 = vunpack.c.h.b16 %v1816
    %v1839 = vunpack.c.l.b16 %v1817
    %v1840 = vunpack.c.h.b16 %v1817
    %v1841 = vunpack.c.l.b16 %v1818
    %v1842 = vunpack.c.h.b16 %v1818
    %v1843 = vunpack.c.l.b16 %v1819
    %v1844 = vunpack.c.h.b16 %v1819
    %v1845 = vpack.c.b16 %v1831, %v1829
    %v1846 = vpack.c.b16 %v1832, %v1830
    %v1847 = vpack.c.b16 %v1835, %v1833
    %v1848 = vpack.c.b16 %v1836, %v1834
    %v1849 = vpack.c.b16 %v1839, %v1837
    %v1850 = vpack.c.b16 %v1840, %v1838
    %v1851 = vpack.c.b16 %v1843, %v1841
    %v1852 = vpack.c.b16 %v1844, %v1842
    %v1862 = vsel %vm277, %v1820, 0
    %1864 = vmatprep.subr.bf16.mxu0 %v1846
    %1865 = vmatpush1.bf16.msra.mxu0 %v1845
    %1866 = vmatprep.subr.bf16.mxu0 %v1848
    %1867 = vmatpush1.bf16.msra.mxu0 %v1847
    %1868 = vmatprep.subr.bf16.mxu0 %v1850
    %1869 = vmatpush1.bf16.msra.mxu0 %v1849
    %1870 = vmatprep.subr.bf16.mxu0 %v1852
    %1871 = vmatpush1.bf16.msra.mxu0 %v1851
    %1872 = vmatprep.subr.bf16.mxu0 0
    %1873 = vmatpush1.bf16.msra.mxu0 0
    %1874 = vmatprep.subr.bf16.mxu0 0
    %1875 = vmatpush1.bf16.msra.mxu0 0
    %1876 = vmatprep.subr.bf16.mxu0 0
    %1877 = vmatpush1.bf16.msra.mxu0 0
    %1878 = vmatprep.subr.bf16.mxu0 0
    %1879 = vmatpush1.bf16.msra.mxu0 0
    %1880 = vmatprep.subr.bf16.mxu0 0
    %1881 = vmatpush1.bf16.msra.mxu0 0
    %1882 = vmatprep.subr.bf16.mxu0 0
    %1883 = vmatpush1.bf16.msra.mxu0 0
    %1884 = vmatprep.subr.bf16.mxu0 0
    %1885 = vmatpush1.bf16.msra.mxu0 0
    %1886 = vmatprep.subr.bf16.mxu0 0
    %1887 = vmatpush1.bf16.msra.mxu0 0
    %1888 = vmatprep.subr.bf16.mxu0 0
    %1889 = vmatpush1.bf16.msra.mxu0 0
    %1890 = vmatprep.subr.bf16.mxu0 0
    %1891 = vmatpush1.bf16.msra.mxu0 0
    %1892 = vmatprep.subr.bf16.mxu0 0
    %1893 = vmatpush1.bf16.msra.mxu0 0
    %1894 = vmatprep.subr.bf16.mxu0 0
    %1895 = vmatpush1.bf16.msra.mxu0 0
    %1896 = vmatprep.mubr.bf16.mxu0 0
    %1897 = vmatmul.mubr.bf16.gmra.mrb[0].mxu0 %v1862
    %v1898 = vpop.f32.mrb[0].mxu0
    %v1899 = vadd.f32 0.0, %v1898
    %v1900 = vpop.f32.mrb[0].mxu0
    %v1901 = vadd.f32 0.0, %v1900
    %v1902 = vpop.f32.mrb[0].mxu0
    %v1903 = vadd.f32 0.0, %v1902
    %v1904 = vpop.f32.mrb[0].mxu0
    %v1905 = vadd.f32 0.0, %v1904
    %1906 = vdwg.mxu0
    %1908 = vrot.lane.b32.xlu0 %v1899, 64
    %v1909 = vpop.permute.xlu0 %1908
    %v1910 = vsel %vm277, %v1899, 0
    %v1912 = vsel %vm277, %v1909, 0
    %1914 = vmatprep.subr.mxu0 0.0
    %1915 = vmatpush1.xpose.msra.mxu0 %v1912
    %1916 = vmatprep.subr.mxu0 0.0
    %1917 = vmatpush1.xpose.msra.mxu0 0.0
    %1918 = vmatprep.subr.mxu0 0.0
    %1919 = vmatpush1.xpose.msra.mxu0 0.0
    %1920 = vmatprep.subr.mxu0 0.0
    %1921 = vmatpush1.xpose.msra.mxu0 0.0
    %1922 = vmatprep.subr.mxu0 0.0
    %1923 = vmatpush1.xpose.msra.mxu0 0.0
    %1924 = vmatprep.subr.mxu0 0.0
    %1925 = vmatpush1.xpose.msra.mxu0 0.0
    %1926 = vmatprep.subr.mxu0 0.0
    %1927 = vmatpush1.xpose.msra.mxu0 0.0
    %1928 = vmatprep.subr.mxu0 0.0
    %1929 = vmatpush1.xpose.msra.mxu0 0.0
    %1930 = vmatprep.subr.mxu0 0.0
    %1931 = vmatpush1.xpose.msra.mxu0 0.0
    %1932 = vmatprep.subr.mxu0 0.0
    %1933 = vmatpush1.xpose.msra.mxu0 0.0
    %1934 = vmatprep.subr.mxu0 0.0
    %1935 = vmatpush1.xpose.msra.mxu0 0.0
    %1936 = vmatprep.subr.mxu0 0.0
    %1937 = vmatpush1.xpose.msra.mxu0 0.0
    %1938 = vmatprep.subr.mxu0 0.0
    %1939 = vmatpush1.xpose.msra.mxu0 0.0
    %1940 = vmatprep.subr.mxu0 0.0
    %1941 = vmatpush1.xpose.msra.mxu0 0.0
    %1942 = vmatprep.subr.mxu0 0.0
    %1943 = vmatpush1.xpose.msra.mxu0 0.0
    %1944 = vmatprep.subr.mxu0 0.0
    %1945 = vmatpush1.xpose.msra.mxu0 0.0
    %1946 = vmatprep.subr.mxu0 0.0
    %1947 = vmatpush1.xpose.msra.mxu0 0.0
    %1948 = vmatprep.subr.mxu0 0.0
    %1949 = vmatpush1.xpose.msra.mxu0 0.0
    %1950 = vmatprep.subr.mxu0 0.0
    %1951 = vmatpush1.xpose.msra.mxu0 0.0
    %1952 = vmatprep.subr.mxu0 0.0
    %1953 = vmatpush1.xpose.msra.mxu0 0.0
    %1954 = vmatprep.subr.mxu0 0.0
    %1955 = vmatpush1.xpose.msra.mxu0 0.0
    %1956 = vmatprep.subr.mxu0 0.0
    %1957 = vmatpush1.xpose.msra.mxu0 0.0
    %1958 = vmatprep.subr.mxu0 0.0
    %1959 = vmatpush1.xpose.msra.mxu0 0.0
    %1960 = vmatprep.subr.mxu0 0.0
    %1961 = vmatpush1.xpose.msra.mxu0 0.0
    %1962 = vmatprep.subr.mxu0 0.0
    %1963 = vmatpush1.xpose.msra.mxu0 0.0
    %1964 = vmatprep.subr.mxu0 0.0
    %1965 = vmatpush1.xpose.msra.mxu0 0.0
    %1966 = vmatprep.subr.mxu0 0.0
    %1967 = vmatpush1.xpose.msra.mxu0 0.0
    %1968 = vmatprep.subr.mxu0 0.0
    %1969 = vmatpush1.xpose.msra.mxu0 0.0
    %1970 = vmatprep.subr.mxu0 0.0
    %1971 = vmatpush1.xpose.msra.mxu0 0.0
    %1972 = vmatprep.subr.mxu0 0.0
    %1973 = vmatpush1.xpose.msra.mxu0 0.0
    %1974 = vmatprep.subr.mxu0 0.0
    %1975 = vmatpush1.xpose.msra.mxu0 0.0
    %1976 = vmatprep.subr.mxu0 0.0
    %1977 = vmatpush1.xpose.msra.mxu0 0.0
    %1978 = vmatprep.mubr.f32.mxu0 0.0
    %1979 = vmatmul.mubr.f32.gmra.mrb[0].mxu0 %v1910
    %v1980 = vpop.f32.mrb[0].mxu0
    %v1981 = vadd.f32 0.0, %v1980
    %v1982 = vpop.f32.mrb[0].mxu0
    %1983 = vdwg.mxu0
    %1985 = vrot.lane.b32.xlu0 %v1903, 64
    %v1986 = vpop.permute.xlu0 %1985
    %v1987 = vsel %vm277, %v1903, 0
    %v1989 = vsel %vm277, %v1986, 0
    %1991 = vmatprep.subr.mxu0 0.0
    %1992 = vmatpush1.xpose.msra.mxu0 %v1989
    %1993 = vmatprep.subr.mxu0 0.0
    %1994 = vmatpush1.xpose.msra.mxu0 0.0
    %1995 = vmatprep.subr.mxu0 0.0
    %1996 = vmatpush1.xpose.msra.mxu0 0.0
    %1997 = vmatprep.subr.mxu0 0.0
    %1998 = vmatpush1.xpose.msra.mxu0 0.0
    %1999 = vmatprep.subr.mxu0 0.0
    %2000 = vmatpush1.xpose.msra.mxu0 0.0
    %2001 = vmatprep.subr.mxu0 0.0
    %2002 = vmatpush1.xpose.msra.mxu0 0.0
    %2003 = vmatprep.subr.mxu0 0.0
    %2004 = vmatpush1.xpose.msra.mxu0 0.0
    %2005 = vmatprep.subr.mxu0 0.0
    %2006 = vmatpush1.xpose.msra.mxu0 0.0
    %2007 = vmatprep.subr.mxu0 0.0
    %2008 = vmatpush1.xpose.msra.mxu0 0.0
    %2009 = vmatprep.subr.mxu0 0.0
    %2010 = vmatpush1.xpose.msra.mxu0 0.0
    %2011 = vmatprep.subr.mxu0 0.0
    %2012 = vmatpush1.xpose.msra.mxu0 0.0
    %2013 = vmatprep.subr.mxu0 0.0
    %2014 = vmatpush1.xpose.msra.mxu0 0.0
    %2015 = vmatprep.subr.mxu0 0.0
    %2016 = vmatpush1.xpose.msra.mxu0 0.0
    %2017 = vmatprep.subr.mxu0 0.0
    %2018 = vmatpush1.xpose.msra.mxu0 0.0
    %2019 = vmatprep.subr.mxu0 0.0
    %2020 = vmatpush1.xpose.msra.mxu0 0.0
    %2021 = vmatprep.subr.mxu0 0.0
    %2022 = vmatpush1.xpose.msra.mxu0 0.0
    %2023 = vmatprep.subr.mxu0 0.0
    %2024 = vmatpush1.xpose.msra.mxu0 0.0
    %2025 = vmatprep.subr.mxu0 0.0
    %2026 = vmatpush1.xpose.msra.mxu0 0.0
    %2027 = vmatprep.subr.mxu0 0.0
    %2028 = vmatpush1.xpose.msra.mxu0 0.0
    %2029 = vmatprep.subr.mxu0 0.0
    %2030 = vmatpush1.xpose.msra.mxu0 0.0
    %2031 = vmatprep.subr.mxu0 0.0
    %2032 = vmatpush1.xpose.msra.mxu0 0.0
    %2033 = vmatprep.subr.mxu0 0.0
    %2034 = vmatpush1.xpose.msra.mxu0 0.0
    %2035 = vmatprep.subr.mxu0 0.0
    %2036 = vmatpush1.xpose.msra.mxu0 0.0
    %2037 = vmatprep.subr.mxu0 0.0
    %2038 = vmatpush1.xpose.msra.mxu0 0.0
    %2039 = vmatprep.subr.mxu0 0.0
    %2040 = vmatpush1.xpose.msra.mxu0 0.0
    %2041 = vmatprep.subr.mxu0 0.0
    %2042 = vmatpush1.xpose.msra.mxu0 0.0
    %2043 = vmatprep.subr.mxu0 0.0
    %2044 = vmatpush1.xpose.msra.mxu0 0.0
    %2045 = vmatprep.subr.mxu0 0.0
    %2046 = vmatpush1.xpose.msra.mxu0 0.0
    %2047 = vmatprep.subr.mxu0 0.0
    %2048 = vmatpush1.xpose.msra.mxu0 0.0
    %2049 = vmatprep.subr.mxu0 0.0
    %2050 = vmatpush1.xpose.msra.mxu0 0.0
    %2051 = vmatprep.subr.mxu0 0.0
    %2052 = vmatpush1.xpose.msra.mxu0 0.0
    %2053 = vmatprep.subr.mxu0 0.0
    %2054 = vmatpush1.xpose.msra.mxu0 0.0
    %2055 = vmatprep.mubr.f32.mxu0 0.0
    %2056 = vmatmul.mubr.f32.gmra.mrb[0].mxu0 %v1987
    %v2057 = vpop.f32.mrb[0].mxu0
    %v2058 = vadd.f32 0.0, %v2057
    %v2059 = vpop.f32.mrb[0].mxu0
    %2060 = vdwg.mxu0
    %v2061 = vsel %vm478, %v1981, -inf
    %2062 = vmax.xlane.f32.xlu0 %v2061
    %v2063 = vpop.xlane.xlu0 %2062
    %v2064 = vsel %vm478, %v2058, -inf
    %2065 = vmax.xlane.f32.xlu0 %v2064
    %v2066 = vpop.xlane.xlu0 %2065
    %v2067 = vsub.f32 %v1981, %v2063
    %v2068 = vsub.f32 %v2058, %v2066
    %v2069 = vmul.f32 %v2067, 1.442695
    %v2070 = vpow.pop %v2069
    %v2071 = vmul.f32 %v2068, 1.442695
    %v2072 = vpow.pop %v2071
    %v2073 = vsel %vm478, %v2070, 0.0
    %2074 = vadd.xlane.f32.xlu0 %v2073
    %v2075 = vpop.xlane.xlu0 %2074
    %v2076 = vsel %vm478, %v2072, 0.0
    %2077 = vadd.xlane.f32.xlu0 %v2076
    %v2078 = vpop.xlane.xlu0 %2077
    %v2079 = vrcp.pop %v2075
    %v2080 = vrcp.pop %v2078
    %v2081 = vmul.f32 %v2070, %v2079
    %v2082 = vmul.f32 %v2072, %v2080
    %v2084 = vsel %vm478, %v2081, 0
    %2086 = vmatprep.subr.mxu0 0.0
    %2087 = vmatpush1.msra.mxu0 %v1901
    %2088 = vmatprep.subr.mxu0 0.0
    %2089 = vmatpush1.msra.mxu0 0.0
    %2090 = vmatprep.subr.mxu0 0.0
    %2091 = vmatpush1.msra.mxu0 0.0
    %2092 = vmatprep.subr.mxu0 0.0
    %2093 = vmatpush1.msra.mxu0 0.0
    %2094 = vmatprep.subr.mxu0 0.0
    %2095 = vmatpush1.msra.mxu0 0.0
    %2096 = vmatprep.subr.mxu0 0.0
    %2097 = vmatpush1.msra.mxu0 0.0
    %2098 = vmatprep.subr.mxu0 0.0
    %2099 = vmatpush1.msra.mxu0 0.0
    %2100 = vmatprep.subr.mxu0 0.0
    %2101 = vmatpush1.msra.mxu0 0.0
    %2102 = vmatprep.subr.mxu0 0.0
    %2103 = vmatpush1.msra.mxu0 0.0
    %2104 = vmatprep.subr.mxu0 0.0
    %2105 = vmatpush1.msra.mxu0 0.0
    %2106 = vmatprep.subr.mxu0 0.0
    %2107 = vmatpush1.msra.mxu0 0.0
    %2108 = vmatprep.subr.mxu0 0.0
    %2109 = vmatpush1.msra.mxu0 0.0
    %2110 = vmatprep.subr.mxu0 0.0
    %2111 = vmatpush1.msra.mxu0 0.0
    %2112 = vmatprep.subr.mxu0 0.0
    %2113 = vmatpush1.msra.mxu0 0.0
    %2114 = vmatprep.subr.mxu0 0.0
    %2115 = vmatpush1.msra.mxu0 0.0
    %2116 = vmatprep.subr.mxu0 0.0
    %2117 = vmatpush1.msra.mxu0 0.0
    %2118 = vmatprep.subr.mxu0 0.0
    %2119 = vmatpush1.msra.mxu0 0.0
    %2120 = vmatprep.subr.mxu0 0.0
    %2121 = vmatpush1.msra.mxu0 0.0
    %2122 = vmatprep.subr.mxu0 0.0
    %2123 = vmatpush1.msra.mxu0 0.0
    %2124 = vmatprep.subr.mxu0 0.0
    %2125 = vmatpush1.msra.mxu0 0.0
    %2126 = vmatprep.subr.mxu0 0.0
    %2127 = vmatpush1.msra.mxu0 0.0
    %2128 = vmatprep.subr.mxu0 0.0
    %2129 = vmatpush1.msra.mxu0 0.0
    %2130 = vmatprep.subr.mxu0 0.0
    %2131 = vmatpush1.msra.mxu0 0.0
    %2132 = vmatprep.subr.mxu0 0.0
    %2133 = vmatpush1.msra.mxu0 0.0
    %2134 = vmatprep.subr.mxu0 0.0
    %2135 = vmatpush1.msra.mxu0 0.0
    %2136 = vmatprep.subr.mxu0 0.0
    %2137 = vmatpush1.msra.mxu0 0.0
    %2138 = vmatprep.subr.mxu0 0.0
    %2139 = vmatpush1.msra.mxu0 0.0
    %2140 = vmatprep.subr.mxu0 0.0
    %2141 = vmatpush1.msra.mxu0 0.0
    %2142 = vmatprep.subr.mxu0 0.0
    %2143 = vmatpush1.msra.mxu0 0.0
    %2144 = vmatprep.subr.mxu0 0.0
    %2145 = vmatpush1.msra.mxu0 0.0
    %2146 = vmatprep.subr.mxu0 0.0
    %2147 = vmatpush1.msra.mxu0 0.0
    %2148 = vmatprep.subr.mxu0 0.0
    %2149 = vmatpush1.msra.mxu0 0.0
    %2150 = vmatprep.mubr.f32.mxu0 0.0
    %2151 = vmatmul.mubr.f32.gmra.mrb[0].mxu0 %v2084
    %v2152 = vpop.f32.mrb[0].mxu0
    %v2153 = vadd.f32 0.0, %v2152
    %v2154 = vpop.f32.mrb[0].mxu0
    %2155 = vdwg.mxu0
    %v2157 = vsel %vm478, %v2082, 0
    %2159 = vmatprep.subr.mxu0 0.0
    %2160 = vmatpush1.msra.mxu0 %v1905
    %2161 = vmatprep.subr.mxu0 0.0
    %2162 = vmatpush1.msra.mxu0 0.0
    %2163 = vmatprep.subr.mxu0 0.0
    %2164 = vmatpush1.msra.mxu0 0.0
    %2165 = vmatprep.subr.mxu0 0.0
    %2166 = vmatpush1.msra.mxu0 0.0
    %2167 = vmatprep.subr.mxu0 0.0
    %2168 = vmatpush1.msra.mxu0 0.0
    %2169 = vmatprep.subr.mxu0 0.0
    %2170 = vmatpush1.msra.mxu0 0.0
    %2171 = vmatprep.subr.mxu0 0.0
    %2172 = vmatpush1.msra.mxu0 0.0
    %2173 = vmatprep.subr.mxu0 0.0
    %2174 = vmatpush1.msra.mxu0 0.0
    %2175 = vmatprep.subr.mxu0 0.0
    %2176 = vmatpush1.msra.mxu0 0.0
    %2177 = vmatprep.subr.mxu0 0.0
    %2178 = vmatpush1.msra.mxu0 0.0
    %2179 = vmatprep.subr.mxu0 0.0
    %2180 = vmatpush1.msra.mxu0 0.0
    %2181 = vmatprep.subr.mxu0 0.0
    %2182 = vmatpush1.msra.mxu0 0.0
    %2183 = vmatprep.subr.mxu0 0.0
    %2184 = vmatpush1.msra.mxu0 0.0
    %2185 = vmatprep.subr.mxu0 0.0
    %2186 = vmatpush1.msra.mxu0 0.0
    %2187 = vmatprep.subr.mxu0 0.0
    %2188 = vmatpush1.msra.mxu0 0.0
    %2189 = vmatprep.subr.mxu0 0.0
    %2190 = vmatpush1.msra.mxu0 0.0
    %2191 = vmatprep.subr.mxu0 0.0
    %2192 = vmatpush1.msra.mxu0 0.0
    %2193 = vmatprep.subr.mxu0 0.0
    %2194 = vmatpush1.msra.mxu0 0.0
    %2195 = vmatprep.subr.mxu0 0.0
    %2196 = vmatpush1.msra.mxu0 0.0
    %2197 = vmatprep.subr.mxu0 0.0
    %2198 = vmatpush1.msra.mxu0 0.0
    %2199 = vmatprep.subr.mxu0 0.0
    %2200 = vmatpush1.msra.mxu0 0.0
    %2201 = vmatprep.subr.mxu0 0.0
    %2202 = vmatpush1.msra.mxu0 0.0
    %2203 = vmatprep.subr.mxu0 0.0
    %2204 = vmatpush1.msra.mxu0 0.0
    %2205 = vmatprep.subr.mxu0 0.0
    %2206 = vmatpush1.msra.mxu0 0.0
    %2207 = vmatprep.subr.mxu0 0.0
    %2208 = vmatpush1.msra.mxu0 0.0
    %2209 = vmatprep.subr.mxu0 0.0
    %2210 = vmatpush1.msra.mxu0 0.0
    %2211 = vmatprep.subr.mxu0 0.0
    %2212 = vmatpush1.msra.mxu0 0.0
    %2213 = vmatprep.subr.mxu0 0.0
    %2214 = vmatpush1.msra.mxu0 0.0
    %2215 = vmatprep.subr.mxu0 0.0
    %2216 = vmatpush1.msra.mxu0 0.0
    %2217 = vmatprep.subr.mxu0 0.0
    %2218 = vmatpush1.msra.mxu0 0.0
    %2219 = vmatprep.subr.mxu0 0.0
    %2220 = vmatpush1.msra.mxu0 0.0
    %2221 = vmatprep.subr.mxu0 0.0
    %2222 = vmatpush1.msra.mxu0 0.0
    %2223 = vmatprep.mubr.f32.mxu0 0.0
    %2224 = vmatmul.mubr.f32.gmra.mrb[0].mxu0 %v2157
    %v2225 = vpop.f32.mrb[0].mxu0
    %v2226 = vadd.f32 0.0, %v2225
    %v2227 = vpop.f32.mrb[0].mxu0
    %2228 = vdwg.mxu0
    %s2229 = scalar_lea.vmem %s3, 64
    %v2230 = vld [vmem:[%s2229] sm:$0xf]
    %v2231 = vld [vmem:[%s2229 + $0x4] sm:$0xf]
    %v2232 = vld [vmem:[%s2229 + $0x8] sm:$0xf]
    %v2233 = vld [vmem:[%s2229 + $0xc] sm:$0xf]
    %v2234 = vld [vmem:[%s2229 + $0x10] sm:$0xf]
    %v2235 = vld [vmem:[%s2229 + $0x14] sm:$0xf]
    %v2236 = vld [vmem:[%s2229 + $0x18] sm:$0xf]
    %v2237 = vld [vmem:[%s2229 + $0x1c] sm:$0xf]
    %v2238 = vpack.c.bf16 %v2226, %v2153
    %v2247 = vunpack.c.l.b16 %v2230
    %v2248 = vunpack.c.l.b16 %v2231
    %v2249 = vunpack.c.l.b16 %v2232
    %v2250 = vunpack.c.l.b16 %v2233
    %v2251 = vunpack.c.l.b16 %v2234
    %v2252 = vunpack.c.l.b16 %v2235
    %v2253 = vunpack.c.l.b16 %v2236
    %v2254 = vunpack.c.l.b16 %v2237
    %v2255 = vpack.c.b16 %v2248, %v2247
    %v2256 = vpack.c.b16 %v2250, %v2249
    %v2257 = vpack.c.b16 %v2252, %v2251
    %v2258 = vpack.c.b16 %v2254, %v2253
    %v2264 = vsel %vm277, %v2238, 0
    %2266 = vmatprep.subr.bf16.mxu0 0
    %2267 = vmatpush1.bf16.msra.mxu0 %v2255
    %2268 = vmatprep.subr.bf16.mxu0 0
    %2269 = vmatpush1.bf16.msra.mxu0 %v2256
    %2270 = vmatprep.subr.bf16.mxu0 0
    %2271 = vmatpush1.bf16.msra.mxu0 %v2257
    %2272 = vmatprep.subr.bf16.mxu0 0
    %2273 = vmatpush1.bf16.msra.mxu0 %v2258
    %2274 = vmatprep.subr.bf16.mxu0 0
    %2275 = vmatpush1.bf16.msra.mxu0 0
    %2276 = vmatprep.subr.bf16.mxu0 0
    %2277 = vmatpush1.bf16.msra.mxu0 0
    %2278 = vmatprep.subr.bf16.mxu0 0
    %2279 = vmatpush1.bf16.msra.mxu0 0
    %2280 = vmatprep.subr.bf16.mxu0 0
    %2281 = vmatpush1.bf16.msra.mxu0 0
    %2282 = vmatprep.subr.bf16.mxu0 0
    %2283 = vmatpush1.bf16.msra.mxu0 0
    %2284 = vmatprep.subr.bf16.mxu0 0
    %2285 = vmatpush1.bf16.msra.mxu0 0
    %2286 = vmatprep.subr.bf16.mxu0 0
    %2287 = vmatpush1.bf16.msra.mxu0 0
    %2288 = vmatprep.subr.bf16.mxu0 0
    %2289 = vmatpush1.bf16.msra.mxu0 0
    %2290 = vmatprep.subr.bf16.mxu0 0
    %2291 = vmatpush1.bf16.msra.mxu0 0
    %2292 = vmatprep.subr.bf16.mxu0 0
    %2293 = vmatpush1.bf16.msra.mxu0 0
    %2294 = vmatprep.subr.bf16.mxu0 0
    %2295 = vmatpush1.bf16.msra.mxu0 0
    %2296 = vmatprep.subr.bf16.mxu0 0
    %2297 = vmatpush1.bf16.msra.mxu0 0
    %2298 = vmatprep.mubr.bf16.mxu0 0
    %2299 = vmatmul.mubr.bf16.gmra.mrb[0].mxu0 %v2264
    %v2300 = vpop.f32.mrb[0].mxu0
    %v2301 = vadd.f32 0.0, %v2300
    %v2302 = vpop.f32.mrb[0].mxu0
    %v2303 = vpop.f32.mrb[0].mxu0
    %v2304 = vadd.f32 0.0, %v2303
    %v2305 = vpop.f32.mrb[0].mxu0
    %2306 = vdwg.mxu0
    %v2307 = vadd.f32 %v1809, %v2301
    %v2308 = vadd.f32 %v1810, %v2304
    %s2309 = scalar_lea.vmem %s4, 2
    %v2310 = vld [vmem:[%s2309] sm:$0x1]
    %s2311 = scalar_lea.vmem %s5, 2
    %v2312 = vld [vmem:[%s2311] sm:$0x1]
    %v2313 = vsel %vm277, %v2307, 0.0
    %2314 = vadd.xlane.f32.xlu0 %v2313
    %v2315 = vpop.xlane.xlu0 %2314
    %v2316 = vsel %vm277, %v2308, 0.0
    %2317 = vadd.xlane.f32.xlu0 %v2316
    %v2318 = vpop.xlane.xlu0 %2317
    %v2319 = vmul.f32 %v2315, %v734
    %v2320 = vmul.f32 %v2318, %v734
    %v2321 = vsub.f32 %v2307, %v2319
    %v2322 = vsub.f32 %v2308, %v2320
    %v2323 = vmul.f32 %v2321, %v2321
    %v2324 = vmul.f32 %v2322, %v2322
    %v2325 = vsel %vm277, %v2323, 0.0
    %2326 = vadd.xlane.f32.xlu0 %v2325
    %v2327 = vpop.xlane.xlu0 %2326
    %v2328 = vsel %vm277, %v2324, 0.0
    %2329 = vadd.xlane.f32.xlu0 %v2328
    %v2330 = vpop.xlane.xlu0 %2329
    %v2331 = vmul.f32 %v2327, %v734
    %v2332 = vmul.f32 %v2330, %v734
    %v2333 = vadd.f32 %v2331, 1e-05
    %v2334 = vadd.f32 %v2332, 1e-05
    %v2335 = vrsqrt.pop %v2333
    %v2336 = vrsqrt.pop %v2334
    %v2337 = vmul.f32 %v2321, %v2335
    %v2338 = vmul.f32 %v2322, %v2336
    %v2340 = vlaneseq
    %v2341 = vshrl.u32 %v2340, 7
    %v2342 = vsub.s32 0, %v2341
    %v2343 = vrot.slane %v2310, %v2342
    %v2345 = vmul.f32 %v2337, %v2343
    %v2346 = vmul.f32 %v2338, %v2343
    %v2348 = vlaneseq
    %v2349 = vshrl.u32 %v2348, 7
    %v2350 = vsub.s32 0, %v2349
    %v2351 = vrot.slane %v2312, %v2350
    %v2353 = vadd.f32 %v2345, %v2351
    %v2354 = vadd.f32 %v2346, %v2351
    %s2355 = scalar_lea.vmem [#allocation7], 64
    %v2356 = vld [vmem:[%s2355] sm:$0xf]
    %v2357 = vld [vmem:[%s2355 + $0x4] sm:$0xf]
    %v2358 = vld [vmem:[%s2355 + $0x8] sm:$0xf]
    %v2359 = vld [vmem:[%s2355 + $0xc] sm:$0xf]
    %v2360 = vld [vmem:[%s2355 + $0x10] sm:$0xf]
    %v2361 = vld [vmem:[%s2355 + $0x14] sm:$0xf]
    %v2362 = vld [vmem:[%s2355 + $0x18] sm:$0xf]
    %v2363 = vld [vmem:[%s2355 + $0x1c] sm:$0xf]
    %s2364 = scalar_lea.vmem %s7, 2
    %v2365 = vld [vmem:[%s2364] sm:$0x1]
    %s2366 = scalar_lea.vmem %s8, 128
    %v2367 = vld [vmem:[%s2366] sm:$0xf]
    %v2368 = vld [vmem:[%s2366 + $0x4] sm:$0xf]
    %v2369 = vld [vmem:[%s2366 + $0x8] sm:$0xf]
    %v2370 = vld [vmem:[%s2366 + $0xc] sm:$0xf]
    %v2371 = vld [vmem:[%s2366 + $0x10] sm:$0xf]
    %v2372 = vld [vmem:[%s2366 + $0x14] sm:$0xf]
    %v2373 = vld [vmem:[%s2366 + $0x18] sm:$0xf]
    %v2374 = vld [vmem:[%s2366 + $0x1c] sm:$0xf]
    %v2375 = vld [vmem:[%s2366 + $0x20] sm:$0xf]
    %v2376 = vld [vmem:[%s2366 + $0x24] sm:$0xf]
    %v2377 = vld [vmem:[%s2366 + $0x28] sm:$0xf]
    %v2378 = vld [vmem:[%s2366 + $0x2c] sm:$0xf]
    %v2379 = vld [vmem:[%s2366 + $0x30] sm:$0xf]
    %v2380 = vld [vmem:[%s2366 + $0x34] sm:$0xf]
    %v2381 = vld [vmem:[%s2366 + $0x38] sm:$0xf]
    %v2382 = vld [vmem:[%s2366 + $0x3c] sm:$0xf]
    %s2383 = scalar_lea.vmem %s9, 2
    %v2384 = vld [vmem:[%s2383] sm:$0x1]
    %v2385 = vpack.c.bf16 %v2354, %v2353
    %v2387 = vlaneseq
    %v2388 = vshrl.u32 %v2387, 7
    %v2389 = vsub.s32 0, %v2388
    %v2390 = vrot.slane %v2365, %v2389
    %v2400 = vunpack.c.l.b16 %v2356
    %v2401 = vunpack.c.l.b16 %v2357
    %v2402 = vunpack.c.l.b16 %v2358
    %v2403 = vunpack.c.l.b16 %v2359
    %v2404 = vunpack.c.l.b16 %v2360
    %v2405 = vunpack.c.l.b16 %v2361
    %v2406 = vunpack.c.l.b16 %v2362
    %v2407 = vunpack.c.l.b16 %v2363
    %v2408 = vpack.c.b16 %v2401, %v2400
    %v2409 = vpack.c.b16 %v2403, %v2402
    %v2410 = vpack.c.b16 %v2405, %v2404
    %v2411 = vpack.c.b16 %v2407, %v2406
    %v2417 = vsel %vm277, %v2385, 0
    %2419 = vmatprep.subr.bf16.mxu0 0
    %2420 = vmatpush1.bf16.msra.mxu0 %v2408
    %2421 = vmatprep.subr.bf16.mxu0 0
    %2422 = vmatpush1.bf16.msra.mxu0 %v2409
    %2423 = vmatprep.subr.bf16.mxu0 0
    %2424 = vmatpush1.bf16.msra.mxu0 %v2410
    %2425 = vmatprep.subr.bf16.mxu0 0
    %2426 = vmatpush1.bf16.msra.mxu0 %v2411
    %2427 = vmatprep.subr.bf16.mxu0 0
    %2428 = vmatpush1.bf16.msra.mxu0 0
    %2429 = vmatprep.subr.bf16.mxu0 0
    %2430 = vmatpush1.bf16.msra.mxu0 0
    %2431 = vmatprep.subr.bf16.mxu0 0
    %2432 = vmatpush1.bf16.msra.mxu0 0
    %2433 = vmatprep.subr.bf16.mxu0 0
    %2434 = vmatpush1.bf16.msra.mxu0 0
    %2435 = vmatprep.subr.bf16.mxu0 0
    %2436 = vmatpush1.bf16.msra.mxu0 0
    %2437 = vmatprep.subr.bf16.mxu0 0
    %2438 = vmatpush1.bf16.msra.mxu0 0
    %2439 = vmatprep.subr.bf16.mxu0 0
    %2440 = vmatpush1.bf16.msra.mxu0 0
    %2441 = vmatprep.subr.bf16.mxu0 0
    %2442 = vmatpush1.bf16.msra.mxu0 0
    %2443 = vmatprep.subr.bf16.mxu0 0
    %2444 = vmatpush1.bf16.msra.mxu0 0
    %2445 = vmatprep.subr.bf16.mxu0 0
    %2446 = vmatpush1.bf16.msra.mxu0 0
    %2447 = vmatprep.subr.bf16.mxu0 0
    %2448 = vmatpush1.bf16.msra.mxu0 0
    %2449 = vmatprep.subr.bf16.mxu0 0
    %2450 = vmatpush1.bf16.msra.mxu0 0
    %2451 = vmatprep.mubr.bf16.mxu0 0
    %2452 = vmatmul.mubr.bf16.gmra.mrb[0].mxu0 %v2417
    %v2453 = vpop.f32.mrb[0].mxu0
    %v2454 = vadd.f32 %v2390, %v2453
    %v2455 = vpop.f32.mrb[0].mxu0
    %v2456 = vpop.f32.mrb[0].mxu0
    %v2457 = vadd.f32 %v2390, %v2456
    %v2458 = vpop.f32.mrb[0].mxu0
    %2459 = vdwg.mxu0
    %v2460 = vmax.f32 %v2454, 0.0
    %v2461 = vmax.f32 %v2457, 0.0
    %v2462 = vpack.c.bf16 %v2461, %v2460
    %v2464 = vlaneseq
    %v2465 = vshrl.u32 %v2464, 7
    %v2466 = vsub.s32 0, %v2465
    %v2467 = vrot.slane %v2384, %v2466
    %v2485 = vunpack.c.l.b16 %v2367
    %v2486 = vunpack.c.l.b16 %v2368
    %v2487 = vunpack.c.l.b16 %v2369
    %v2488 = vunpack.c.l.b16 %v2370
    %v2489 = vunpack.c.l.b16 %v2371
    %v2490 = vunpack.c.l.b16 %v2372
    %v2491 = vunpack.c.l.b16 %v2373
    %v2492 = vunpack.c.l.b16 %v2374
    %v2493 = vunpack.c.l.b16 %v2375
    %v2494 = vunpack.c.l.b16 %v2376
    %v2495 = vunpack.c.l.b16 %v2377
    %v2496 = vunpack.c.l.b16 %v2378
    %v2497 = vunpack.c.l.b16 %v2379
    %v2498 = vunpack.c.l.b16 %v2380
    %v2499 = vunpack.c.l.b16 %v2381
    %v2500 = vunpack.c.l.b16 %v2382
    %v2501 = vpack.c.b16 %v2486, %v2485
    %v2502 = vpack.c.b16 %v2488, %v2487
    %v2503 = vpack.c.b16 %v2490, %v2489
    %v2504 = vpack.c.b16 %v2492, %v2491
    %v2505 = vpack.c.b16 %v2494, %v2493
    %v2506 = vpack.c.b16 %v2496, %v2495
    %v2507 = vpack.c.b16 %v2498, %v2497
    %v2508 = vpack.c.b16 %v2500, %v2499
    %2517 = vmatprep.subr.bf16.mxu0 0
    %2518 = vmatpush1.bf16.msra.mxu0 %v2501
    %2519 = vmatprep.subr.bf16.mxu0 0
    %2520 = vmatpush1.bf16.msra.mxu0 %v2502
    %2521 = vmatprep.subr.bf16.mxu0 0
    %2522 = vmatpush1.bf16.msra.mxu0 %v2503
    %2523 = vmatprep.subr.bf16.mxu0 0
    %2524 = vmatpush1.bf16.msra.mxu0 %v2504
    %2525 = vmatprep.subr.bf16.mxu0 0
    %2526 = vmatpush1.bf16.msra.mxu0 %v2505
    %2527 = vmatprep.subr.bf16.mxu0 0
    %2528 = vmatpush1.bf16.msra.mxu0 %v2506
    %2529 = vmatprep.subr.bf16.mxu0 0
    %2530 = vmatpush1.bf16.msra.mxu0 %v2507
    %2531 = vmatprep.subr.bf16.mxu0 0
    %2532 = vmatpush1.bf16.msra.mxu0 %v2508
    %2533 = vmatprep.subr.bf16.mxu0 0
    %2534 = vmatpush1.bf16.msra.mxu0 0
    %2535 = vmatprep.subr.bf16.mxu0 0
    %2536 = vmatpush1.bf16.msra.mxu0 0
    %2537 = vmatprep.subr.bf16.mxu0 0
    %2538 = vmatpush1.bf16.msra.mxu0 0
    %2539 = vmatprep.subr.bf16.mxu0 0
    %2540 = vmatpush1.bf16.msra.mxu0 0
    %2541 = vmatprep.subr.bf16.mxu0 0
    %2542 = vmatpush1.bf16.msra.mxu0 0
    %2543 = vmatprep.subr.bf16.mxu0 0
    %2544 = vmatpush1.bf16.msra.mxu0 0
    %2545 = vmatprep.subr.bf16.mxu0 0
    %2546 = vmatpush1.bf16.msra.mxu0 0
    %2547 = vmatprep.subr.bf16.mxu0 0
    %2548 = vmatpush1.bf16.msra.mxu0 0
    %2549 = vmatprep.mubr.bf16.mxu0 0
    %2550 = vmatmul.mubr.bf16.gmra.mrb[0].mxu0 %v2462
    %v2551 = vpop.f32.mrb[0].mxu0
    %v2552 = vadd.f32 %v2467, %v2551
    %v2553 = vpop.f32.mrb[0].mxu0
    %v2554 = vpop.f32.mrb[0].mxu0
    %v2555 = vadd.f32 %v2467, %v2554
    %v2556 = vpop.f32.mrb[0].mxu0
    %2557 = vdwg.mxu0
    %v2558 = vadd.f32 %v2353, %v2552
    %v2559 = vadd.f32 %v2354, %v2555
    %s2560 = scalar_lea.vmem %s10, 2
    %v2561 = vld [vmem:[%s2560] sm:$0x1]
    %s2562 = scalar_lea.vmem %s11, 2
    %v2563 = vld [vmem:[%s2562] sm:$0x1]
    %v2564 = vsel %vm277, %v2558, 0.0
    %2565 = vadd.xlane.f32.xlu0 %v2564
    %v2566 = vpop.xlane.xlu0 %2565
    %v2567 = vsel %vm277, %v2559, 0.0
    %2568 = vadd.xlane.f32.xlu0 %v2567
    %v2569 = vpop.xlane.xlu0 %2568
    %v2570 = vmul.f32 %v2566, %v734
    %v2571 = vmul.f32 %v2569, %v734
    %v2572 = vsub.f32 %v2558, %v2570
    %v2573 = vsub.f32 %v2559, %v2571
    %v2574 = vmul.f32 %v2572, %v2572
    %v2575 = vmul.f32 %v2573, %v2573
    %v2576 = vsel %vm277, %v2574, 0.0
    %2577 = vadd.xlane.f32.xlu0 %v2576
    %v2578 = vpop.xlane.xlu0 %2577
    %v2579 = vsel %vm277, %v2575, 0.0
    %2580 = vadd.xlane.f32.xlu0 %v2579
    %v2581 = vpop.xlane.xlu0 %2580
    %v2582 = vmul.f32 %v2578, %v734
    %v2583 = vmul.f32 %v2581, %v734
    %v2584 = vadd.f32 %v2582, 1e-05
    %v2585 = vadd.f32 %v2583, 1e-05
    %v2586 = vrsqrt.pop %v2584
    %v2587 = vrsqrt.pop %v2585
    %v2588 = vmul.f32 %v2572, %v2586
    %v2589 = vmul.f32 %v2573, %v2587
    %v2591 = vlaneseq
    %v2592 = vshrl.u32 %v2591, 7
    %v2593 = vsub.s32 0, %v2592
    %v2594 = vrot.slane %v2561, %v2593
    %v2596 = vmul.f32 %v2588, %v2594
    %v2597 = vmul.f32 %v2589, %v2594
    %v2599 = vlaneseq
    %v2600 = vshrl.u32 %v2599, 7
    %v2601 = vsub.s32 0, %v2600
    %v2602 = vrot.slane %v2563, %v2601
    %v2604 = vadd.f32 %v2596, %v2602
    %v2605 = vadd.f32 %v2597, %v2602
    %v2606 = vld [vmem:[%s12] sm:$0xff]
    %v2607 = vld [vmem:[%s12 + $0x8] sm:$0xff]
    %v2608 = vld [vmem:[%s12 + $0x10] sm:$0xff]
    %v2609 = vld [vmem:[%s12 + $0x18] sm:$0xff]
    %v2610 = vld [vmem:[%s12 + $0x20] sm:$0xff]
    %v2611 = vld [vmem:[%s12 + $0x28] sm:$0xff]
    %v2612 = vld [vmem:[%s12 + $0x30] sm:$0xff]
    %v2613 = vld [vmem:[%s12 + $0x38] sm:$0xff]
    %v2614 = vpack.c.bf16 %v227, %v226
    %v2623 = vunpack.c.l.b16 %v2606
    %v2624 = vunpack.c.h.b16 %v2606
    %v2625 = vunpack.c.l.b16 %v2607
    %v2626 = vunpack.c.h.b16 %v2607
    %v2627 = vunpack.c.l.b16 %v2608
    %v2628 = vunpack.c.h.b16 %v2608
    %v2629 = vunpack.c.l.b16 %v2609
    %v2630 = vunpack.c.h.b16 %v2609
    %v2631 = vunpack.c.l.b16 %v2610
    %v2632 = vunpack.c.h.b16 %v2610
    %v2633 = vunpack.c.l.b16 %v2611
    %v2634 = vunpack.c.h.b16 %v2611
    %v2635 = vunpack.c.l.b16 %v2612
    %v2636 = vunpack.c.h.b16 %v2612
    %v2637 = vunpack.c.l.b16 %v2613
    %v2638 = vunpack.c.h.b16 %v2613
    %v2639 = vpack.c.b16 %v2625, %v2623
    %v2640 = vpack.c.b16 %v2626, %v2624
    %v2641 = vpack.c.b16 %v2629, %v2627
    %v2642 = vpack.c.b16 %v2630, %v2628
    %v2643 = vpack.c.b16 %v2633, %v2631
    %v2644 = vpack.c.b16 %v2634, %v2632
    %v2645 = vpack.c.b16 %v2637, %v2635
    %v2646 = vpack.c.b16 %v2638, %v2636
    %v2656 = vsel %vm277, %v2614, 0
    %2658 = vmatprep.subr.bf16.mxu0 %v2640
    %2659 = vmatpush1.bf16.msra.mxu0 %v2639
    %2660 = vmatprep.subr.bf16.mxu0 %v2642
    %2661 = vmatpush1.bf16.msra.mxu0 %v2641
    %2662 = vmatprep.subr.bf16.mxu0 %v2644
    %2663 = vmatpush1.bf16.msra.mxu0 %v2643
    %2664 = vmatprep.subr.bf16.mxu0 %v2646
    %2665 = vmatpush1.bf16.msra.mxu0 %v2645
    %2666 = vmatprep.subr.bf16.mxu0 0
    %2667 = vmatpush1.bf16.msra.mxu0 0
    %2668 = vmatprep.subr.bf16.mxu0 0
    %2669 = vmatpush1.bf16.msra.mxu0 0
    %2670 = vmatprep.subr.bf16.mxu0 0
    %2671 = vmatpush1.bf16.msra.mxu0 0
    %2672 = vmatprep.subr.bf16.mxu0 0
    %2673 = vmatpush1.bf16.msra.mxu0 0
    %2674 = vmatprep.subr.bf16.mxu0 0
    %2675 = vmatpush1.bf16.msra.mxu0 0
    %2676 = vmatprep.subr.bf16.mxu0 0
    %2677 = vmatpush1.bf16.msra.mxu0 0
    %2678 = vmatprep.subr.bf16.mxu0 0
    %2679 = vmatpush1.bf16.msra.mxu0 0
    %2680 = vmatprep.subr.bf16.mxu0 0
    %2681 = vmatpush1.bf16.msra.mxu0 0
    %2682 = vmatprep.subr.bf16.mxu0 0
    %2683 = vmatpush1.bf16.msra.mxu0 0
    %2684 = vmatprep.subr.bf16.mxu0 0
    %2685 = vmatpush1.bf16.msra.mxu0 0
    %2686 = vmatprep.subr.bf16.mxu0 0
    %2687 = vmatpush1.bf16.msra.mxu0 0
    %2688 = vmatprep.subr.bf16.mxu0 0
    %2689 = vmatpush1.bf16.msra.mxu0 0
    %2690 = vmatprep.mubr.bf16.mxu0 0
    %2691 = vmatmul.mubr.bf16.gmra.mrb[0].mxu0 %v2656
    %v2692 = vpop.f32.mrb[0].mxu0
    %v2693 = vadd.f32 0.0, %v2692
    %v2694 = vpop.f32.mrb[0].mxu0
    %v2695 = vadd.f32 0.0, %v2694
    %v2696 = vpop.f32.mrb[0].mxu0
    %v2697 = vadd.f32 0.0, %v2696
    %v2698 = vpop.f32.mrb[0].mxu0
    %v2699 = vadd.f32 0.0, %v2698
    %2700 = vdwg.mxu0
    %2702 = vrot.lane.b32.xlu0 %v2693, 64
    %v2703 = vpop.permute.xlu0 %2702
    %v2704 = vsel %vm277, %v2693, 0
    %v2706 = vsel %vm277, %v2703, 0
    %2708 = vmatprep.subr.mxu0 0.0
    %2709 = vmatpush1.xpose.msra.mxu0 %v2706
    %2710 = vmatprep.subr.mxu0 0.0
    %2711 = vmatpush1.xpose.msra.mxu0 0.0
    %2712 = vmatprep.subr.mxu0 0.0
    %2713 = vmatpush1.xpose.msra.mxu0 0.0
    %2714 = vmatprep.subr.mxu0 0.0
    %2715 = vmatpush1.xpose.msra.mxu0 0.0
    %2716 = vmatprep.subr.mxu0 0.0
    %2717 = vmatpush1.xpose.msra.mxu0 0.0
    %2718 = vmatprep.subr.mxu0 0.0
    %2719 = vmatpush1.xpose.msra.mxu0 0.0
    %2720 = vmatprep.subr.mxu0 0.0
    %2721 = vmatpush1.xpose.msra.mxu0 0.0
    %2722 = vmatprep.subr.mxu0 0.0
    %2723 = vmatpush1.xpose.msra.mxu0 0.0
    %2724 = vmatprep.subr.mxu0 0.0
    %2725 = vmatpush1.xpose.msra.mxu0 0.0
    %2726 = vmatprep.subr.mxu0 0.0
    %2727 = vmatpush1.xpose.msra.mxu0 0.0
    %2728 = vmatprep.subr.mxu0 0.0
    %2729 = vmatpush1.xpose.msra.mxu0 0.0
    %2730 = vmatprep.subr.mxu0 0.0
    %2731 = vmatpush1.xpose.msra.mxu0 0.0
    %2732 = vmatprep.subr.mxu0 0.0
    %2733 = vmatpush1.xpose.msra.mxu0 0.0
    %2734 = vmatprep.subr.mxu0 0.0
    %2735 = vmatpush1.xpose.msra.mxu0 0.0
    %2736 = vmatprep.subr.mxu0 0.0
    %2737 = vmatpush1.xpose.msra.mxu0 0.0
    %2738 = vmatprep.subr.mxu0 0.0
    %2739 = vmatpush1.xpose.msra.mxu0 0.0
    %2740 = vmatprep.subr.mxu0 0.0
    %2741 = vmatpush1.xpose.msra.mxu0 0.0
    %2742 = vmatprep.subr.mxu0 0.0
    %2743 = vmatpush1.xpose.msra.mxu0 0.0
    %2744 = vmatprep.subr.mxu0 0.0
    %2745 = vmatpush1.xpose.msra.mxu0 0.0
    %2746 = vmatprep.subr.mxu0 0.0
    %2747 = vmatpush1.xpose.msra.mxu0 0.0
    %2748 = vmatprep.subr.mxu0 0.0
    %2749 = vmatpush1.xpose.msra.mxu0 0.0
    %2750 = vmatprep.subr.mxu0 0.0
    %2751 = vmatpush1.xpose.msra.mxu0 0.0
    %2752 = vmatprep.subr.mxu0 0.0
    %2753 = vmatpush1.xpose.msra.mxu0 0.0
    %2754 = vmatprep.subr.mxu0 0.0
    %2755 = vmatpush1.xpose.msra.mxu0 0.0
    %2756 = vmatprep.subr.mxu0 0.0
    %2757 = vmatpush1.xpose.msra.mxu0 0.0
    %2758 = vmatprep.subr.mxu0 0.0
    %2759 = vmatpush1.xpose.msra.mxu0 0.0
    %2760 = vmatprep.subr.mxu0 0.0
    %2761 = vmatpush1.xpose.msra.mxu0 0.0
    %2762 = vmatprep.subr.mxu0 0.0
    %2763 = vmatpush1.xpose.msra.mxu0 0.0
    %2764 = vmatprep.subr.mxu0 0.0
    %2765 = vmatpush1.xpose.msra.mxu0 0.0
    %2766 = vmatprep.subr.mxu0 0.0
    %2767 = vmatpush1.xpose.msra.mxu0 0.0
    %2768 = vmatprep.subr.mxu0 0.0
    %2769 = vmatpush1.xpose.msra.mxu0 0.0
    %2770 = vmatprep.subr.mxu0 0.0
    %2771 = vmatpush1.xpose.msra.mxu0 0.0
    %2772 = vmatprep.mubr.f32.mxu0 0.0
    %2773 = vmatmul.mubr.f32.gmra.mrb[0].mxu0 %v2704
    %v2774 = vpop.f32.mrb[0].mxu0
    %v2775 = vadd.f32 0.0, %v2774
    %v2776 = vpop.f32.mrb[0].mxu0
    %2777 = vdwg.mxu0
    %2779 = vrot.lane.b32.xlu0 %v2697, 64
    %v2780 = vpop.permute.xlu0 %2779
    %v2781 = vsel %vm277, %v2697, 0
    %v2783 = vsel %vm277, %v2780, 0
    %2785 = vmatprep.subr.mxu0 0.0
    %2786 = vmatpush1.xpose.msra.mxu0 %v2783
    %2787 = vmatprep.subr.mxu0 0.0
    %2788 = vmatpush1.xpose.msra.mxu0 0.0
    %2789 = vmatprep.subr.mxu0 0.0
    %2790 = vmatpush1.xpose.msra.mxu0 0.0
    %2791 = vmatprep.subr.mxu0 0.0
    %2792 = vmatpush1.xpose.msra.mxu0 0.0
    %2793 = vmatprep.subr.mxu0 0.0
    %2794 = vmatpush1.xpose.msra.mxu0 0.0
    %2795 = vmatprep.subr.mxu0 0.0
    %2796 = vmatpush1.xpose.msra.mxu0 0.0
    %2797 = vmatprep.subr.mxu0 0.0
    %2798 = vmatpush1.xpose.msra.mxu0 0.0
    %2799 = vmatprep.subr.mxu0 0.0
    %2800 = vmatpush1.xpose.msra.mxu0 0.0
    %2801 = vmatprep.subr.mxu0 0.0
    %2802 = vmatpush1.xpose.msra.mxu0 0.0
    %2803 = vmatprep.subr.mxu0 0.0
    %2804 = vmatpush1.xpose.msra.mxu0 0.0
    %2805 = vmatprep.subr.mxu0 0.0
    %2806 = vmatpush1.xpose.msra.mxu0 0.0
    %2807 = vmatprep.subr.mxu0 0.0
    %2808 = vmatpush1.xpose.msra.mxu0 0.0
    %2809 = vmatprep.subr.mxu0 0.0
    %2810 = vmatpush1.xpose.msra.mxu0 0.0
    %2811 = vmatprep.subr.mxu0 0.0
    %2812 = vmatpush1.xpose.msra.mxu0 0.0
    %2813 = vmatprep.subr.mxu0 0.0
    %2814 = vmatpush1.xpose.msra.mxu0 0.0
    %2815 = vmatprep.subr.mxu0 0.0
    %2816 = vmatpush1.xpose.msra.mxu0 0.0
    %2817 = vmatprep.subr.mxu0 0.0
    %2818 = vmatpush1.xpose.msra.mxu0 0.0
    %2819 = vmatprep.subr.mxu0 0.0
    %2820 = vmatpush1.xpose.msra.mxu0 0.0
    %2821 = vmatprep.subr.mxu0 0.0
    %2822 = vmatpush1.xpose.msra.mxu0 0.0
    %2823 = vmatprep.subr.mxu0 0.0
    %2824 = vmatpush1.xpose.msra.mxu0 0.0
    %2825 = vmatprep.subr.mxu0 0.0
    %2826 = vmatpush1.xpose.msra.mxu0 0.0
    %2827 = vmatprep.subr.mxu0 0.0
    %2828 = vmatpush1.xpose.msra.mxu0 0.0
    %2829 = vmatprep.subr.mxu0 0.0
    %2830 = vmatpush1.xpose.msra.mxu0 0.0
    %2831 = vmatprep.subr.mxu0 0.0
    %2832 = vmatpush1.xpose.msra.mxu0 0.0
    %2833 = vmatprep.subr.mxu0 0.0
    %2834 = vmatpush1.xpose.msra.mxu0 0.0
    %2835 = vmatprep.subr.mxu0 0.0
    %2836 = vmatpush1.xpose.msra.mxu0 0.0
    %2837 = vmatprep.subr.mxu0 0.0
    %2838 = vmatpush1.xpose.msra.mxu0 0.0
    %2839 = vmatprep.subr.mxu0 0.0
    %2840 = vmatpush1.xpose.msra.mxu0 0.0
    %2841 = vmatprep.subr.mxu0 0.0
    %2842 = vmatpush1.xpose.msra.mxu0 0.0
    %2843 = vmatprep.subr.mxu0 0.0
    %2844 = vmatpush1.xpose.msra.mxu0 0.0
    %2845 = vmatprep.subr.mxu0 0.0
    %2846 = vmatpush1.xpose.msra.mxu0 0.0
    %2847 = vmatprep.subr.mxu0 0.0
    %2848 = vmatpush1.xpose.msra.mxu0 0.0
    %2849 = vmatprep.mubr.f32.mxu0 0.0
    %2850 = vmatmul.mubr.f32.gmra.mrb[0].mxu0 %v2781
    %v2851 = vpop.f32.mrb[0].mxu0
    %v2852 = vadd.f32 0.0, %v2851
    %v2853 = vpop.f32.mrb[0].mxu0
    %2854 = vdwg.mxu0
    %v2855 = vsel %vm478, %v2775, -inf
    %2856 = vmax.xlane.f32.xlu0 %v2855
    %v2857 = vpop.xlane.xlu0 %2856
    %v2858 = vsel %vm478, %v2852, -inf
    %2859 = vmax.xlane.f32.xlu0 %v2858
    %v2860 = vpop.xlane.xlu0 %2859
    %v2861 = vsub.f32 %v2775, %v2857
    %v2862 = vsub.f32 %v2852, %v2860
    %v2863 = vmul.f32 %v2861, 1.442695
    %v2864 = vpow.pop %v2863
    %v2865 = vmul.f32 %v2862, 1.442695
    %v2866 = vpow.pop %v2865
    %v2867 = vsel %vm478, %v2864, 0.0
    %2868 = vadd.xlane.f32.xlu0 %v2867
    %v2869 = vpop.xlane.xlu0 %2868
    %v2870 = vsel %vm478, %v2866, 0.0
    %2871 = vadd.xlane.f32.xlu0 %v2870
    %v2872 = vpop.xlane.xlu0 %2871
    %v2873 = vrcp.pop %v2869
    %v2874 = vrcp.pop %v2872
    %v2875 = vmul.f32 %v2864, %v2873
    %v2876 = vmul.f32 %v2866, %v2874
    %v2878 = vsel %vm478, %v2875, 0
    %2880 = vmatprep.subr.mxu0 0.0
    %2881 = vmatpush1.msra.mxu0 %v2695
    %2882 = vmatprep.subr.mxu0 0.0
    %2883 = vmatpush1.msra.mxu0 0.0
    %2884 = vmatprep.subr.mxu0 0.0
    %2885 = vmatpush1.msra.mxu0 0.0
    %2886 = vmatprep.subr.mxu0 0.0
    %2887 = vmatpush1.msra.mxu0 0.0
    %2888 = vmatprep.subr.mxu0 0.0
    %2889 = vmatpush1.msra.mxu0 0.0
    %2890 = vmatprep.subr.mxu0 0.0
    %2891 = vmatpush1.msra.mxu0 0.0
    %2892 = vmatprep.subr.mxu0 0.0
    %2893 = vmatpush1.msra.mxu0 0.0
    %2894 = vmatprep.subr.mxu0 0.0
    %2895 = vmatpush1.msra.mxu0 0.0
    %2896 = vmatprep.subr.mxu0 0.0
    %2897 = vmatpush1.msra.mxu0 0.0
    %2898 = vmatprep.subr.mxu0 0.0
    %2899 = vmatpush1.msra.mxu0 0.0
    %2900 = vmatprep.subr.mxu0 0.0
    %2901 = vmatpush1.msra.mxu0 0.0
    %2902 = vmatprep.subr.mxu0 0.0
    %2903 = vmatpush1.msra.mxu0 0.0
    %2904 = vmatprep.subr.mxu0 0.0
    %2905 = vmatpush1.msra.mxu0 0.0
    %2906 = vmatprep.subr.mxu0 0.0
    %2907 = vmatpush1.msra.mxu0 0.0
    %2908 = vmatprep.subr.mxu0 0.0
    %2909 = vmatpush1.msra.mxu0 0.0
    %2910 = vmatprep.subr.mxu0 0.0
    %2911 = vmatpush1.msra.mxu0 0.0
    %2912 = vmatprep.subr.mxu0 0.0
    %2913 = vmatpush1.msra.mxu0 0.0
    %2914 = vmatprep.subr.mxu0 0.0
    %2915 = vmatpush1.msra.mxu0 0.0
    %2916 = vmatprep.subr.mxu0 0.0
    %2917 = vmatpush1.msra.mxu0 0.0
    %2918 = vmatprep.subr.mxu0 0.0
    %2919 = vmatpush1.msra.mxu0 0.0
    %2920 = vmatprep.subr.mxu0 0.0
    %2921 = vmatpush1.msra.mxu0 0.0
    %2922 = vmatprep.subr.mxu0 0.0
    %2923 = vmatpush1.msra.mxu0 0.0
    %2924 = vmatprep.subr.mxu0 0.0
    %2925 = vmatpush1.msra.mxu0 0.0
    %2926 = vmatprep.subr.mxu0 0.0
    %2927 = vmatpush1.msra.mxu0 0.0
    %2928 = vmatprep.subr.mxu0 0.0
    %2929 = vmatpush1.msra.mxu0 0.0
    %2930 = vmatprep.subr.mxu0 0.0
    %2931 = vmatpush1.msra.mxu0 0.0
    %2932 = vmatprep.subr.mxu0 0.0
    %2933 = vmatpush1.msra.mxu0 0.0
    %2934 = vmatprep.subr.mxu0 0.0
    %2935 = vmatpush1.msra.mxu0 0.0
    %2936 = vmatprep.subr.mxu0 0.0
    %2937 = vmatpush1.msra.mxu0 0.0
    %2938 = vmatprep.subr.mxu0 0.0
    %2939 = vmatpush1.msra.mxu0 0.0
    %2940 = vmatprep.subr.mxu0 0.0
    %2941 = vmatpush1.msra.mxu0 0.0
    %2942 = vmatprep.subr.mxu0 0.0
    %2943 = vmatpush1.msra.mxu0 0.0
    %2944 = vmatprep.mubr.f32.mxu0 0.0
    %2945 = vmatmul.mubr.f32.gmra.mrb[0].mxu0 %v2878
    %v2946 = vpop.f32.mrb[0].mxu0
    %v2947 = vadd.f32 0.0, %v2946
    %v2948 = vpop.f32.mrb[0].mxu0
    %2949 = vdwg.mxu0
    %v2951 = vsel %vm478, %v2876, 0
    %2953 = vmatprep.subr.mxu0 0.0
    %2954 = vmatpush1.msra.mxu0 %v2699
    %2955 = vmatprep.subr.mxu0 0.0
    %2956 = vmatpush1.msra.mxu0 0.0
    %2957 = vmatprep.subr.mxu0 0.0
    %2958 = vmatpush1.msra.mxu0 0.0
    %2959 = vmatprep.subr.mxu0 0.0
    %2960 = vmatpush1.msra.mxu0 0.0
    %2961 = vmatprep.subr.mxu0 0.0
    %2962 = vmatpush1.msra.mxu0 0.0
    %2963 = vmatprep.subr.mxu0 0.0
    %2964 = vmatpush1.msra.mxu0 0.0
    %2965 = vmatprep.subr.mxu0 0.0
    %2966 = vmatpush1.msra.mxu0 0.0
    %2967 = vmatprep.subr.mxu0 0.0
    %2968 = vmatpush1.msra.mxu0 0.0
    %2969 = vmatprep.subr.mxu0 0.0
    %2970 = vmatpush1.msra.mxu0 0.0
    %2971 = vmatprep.subr.mxu0 0.0
    %2972 = vmatpush1.msra.mxu0 0.0
    %2973 = vmatprep.subr.mxu0 0.0
    %2974 = vmatpush1.msra.mxu0 0.0
    %2975 = vmatprep.subr.mxu0 0.0
    %2976 = vmatpush1.msra.mxu0 0.0
    %2977 = vmatprep.subr.mxu0 0.0
    %2978 = vmatpush1.msra.mxu0 0.0
    %2979 = vmatprep.subr.mxu0 0.0
    %2980 = vmatpush1.msra.mxu0 0.0
    %2981 = vmatprep.subr.mxu0 0.0
    %2982 = vmatpush1.msra.mxu0 0.0
    %2983 = vmatprep.subr.mxu0 0.0
    %2984 = vmatpush1.msra.mxu0 0.0
    %2985 = vmatprep.subr.mxu0 0.0
    %2986 = vmatpush1.msra.mxu0 0.0
    %2987 = vmatprep.subr.mxu0 0.0
    %2988 = vmatpush1.msra.mxu0 0.0
    %2989 = vmatprep.subr.mxu0 0.0
    %2990 = vmatpush1.msra.mxu0 0.0
    %2991 = vmatprep.subr.mxu0 0.0
    %2992 = vmatpush1.msra.mxu0 0.0
    %2993 = vmatprep.subr.mxu0 0.0
    %2994 = vmatpush1.msra.mxu0 0.0
    %2995 = vmatprep.subr.mxu0 0.0
    %2996 = vmatpush1.msra.mxu0 0.0
    %2997 = vmatprep.subr.mxu0 0.0
    %2998 = vmatpush1.msra.mxu0 0.0
    %2999 = vmatprep.subr.mxu0 0.0
    %3000 = vmatpush1.msra.mxu0 0.0
    %3001 = vmatprep.subr.mxu0 0.0
    %3002 = vmatpush1.msra.mxu0 0.0
    %3003 = vmatprep.subr.mxu0 0.0
    %3004 = vmatpush1.msra.mxu0 0.0
    %3005 = vmatprep.subr.mxu0 0.0
    %3006 = vmatpush1.msra.mxu0 0.0
    %3007 = vmatprep.subr.mxu0 0.0
    %3008 = vmatpush1.msra.mxu0 0.0
    %3009 = vmatprep.subr.mxu0 0.0
    %3010 = vmatpush1.msra.mxu0 0.0
    %3011 = vmatprep.subr.mxu0 0.0
    %3012 = vmatpush1.msra.mxu0 0.0
    %3013 = vmatprep.subr.mxu0 0.0
    %3014 = vmatpush1.msra.mxu0 0.0
    %3015 = vmatprep.subr.mxu0 0.0
    %3016 = vmatpush1.msra.mxu0 0.0
    %3017 = vmatprep.mubr.f32.mxu0 0.0
    %3018 = vmatmul.mubr.f32.gmra.mrb[0].mxu0 %v2951
    %v3019 = vpop.f32.mrb[0].mxu0
    %v3020 = vadd.f32 0.0, %v3019
    %v3021 = vpop.f32.mrb[0].mxu0
    %3022 = vdwg.mxu0
    %v3023 = vld [vmem:[%s13] sm:$0xf]
    %v3024 = vld [vmem:[%s13 + $0x4] sm:$0xf]
    %v3025 = vld [vmem:[%s13 + $0x8] sm:$0xf]
    %v3026 = vld [vmem:[%s13 + $0xc] sm:$0xf]
    %v3027 = vld [vmem:[%s13 + $0x10] sm:$0xf]
    %v3028 = vld [vmem:[%s13 + $0x14] sm:$0xf]
    %v3029 = vld [vmem:[%s13 + $0x18] sm:$0xf]
    %v3030 = vld [vmem:[%s13 + $0x1c] sm:$0xf]
    %v3031 = vpack.c.bf16 %v3020, %v2947
    %v3040 = vunpack.c.l.b16 %v3023
    %v3041 = vunpack.c.l.b16 %v3024
    %v3042 = vunpack.c.l.b16 %v3025
    %v3043 = vunpack.c.l.b16 %v3026
    %v3044 = vunpack.c.l.b16 %v3027
    %v3045 = vunpack.c.l.b16 %v3028
    %v3046 = vunpack.c.l.b16 %v3029
    %v3047 = vunpack.c.l.b16 %v3030
    %v3048 = vpack.c.b16 %v3041, %v3040
    %v3049 = vpack.c.b16 %v3043, %v3042
    %v3050 = vpack.c.b16 %v3045, %v3044
    %v3051 = vpack.c.b16 %v3047, %v3046
    %v3057 = vsel %vm277, %v3031, 0
    %3059 = vmatprep.subr.bf16.mxu0 0
    %3060 = vmatpush1.bf16.msra.mxu0 %v3048
    %3061 = vmatprep.subr.bf16.mxu0 0
    %3062 = vmatpush1.bf16.msra.mxu0 %v3049
    %3063 = vmatprep.subr.bf16.mxu0 0
    %3064 = vmatpush1.bf16.msra.mxu0 %v3050
    %3065 = vmatprep.subr.bf16.mxu0 0
    %3066 = vmatpush1.bf16.msra.mxu0 %v3051
    %3067 = vmatprep.subr.bf16.mxu0 0
    %3068 = vmatpush1.bf16.msra.mxu0 0
    %3069 = vmatprep.subr.bf16.mxu0 0
    %3070 = vmatpush1.bf16.msra.mxu0 0
    %3071 = vmatprep.subr.bf16.mxu0 0
    %3072 = vmatpush1.bf16.msra.mxu0 0
    %3073 = vmatprep.subr.bf16.mxu0 0
    %3074 = vmatpush1.bf16.msra.mxu0 0
    %3075 = vmatprep.subr.bf16.mxu0 0
    %3076 = vmatpush1.bf16.msra.mxu0 0
    %3077 = vmatprep.subr.bf16.mxu0 0
    %3078 = vmatpush1.bf16.msra.mxu0 0
    %3079 = vmatprep.subr.bf16.mxu0 0
    %3080 = vmatpush1.bf16.msra.mxu0 0
    %3081 = vmatprep.subr.bf16.mxu0 0
    %3082 = vmatpush1.bf16.msra.mxu0 0
    %3083 = vmatprep.subr.bf16.mxu0 0
    %3084 = vmatpush1.bf16.msra.mxu0 0
    %3085 = vmatprep.subr.bf16.mxu0 0
    %3086 = vmatpush1.bf16.msra.mxu0 0
    %3087 = vmatprep.subr.bf16.mxu0 0
    %3088 = vmatpush1.bf16.msra.mxu0 0
    %3089 = vmatprep.subr.bf16.mxu0 0
    %3090 = vmatpush1.bf16.msra.mxu0 0
    %3091 = vmatprep.mubr.bf16.mxu0 0
    %3092 = vmatmul.mubr.bf16.gmra.mrb[0].mxu0 %v3057
    %v3093 = vpop.f32.mrb[0].mxu0
    %v3094 = vadd.f32 0.0, %v3093
    %v3095 = vpop.f32.mrb[0].mxu0
    %v3096 = vpop.f32.mrb[0].mxu0
    %v3097 = vadd.f32 0.0, %v3096
    %v3098 = vpop.f32.mrb[0].mxu0
    %3099 = vdwg.mxu0
    %v3100 = vadd.f32 %v226, %v3094
    %v3101 = vadd.f32 %v227, %v3097
    %v3102 = vld [vmem:[%s14] sm:$0x1]
    %v3103 = vld [vmem:[%s15] sm:$0x1]
    %v3104 = vsel %vm277, %v3100, 0.0
    %3105 = vadd.xlane.f32.xlu0 %v3104
    %v3106 = vpop.xlane.xlu0 %3105
    %v3107 = vsel %vm277, %v3101, 0.0
    %3108 = vadd.xlane.f32.xlu0 %v3107
    %v3109 = vpop.xlane.xlu0 %3108
    %v3110 = vmul.f32 %v3106, %v734
    %v3111 = vmul.f32 %v3109, %v734
    %v3112 = vsub.f32 %v3100, %v3110
    %v3113 = vsub.f32 %v3101, %v3111
    %v3114 = vmul.f32 %v3112, %v3112
    %v3115 = vmul.f32 %v3113, %v3113
    %v3116 = vsel %vm277, %v3114, 0.0
    %3117 = vadd.xlane.f32.xlu0 %v3116
    %v3118 = vpop.xlane.xlu0 %3117
    %v3119 = vsel %vm277, %v3115, 0.0
    %3120 = vadd.xlane.f32.xlu0 %v3119
    %v3121 = vpop.xlane.xlu0 %3120
    %v3122 = vmul.f32 %v3118, %v734
    %v3123 = vmul.f32 %v3121, %v734
    %v3124 = vadd.f32 %v3122, 1e-05
    %v3125 = vadd.f32 %v3123, 1e-05
    %v3126 = vrsqrt.pop %v3124
    %v3127 = vrsqrt.pop %v3125
    %v3128 = vmul.f32 %v3112, %v3126
    %v3129 = vmul.f32 %v3113, %v3127
    %v3131 = vlaneseq
    %v3132 = vshrl.u32 %v3131, 7
    %v3133 = vsub.s32 0, %v3132
    %v3134 = vrot.slane %v3102, %v3133
    %v3136 = vmul.f32 %v3128, %v3134
    %v3137 = vmul.f32 %v3129, %v3134
    %v3139 = vlaneseq
    %v3140 = vshrl.u32 %v3139, 7
    %v3141 = vsub.s32 0, %v3140
    %v3142 = vrot.slane %v3103, %v3141
    %v3144 = vadd.f32 %v3136, %v3142
    %v3145 = vadd.f32 %v3137, %v3142
    %v3146 = vld [vmem:[#allocation8] sm:$0xf]
    %v3147 = vld [vmem:[#allocation8 + $0x4] sm:$0xf]
    %v3148 = vld [vmem:[#allocation8 + $0x8] sm:$0xf]
    %v3149 = vld [vmem:[#allocation8 + $0xc] sm:$0xf]
    %v3150 = vld [vmem:[#allocation8 + $0x10] sm:$0xf]
    %v3151 = vld [vmem:[#allocation8 + $0x14] sm:$0xf]
    %v3152 = vld [vmem:[#allocation8 + $0x18] sm:$0xf]
    %v3153 = vld [vmem:[#allocation8 + $0x1c] sm:$0xf]
    %v3154 = vpack.c.bf16 %v3145, %v3144
    %v3163 = vunpack.c.l.b16 %v3146
    %v3164 = vunpack.c.l.b16 %v3147
    %v3165 = vunpack.c.l.b16 %v3148
    %v3166 = vunpack.c.l.b16 %v3149
    %v3167 = vunpack.c.l.b16 %v3150
    %v3168 = vunpack.c.l.b16 %v3151
    %v3169 = vunpack.c.l.b16 %v3152
    %v3170 = vunpack.c.l.b16 %v3153
    %v3171 = vpack.c.b16 %v3164, %v3163
    %v3172 = vpack.c.b16 %v3166, %v3165
    %v3173 = vpack.c.b16 %v3168, %v3167
    %v3174 = vpack.c.b16 %v3170, %v3169
    %v3180 = vsel %vm277, %v3154, 0
    %3182 = vmatprep.subr.bf16.mxu0 0
    %3183 = vmatpush1.bf16.msra.mxu0 %v3171
    %3184 = vmatprep.subr.bf16.mxu0 0
    %3185 = vmatpush1.bf16.msra.mxu0 %v3172
    %3186 = vmatprep.subr.bf16.mxu0 0
    %3187 = vmatpush1.bf16.msra.mxu0 %v3173
    %3188 = vmatprep.subr.bf16.mxu0 0
    %3189 = vmatpush1.bf16.msra.mxu0 %v3174
    %3190 = vmatprep.subr.bf16.mxu0 0
    %3191 = vmatpush1.bf16.msra.mxu0 0
    %3192 = vmatprep.subr.bf16.mxu0 0
    %3193 = vmatpush1.bf16.msra.mxu0 0
    %3194 = vmatprep.subr.bf16.mxu0 0
    %3195 = vmatpush1.bf16.msra.mxu0 0
    %3196 = vmatprep.subr.bf16.mxu0 0
    %3197 = vmatpush1.bf16.msra.mxu0 0
    %3198 = vmatprep.subr.bf16.mxu0 0
    %3199 = vmatpush1.bf16.msra.mxu0 0
    %3200 = vmatprep.subr.bf16.mxu0 0
    %3201 = vmatpush1.bf16.msra.mxu0 0
    %3202 = vmatprep.subr.bf16.mxu0 0
    %3203 = vmatpush1.bf16.msra.mxu0 0
    %3204 = vmatprep.subr.bf16.mxu0 0
    %3205 = vmatpush1.bf16.msra.mxu0 0
    %3206 = vmatprep.subr.bf16.mxu0 0
    %3207 = vmatpush1.bf16.msra.mxu0 0
    %3208 = vmatprep.subr.bf16.mxu0 0
    %3209 = vmatpush1.bf16.msra.mxu0 0
    %3210 = vmatprep.subr.bf16.mxu0 0
    %3211 = vmatpush1.bf16.msra.mxu0 0
    %3212 = vmatprep.subr.bf16.mxu0 0
    %3213 = vmatpush1.bf16.msra.mxu0 0
    %3214 = vmatprep.mubr.bf16.mxu0 0
    %3215 = vmatmul.mubr.bf16.gmra.mrb[0].mxu0 %v3180
    %v3216 = vpop.f32.mrb[0].mxu0
    %v3217 = vadd.f32 0.0, %v3216
    %v3218 = vpop.f32.mrb[0].mxu0
    %v3219 = vpop.f32.mrb[0].mxu0
    %v3220 = vadd.f32 0.0, %v3219
    %v3221 = vpop.f32.mrb[0].mxu0
    %3222 = vdwg.mxu0
    %v3223 = vld [vmem:[#allocation10] sm:$0xf]
    %v3224 = vld [vmem:[#allocation10 + $0x4] sm:$0xf]
    %v3225 = vld [vmem:[#allocation10 + $0x8] sm:$0xf]
    %v3226 = vld [vmem:[#allocation10 + $0xc] sm:$0xf]
    %v3227 = vld [vmem:[#allocation10 + $0x10] sm:$0xf]
    %v3228 = vld [vmem:[#allocation10 + $0x14] sm:$0xf]
    %v3229 = vld [vmem:[#allocation10 + $0x18] sm:$0xf]
    %v3230 = vld [vmem:[#allocation10 + $0x1c] sm:$0xf]
    %v3231 = vpack.c.bf16 %v2605, %v2604
    %v3240 = vunpack.c.l.b16 %v3223
    %v3241 = vunpack.c.l.b16 %v3224
    %v3242 = vunpack.c.l.b16 %v3225
    %v3243 = vunpack.c.l.b16 %v3226
    %v3244 = vunpack.c.l.b16 %v3227
    %v3245 = vunpack.c.l.b16 %v3228
    %v3246 = vunpack.c.l.b16 %v3229
    %v3247 = vunpack.c.l.b16 %v3230
    %v3248 = vpack.c.b16 %v3241, %v3240
    %v3249 = vpack.c.b16 %v3243, %v3242
    %v3250 = vpack.c.b16 %v3245, %v3244
    %v3251 = vpack.c.b16 %v3247, %v3246
    %v3257 = vsel %vm277, %v3231, 0
    %3259 = vmatprep.subr.bf16.mxu0 0
    %3260 = vmatpush1.bf16.msra.mxu0 %v3248
    %3261 = vmatprep.subr.bf16.mxu0 0
    %3262 = vmatpush1.bf16.msra.mxu0 %v3249
    %3263 = vmatprep.subr.bf16.mxu0 0
    %3264 = vmatpush1.bf16.msra.mxu0 %v3250
    %3265 = vmatprep.subr.bf16.mxu0 0
    %3266 = vmatpush1.bf16.msra.mxu0 %v3251
    %3267 = vmatprep.subr.bf16.mxu0 0
    %3268 = vmatpush1.bf16.msra.mxu0 0
    %3269 = vmatprep.subr.bf16.mxu0 0
    %3270 = vmatpush1.bf16.msra.mxu0 0
    %3271 = vmatprep.subr.bf16.mxu0 0
    %3272 = vmatpush1.bf16.msra.mxu0 0
    %3273 = vmatprep.subr.bf16.mxu0 0
    %3274 = vmatpush1.bf16.msra.mxu0 0
    %3275 = vmatprep.subr.bf16.mxu0 0
    %3276 = vmatpush1.bf16.msra.mxu0 0
    %3277 = vmatprep.subr.bf16.mxu0 0
    %3278 = vmatpush1.bf16.msra.mxu0 0
    %3279 = vmatprep.subr.bf16.mxu0 0
    %3280 = vmatpush1.bf16.msra.mxu0 0
    %3281 = vmatprep.subr.bf16.mxu0 0
    %3282 = vmatpush1.bf16.msra.mxu0 0
    %3283 = vmatprep.subr.bf16.mxu0 0
    %3284 = vmatpush1.bf16.msra.mxu0 0
    %3285 = vmatprep.subr.bf16.mxu0 0
    %3286 = vmatpush1.bf16.msra.mxu0 0
    %3287 = vmatprep.subr.bf16.mxu0 0
    %3288 = vmatpush1.bf16.msra.mxu0 0
    %3289 = vmatprep.subr.bf16.mxu0 0
    %3290 = vmatpush1.bf16.msra.mxu0 0
    %3291 = vmatprep.mubr.bf16.mxu0 0
    %3292 = vmatmul.mubr.bf16.gmra.mrb[0].mxu0 %v3257
    %v3293 = vpop.f32.mrb[0].mxu0
    %v3294 = vadd.f32 0.0, %v3293
    %v3295 = vpop.f32.mrb[0].mxu0
    %v3296 = vpop.f32.mrb[0].mxu0
    %v3297 = vadd.f32 0.0, %v3296
    %v3298 = vpop.f32.mrb[0].mxu0
    %3299 = vdwg.mxu0
    %v3301 = vsel %vm277, %v3217, 0
    %v3304 = vsel %vm277, %v3294, 0
    %3306 = vmatprep.subr.mxu0 0.0
    %3307 = vmatpush1.xpose.msra.mxu0 %v3304
    %3308 = vmatprep.subr.mxu0 0.0
    %3309 = vmatpush1.xpose.msra.mxu0 0.0
    %3310 = vmatprep.subr.mxu0 0.0
    %3311 = vmatpush1.xpose.msra.mxu0 0.0
    %3312 = vmatprep.subr.mxu0 0.0
    %3313 = vmatpush1.xpose.msra.mxu0 0.0
    %3314 = vmatprep.subr.mxu0 0.0
    %3315 = vmatpush1.xpose.msra.mxu0 0.0
    %3316 = vmatprep.subr.mxu0 0.0
    %3317 = vmatpush1.xpose.msra.mxu0 0.0
    %3318 = vmatprep.subr.mxu0 0.0
    %3319 = vmatpush1.xpose.msra.mxu0 0.0
    %3320 = vmatprep.subr.mxu0 0.0
    %3321 = vmatpush1.xpose.msra.mxu0 0.0
    %3322 = vmatprep.subr.mxu0 0.0
    %3323 = vmatpush1.xpose.msra.mxu0 0.0
    %3324 = vmatprep.subr.mxu0 0.0
    %3325 = vmatpush1.xpose.msra.mxu0 0.0
    %3326 = vmatprep.subr.mxu0 0.0
    %3327 = vmatpush1.xpose.msra.mxu0 0.0
    %3328 = vmatprep.subr.mxu0 0.0
    %3329 = vmatpush1.xpose.msra.mxu0 0.0
    %3330 = vmatprep.subr.mxu0 0.0
    %3331 = vmatpush1.xpose.msra.mxu0 0.0
    %3332 = vmatprep.subr.mxu0 0.0
    %3333 = vmatpush1.xpose.msra.mxu0 0.0
    %3334 = vmatprep.subr.mxu0 0.0
    %3335 = vmatpush1.xpose.msra.mxu0 0.0
    %3336 = vmatprep.subr.mxu0 0.0
    %3337 = vmatpush1.xpose.msra.mxu0 0.0
    %3338 = vmatprep.subr.mxu0 0.0
    %3339 = vmatpush1.xpose.msra.mxu0 0.0
    %3340 = vmatprep.subr.mxu0 0.0
    %3341 = vmatpush1.xpose.msra.mxu0 0.0
    %3342 = vmatprep.subr.mxu0 0.0
    %3343 = vmatpush1.xpose.msra.mxu0 0.0
    %3344 = vmatprep.subr.mxu0 0.0
    %3345 = vmatpush1.xpose.msra.mxu0 0.0
    %3346 = vmatprep.subr.mxu0 0.0
    %3347 = vmatpush1.xpose.msra.mxu0 0.0
    %3348 = vmatprep.subr.mxu0 0.0
    %3349 = vmatpush1.xpose.msra.mxu0 0.0
    %3350 = vmatprep.subr.mxu0 0.0
    %3351 = vmatpush1.xpose.msra.mxu0 0.0
    %3352 = vmatprep.subr.mxu0 0.0
    %3353 = vmatpush1.xpose.msra.mxu0 0.0
    %3354 = vmatprep.subr.mxu0 0.0
    %3355 = vmatpush1.xpose.msra.mxu0 0.0
    %3356 = vmatprep.subr.mxu0 0.0
    %3357 = vmatpush1.xpose.msra.mxu0 0.0
    %3358 = vmatprep.subr.mxu0 0.0
    %3359 = vmatpush1.xpose.msra.mxu0 0.0
    %3360 = vmatprep.subr.mxu0 0.0
    %3361 = vmatpush1.xpose.msra.mxu0 0.0
    %3362 = vmatprep.subr.mxu0 0.0
    %3363 = vmatpush1.xpose.msra.mxu0 0.0
    %3364 = vmatprep.subr.mxu0 0.0
    %3365 = vmatpush1.xpose.msra.mxu0 0.0
    %3366 = vmatprep.subr.mxu0 0.0
    %3367 = vmatpush1.xpose.msra.mxu0 0.0
    %3368 = vmatprep.subr.mxu0 0.0
    %3369 = vmatpush1.xpose.msra.mxu0 0.0
    %3370 = vmatprep.mubr.f32.mxu0 0.0
    %3371 = vmatmul.mubr.f32.gmra.mrb[0].mxu0 %v3301
    %v3372 = vpop.f32.mrb[0].mxu0
    %v3373 = vadd.f32 0.0, %v3372
    %v3374 = vpop.f32.mrb[0].mxu0
    %3375 = vdwg.mxu0
    %v3377 = vsel %vm277, %v3220, 0
    %v3380 = vsel %vm277, %v3297, 0
    %3382 = vmatprep.subr.mxu0 0.0
    %3383 = vmatpush1.xpose.msra.mxu0 %v3380
    %3384 = vmatprep.subr.mxu0 0.0
    %3385 = vmatpush1.xpose.msra.mxu0 0.0
    %3386 = vmatprep.subr.mxu0 0.0
    %3387 = vmatpush1.xpose.msra.mxu0 0.0
    %3388 = vmatprep.subr.mxu0 0.0
    %3389 = vmatpush1.xpose.msra.mxu0 0.0
    %3390 = vmatprep.subr.mxu0 0.0
    %3391 = vmatpush1.xpose.msra.mxu0 0.0
    %3392 = vmatprep.subr.mxu0 0.0
    %3393 = vmatpush1.xpose.msra.mxu0 0.0
    %3394 = vmatprep.subr.mxu0 0.0
    %3395 = vmatpush1.xpose.msra.mxu0 0.0
    %3396 = vmatprep.subr.mxu0 0.0
    %3397 = vmatpush1.xpose.msra.mxu0 0.0
    %3398 = vmatprep.subr.mxu0 0.0
    %3399 = vmatpush1.xpose.msra.mxu0 0.0
    %3400 = vmatprep.subr.mxu0 0.0
    %3401 = vmatpush1.xpose.msra.mxu0 0.0
    %3402 = vmatprep.subr.mxu0 0.0
    %3403 = vmatpush1.xpose.msra.mxu0 0.0
    %3404 = vmatprep.subr.mxu0 0.0
    %3405 = vmatpush1.xpose.msra.mxu0 0.0
    %3406 = vmatprep.subr.mxu0 0.0
    %3407 = vmatpush1.xpose.msra.mxu0 0.0
    %3408 = vmatprep.subr.mxu0 0.0
    %3409 = vmatpush1.xpose.msra.mxu0 0.0
    %3410 = vmatprep.subr.mxu0 0.0
    %3411 = vmatpush1.xpose.msra.mxu0 0.0
    %3412 = vmatprep.subr.mxu0 0.0
    %3413 = vmatpush1.xpose.msra.mxu0 0.0
    %3414 = vmatprep.subr.mxu0 0.0
    %3415 = vmatpush1.xpose.msra.mxu0 0.0
    %3416 = vmatprep.subr.mxu0 0.0
    %3417 = vmatpush1.xpose.msra.mxu0 0.0
    %3418 = vmatprep.subr.mxu0 0.0
    %3419 = vmatpush1.xpose.msra.mxu0 0.0
    %3420 = vmatprep.subr.mxu0 0.0
    %3421 = vmatpush1.xpose.msra.mxu0 0.0
    %3422 = vmatprep.subr.mxu0 0.0
    %3423 = vmatpush1.xpose.msra.mxu0 0.0
    %3424 = vmatprep.subr.mxu0 0.0
    %3425 = vmatpush1.xpose.msra.mxu0 0.0
    %3426 = vmatprep.subr.mxu0 0.0
    %3427 = vmatpush1.xpose.msra.mxu0 0.0
    %3428 = vmatprep.subr.mxu0 0.0
    %3429 = vmatpush1.xpose.msra.mxu0 0.0
    %3430 = vmatprep.subr.mxu0 0.0
    %3431 = vmatpush1.xpose.msra.mxu0 0.0
    %3432 = vmatprep.subr.mxu0 0.0
    %3433 = vmatpush1.xpose.msra.mxu0 0.0
    %3434 = vmatprep.subr.mxu0 0.0
    %3435 = vmatpush1.xpose.msra.mxu0 0.0
    %3436 = vmatprep.subr.mxu0 0.0
    %3437 = vmatpush1.xpose.msra.mxu0 0.0
    %3438 = vmatprep.subr.mxu0 0.0
    %3439 = vmatpush1.xpose.msra.mxu0 0.0
    %3440 = vmatprep.subr.mxu0 0.0
    %3441 = vmatpush1.xpose.msra.mxu0 0.0
    %3442 = vmatprep.subr.mxu0 0.0
    %3443 = vmatpush1.xpose.msra.mxu0 0.0
    %3444 = vmatprep.subr.mxu0 0.0
    %3445 = vmatpush1.xpose.msra.mxu0 0.0
    %3446 = vmatprep.mubr.f32.mxu0 0.0
    %3447 = vmatmul.mubr.f32.gmra.mrb[0].mxu0 %v3377
    %v3448 = vpop.f32.mrb[0].mxu0
    %v3449 = vadd.f32 0.0, %v3448
    %v3450 = vpop.f32.mrb[0].mxu0
    %3451 = vdwg.mxu0
    %v3452 = vsel %vm478, %v3373, -inf
    %3453 = vmax.xlane.f32.xlu0 %v3452
    %v3454 = vpop.xlane.xlu0 %3453
    %v3455 = vsel %vm478, %v3449, -inf
    %3456 = vmax.xlane.f32.xlu0 %v3455
    %v3457 = vpop.xlane.xlu0 %3456
    %v3458 = vsub.f32 %v3373, %v3454
    %v3459 = vsub.f32 %v3449, %v3457
    %v3460 = vmul.f32 %v3458, 1.442695
    %v3461 = vpow.pop %v3460
    %v3462 = vmul.f32 %v3459, 1.442695
    %v3463 = vpow.pop %v3462
    %v3464 = vsel %vm478, %v3461, 0.0
    %3465 = vadd.xlane.f32.xlu0 %v3464
    %v3466 = vpop.xlane.xlu0 %3465
    %v3467 = vsel %vm478, %v3463, 0.0
    %3468 = vadd.xlane.f32.xlu0 %v3467
    %v3469 = vpop.xlane.xlu0 %3468
    %v3470 = vrcp.pop %v3466
    %v3471 = vrcp.pop %v3469
    %v3472 = vmul.f32 %v3461, %v3470
    %v3473 = vmul.f32 %v3463, %v3471
    %3474 = vrot.lane.b32.xlu0 %v3294, 64
    %v3475 = vpop.permute.xlu0 %3474
    %v3478 = vsel %vm478, %v3472, 0
    %3480 = vmatprep.subr.mxu0 0.0
    %3481 = vmatpush1.msra.mxu0 %v3475
    %3482 = vmatprep.subr.mxu0 0.0
    %3483 = vmatpush1.msra.mxu0 0.0
    %3484 = vmatprep.subr.mxu0 0.0
    %3485 = vmatpush1.msra.mxu0 0.0
    %3486 = vmatprep.subr.mxu0 0.0
    %3487 = vmatpush1.msra.mxu0 0.0
    %3488 = vmatprep.subr.mxu0 0.0
    %3489 = vmatpush1.msra.mxu0 0.0
    %3490 = vmatprep.subr.mxu0 0.0
    %3491 = vmatpush1.msra.mxu0 0.0
    %3492 = vmatprep.subr.mxu0 0.0
    %3493 = vmatpush1.msra.mxu0 0.0
    %3494 = vmatprep.subr.mxu0 0.0
    %3495 = vmatpush1.msra.mxu0 0.0
    %3496 = vmatprep.subr.mxu0 0.0
    %3497 = vmatpush1.msra.mxu0 0.0
    %3498 = vmatprep.subr.mxu0 0.0
    %3499 = vmatpush1.msra.mxu0 0.0
    %3500 = vmatprep.subr.mxu0 0.0
    %3501 = vmatpush1.msra.mxu0 0.0
    %3502 = vmatprep.subr.mxu0 0.0
    %3503 = vmatpush1.msra.mxu0 0.0
    %3504 = vmatprep.subr.mxu0 0.0
    %3505 = vmatpush1.msra.mxu0 0.0
    %3506 = vmatprep.subr.mxu0 0.0
    %3507 = vmatpush1.msra.mxu0 0.0
    %3508 = vmatprep.subr.mxu0 0.0
    %3509 = vmatpush1.msra.mxu0 0.0
    %3510 = vmatprep.subr.mxu0 0.0
    %3511 = vmatpush1.msra.mxu0 0.0
    %3512 = vmatprep.subr.mxu0 0.0
    %3513 = vmatpush1.msra.mxu0 0.0
    %3514 = vmatprep.subr.mxu0 0.0
    %3515 = vmatpush1.msra.mxu0 0.0
    %3516 = vmatprep.subr.mxu0 0.0
    %3517 = vmatpush1.msra.mxu0 0.0
    %3518 = vmatprep.subr.mxu0 0.0
    %3519 = vmatpush1.msra.mxu0 0.0
    %3520 = vmatprep.subr.mxu0 0.0
    %3521 = vmatpush1.msra.mxu0 0.0
    %3522 = vmatprep.subr.mxu0 0.0
    %3523 = vmatpush1.msra.mxu0 0.0
    %3524 = vmatprep.subr.mxu0 0.0
    %3525 = vmatpush1.msra.mxu0 0.0
    %3526 = vmatprep.subr.mxu0 0.0
    %3527 = vmatpush1.msra.mxu0 0.0
    %3528 = vmatprep.subr.mxu0 0.0
    %3529 = vmatpush1.msra.mxu0 0.0
    %3530 = vmatprep.subr.mxu0 0.0
    %3531 = vmatpush1.msra.mxu0 0.0
    %3532 = vmatprep.subr.mxu0 0.0
    %3533 = vmatpush1.msra.mxu0 0.0
    %3534 = vmatprep.subr.mxu0 0.0
    %3535 = vmatpush1.msra.mxu0 0.0
    %3536 = vmatprep.subr.mxu0 0.0
    %3537 = vmatpush1.msra.mxu0 0.0
    %3538 = vmatprep.subr.mxu0 0.0
    %3539 = vmatpush1.msra.mxu0 0.0
    %3540 = vmatprep.subr.mxu0 0.0
    %3541 = vmatpush1.msra.mxu0 0.0
    %3542 = vmatprep.subr.mxu0 0.0
    %3543 = vmatpush1.msra.mxu0 0.0
    %3544 = vmatprep.mubr.f32.mxu0 0.0
    %3545 = vmatmul.mubr.f32.gmra.mrb[0].mxu0 %v3478
    %v3546 = vpop.f32.mrb[0].mxu0
    %v3547 = vadd.f32 0.0, %v3546
    %v3548 = vpop.f32.mrb[0].mxu0
    %3549 = vdwg.mxu0
    %3550 = vrot.lane.b32.xlu0 %v3297, 64
    %v3551 = vpop.permute.xlu0 %3550
    %v3554 = vsel %vm478, %v3473, 0
    %3556 = vmatprep.subr.mxu0 0.0
    %3557 = vmatpush1.msra.mxu0 %v3551
    %3558 = vmatprep.subr.mxu0 0.0
    %3559 = vmatpush1.msra.mxu0 0.0
    %3560 = vmatprep.subr.mxu0 0.0
    %3561 = vmatpush1.msra.mxu0 0.0
    %3562 = vmatprep.subr.mxu0 0.0
    %3563 = vmatpush1.msra.mxu0 0.0
    %3564 = vmatprep.subr.mxu0 0.0
    %3565 = vmatpush1.msra.mxu0 0.0
    %3566 = vmatprep.subr.mxu0 0.0
    %3567 = vmatpush1.msra.mxu0 0.0
    %3568 = vmatprep.subr.mxu0 0.0
    %3569 = vmatpush1.msra.mxu0 0.0
    %3570 = vmatprep.subr.mxu0 0.0
    %3571 = vmatpush1.msra.mxu0 0.0
    %3572 = vmatprep.subr.mxu0 0.0
    %3573 = vmatpush1.msra.mxu0 0.0
    %3574 = vmatprep.subr.mxu0 0.0
    %3575 = vmatpush1.msra.mxu0 0.0
    %3576 = vmatprep.subr.mxu0 0.0
    %3577 = vmatpush1.msra.mxu0 0.0
    %3578 = vmatprep.subr.mxu0 0.0
    %3579 = vmatpush1.msra.mxu0 0.0
    %3580 = vmatprep.subr.mxu0 0.0
    %3581 = vmatpush1.msra.mxu0 0.0
    %3582 = vmatprep.subr.mxu0 0.0
    %3583 = vmatpush1.msra.mxu0 0.0
    %3584 = vmatprep.subr.mxu0 0.0
    %3585 = vmatpush1.msra.mxu0 0.0
    %3586 = vmatprep.subr.mxu0 0.0
    %3587 = vmatpush1.msra.mxu0 0.0
    %3588 = vmatprep.subr.mxu0 0.0
    %3589 = vmatpush1.msra.mxu0 0.0
    %3590 = vmatprep.subr.mxu0 0.0
    %3591 = vmatpush1.msra.mxu0 0.0
    %3592 = vmatprep.subr.mxu0 0.0
    %3593 = vmatpush1.msra.mxu0 0.0
    %3594 = vmatprep.subr.mxu0 0.0
    %3595 = vmatpush1.msra.mxu0 0.0
    %3596 = vmatprep.subr.mxu0 0.0
    %3597 = vmatpush1.msra.mxu0 0.0
    %3598 = vmatprep.subr.mxu0 0.0
    %3599 = vmatpush1.msra.mxu0 0.0
    %3600 = vmatprep.subr.mxu0 0.0
    %3601 = vmatpush1.msra.mxu0 0.0
    %3602 = vmatprep.subr.mxu0 0.0
    %3603 = vmatpush1.msra.mxu0 0.0
    %3604 = vmatprep.subr.mxu0 0.0
    %3605 = vmatpush1.msra.mxu0 0.0
    %3606 = vmatprep.subr.mxu0 0.0
    %3607 = vmatpush1.msra.mxu0 0.0
    %3608 = vmatprep.subr.mxu0 0.0
    %3609 = vmatpush1.msra.mxu0 0.0
    %3610 = vmatprep.subr.mxu0 0.0
    %3611 = vmatpush1.msra.mxu0 0.0
    %3612 = vmatprep.subr.mxu0 0.0
    %3613 = vmatpush1.msra.mxu0 0.0
    %3614 = vmatprep.subr.mxu0 0.0
    %3615 = vmatpush1.msra.mxu0 0.0
    %3616 = vmatprep.subr.mxu0 0.0
    %3617 = vmatpush1.msra.mxu0 0.0
    %3618 = vmatprep.subr.mxu0 0.0
    %3619 = vmatpush1.msra.mxu0 0.0
    %3620 = vmatprep.mubr.f32.mxu0 0.0
    %3621 = vmatmul.mubr.f32.gmra.mrb[0].mxu0 %v3554
    %v3622 = vpop.f32.mrb[0].mxu0
    %v3623 = vadd.f32 0.0, %v3622
    %v3624 = vpop.f32.mrb[0].mxu0
    %3625 = vdwg.mxu0
    %v3626 = vld [vmem:[#allocation11] sm:$0xf]
    %v3627 = vld [vmem:[#allocation11 + $0x4] sm:$0xf]
    %v3628 = vld [vmem:[#allocation11 + $0x8] sm:$0xf]
    %v3629 = vld [vmem:[#allocation11 + $0xc] sm:$0xf]
    %v3630 = vld [vmem:[#allocation11 + $0x10] sm:$0xf]
    %v3631 = vld [vmem:[#allocation11 + $0x14] sm:$0xf]
    %v3632 = vld [vmem:[#allocation11 + $0x18] sm:$0xf]
    %v3633 = vld [vmem:[#allocation11 + $0x1c] sm:$0xf]
    %v3634 = vpack.c.bf16 %v3623, %v3547
    %v3643 = vunpack.c.l.b16 %v3626
    %v3644 = vunpack.c.l.b16 %v3627
    %v3645 = vunpack.c.l.b16 %v3628
    %v3646 = vunpack.c.l.b16 %v3629
    %v3647 = vunpack.c.l.b16 %v3630
    %v3648 = vunpack.c.l.b16 %v3631
    %v3649 = vunpack.c.l.b16 %v3632
    %v3650 = vunpack.c.l.b16 %v3633
    %v3651 = vpack.c.b16 %v3644, %v3643
    %v3652 = vpack.c.b16 %v3646, %v3645
    %v3653 = vpack.c.b16 %v3648, %v3647
    %v3654 = vpack.c.b16 %v3650, %v3649
    %v3660 = vsel %vm277, %v3634, 0
    %3662 = vmatprep.subr.bf16.mxu0 0
    %3663 = vmatpush1.bf16.msra.mxu0 %v3651
    %3664 = vmatprep.subr.bf16.mxu0 0
    %3665 = vmatpush1.bf16.msra.mxu0 %v3652
    %3666 = vmatprep.subr.bf16.mxu0 0
    %3667 = vmatpush1.bf16.msra.mxu0 %v3653
    %3668 = vmatprep.subr.bf16.mxu0 0
    %3669 = vmatpush1.bf16.msra.mxu0 %v3654
    %3670 = vmatprep.subr.bf16.mxu0 0
    %3671 = vmatpush1.bf16.msra.mxu0 0
    %3672 = vmatprep.subr.bf16.mxu0 0
    %3673 = vmatpush1.bf16.msra.mxu0 0
    %3674 = vmatprep.subr.bf16.mxu0 0
    %3675 = vmatpush1.bf16.msra.mxu0 0
    %3676 = vmatprep.subr.bf16.mxu0 0
    %3677 = vmatpush1.bf16.msra.mxu0 0
    %3678 = vmatprep.subr.bf16.mxu0 0
    %3679 = vmatpush1.bf16.msra.mxu0 0
    %3680 = vmatprep.subr.bf16.mxu0 0
    %3681 = vmatpush1.bf16.msra.mxu0 0
    %3682 = vmatprep.subr.bf16.mxu0 0
    %3683 = vmatpush1.bf16.msra.mxu0 0
    %3684 = vmatprep.subr.bf16.mxu0 0
    %3685 = vmatpush1.bf16.msra.mxu0 0
    %3686 = vmatprep.subr.bf16.mxu0 0
    %3687 = vmatpush1.bf16.msra.mxu0 0
    %3688 = vmatprep.subr.bf16.mxu0 0
    %3689 = vmatpush1.bf16.msra.mxu0 0
    %3690 = vmatprep.subr.bf16.mxu0 0
    %3691 = vmatpush1.bf16.msra.mxu0 0
    %3692 = vmatprep.subr.bf16.mxu0 0
    %3693 = vmatpush1.bf16.msra.mxu0 0
    %3694 = vmatprep.mubr.bf16.mxu0 0
    %3695 = vmatmul.mubr.bf16.gmra.mrb[0].mxu0 %v3660
    %v3696 = vpop.f32.mrb[0].mxu0
    %v3697 = vadd.f32 0.0, %v3696
    %v3698 = vpop.f32.mrb[0].mxu0
    %v3699 = vpop.f32.mrb[0].mxu0
    %v3700 = vadd.f32 0.0, %v3699
    %v3701 = vpop.f32.mrb[0].mxu0
    %3702 = vdwg.mxu0
    %v3703 = vadd.f32 %v3144, %v3697
    %v3704 = vadd.f32 %v3145, %v3700
    %v3705 = vld [vmem:[#allocation13] sm:$0x1]
    %v3706 = vld [vmem:[#allocation14] sm:$0x1]
    %v3707 = vsel %vm277, %v3703, 0.0
    %3708 = vadd.xlane.f32.xlu0 %v3707
    %v3709 = vpop.xlane.xlu0 %3708
    %v3710 = vsel %vm277, %v3704, 0.0
    %3711 = vadd.xlane.f32.xlu0 %v3710
    %v3712 = vpop.xlane.xlu0 %3711
    %v3713 = vmul.f32 %v3709, %v734
    %v3714 = vmul.f32 %v3712, %v734
    %v3715 = vsub.f32 %v3703, %v3713
    %v3716 = vsub.f32 %v3704, %v3714
    %v3717 = vmul.f32 %v3715, %v3715
    %v3718 = vmul.f32 %v3716, %v3716
    %v3719 = vsel %vm277, %v3717, 0.0
    %3720 = vadd.xlane.f32.xlu0 %v3719
    %v3721 = vpop.xlane.xlu0 %3720
    %v3722 = vsel %vm277, %v3718, 0.0
    %3723 = vadd.xlane.f32.xlu0 %v3722
    %v3724 = vpop.xlane.xlu0 %3723
    %v3725 = vmul.f32 %v3721, %v734
    %v3726 = vmul.f32 %v3724, %v734
    %v3727 = vadd.f32 %v3725, 1e-05
    %v3728 = vadd.f32 %v3726, 1e-05
    %v3729 = vrsqrt.pop %v3727
    %v3730 = vrsqrt.pop %v3728
    %v3731 = vmul.f32 %v3715, %v3729
    %v3732 = vmul.f32 %v3716, %v3730
    %v3734 = vlaneseq
    %v3735 = vshrl.u32 %v3734, 7
    %v3736 = vsub.s32 0, %v3735
    %v3737 = vrot.slane %v3705, %v3736
    %v3739 = vmul.f32 %v3731, %v3737
    %v3740 = vmul.f32 %v3732, %v3737
    %v3742 = vlaneseq
    %v3743 = vshrl.u32 %v3742, 7
    %v3744 = vsub.s32 0, %v3743
    %v3745 = vrot.slane %v3706, %v3744
    %v3747 = vadd.f32 %v3739, %v3745
    %v3748 = vadd.f32 %v3740, %v3745
    %v3749 = vld [vmem:[#allocation16] sm:$0xf]
    %v3750 = vld [vmem:[#allocation16 + $0x4] sm:$0xf]
    %v3751 = vld [vmem:[#allocation16 + $0x8] sm:$0xf]
    %v3752 = vld [vmem:[#allocation16 + $0xc] sm:$0xf]
    %v3753 = vld [vmem:[#allocation16 + $0x10] sm:$0xf]
    %v3754 = vld [vmem:[#allocation16 + $0x14] sm:$0xf]
    %v3755 = vld [vmem:[#allocation16 + $0x18] sm:$0xf]
    %v3756 = vld [vmem:[#allocation16 + $0x1c] sm:$0xf]
    %v3757 = vld [vmem:[#allocation17] sm:$0x1]
    %v3758 = vld [vmem:[%s23] sm:$0xf]
    %v3759 = vld [vmem:[%s23 + $0x4] sm:$0xf]
    %v3760 = vld [vmem:[%s23 + $0x8] sm:$0xf]
    %v3761 = vld [vmem:[%s23 + $0xc] sm:$0xf]
    %v3762 = vld [vmem:[%s23 + $0x10] sm:$0xf]
    %v3763 = vld [vmem:[%s23 + $0x14] sm:$0xf]
    %v3764 = vld [vmem:[%s23 + $0x18] sm:$0xf]
    %v3765 = vld [vmem:[%s23 + $0x1c] sm:$0xf]
    %v3766 = vld [vmem:[%s23 + $0x20] sm:$0xf]
    %v3767 = vld [vmem:[%s23 + $0x24] sm:$0xf]
    %v3768 = vld [vmem:[%s23 + $0x28] sm:$0xf]
    %v3769 = vld [vmem:[%s23 + $0x2c] sm:$0xf]
    %v3770 = vld [vmem:[%s23 + $0x30] sm:$0xf]
    %v3771 = vld [vmem:[%s23 + $0x34] sm:$0xf]
    %v3772 = vld [vmem:[%s23 + $0x38] sm:$0xf]
    %v3773 = vld [vmem:[%s23 + $0x3c] sm:$0xf]
    %v3774 = vld [vmem:[%s24] sm:$0x1]
    %v3775 = vpack.c.bf16 %v3748, %v3747
    %v3777 = vlaneseq
    %v3778 = vshrl.u32 %v3777, 7
    %v3779 = vsub.s32 0, %v3778
    %v3780 = vrot.slane %v3757, %v3779
    %v3790 = vunpack.c.l.b16 %v3749
    %v3791 = vunpack.c.l.b16 %v3750
    %v3792 = vunpack.c.l.b16 %v3751
    %v3793 = vunpack.c.l.b16 %v3752
    %v3794 = vunpack.c.l.b16 %v3753
    %v3795 = vunpack.c.l.b16 %v3754
    %v3796 = vunpack.c.l.b16 %v3755
    %v3797 = vunpack.c.l.b16 %v3756
    %v3798 = vpack.c.b16 %v3791, %v3790
    %v3799 = vpack.c.b16 %v3793, %v3792
    %v3800 = vpack.c.b16 %v3795, %v3794
    %v3801 = vpack.c.b16 %v3797, %v3796
    %v3807 = vsel %vm277, %v3775, 0
    %3809 = vmatprep.subr.bf16.mxu0 0
    %3810 = vmatpush1.bf16.msra.mxu0 %v3798
    %3811 = vmatprep.subr.bf16.mxu0 0
    %3812 = vmatpush1.bf16.msra.mxu0 %v3799
    %3813 = vmatprep.subr.bf16.mxu0 0
    %3814 = vmatpush1.bf16.msra.mxu0 %v3800
    %3815 = vmatprep.subr.bf16.mxu0 0
    %3816 = vmatpush1.bf16.msra.mxu0 %v3801
    %3817 = vmatprep.subr.bf16.mxu0 0
    %3818 = vmatpush1.bf16.msra.mxu0 0
    %3819 = vmatprep.subr.bf16.mxu0 0
    %3820 = vmatpush1.bf16.msra.mxu0 0
    %3821 = vmatprep.subr.bf16.mxu0 0
    %3822 = vmatpush1.bf16.msra.mxu0 0
    %3823 = vmatprep.subr.bf16.mxu0 0
    %3824 = vmatpush1.bf16.msra.mxu0 0
    %3825 = vmatprep.subr.bf16.mxu0 0
    %3826 = vmatpush1.bf16.msra.mxu0 0
    %3827 = vmatprep.subr.bf16.mxu0 0
    %3828 = vmatpush1.bf16.msra.mxu0 0
    %3829 = vmatprep.subr.bf16.mxu0 0
    %3830 = vmatpush1.bf16.msra.mxu0 0
    %3831 = vmatprep.subr.bf16.mxu0 0
    %3832 = vmatpush1.bf16.msra.mxu0 0
    %3833 = vmatprep.subr.bf16.mxu0 0
    %3834 = vmatpush1.bf16.msra.mxu0 0
    %3835 = vmatprep.subr.bf16.mxu0 0
    %3836 = vmatpush1.bf16.msra.mxu0 0
    %3837 = vmatprep.subr.bf16.mxu0 0
    %3838 = vmatpush1.bf16.msra.mxu0 0
    %3839 = vmatprep.subr.bf16.mxu0 0
    %3840 = vmatpush1.bf16.msra.mxu0 0
    %3841 = vmatprep.mubr.bf16.mxu0 0
    %3842 = vmatmul.mubr.bf16.gmra.mrb[0].mxu0 %v3807
    %v3843 = vpop.f32.mrb[0].mxu0
    %v3844 = vadd.f32 %v3780, %v3843
    %v3845 = vpop.f32.mrb[0].mxu0
    %v3846 = vpop.f32.mrb[0].mxu0
    %v3847 = vadd.f32 %v3780, %v3846
    %v3848 = vpop.f32.mrb[0].mxu0
    %3849 = vdwg.mxu0
    %v3850 = vmax.f32 %v3844, 0.0
    %v3851 = vmax.f32 %v3847, 0.0
    %v3852 = vpack.c.bf16 %v3851, %v3850
    %v3854 = vlaneseq
    %v3855 = vshrl.u32 %v3854, 7
    %v3856 = vsub.s32 0, %v3855
    %v3857 = vrot.slane %v3774, %v3856
    %v3875 = vunpack.c.l.b16 %v3758
    %v3876 = vunpack.c.l.b16 %v3759
    %v3877 = vunpack.c.l.b16 %v3760
    %v3878 = vunpack.c.l.b16 %v3761
    %v3879 = vunpack.c.l.b16 %v3762
    %v3880 = vunpack.c.l.b16 %v3763
    %v3881 = vunpack.c.l.b16 %v3764
    %v3882 = vunpack.c.l.b16 %v3765
    %v3883 = vunpack.c.l.b16 %v3766
    %v3884 = vunpack.c.l.b16 %v3767
    %v3885 = vunpack.c.l.b16 %v3768
    %v3886 = vunpack.c.l.b16 %v3769
    %v3887 = vunpack.c.l.b16 %v3770
    %v3888 = vunpack.c.l.b16 %v3771
    %v3889 = vunpack.c.l.b16 %v3772
    %v3890 = vunpack.c.l.b16 %v3773
    %v3891 = vpack.c.b16 %v3876, %v3875
    %v3892 = vpack.c.b16 %v3878, %v3877
    %v3893 = vpack.c.b16 %v3880, %v3879
    %v3894 = vpack.c.b16 %v3882, %v3881
    %v3895 = vpack.c.b16 %v3884, %v3883
    %v3896 = vpack.c.b16 %v3886, %v3885
    %v3897 = vpack.c.b16 %v3888, %v3887
    %v3898 = vpack.c.b16 %v3890, %v3889
    %3907 = vmatprep.subr.bf16.mxu0 0
    %3908 = vmatpush1.bf16.msra.mxu0 %v3891
    %3909 = vmatprep.subr.bf16.mxu0 0
    %3910 = vmatpush1.bf16.msra.mxu0 %v3892
    %3911 = vmatprep.subr.bf16.mxu0 0
    %3912 = vmatpush1.bf16.msra.mxu0 %v3893
    %3913 = vmatprep.subr.bf16.mxu0 0
    %3914 = vmatpush1.bf16.msra.mxu0 %v3894
    %3915 = vmatprep.subr.bf16.mxu0 0
    %3916 = vmatpush1.bf16.msra.mxu0 %v3895
    %3917 = vmatprep.subr.bf16.mxu0 0
    %3918 = vmatpush1.bf16.msra.mxu0 %v3896
    %3919 = vmatprep.subr.bf16.mxu0 0
    %3920 = vmatpush1.bf16.msra.mxu0 %v3897
    %3921 = vmatprep.subr.bf16.mxu0 0
    %3922 = vmatpush1.bf16.msra.mxu0 %v3898
    %3923 = vmatprep.subr.bf16.mxu0 0
    %3924 = vmatpush1.bf16.msra.mxu0 0
    %3925 = vmatprep.subr.bf16.mxu0 0
    %3926 = vmatpush1.bf16.msra.mxu0 0
    %3927 = vmatprep.subr.bf16.mxu0 0
    %3928 = vmatpush1.bf16.msra.mxu0 0
    %3929 = vmatprep.subr.bf16.mxu0 0
    %3930 = vmatpush1.bf16.msra.mxu0 0
    %3931 = vmatprep.subr.bf16.mxu0 0
    %3932 = vmatpush1.bf16.msra.mxu0 0
    %3933 = vmatprep.subr.bf16.mxu0 0
    %3934 = vmatpush1.bf16.msra.mxu0 0
    %3935 = vmatprep.subr.bf16.mxu0 0
    %3936 = vmatpush1.bf16.msra.mxu0 0
    %3937 = vmatprep.subr.bf16.mxu0 0
    %3938 = vmatpush1.bf16.msra.mxu0 0
    %3939 = vmatprep.mubr.bf16.mxu0 0
    %3940 = vmatmul.mubr.bf16.gmra.mrb[0].mxu0 %v3852
    %v3941 = vpop.f32.mrb[0].mxu0
    %v3942 = vadd.f32 %v3857, %v3941
    %v3943 = vpop.f32.mrb[0].mxu0
    %v3944 = vpop.f32.mrb[0].mxu0
    %v3945 = vadd.f32 %v3857, %v3944
    %v3946 = vpop.f32.mrb[0].mxu0
    %3947 = vdwg.mxu0
    %v3948 = vadd.f32 %v3747, %v3942
    %v3949 = vadd.f32 %v3748, %v3945
    %v3950 = vld [vmem:[%s25] sm:$0x1]
    %v3951 = vld [vmem:[%s26] sm:$0x1]
    %v3952 = vsel %vm277, %v3948, 0.0
    %3953 = vadd.xlane.f32.xlu0 %v3952
    %v3954 = vpop.xlane.xlu0 %3953
    %v3955 = vsel %vm277, %v3949, 0.0
    %3956 = vadd.xlane.f32.xlu0 %v3955
    %v3957 = vpop.xlane.xlu0 %3956
    %v3958 = vmul.f32 %v3954, %v734
    %v3959 = vmul.f32 %v3957, %v734
    %v3960 = vsub.f32 %v3948, %v3958
    %v3961 = vsub.f32 %v3949, %v3959
    %v3962 = vmul.f32 %v3960, %v3960
    %v3963 = vmul.f32 %v3961, %v3961
    %v3964 = vsel %vm277, %v3962, 0.0
    %3965 = vadd.xlane.f32.xlu0 %v3964
    %v3966 = vpop.xlane.xlu0 %3965
    %v3967 = vsel %vm277, %v3963, 0.0
    %3968 = vadd.xlane.f32.xlu0 %v3967
    %v3969 = vpop.xlane.xlu0 %3968
    %v3970 = vmul.f32 %v3966, %v734
    %v3971 = vmul.f32 %v3969, %v734
    %v3972 = vadd.f32 %v3970, 1e-05
    %v3973 = vadd.f32 %v3971, 1e-05
    %v3974 = vrsqrt.pop %v3972
    %v3975 = vrsqrt.pop %v3973
    %v3976 = vmul.f32 %v3960, %v3974
    %v3977 = vmul.f32 %v3961, %v3975
    %v3979 = vlaneseq
    %v3980 = vshrl.u32 %v3979, 7
    %v3981 = vsub.s32 0, %v3980
    %v3982 = vrot.slane %v3950, %v3981
    %v3984 = vmul.f32 %v3976, %v3982
    %v3985 = vmul.f32 %v3977, %v3982
    %v3987 = vlaneseq
    %v3988 = vshrl.u32 %v3987, 7
    %v3989 = vsub.s32 0, %v3988
    %v3990 = vrot.slane %v3951, %v3989
    %v3992 = vadd.f32 %v3984, %v3990
    %v3993 = vadd.f32 %v3985, %v3990
    %s3994 = scalar_lea.vmem %s12, 64
    %v3995 = vld [vmem:[%s3994] sm:$0xff]
    %v3996 = vld [vmem:[%s3994 + $0x8] sm:$0xff]
    %v3997 = vld [vmem:[%s3994 + $0x10] sm:$0xff]
    %v3998 = vld [vmem:[%s3994 + $0x18] sm:$0xff]
    %v3999 = vld [vmem:[%s3994 + $0x20] sm:$0xff]
    %v4000 = vld [vmem:[%s3994 + $0x28] sm:$0xff]
    %v4001 = vld [vmem:[%s3994 + $0x30] sm:$0xff]
    %v4002 = vld [vmem:[%s3994 + $0x38] sm:$0xff]
    %v4003 = vpack.c.bf16 %v3993, %v3992
    %v4012 = vunpack.c.l.b16 %v3995
    %v4013 = vunpack.c.h.b16 %v3995
    %v4014 = vunpack.c.l.b16 %v3996
    %v4015 = vunpack.c.h.b16 %v3996
    %v4016 = vunpack.c.l.b16 %v3997
    %v4017 = vunpack.c.h.b16 %v3997
    %v4018 = vunpack.c.l.b16 %v3998
    %v4019 = vunpack.c.h.b16 %v3998
    %v4020 = vunpack.c.l.b16 %v3999
    %v4021 = vunpack.c.h.b16 %v3999
    %v4022 = vunpack.c.l.b16 %v4000
    %v4023 = vunpack.c.h.b16 %v4000
    %v4024 = vunpack.c.l.b16 %v4001
    %v4025 = vunpack.c.h.b16 %v4001
    %v4026 = vunpack.c.l.b16 %v4002
    %v4027 = vunpack.c.h.b16 %v4002
    %v4028 = vpack.c.b16 %v4014, %v4012
    %v4029 = vpack.c.b16 %v4015, %v4013
    %v4030 = vpack.c.b16 %v4018, %v4016
    %v4031 = vpack.c.b16 %v4019, %v4017
    %v4032 = vpack.c.b16 %v4022, %v4020
    %v4033 = vpack.c.b16 %v4023, %v4021
    %v4034 = vpack.c.b16 %v4026, %v4024
    %v4035 = vpack.c.b16 %v4027, %v4025
    %v4045 = vsel %vm277, %v4003, 0
    %4047 = vmatprep.subr.bf16.mxu0 %v4029
    %4048 = vmatpush1.bf16.msra.mxu0 %v4028
    %4049 = vmatprep.subr.bf16.mxu0 %v4031
    %4050 = vmatpush1.bf16.msra.mxu0 %v4030
    %4051 = vmatprep.subr.bf16.mxu0 %v4033
    %4052 = vmatpush1.bf16.msra.mxu0 %v4032
    %4053 = vmatprep.subr.bf16.mxu0 %v4035
    %4054 = vmatpush1.bf16.msra.mxu0 %v4034
    %4055 = vmatprep.subr.bf16.mxu0 0
    %4056 = vmatpush1.bf16.msra.mxu0 0
    %4057 = vmatprep.subr.bf16.mxu0 0
    %4058 = vmatpush1.bf16.msra.mxu0 0
    %4059 = vmatprep.subr.bf16.mxu0 0
    %4060 = vmatpush1.bf16.msra.mxu0 0
    %4061 = vmatprep.subr.bf16.mxu0 0
    %4062 = vmatpush1.bf16.msra.mxu0 0
    %4063 = vmatprep.subr.bf16.mxu0 0
    %4064 = vmatpush1.bf16.msra.mxu0 0
    %4065 = vmatprep.subr.bf16.mxu0 0
    %4066 = vmatpush1.bf16.msra.mxu0 0
    %4067 = vmatprep.subr.bf16.mxu0 0
    %4068 = vmatpush1.bf16.msra.mxu0 0
    %4069 = vmatprep.subr.bf16.mxu0 0
    %4070 = vmatpush1.bf16.msra.mxu0 0
    %4071 = vmatprep.subr.bf16.mxu0 0
    %4072 = vmatpush1.bf16.msra.mxu0 0
    %4073 = vmatprep.subr.bf16.mxu0 0
    %4074 = vmatpush1.bf16.msra.mxu0 0
    %4075 = vmatprep.subr.bf16.mxu0 0
    %4076 = vmatpush1.bf16.msra.mxu0 0
    %4077 = vmatprep.subr.bf16.mxu0 0
    %4078 = vmatpush1.bf16.msra.mxu0 0
    %4079 = vmatprep.mubr.bf16.mxu0 0
    %4080 = vmatmul.mubr.bf16.gmra.mrb[0].mxu0 %v4045
    %v4081 = vpop.f32.mrb[0].mxu0
    %v4082 = vadd.f32 0.0, %v4081
    %v4083 = vpop.f32.mrb[0].mxu0
    %v4084 = vadd.f32 0.0, %v4083
    %v4085 = vpop.f32.mrb[0].mxu0
    %v4086 = vadd.f32 0.0, %v4085
    %v4087 = vpop.f32.mrb[0].mxu0
    %v4088 = vadd.f32 0.0, %v4087
    %4089 = vdwg.mxu0
    %4091 = vrot.lane.b32.xlu0 %v4082, 64
    %v4092 = vpop.permute.xlu0 %4091
    %v4093 = vsel %vm277, %v4082, 0
    %v4095 = vsel %vm277, %v4092, 0
    %4097 = vmatprep.subr.mxu0 0.0
    %4098 = vmatpush1.xpose.msra.mxu0 %v4095
    %4099 = vmatprep.subr.mxu0 0.0
    %4100 = vmatpush1.xpose.msra.mxu0 0.0
    %4101 = vmatprep.subr.mxu0 0.0
    %4102 = vmatpush1.xpose.msra.mxu0 0.0
    %4103 = vmatprep.subr.mxu0 0.0
    %4104 = vmatpush1.xpose.msra.mxu0 0.0
    %4105 = vmatprep.subr.mxu0 0.0
    %4106 = vmatpush1.xpose.msra.mxu0 0.0
    %4107 = vmatprep.subr.mxu0 0.0
    %4108 = vmatpush1.xpose.msra.mxu0 0.0
    %4109 = vmatprep.subr.mxu0 0.0
    %4110 = vmatpush1.xpose.msra.mxu0 0.0
    %4111 = vmatprep.subr.mxu0 0.0
    %4112 = vmatpush1.xpose.msra.mxu0 0.0
    %4113 = vmatprep.subr.mxu0 0.0
    %4114 = vmatpush1.xpose.msra.mxu0 0.0
    %4115 = vmatprep.subr.mxu0 0.0
    %4116 = vmatpush1.xpose.msra.mxu0 0.0
    %4117 = vmatprep.subr.mxu0 0.0
    %4118 = vmatpush1.xpose.msra.mxu0 0.0
    %4119 = vmatprep.subr.mxu0 0.0
    %4120 = vmatpush1.xpose.msra.mxu0 0.0
    %4121 = vmatprep.subr.mxu0 0.0
    %4122 = vmatpush1.xpose.msra.mxu0 0.0
    %4123 = vmatprep.subr.mxu0 0.0
    %4124 = vmatpush1.xpose.msra.mxu0 0.0
    %4125 = vmatprep.subr.mxu0 0.0
    %4126 = vmatpush1.xpose.msra.mxu0 0.0
    %4127 = vmatprep.subr.mxu0 0.0
    %4128 = vmatpush1.xpose.msra.mxu0 0.0
    %4129 = vmatprep.subr.mxu0 0.0
    %4130 = vmatpush1.xpose.msra.mxu0 0.0
    %4131 = vmatprep.subr.mxu0 0.0
    %4132 = vmatpush1.xpose.msra.mxu0 0.0
    %4133 = vmatprep.subr.mxu0 0.0
    %4134 = vmatpush1.xpose.msra.mxu0 0.0
    %4135 = vmatprep.subr.mxu0 0.0
    %4136 = vmatpush1.xpose.msra.mxu0 0.0
    %4137 = vmatprep.subr.mxu0 0.0
    %4138 = vmatpush1.xpose.msra.mxu0 0.0
    %4139 = vmatprep.subr.mxu0 0.0
    %4140 = vmatpush1.xpose.msra.mxu0 0.0
    %4141 = vmatprep.subr.mxu0 0.0
    %4142 = vmatpush1.xpose.msra.mxu0 0.0
    %4143 = vmatprep.subr.mxu0 0.0
    %4144 = vmatpush1.xpose.msra.mxu0 0.0
    %4145 = vmatprep.subr.mxu0 0.0
    %4146 = vmatpush1.xpose.msra.mxu0 0.0
    %4147 = vmatprep.subr.mxu0 0.0
    %4148 = vmatpush1.xpose.msra.mxu0 0.0
    %4149 = vmatprep.subr.mxu0 0.0
    %4150 = vmatpush1.xpose.msra.mxu0 0.0
    %4151 = vmatprep.subr.mxu0 0.0
    %4152 = vmatpush1.xpose.msra.mxu0 0.0
    %4153 = vmatprep.subr.mxu0 0.0
    %4154 = vmatpush1.xpose.msra.mxu0 0.0
    %4155 = vmatprep.subr.mxu0 0.0
    %4156 = vmatpush1.xpose.msra.mxu0 0.0
    %4157 = vmatprep.subr.mxu0 0.0
    %4158 = vmatpush1.xpose.msra.mxu0 0.0
    %4159 = vmatprep.subr.mxu0 0.0
    %4160 = vmatpush1.xpose.msra.mxu0 0.0
    %4161 = vmatprep.mubr.f32.mxu0 0.0
    %4162 = vmatmul.mubr.f32.gmra.mrb[0].mxu0 %v4093
    %v4163 = vpop.f32.mrb[0].mxu0
    %v4164 = vadd.f32 0.0, %v4163
    %v4165 = vpop.f32.mrb[0].mxu0
    %4166 = vdwg.mxu0
    %4168 = vrot.lane.b32.xlu0 %v4086, 64
    %v4169 = vpop.permute.xlu0 %4168
    %v4170 = vsel %vm277, %v4086, 0
    %v4172 = vsel %vm277, %v4169, 0
    %4174 = vmatprep.subr.mxu0 0.0
    %4175 = vmatpush1.xpose.msra.mxu0 %v4172
    %4176 = vmatprep.subr.mxu0 0.0
    %4177 = vmatpush1.xpose.msra.mxu0 0.0
    %4178 = vmatprep.subr.mxu0 0.0
    %4179 = vmatpush1.xpose.msra.mxu0 0.0
    %4180 = vmatprep.subr.mxu0 0.0
    %4181 = vmatpush1.xpose.msra.mxu0 0.0
    %4182 = vmatprep.subr.mxu0 0.0
    %4183 = vmatpush1.xpose.msra.mxu0 0.0
    %4184 = vmatprep.subr.mxu0 0.0
    %4185 = vmatpush1.xpose.msra.mxu0 0.0
    %4186 = vmatprep.subr.mxu0 0.0
    %4187 = vmatpush1.xpose.msra.mxu0 0.0
    %4188 = vmatprep.subr.mxu0 0.0
    %4189 = vmatpush1.xpose.msra.mxu0 0.0
    %4190 = vmatprep.subr.mxu0 0.0
    %4191 = vmatpush1.xpose.msra.mxu0 0.0
    %4192 = vmatprep.subr.mxu0 0.0
    %4193 = vmatpush1.xpose.msra.mxu0 0.0
    %4194 = vmatprep.subr.mxu0 0.0
    %4195 = vmatpush1.xpose.msra.mxu0 0.0
    %4196 = vmatprep.subr.mxu0 0.0
    %4197 = vmatpush1.xpose.msra.mxu0 0.0
    %4198 = vmatprep.subr.mxu0 0.0
    %4199 = vmatpush1.xpose.msra.mxu0 0.0
    %4200 = vmatprep.subr.mxu0 0.0
    %4201 = vmatpush1.xpose.msra.mxu0 0.0
    %4202 = vmatprep.subr.mxu0 0.0
    %4203 = vmatpush1.xpose.msra.mxu0 0.0
    %4204 = vmatprep.subr.mxu0 0.0
    %4205 = vmatpush1.xpose.msra.mxu0 0.0
    %4206 = vmatprep.subr.mxu0 0.0
    %4207 = vmatpush1.xpose.msra.mxu0 0.0
    %4208 = vmatprep.subr.mxu0 0.0
    %4209 = vmatpush1.xpose.msra.mxu0 0.0
    %4210 = vmatprep.subr.mxu0 0.0
    %4211 = vmatpush1.xpose.msra.mxu0 0.0
    %4212 = vmatprep.subr.mxu0 0.0
    %4213 = vmatpush1.xpose.msra.mxu0 0.0
    %4214 = vmatprep.subr.mxu0 0.0
    %4215 = vmatpush1.xpose.msra.mxu0 0.0
    %4216 = vmatprep.subr.mxu0 0.0
    %4217 = vmatpush1.xpose.msra.mxu0 0.0
    %4218 = vmatprep.subr.mxu0 0.0
    %4219 = vmatpush1.xpose.msra.mxu0 0.0
    %4220 = vmatprep.subr.mxu0 0.0
    %4221 = vmatpush1.xpose.msra.mxu0 0.0
    %4222 = vmatprep.subr.mxu0 0.0
    %4223 = vmatpush1.xpose.msra.mxu0 0.0
    %4224 = vmatprep.subr.mxu0 0.0
    %4225 = vmatpush1.xpose.msra.mxu0 0.0
    %4226 = vmatprep.subr.mxu0 0.0
    %4227 = vmatpush1.xpose.msra.mxu0 0.0
    %4228 = vmatprep.subr.mxu0 0.0
    %4229 = vmatpush1.xpose.msra.mxu0 0.0
    %4230 = vmatprep.subr.mxu0 0.0
    %4231 = vmatpush1.xpose.msra.mxu0 0.0
    %4232 = vmatprep.subr.mxu0 0.0
    %4233 = vmatpush1.xpose.msra.mxu0 0.0
    %4234 = vmatprep.subr.mxu0 0.0
    %4235 = vmatpush1.xpose.msra.mxu0 0.0
    %4236 = vmatprep.subr.mxu0 0.0
    %4237 = vmatpush1.xpose.msra.mxu0 0.0
    %4238 = vmatprep.mubr.f32.mxu0 0.0
    %4239 = vmatmul.mubr.f32.gmra.mrb[0].mxu0 %v4170
    %v4240 = vpop.f32.mrb[0].mxu0
    %v4241 = vadd.f32 0.0, %v4240
    %v4242 = vpop.f32.mrb[0].mxu0
    %4243 = vdwg.mxu0
    %v4244 = vsel %vm478, %v4164, -inf
    %4245 = vmax.xlane.f32.xlu0 %v4244
    %v4246 = vpop.xlane.xlu0 %4245
    %v4247 = vsel %vm478, %v4241, -inf
    %4248 = vmax.xlane.f32.xlu0 %v4247
    %v4249 = vpop.xlane.xlu0 %4248
    %v4250 = vsub.f32 %v4164, %v4246
    %v4251 = vsub.f32 %v4241, %v4249
    %v4252 = vmul.f32 %v4250, 1.442695
    %v4253 = vpow.pop %v4252
    %v4254 = vmul.f32 %v4251, 1.442695
    %v4255 = vpow.pop %v4254
    %v4256 = vsel %vm478, %v4253, 0.0
    %4257 = vadd.xlane.f32.xlu0 %v4256
    %v4258 = vpop.xlane.xlu0 %4257
    %v4259 = vsel %vm478, %v4255, 0.0
    %4260 = vadd.xlane.f32.xlu0 %v4259
    %v4261 = vpop.xlane.xlu0 %4260
    %v4262 = vrcp.pop %v4258
    %v4263 = vrcp.pop %v4261
    %v4264 = vmul.f32 %v4253, %v4262
    %v4265 = vmul.f32 %v4255, %v4263
    %v4267 = vsel %vm478, %v4264, 0
    %4269 = vmatprep.subr.mxu0 0.0
    %4270 = vmatpush1.msra.mxu0 %v4084
    %4271 = vmatprep.subr.mxu0 0.0
    %4272 = vmatpush1.msra.mxu0 0.0
    %4273 = vmatprep.subr.mxu0 0.0
    %4274 = vmatpush1.msra.mxu0 0.0
    %4275 = vmatprep.subr.mxu0 0.0
    %4276 = vmatpush1.msra.mxu0 0.0
    %4277 = vmatprep.subr.mxu0 0.0
    %4278 = vmatpush1.msra.mxu0 0.0
    %4279 = vmatprep.subr.mxu0 0.0
    %4280 = vmatpush1.msra.mxu0 0.0
    %4281 = vmatprep.subr.mxu0 0.0
    %4282 = vmatpush1.msra.mxu0 0.0
    %4283 = vmatprep.subr.mxu0 0.0
    %4284 = vmatpush1.msra.mxu0 0.0
    %4285 = vmatprep.subr.mxu0 0.0
    %4286 = vmatpush1.msra.mxu0 0.0
    %4287 = vmatprep.subr.mxu0 0.0
    %4288 = vmatpush1.msra.mxu0 0.0
    %4289 = vmatprep.subr.mxu0 0.0
    %4290 = vmatpush1.msra.mxu0 0.0
    %4291 = vmatprep.subr.mxu0 0.0
    %4292 = vmatpush1.msra.mxu0 0.0
    %4293 = vmatprep.subr.mxu0 0.0
    %4294 = vmatpush1.msra.mxu0 0.0
    %4295 = vmatprep.subr.mxu0 0.0
    %4296 = vmatpush1.msra.mxu0 0.0
    %4297 = vmatprep.subr.mxu0 0.0
    %4298 = vmatpush1.msra.mxu0 0.0
    %4299 = vmatprep.subr.mxu0 0.0
    %4300 = vmatpush1.msra.mxu0 0.0
    %4301 = vmatprep.subr.mxu0 0.0
    %4302 = vmatpush1.msra.mxu0 0.0
    %4303 = vmatprep.subr.mxu0 0.0
    %4304 = vmatpush1.msra.mxu0 0.0
    %4305 = vmatprep.subr.mxu0 0.0
    %4306 = vmatpush1.msra.mxu0 0.0
    %4307 = vmatprep.subr.mxu0 0.0
    %4308 = vmatpush1.msra.mxu0 0.0
    %4309 = vmatprep.subr.mxu0 0.0
    %4310 = vmatpush1.msra.mxu0 0.0
    %4311 = vmatprep.subr.mxu0 0.0
    %4312 = vmatpush1.msra.mxu0 0.0
    %4313 = vmatprep.subr.mxu0 0.0
    %4314 = vmatpush1.msra.mxu0 0.0
    %4315 = vmatprep.subr.mxu0 0.0
    %4316 = vmatpush1.msra.mxu0 0.0
    %4317 = vmatprep.subr.mxu0 0.0
    %4318 = vmatpush1.msra.mxu0 0.0
    %4319 = vmatprep.subr.mxu0 0.0
    %4320 = vmatpush1.msra.mxu0 0.0
    %4321 = vmatprep.subr.mxu0 0.0
    %4322 = vmatpush1.msra.mxu0 0.0
    %4323 = vmatprep.subr.mxu0 0.0
    %4324 = vmatpush1.msra.mxu0 0.0
    %4325 = vmatprep.subr.mxu0 0.0
    %4326 = vmatpush1.msra.mxu0 0.0
    %4327 = vmatprep.subr.mxu0 0.0
    %4328 = vmatpush1.msra.mxu0 0.0
    %4329 = vmatprep.subr.mxu0 0.0
    %4330 = vmatpush1.msra.mxu0 0.0
    %4331 = vmatprep.subr.mxu0 0.0
    %4332 = vmatpush1.msra.mxu0 0.0
    %4333 = vmatprep.mubr.f32.mxu0 0.0
    %4334 = vmatmul.mubr.f32.gmra.mrb[0].mxu0 %v4267
    %v4335 = vpop.f32.mrb[0].mxu0
    %v4336 = vadd.f32 0.0, %v4335
    %v4337 = vpop.f32.mrb[0].mxu0
    %4338 = vdwg.mxu0
    %v4340 = vsel %vm478, %v4265, 0
    %4342 = vmatprep.subr.mxu0 0.0
    %4343 = vmatpush1.msra.mxu0 %v4088
    %4344 = vmatprep.subr.mxu0 0.0
    %4345 = vmatpush1.msra.mxu0 0.0
    %4346 = vmatprep.subr.mxu0 0.0
    %4347 = vmatpush1.msra.mxu0 0.0
    %4348 = vmatprep.subr.mxu0 0.0
    %4349 = vmatpush1.msra.mxu0 0.0
    %4350 = vmatprep.subr.mxu0 0.0
    %4351 = vmatpush1.msra.mxu0 0.0
    %4352 = vmatprep.subr.mxu0 0.0
    %4353 = vmatpush1.msra.mxu0 0.0
    %4354 = vmatprep.subr.mxu0 0.0
    %4355 = vmatpush1.msra.mxu0 0.0
    %4356 = vmatprep.subr.mxu0 0.0
    %4357 = vmatpush1.msra.mxu0 0.0
    %4358 = vmatprep.subr.mxu0 0.0
    %4359 = vmatpush1.msra.mxu0 0.0
    %4360 = vmatprep.subr.mxu0 0.0
    %4361 = vmatpush1.msra.mxu0 0.0
    %4362 = vmatprep.subr.mxu0 0.0
    %4363 = vmatpush1.msra.mxu0 0.0
    %4364 = vmatprep.subr.mxu0 0.0
    %4365 = vmatpush1.msra.mxu0 0.0
    %4366 = vmatprep.subr.mxu0 0.0
    %4367 = vmatpush1.msra.mxu0 0.0
    %4368 = vmatprep.subr.mxu0 0.0
    %4369 = vmatpush1.msra.mxu0 0.0
    %4370 = vmatprep.subr.mxu0 0.0
    %4371 = vmatpush1.msra.mxu0 0.0
    %4372 = vmatprep.subr.mxu0 0.0
    %4373 = vmatpush1.msra.mxu0 0.0
    %4374 = vmatprep.subr.mxu0 0.0
    %4375 = vmatpush1.msra.mxu0 0.0
    %4376 = vmatprep.subr.mxu0 0.0
    %4377 = vmatpush1.msra.mxu0 0.0
    %4378 = vmatprep.subr.mxu0 0.0
    %4379 = vmatpush1.msra.mxu0 0.0
    %4380 = vmatprep.subr.mxu0 0.0
    %4381 = vmatpush1.msra.mxu0 0.0
    %4382 = vmatprep.subr.mxu0 0.0
    %4383 = vmatpush1.msra.mxu0 0.0
    %4384 = vmatprep.subr.mxu0 0.0
    %4385 = vmatpush1.msra.mxu0 0.0
    %4386 = vmatprep.subr.mxu0 0.0
    %4387 = vmatpush1.msra.mxu0 0.0
    %4388 = vmatprep.subr.mxu0 0.0
    %4389 = vmatpush1.msra.mxu0 0.0
    %4390 = vmatprep.subr.mxu0 0.0
    %4391 = vmatpush1.msra.mxu0 0.0
    %4392 = vmatprep.subr.mxu0 0.0
    %4393 = vmatpush1.msra.mxu0 0.0
    %4394 = vmatprep.subr.mxu0 0.0
    %4395 = vmatpush1.msra.mxu0 0.0
    %4396 = vmatprep.subr.mxu0 0.0
    %4397 = vmatpush1.msra.mxu0 0.0
    %4398 = vmatprep.subr.mxu0 0.0
    %4399 = vmatpush1.msra.mxu0 0.0
    %4400 = vmatprep.subr.mxu0 0.0
    %4401 = vmatpush1.msra.mxu0 0.0
    %4402 = vmatprep.subr.mxu0 0.0
    %4403 = vmatpush1.msra.mxu0 0.0
    %4404 = vmatprep.subr.mxu0 0.0
    %4405 = vmatpush1.msra.mxu0 0.0
    %4406 = vmatprep.mubr.f32.mxu0 0.0
    %4407 = vmatmul.mubr.f32.gmra.mrb[0].mxu0 %v4340
    %v4408 = vpop.f32.mrb[0].mxu0
    %v4409 = vadd.f32 0.0, %v4408
    %v4410 = vpop.f32.mrb[0].mxu0
    %4411 = vdwg.mxu0
    %s4412 = scalar_lea.vmem %s13, 32
    %v4413 = vld [vmem:[%s4412] sm:$0xf]
    %v4414 = vld [vmem:[%s4412 + $0x4] sm:$0xf]
    %v4415 = vld [vmem:[%s4412 + $0x8] sm:$0xf]
    %v4416 = vld [vmem:[%s4412 + $0xc] sm:$0xf]
    %v4417 = vld [vmem:[%s4412 + $0x10] sm:$0xf]
    %v4418 = vld [vmem:[%s4412 + $0x14] sm:$0xf]
    %v4419 = vld [vmem:[%s4412 + $0x18] sm:$0xf]
    %v4420 = vld [vmem:[%s4412 + $0x1c] sm:$0xf]
    %v4421 = vpack.c.bf16 %v4409, %v4336
    %v4430 = vunpack.c.l.b16 %v4413
    %v4431 = vunpack.c.l.b16 %v4414
    %v4432 = vunpack.c.l.b16 %v4415
    %v4433 = vunpack.c.l.b16 %v4416
    %v4434 = vunpack.c.l.b16 %v4417
    %v4435 = vunpack.c.l.b16 %v4418
    %v4436 = vunpack.c.l.b16 %v4419
    %v4437 = vunpack.c.l.b16 %v4420
    %v4438 = vpack.c.b16 %v4431, %v4430
    %v4439 = vpack.c.b16 %v4433, %v4432
    %v4440 = vpack.c.b16 %v4435, %v4434
    %v4441 = vpack.c.b16 %v4437, %v4436
    %v4447 = vsel %vm277, %v4421, 0
    %4449 = vmatprep.subr.bf16.mxu0 0
    %4450 = vmatpush1.bf16.msra.mxu0 %v4438
    %4451 = vmatprep.subr.bf16.mxu0 0
    %4452 = vmatpush1.bf16.msra.mxu0 %v4439
    %4453 = vmatprep.subr.bf16.mxu0 0
    %4454 = vmatpush1.bf16.msra.mxu0 %v4440
    %4455 = vmatprep.subr.bf16.mxu0 0
    %4456 = vmatpush1.bf16.msra.mxu0 %v4441
    %4457 = vmatprep.subr.bf16.mxu0 0
    %4458 = vmatpush1.bf16.msra.mxu0 0
    %4459 = vmatprep.subr.bf16.mxu0 0
    %4460 = vmatpush1.bf16.msra.mxu0 0
    %4461 = vmatprep.subr.bf16.mxu0 0
    %4462 = vmatpush1.bf16.msra.mxu0 0
    %4463 = vmatprep.subr.bf16.mxu0 0
    %4464 = vmatpush1.bf16.msra.mxu0 0
    %4465 = vmatprep.subr.bf16.mxu0 0
    %4466 = vmatpush1.bf16.msra.mxu0 0
    %4467 = vmatprep.subr.bf16.mxu0 0
    %4468 = vmatpush1.bf16.msra.mxu0 0
    %4469 = vmatprep.subr.bf16.mxu0 0
    %4470 = vmatpush1.bf16.msra.mxu0 0
    %4471 = vmatprep.subr.bf16.mxu0 0
    %4472 = vmatpush1.bf16.msra.mxu0 0
    %4473 = vmatprep.subr.bf16.mxu0 0
    %4474 = vmatpush1.bf16.msra.mxu0 0
    %4475 = vmatprep.subr.bf16.mxu0 0
    %4476 = vmatpush1.bf16.msra.mxu0 0
    %4477 = vmatprep.subr.bf16.mxu0 0
    %4478 = vmatpush1.bf16.msra.mxu0 0
    %4479 = vmatprep.subr.bf16.mxu0 0
    %4480 = vmatpush1.bf16.msra.mxu0 0
    %4481 = vmatprep.mubr.bf16.mxu0 0
    %4482 = vmatmul.mubr.bf16.gmra.mrb[0].mxu0 %v4447
    %v4483 = vpop.f32.mrb[0].mxu0
    %v4484 = vadd.f32 0.0, %v4483
    %v4485 = vpop.f32.mrb[0].mxu0
    %v4486 = vpop.f32.mrb[0].mxu0
    %v4487 = vadd.f32 0.0, %v4486
    %v4488 = vpop.f32.mrb[0].mxu0
    %4489 = vdwg.mxu0
    %v4490 = vadd.f32 %v3992, %v4484
    %v4491 = vadd.f32 %v3993, %v4487
    %s4492 = scalar_lea.vmem %s14, 1
    %v4493 = vld [vmem:[%s4492] sm:$0x1]
    %s4494 = scalar_lea.vmem %s15, 1
    %v4495 = vld [vmem:[%s4494] sm:$0x1]
    %v4496 = vsel %vm277, %v4490, 0.0
    %4497 = vadd.xlane.f32.xlu0 %v4496
    %v4498 = vpop.xlane.xlu0 %4497
    %v4499 = vsel %vm277, %v4491, 0.0
    %4500 = vadd.xlane.f32.xlu0 %v4499
    %v4501 = vpop.xlane.xlu0 %4500
    %v4502 = vmul.f32 %v4498, %v734
    %v4503 = vmul.f32 %v4501, %v734
    %v4504 = vsub.f32 %v4490, %v4502
    %v4505 = vsub.f32 %v4491, %v4503
    %v4506 = vmul.f32 %v4504, %v4504
    %v4507 = vmul.f32 %v4505, %v4505
    %v4508 = vsel %vm277, %v4506, 0.0
    %4509 = vadd.xlane.f32.xlu0 %v4508
    %v4510 = vpop.xlane.xlu0 %4509
    %v4511 = vsel %vm277, %v4507, 0.0
    %4512 = vadd.xlane.f32.xlu0 %v4511
    %v4513 = vpop.xlane.xlu0 %4512
    %v4514 = vmul.f32 %v4510, %v734
    %v4515 = vmul.f32 %v4513, %v734
    %v4516 = vadd.f32 %v4514, 1e-05
    %v4517 = vadd.f32 %v4515, 1e-05
    %v4518 = vrsqrt.pop %v4516
    %v4519 = vrsqrt.pop %v4517
    %v4520 = vmul.f32 %v4504, %v4518
    %v4521 = vmul.f32 %v4505, %v4519
    %v4523 = vlaneseq
    %v4524 = vshrl.u32 %v4523, 7
    %v4525 = vsub.s32 0, %v4524
    %v4526 = vrot.slane %v4493, %v4525
    %v4528 = vmul.f32 %v4520, %v4526
    %v4529 = vmul.f32 %v4521, %v4526
    %v4531 = vlaneseq
    %v4532 = vshrl.u32 %v4531, 7
    %v4533 = vsub.s32 0, %v4532
    %v4534 = vrot.slane %v4495, %v4533
    %v4536 = vadd.f32 %v4528, %v4534
    %v4537 = vadd.f32 %v4529, %v4534
    %s4538 = scalar_lea.vmem [#allocation8], 32
    %v4539 = vld [vmem:[%s4538] sm:$0xf]
    %v4540 = vld [vmem:[%s4538 + $0x4] sm:$0xf]
    %v4541 = vld [vmem:[%s4538 + $0x8] sm:$0xf]
    %v4542 = vld [vmem:[%s4538 + $0xc] sm:$0xf]
    %v4543 = vld [vmem:[%s4538 + $0x10] sm:$0xf]
    %v4544 = vld [vmem:[%s4538 + $0x14] sm:$0xf]
    %v4545 = vld [vmem:[%s4538 + $0x18] sm:$0xf]
    %v4546 = vld [vmem:[%s4538 + $0x1c] sm:$0xf]
    %v4547 = vpack.c.bf16 %v4537, %v4536
    %v4556 = vunpack.c.l.b16 %v4539
    %v4557 = vunpack.c.l.b16 %v4540
    %v4558 = vunpack.c.l.b16 %v4541
    %v4559 = vunpack.c.l.b16 %v4542
    %v4560 = vunpack.c.l.b16 %v4543
    %v4561 = vunpack.c.l.b16 %v4544
    %v4562 = vunpack.c.l.b16 %v4545
    %v4563 = vunpack.c.l.b16 %v4546
    %v4564 = vpack.c.b16 %v4557, %v4556
    %v4565 = vpack.c.b16 %v4559, %v4558
    %v4566 = vpack.c.b16 %v4561, %v4560
    %v4567 = vpack.c.b16 %v4563, %v4562
    %v4573 = vsel %vm277, %v4547, 0
    %4575 = vmatprep.subr.bf16.mxu0 0
    %4576 = vmatpush1.bf16.msra.mxu0 %v4564
    %4577 = vmatprep.subr.bf16.mxu0 0
    %4578 = vmatpush1.bf16.msra.mxu0 %v4565
    %4579 = vmatprep.subr.bf16.mxu0 0
    %4580 = vmatpush1.bf16.msra.mxu0 %v4566
    %4581 = vmatprep.subr.bf16.mxu0 0
    %4582 = vmatpush1.bf16.msra.mxu0 %v4567
    %4583 = vmatprep.subr.bf16.mxu0 0
    %4584 = vmatpush1.bf16.msra.mxu0 0
    %4585 = vmatprep.subr.bf16.mxu0 0
    %4586 = vmatpush1.bf16.msra.mxu0 0
    %4587 = vmatprep.subr.bf16.mxu0 0
    %4588 = vmatpush1.bf16.msra.mxu0 0
    %4589 = vmatprep.subr.bf16.mxu0 0
    %4590 = vmatpush1.bf16.msra.mxu0 0
    %4591 = vmatprep.subr.bf16.mxu0 0
    %4592 = vmatpush1.bf16.msra.mxu0 0
    %4593 = vmatprep.subr.bf16.mxu0 0
    %4594 = vmatpush1.bf16.msra.mxu0 0
    %4595 = vmatprep.subr.bf16.mxu0 0
    %4596 = vmatpush1.bf16.msra.mxu0 0
    %4597 = vmatprep.subr.bf16.mxu0 0
    %4598 = vmatpush1.bf16.msra.mxu0 0
    %4599 = vmatprep.subr.bf16.mxu0 0
    %4600 = vmatpush1.bf16.msra.mxu0 0
    %4601 = vmatprep.subr.bf16.mxu0 0
    %4602 = vmatpush1.bf16.msra.mxu0 0
    %4603 = vmatprep.subr.bf16.mxu0 0
    %4604 = vmatpush1.bf16.msra.mxu0 0
    %4605 = vmatprep.subr.bf16.mxu0 0
    %4606 = vmatpush1.bf16.msra.mxu0 0
    %4607 = vmatprep.mubr.bf16.mxu0 0
    %4608 = vmatmul.mubr.bf16.gmra.mrb[0].mxu0 %v4573
    %v4609 = vpop.f32.mrb[0].mxu0
    %v4610 = vadd.f32 0.0, %v4609
    %v4611 = vpop.f32.mrb[0].mxu0
    %v4612 = vpop.f32.mrb[0].mxu0
    %v4613 = vadd.f32 0.0, %v4612
    %v4614 = vpop.f32.mrb[0].mxu0
    %4615 = vdwg.mxu0
    %s4616 = scalar_lea.vmem [#allocation10], 32
    %v4617 = vld [vmem:[%s4616] sm:$0xf]
    %v4618 = vld [vmem:[%s4616 + $0x4] sm:$0xf]
    %v4619 = vld [vmem:[%s4616 + $0x8] sm:$0xf]
    %v4620 = vld [vmem:[%s4616 + $0xc] sm:$0xf]
    %v4621 = vld [vmem:[%s4616 + $0x10] sm:$0xf]
    %v4622 = vld [vmem:[%s4616 + $0x14] sm:$0xf]
    %v4623 = vld [vmem:[%s4616 + $0x18] sm:$0xf]
    %v4624 = vld [vmem:[%s4616 + $0x1c] sm:$0xf]
    %v4633 = vunpack.c.l.b16 %v4617
    %v4634 = vunpack.c.l.b16 %v4618
    %v4635 = vunpack.c.l.b16 %v4619
    %v4636 = vunpack.c.l.b16 %v4620
    %v4637 = vunpack.c.l.b16 %v4621
    %v4638 = vunpack.c.l.b16 %v4622
    %v4639 = vunpack.c.l.b16 %v4623
    %v4640 = vunpack.c.l.b16 %v4624
    %v4641 = vpack.c.b16 %v4634, %v4633
    %v4642 = vpack.c.b16 %v4636, %v4635
    %v4643 = vpack.c.b16 %v4638, %v4637
    %v4644 = vpack.c.b16 %v4640, %v4639
    %4649 = vmatprep.subr.bf16.mxu0 0
    %4650 = vmatpush1.bf16.msra.mxu0 %v4641
    %4651 = vmatprep.subr.bf16.mxu0 0
    %4652 = vmatpush1.bf16.msra.mxu0 %v4642
    %4653 = vmatprep.subr.bf16.mxu0 0
    %4654 = vmatpush1.bf16.msra.mxu0 %v4643
    %4655 = vmatprep.subr.bf16.mxu0 0
    %4656 = vmatpush1.bf16.msra.mxu0 %v4644
    %4657 = vmatprep.subr.bf16.mxu0 0
    %4658 = vmatpush1.bf16.msra.mxu0 0
    %4659 = vmatprep.subr.bf16.mxu0 0
    %4660 = vmatpush1.bf16.msra.mxu0 0
    %4661 = vmatprep.subr.bf16.mxu0 0
    %4662 = vmatpush1.bf16.msra.mxu0 0
    %4663 = vmatprep.subr.bf16.mxu0 0
    %4664 = vmatpush1.bf16.msra.mxu0 0
    %4665 = vmatprep.subr.bf16.mxu0 0
    %4666 = vmatpush1.bf16.msra.mxu0 0
    %4667 = vmatprep.subr.bf16.mxu0 0
    %4668 = vmatpush1.bf16.msra.mxu0 0
    %4669 = vmatprep.subr.bf16.mxu0 0
    %4670 = vmatpush1.bf16.msra.mxu0 0
    %4671 = vmatprep.subr.bf16.mxu0 0
    %4672 = vmatpush1.bf16.msra.mxu0 0
    %4673 = vmatprep.subr.bf16.mxu0 0
    %4674 = vmatpush1.bf16.msra.mxu0 0
    %4675 = vmatprep.subr.bf16.mxu0 0
    %4676 = vmatpush1.bf16.msra.mxu0 0
    %4677 = vmatprep.subr.bf16.mxu0 0
    %4678 = vmatpush1.bf16.msra.mxu0 0
    %4679 = vmatprep.subr.bf16.mxu0 0
    %4680 = vmatpush1.bf16.msra.mxu0 0
    %4681 = vmatprep.mubr.bf16.mxu0 0
    %4682 = vmatmul.mubr.bf16.gmra.mrb[0].mxu0 %v3257
    %v4683 = vpop.f32.mrb[0].mxu0
    %v4684 = vadd.f32 0.0, %v4683
    %v4685 = vpop.f32.mrb[0].mxu0
    %v4686 = vpop.f32.mrb[0].mxu0
    %v4687 = vadd.f32 0.0, %v4686
    %v4688 = vpop.f32.mrb[0].mxu0
    %4689 = vdwg.mxu0
    %v4691 = vsel %vm277, %v4610, 0
    %v4694 = vsel %vm277, %v4684, 0
    %4696 = vmatprep.subr.mxu0 0.0
    %4697 = vmatpush1.xpose.msra.mxu0 %v4694
    %4698 = vmatprep.subr.mxu0 0.0
    %4699 = vmatpush1.xpose.msra.mxu0 0.0
    %4700 = vmatprep.subr.mxu0 0.0
    %4701 = vmatpush1.xpose.msra.mxu0 0.0
    %4702 = vmatprep.subr.mxu0 0.0
    %4703 = vmatpush1.xpose.msra.mxu0 0.0
    %4704 = vmatprep.subr.mxu0 0.0
    %4705 = vmatpush1.xpose.msra.mxu0 0.0
    %4706 = vmatprep.subr.mxu0 0.0
    %4707 = vmatpush1.xpose.msra.mxu0 0.0
    %4708 = vmatprep.subr.mxu0 0.0
    %4709 = vmatpush1.xpose.msra.mxu0 0.0
    %4710 = vmatprep.subr.mxu0 0.0
    %4711 = vmatpush1.xpose.msra.mxu0 0.0
    %4712 = vmatprep.subr.mxu0 0.0
    %4713 = vmatpush1.xpose.msra.mxu0 0.0
    %4714 = vmatprep.subr.mxu0 0.0
    %4715 = vmatpush1.xpose.msra.mxu0 0.0
    %4716 = vmatprep.subr.mxu0 0.0
    %4717 = vmatpush1.xpose.msra.mxu0 0.0
    %4718 = vmatprep.subr.mxu0 0.0
    %4719 = vmatpush1.xpose.msra.mxu0 0.0
    %4720 = vmatprep.subr.mxu0 0.0
    %4721 = vmatpush1.xpose.msra.mxu0 0.0
    %4722 = vmatprep.subr.mxu0 0.0
    %4723 = vmatpush1.xpose.msra.mxu0 0.0
    %4724 = vmatprep.subr.mxu0 0.0
    %4725 = vmatpush1.xpose.msra.mxu0 0.0
    %4726 = vmatprep.subr.mxu0 0.0
    %4727 = vmatpush1.xpose.msra.mxu0 0.0
    %4728 = vmatprep.subr.mxu0 0.0
    %4729 = vmatpush1.xpose.msra.mxu0 0.0
    %4730 = vmatprep.subr.mxu0 0.0
    %4731 = vmatpush1.xpose.msra.mxu0 0.0
    %4732 = vmatprep.subr.mxu0 0.0
    %4733 = vmatpush1.xpose.msra.mxu0 0.0
    %4734 = vmatprep.subr.mxu0 0.0
    %4735 = vmatpush1.xpose.msra.mxu0 0.0
    %4736 = vmatprep.subr.mxu0 0.0
    %4737 = vmatpush1.xpose.msra.mxu0 0.0
    %4738 = vmatprep.subr.mxu0 0.0
    %4739 = vmatpush1.xpose.msra.mxu0 0.0
    %4740 = vmatprep.subr.mxu0 0.0
    %4741 = vmatpush1.xpose.msra.mxu0 0.0
    %4742 = vmatprep.subr.mxu0 0.0
    %4743 = vmatpush1.xpose.msra.mxu0 0.0
    %4744 = vmatprep.subr.mxu0 0.0
    %4745 = vmatpush1.xpose.msra.mxu0 0.0
    %4746 = vmatprep.subr.mxu0 0.0
    %4747 = vmatpush1.xpose.msra.mxu0 0.0
    %4748 = vmatprep.subr.mxu0 0.0
    %4749 = vmatpush1.xpose.msra.mxu0 0.0
    %4750 = vmatprep.subr.mxu0 0.0
    %4751 = vmatpush1.xpose.msra.mxu0 0.0
    %4752 = vmatprep.subr.mxu0 0.0
    %4753 = vmatpush1.xpose.msra.mxu0 0.0
    %4754 = vmatprep.subr.mxu0 0.0
    %4755 = vmatpush1.xpose.msra.mxu0 0.0
    %4756 = vmatprep.subr.mxu0 0.0
    %4757 = vmatpush1.xpose.msra.mxu0 0.0
    %4758 = vmatprep.subr.mxu0 0.0
    %4759 = vmatpush1.xpose.msra.mxu0 0.0
    %4760 = vmatprep.mubr.f32.mxu0 0.0
    %4761 = vmatmul.mubr.f32.gmra.mrb[0].mxu0 %v4691
    %v4762 = vpop.f32.mrb[0].mxu0
    %v4763 = vadd.f32 0.0, %v4762
    %v4764 = vpop.f32.mrb[0].mxu0
    %4765 = vdwg.mxu0
    %v4767 = vsel %vm277, %v4613, 0
    %v4770 = vsel %vm277, %v4687, 0
    %4772 = vmatprep.subr.mxu0 0.0
    %4773 = vmatpush1.xpose.msra.mxu0 %v4770
    %4774 = vmatprep.subr.mxu0 0.0
    %4775 = vmatpush1.xpose.msra.mxu0 0.0
    %4776 = vmatprep.subr.mxu0 0.0
    %4777 = vmatpush1.xpose.msra.mxu0 0.0
    %4778 = vmatprep.subr.mxu0 0.0
    %4779 = vmatpush1.xpose.msra.mxu0 0.0
    %4780 = vmatprep.subr.mxu0 0.0
    %4781 = vmatpush1.xpose.msra.mxu0 0.0
    %4782 = vmatprep.subr.mxu0 0.0
    %4783 = vmatpush1.xpose.msra.mxu0 0.0
    %4784 = vmatprep.subr.mxu0 0.0
    %4785 = vmatpush1.xpose.msra.mxu0 0.0
    %4786 = vmatprep.subr.mxu0 0.0
    %4787 = vmatpush1.xpose.msra.mxu0 0.0
    %4788 = vmatprep.subr.mxu0 0.0
    %4789 = vmatpush1.xpose.msra.mxu0 0.0
    %4790 = vmatprep.subr.mxu0 0.0
    %4791 = vmatpush1.xpose.msra.mxu0 0.0
    %4792 = vmatprep.subr.mxu0 0.0
    %4793 = vmatpush1.xpose.msra.mxu0 0.0
    %4794 = vmatprep.subr.mxu0 0.0
    %4795 = vmatpush1.xpose.msra.mxu0 0.0
    %4796 = vmatprep.subr.mxu0 0.0
    %4797 = vmatpush1.xpose.msra.mxu0 0.0
    %4798 = vmatprep.subr.mxu0 0.0
    %4799 = vmatpush1.xpose.msra.mxu0 0.0
    %4800 = vmatprep.subr.mxu0 0.0
    %4801 = vmatpush1.xpose.msra.mxu0 0.0
    %4802 = vmatprep.subr.mxu0 0.0
    %4803 = vmatpush1.xpose.msra.mxu0 0.0
    %4804 = vmatprep.subr.mxu0 0.0
    %4805 = vmatpush1.xpose.msra.mxu0 0.0
    %4806 = vmatprep.subr.mxu0 0.0
    %4807 = vmatpush1.xpose.msra.mxu0 0.0
    %4808 = vmatprep.subr.mxu0 0.0
    %4809 = vmatpush1.xpose.msra.mxu0 0.0
    %4810 = vmatprep.subr.mxu0 0.0
    %4811 = vmatpush1.xpose.msra.mxu0 0.0
    %4812 = vmatprep.subr.mxu0 0.0
    %4813 = vmatpush1.xpose.msra.mxu0 0.0
    %4814 = vmatprep.subr.mxu0 0.0
    %4815 = vmatpush1.xpose.msra.mxu0 0.0
    %4816 = vmatprep.subr.mxu0 0.0
    %4817 = vmatpush1.xpose.msra.mxu0 0.0
    %4818 = vmatprep.subr.mxu0 0.0
    %4819 = vmatpush1.xpose.msra.mxu0 0.0
    %4820 = vmatprep.subr.mxu0 0.0
    %4821 = vmatpush1.xpose.msra.mxu0 0.0
    %4822 = vmatprep.subr.mxu0 0.0
    %4823 = vmatpush1.xpose.msra.mxu0 0.0
    %4824 = vmatprep.subr.mxu0 0.0
    %4825 = vmatpush1.xpose.msra.mxu0 0.0
    %4826 = vmatprep.subr.mxu0 0.0
    %4827 = vmatpush1.xpose.msra.mxu0 0.0
    %4828 = vmatprep.subr.mxu0 0.0
    %4829 = vmatpush1.xpose.msra.mxu0 0.0
    %4830 = vmatprep.subr.mxu0 0.0
    %4831 = vmatpush1.xpose.msra.mxu0 0.0
    %4832 = vmatprep.subr.mxu0 0.0
    %4833 = vmatpush1.xpose.msra.mxu0 0.0
    %4834 = vmatprep.subr.mxu0 0.0
    %4835 = vmatpush1.xpose.msra.mxu0 0.0
    %4836 = vmatprep.mubr.f32.mxu0 0.0
    %4837 = vmatmul.mubr.f32.gmra.mrb[0].mxu0 %v4767
    %v4838 = vpop.f32.mrb[0].mxu0
    %v4839 = vadd.f32 0.0, %v4838
    %v4840 = vpop.f32.mrb[0].mxu0
    %4841 = vdwg.mxu0
    %v4842 = vsel %vm478, %v4763, -inf
    %4843 = vmax.xlane.f32.xlu0 %v4842
    %v4844 = vpop.xlane.xlu0 %4843
    %v4845 = vsel %vm478, %v4839, -inf
    %4846 = vmax.xlane.f32.xlu0 %v4845
    %v4847 = vpop.xlane.xlu0 %4846
    %v4848 = vsub.f32 %v4763, %v4844
    %v4849 = vsub.f32 %v4839, %v4847
    %v4850 = vmul.f32 %v4848, 1.442695
    %v4851 = vpow.pop %v4850
    %v4852 = vmul.f32 %v4849, 1.442695
    %v4853 = vpow.pop %v4852
    %v4854 = vsel %vm478, %v4851, 0.0
    %4855 = vadd.xlane.f32.xlu0 %v4854
    %v4856 = vpop.xlane.xlu0 %4855
    %v4857 = vsel %vm478, %v4853, 0.0
    %4858 = vadd.xlane.f32.xlu0 %v4857
    %v4859 = vpop.xlane.xlu0 %4858
    %v4860 = vrcp.pop %v4856
    %v4861 = vrcp.pop %v4859
    %v4862 = vmul.f32 %v4851, %v4860
    %v4863 = vmul.f32 %v4853, %v4861
    %4864 = vrot.lane.b32.xlu0 %v4684, 64
    %v4865 = vpop.permute.xlu0 %4864
    %v4868 = vsel %vm478, %v4862, 0
    %4870 = vmatprep.subr.mxu0 0.0
    %4871 = vmatpush1.msra.mxu0 %v4865
    %4872 = vmatprep.subr.mxu0 0.0
    %4873 = vmatpush1.msra.mxu0 0.0
    %4874 = vmatprep.subr.mxu0 0.0
    %4875 = vmatpush1.msra.mxu0 0.0
    %4876 = vmatprep.subr.mxu0 0.0
    %4877 = vmatpush1.msra.mxu0 0.0
    %4878 = vmatprep.subr.mxu0 0.0
    %4879 = vmatpush1.msra.mxu0 0.0
    %4880 = vmatprep.subr.mxu0 0.0
    %4881 = vmatpush1.msra.mxu0 0.0
    %4882 = vmatprep.subr.mxu0 0.0
    %4883 = vmatpush1.msra.mxu0 0.0
    %4884 = vmatprep.subr.mxu0 0.0
    %4885 = vmatpush1.msra.mxu0 0.0
    %4886 = vmatprep.subr.mxu0 0.0
    %4887 = vmatpush1.msra.mxu0 0.0
    %4888 = vmatprep.subr.mxu0 0.0
    %4889 = vmatpush1.msra.mxu0 0.0
    %4890 = vmatprep.subr.mxu0 0.0
    %4891 = vmatpush1.msra.mxu0 0.0
    %4892 = vmatprep.subr.mxu0 0.0
    %4893 = vmatpush1.msra.mxu0 0.0
    %4894 = vmatprep.subr.mxu0 0.0
    %4895 = vmatpush1.msra.mxu0 0.0
    %4896 = vmatprep.subr.mxu0 0.0
    %4897 = vmatpush1.msra.mxu0 0.0
    %4898 = vmatprep.subr.mxu0 0.0
    %4899 = vmatpush1.msra.mxu0 0.0
    %4900 = vmatprep.subr.mxu0 0.0
    %4901 = vmatpush1.msra.mxu0 0.0
    %4902 = vmatprep.subr.mxu0 0.0
    %4903 = vmatpush1.msra.mxu0 0.0
    %4904 = vmatprep.subr.mxu0 0.0
    %4905 = vmatpush1.msra.mxu0 0.0
    %4906 = vmatprep.subr.mxu0 0.0
    %4907 = vmatpush1.msra.mxu0 0.0
    %4908 = vmatprep.subr.mxu0 0.0
    %4909 = vmatpush1.msra.mxu0 0.0
    %4910 = vmatprep.subr.mxu0 0.0
    %4911 = vmatpush1.msra.mxu0 0.0
    %4912 = vmatprep.subr.mxu0 0.0
    %4913 = vmatpush1.msra.mxu0 0.0
    %4914 = vmatprep.subr.mxu0 0.0
    %4915 = vmatpush1.msra.mxu0 0.0
    %4916 = vmatprep.subr.mxu0 0.0
    %4917 = vmatpush1.msra.mxu0 0.0
    %4918 = vmatprep.subr.mxu0 0.0
    %4919 = vmatpush1.msra.mxu0 0.0
    %4920 = vmatprep.subr.mxu0 0.0
    %4921 = vmatpush1.msra.mxu0 0.0
    %4922 = vmatprep.subr.mxu0 0.0
    %4923 = vmatpush1.msra.mxu0 0.0
    %4924 = vmatprep.subr.mxu0 0.0
    %4925 = vmatpush1.msra.mxu0 0.0
    %4926 = vmatprep.subr.mxu0 0.0
    %4927 = vmatpush1.msra.mxu0 0.0
    %4928 = vmatprep.subr.mxu0 0.0
    %4929 = vmatpush1.msra.mxu0 0.0
    %4930 = vmatprep.subr.mxu0 0.0
    %4931 = vmatpush1.msra.mxu0 0.0
    %4932 = vmatprep.subr.mxu0 0.0
    %4933 = vmatpush1.msra.mxu0 0.0
    %4934 = vmatprep.mubr.f32.mxu0 0.0
    %4935 = vmatmul.mubr.f32.gmra.mrb[0].mxu0 %v4868
    %v4936 = vpop.f32.mrb[0].mxu0
    %v4937 = vadd.f32 0.0, %v4936
    %v4938 = vpop.f32.mrb[0].mxu0
    %4939 = vdwg.mxu0
    %4940 = vrot.lane.b32.xlu0 %v4687, 64
    %v4941 = vpop.permute.xlu0 %4940
    %v4944 = vsel %vm478, %v4863, 0
    %4946 = vmatprep.subr.mxu0 0.0
    %4947 = vmatpush1.msra.mxu0 %v4941
    %4948 = vmatprep.subr.mxu0 0.0
    %4949 = vmatpush1.msra.mxu0 0.0
    %4950 = vmatprep.subr.mxu0 0.0
    %4951 = vmatpush1.msra.mxu0 0.0
    %4952 = vmatprep.subr.mxu0 0.0
    %4953 = vmatpush1.msra.mxu0 0.0
    %4954 = vmatprep.subr.mxu0 0.0
    %4955 = vmatpush1.msra.mxu0 0.0
    %4956 = vmatprep.subr.mxu0 0.0
    %4957 = vmatpush1.msra.mxu0 0.0
    %4958 = vmatprep.subr.mxu0 0.0
    %4959 = vmatpush1.msra.mxu0 0.0
    %4960 = vmatprep.subr.mxu0 0.0
    %4961 = vmatpush1.msra.mxu0 0.0
    %4962 = vmatprep.subr.mxu0 0.0
    %4963 = vmatpush1.msra.mxu0 0.0
    %4964 = vmatprep.subr.mxu0 0.0
    %4965 = vmatpush1.msra.mxu0 0.0
    %4966 = vmatprep.subr.mxu0 0.0
    %4967 = vmatpush1.msra.mxu0 0.0
    %4968 = vmatprep.subr.mxu0 0.0
    %4969 = vmatpush1.msra.mxu0 0.0
    %4970 = vmatprep.subr.mxu0 0.0
    %4971 = vmatpush1.msra.mxu0 0.0
    %4972 = vmatprep.subr.mxu0 0.0
    %4973 = vmatpush1.msra.mxu0 0.0
    %4974 = vmatprep.subr.mxu0 0.0
    %4975 = vmatpush1.msra.mxu0 0.0
    %4976 = vmatprep.subr.mxu0 0.0
    %4977 = vmatpush1.msra.mxu0 0.0
    %4978 = vmatprep.subr.mxu0 0.0
    %4979 = vmatpush1.msra.mxu0 0.0
    %4980 = vmatprep.subr.mxu0 0.0
    %4981 = vmatpush1.msra.mxu0 0.0
    %4982 = vmatprep.subr.mxu0 0.0
    %4983 = vmatpush1.msra.mxu0 0.0
    %4984 = vmatprep.subr.mxu0 0.0
    %4985 = vmatpush1.msra.mxu0 0.0
    %4986 = vmatprep.subr.mxu0 0.0
    %4987 = vmatpush1.msra.mxu0 0.0
    %4988 = vmatprep.subr.mxu0 0.0
    %4989 = vmatpush1.msra.mxu0 0.0
    %4990 = vmatprep.subr.mxu0 0.0
    %4991 = vmatpush1.msra.mxu0 0.0
    %4992 = vmatprep.subr.mxu0 0.0
    %4993 = vmatpush1.msra.mxu0 0.0
    %4994 = vmatprep.subr.mxu0 0.0
    %4995 = vmatpush1.msra.mxu0 0.0
    %4996 = vmatprep.subr.mxu0 0.0
    %4997 = vmatpush1.msra.mxu0 0.0
    %4998 = vmatprep.subr.mxu0 0.0
    %4999 = vmatpush1.msra.mxu0 0.0
    %5000 = vmatprep.subr.mxu0 0.0
    %5001 = vmatpush1.msra.mxu0 0.0
    %5002 = vmatprep.subr.mxu0 0.0
    %5003 = vmatpush1.msra.mxu0 0.0
    %5004 = vmatprep.subr.mxu0 0.0
    %5005 = vmatpush1.msra.mxu0 0.0
    %5006 = vmatprep.subr.mxu0 0.0
    %5007 = vmatpush1.msra.mxu0 0.0
    %5008 = vmatprep.subr.mxu0 0.0
    %5009 = vmatpush1.msra.mxu0 0.0
    %5010 = vmatprep.mubr.f32.mxu0 0.0
    %5011 = vmatmul.mubr.f32.gmra.mrb[0].mxu0 %v4944
    %v5012 = vpop.f32.mrb[0].mxu0
    %v5013 = vadd.f32 0.0, %v5012
    %v5014 = vpop.f32.mrb[0].mxu0
    %5015 = vdwg.mxu0
    %s5016 = scalar_lea.vmem [#allocation11], 32
    %v5017 = vld [vmem:[%s5016] sm:$0xf]
    %v5018 = vld [vmem:[%s5016 + $0x4] sm:$0xf]
    %v5019 = vld [vmem:[%s5016 + $0x8] sm:$0xf]
    %v5020 = vld [vmem:[%s5016 + $0xc] sm:$0xf]
    %v5021 = vld [vmem:[%s5016 + $0x10] sm:$0xf]
    %v5022 = vld [vmem:[%s5016 + $0x14] sm:$0xf]
    %v5023 = vld [vmem:[%s5016 + $0x18] sm:$0xf]
    %v5024 = vld [vmem:[%s5016 + $0x1c] sm:$0xf]
    %v5025 = vpack.c.bf16 %v5013, %v4937
    %v5034 = vunpack.c.l.b16 %v5017
    %v5035 = vunpack.c.l.b16 %v5018
    %v5036 = vunpack.c.l.b16 %v5019
    %v5037 = vunpack.c.l.b16 %v5020
    %v5038 = vunpack.c.l.b16 %v5021
    %v5039 = vunpack.c.l.b16 %v5022
    %v5040 = vunpack.c.l.b16 %v5023
    %v5041 = vunpack.c.l.b16 %v5024
    %v5042 = vpack.c.b16 %v5035, %v5034
    %v5043 = vpack.c.b16 %v5037, %v5036
    %v5044 = vpack.c.b16 %v5039, %v5038
    %v5045 = vpack.c.b16 %v5041, %v5040
    %v5051 = vsel %vm277, %v5025, 0
    %5053 = vmatprep.subr.bf16.mxu0 0
    %5054 = vmatpush1.bf16.msra.mxu0 %v5042
    %5055 = vmatprep.subr.bf16.mxu0 0
    %5056 = vmatpush1.bf16.msra.mxu0 %v5043
    %5057 = vmatprep.subr.bf16.mxu0 0
    %5058 = vmatpush1.bf16.msra.mxu0 %v5044
    %5059 = vmatprep.subr.bf16.mxu0 0
    %5060 = vmatpush1.bf16.msra.mxu0 %v5045
    %5061 = vmatprep.subr.bf16.mxu0 0
    %5062 = vmatpush1.bf16.msra.mxu0 0
    %5063 = vmatprep.subr.bf16.mxu0 0
    %5064 = vmatpush1.bf16.msra.mxu0 0
    %5065 = vmatprep.subr.bf16.mxu0 0
    %5066 = vmatpush1.bf16.msra.mxu0 0
    %5067 = vmatprep.subr.bf16.mxu0 0
    %5068 = vmatpush1.bf16.msra.mxu0 0
    %5069 = vmatprep.subr.bf16.mxu0 0
    %5070 = vmatpush1.bf16.msra.mxu0 0
    %5071 = vmatprep.subr.bf16.mxu0 0
    %5072 = vmatpush1.bf16.msra.mxu0 0
    %5073 = vmatprep.subr.bf16.mxu0 0
    %5074 = vmatpush1.bf16.msra.mxu0 0
    %5075 = vmatprep.subr.bf16.mxu0 0
    %5076 = vmatpush1.bf16.msra.mxu0 0
    %5077 = vmatprep.subr.bf16.mxu0 0
    %5078 = vmatpush1.bf16.msra.mxu0 0
    %5079 = vmatprep.subr.bf16.mxu0 0
    %5080 = vmatpush1.bf16.msra.mxu0 0
    %5081 = vmatprep.subr.bf16.mxu0 0
    %5082 = vmatpush1.bf16.msra.mxu0 0
    %5083 = vmatprep.subr.bf16.mxu0 0
    %5084 = vmatpush1.bf16.msra.mxu0 0
    %5085 = vmatprep.mubr.bf16.mxu0 0
    %5086 = vmatmul.mubr.bf16.gmra.mrb[0].mxu0 %v5051
    %v5087 = vpop.f32.mrb[0].mxu0
    %v5088 = vadd.f32 0.0, %v5087
    %v5089 = vpop.f32.mrb[0].mxu0
    %v5090 = vpop.f32.mrb[0].mxu0
    %v5091 = vadd.f32 0.0, %v5090
    %v5092 = vpop.f32.mrb[0].mxu0
    %5093 = vdwg.mxu0
    %v5094 = vadd.f32 %v4536, %v5088
    %v5095 = vadd.f32 %v4537, %v5091
    %s5096 = scalar_lea.vmem [#allocation13], 1
    %v5097 = vld [vmem:[%s5096] sm:$0x1]
    %s5098 = scalar_lea.vmem [#allocation14], 1
    %v5099 = vld [vmem:[%s5098] sm:$0x1]
    %v5100 = vsel %vm277, %v5094, 0.0
    %5101 = vadd.xlane.f32.xlu0 %v5100
    %v5102 = vpop.xlane.xlu0 %5101
    %v5103 = vsel %vm277, %v5095, 0.0
    %5104 = vadd.xlane.f32.xlu0 %v5103
    %v5105 = vpop.xlane.xlu0 %5104
    %v5106 = vmul.f32 %v5102, %v734
    %v5107 = vmul.f32 %v5105, %v734
    %v5108 = vsub.f32 %v5094, %v5106
    %v5109 = vsub.f32 %v5095, %v5107
    %v5110 = vmul.f32 %v5108, %v5108
    %v5111 = vmul.f32 %v5109, %v5109
    %v5112 = vsel %vm277, %v5110, 0.0
    %5113 = vadd.xlane.f32.xlu0 %v5112
    %v5114 = vpop.xlane.xlu0 %5113
    %v5115 = vsel %vm277, %v5111, 0.0
    %5116 = vadd.xlane.f32.xlu0 %v5115
    %v5117 = vpop.xlane.xlu0 %5116
    %v5118 = vmul.f32 %v5114, %v734
    %v5119 = vmul.f32 %v5117, %v734
    %v5120 = vadd.f32 %v5118, 1e-05
    %v5121 = vadd.f32 %v5119, 1e-05
    %v5122 = vrsqrt.pop %v5120
    %v5123 = vrsqrt.pop %v5121
    %v5124 = vmul.f32 %v5108, %v5122
    %v5125 = vmul.f32 %v5109, %v5123
    %v5127 = vlaneseq
    %v5128 = vshrl.u32 %v5127, 7
    %v5129 = vsub.s32 0, %v5128
    %v5130 = vrot.slane %v5097, %v5129
    %v5132 = vmul.f32 %v5124, %v5130
    %v5133 = vmul.f32 %v5125, %v5130
    %v5135 = vlaneseq
    %v5136 = vshrl.u32 %v5135, 7
    %v5137 = vsub.s32 0, %v5136
    %v5138 = vrot.slane %v5099, %v5137
    %v5140 = vadd.f32 %v5132, %v5138
    %v5141 = vadd.f32 %v5133, %v5138
    %s5142 = scalar_lea.vmem [#allocation16], 32
    %v5143 = vld [vmem:[%s5142] sm:$0xf]
    %v5144 = vld [vmem:[%s5142 + $0x4] sm:$0xf]
    %v5145 = vld [vmem:[%s5142 + $0x8] sm:$0xf]
    %v5146 = vld [vmem:[%s5142 + $0xc] sm:$0xf]
    %v5147 = vld [vmem:[%s5142 + $0x10] sm:$0xf]
    %v5148 = vld [vmem:[%s5142 + $0x14] sm:$0xf]
    %v5149 = vld [vmem:[%s5142 + $0x18] sm:$0xf]
    %v5150 = vld [vmem:[%s5142 + $0x1c] sm:$0xf]
    %s5151 = scalar_lea.vmem [#allocation17], 1
    %v5152 = vld [vmem:[%s5151] sm:$0x1]
    %s5153 = scalar_lea.vmem %s23, 64
    %v5154 = vld [vmem:[%s5153] sm:$0xf]
    %v5155 = vld [vmem:[%s5153 + $0x4] sm:$0xf]
    %v5156 = vld [vmem:[%s5153 + $0x8] sm:$0xf]
    %v5157 = vld [vmem:[%s5153 + $0xc] sm:$0xf]
    %v5158 = vld [vmem:[%s5153 + $0x10] sm:$0xf]
    %v5159 = vld [vmem:[%s5153 + $0x14] sm:$0xf]
    %v5160 = vld [vmem:[%s5153 + $0x18] sm:$0xf]
    %v5161 = vld [vmem:[%s5153 + $0x1c] sm:$0xf]
    %v5162 = vld [vmem:[%s5153 + $0x20] sm:$0xf]
    %v5163 = vld [vmem:[%s5153 + $0x24] sm:$0xf]
    %v5164 = vld [vmem:[%s5153 + $0x28] sm:$0xf]
    %v5165 = vld [vmem:[%s5153 + $0x2c] sm:$0xf]
    %v5166 = vld [vmem:[%s5153 + $0x30] sm:$0xf]
    %v5167 = vld [vmem:[%s5153 + $0x34] sm:$0xf]
    %v5168 = vld [vmem:[%s5153 + $0x38] sm:$0xf]
    %v5169 = vld [vmem:[%s5153 + $0x3c] sm:$0xf]
    %s5170 = scalar_lea.vmem %s24, 1
    %v5171 = vld [vmem:[%s5170] sm:$0x1]
    %v5172 = vpack.c.bf16 %v5141, %v5140
    %v5174 = vlaneseq
    %v5175 = vshrl.u32 %v5174, 7
    %v5176 = vsub.s32 0, %v5175
    %v5177 = vrot.slane %v5152, %v5176
    %v5187 = vunpack.c.l.b16 %v5143
    %v5188 = vunpack.c.l.b16 %v5144
    %v5189 = vunpack.c.l.b16 %v5145
    %v5190 = vunpack.c.l.b16 %v5146
    %v5191 = vunpack.c.l.b16 %v5147
    %v5192 = vunpack.c.l.b16 %v5148
    %v5193 = vunpack.c.l.b16 %v5149
    %v5194 = vunpack.c.l.b16 %v5150
    %v5195 = vpack.c.b16 %v5188, %v5187
    %v5196 = vpack.c.b16 %v5190, %v5189
    %v5197 = vpack.c.b16 %v5192, %v5191
    %v5198 = vpack.c.b16 %v5194, %v5193
    %v5204 = vsel %vm277, %v5172, 0
    %5206 = vmatprep.subr.bf16.mxu0 0
    %5207 = vmatpush1.bf16.msra.mxu0 %v5195
    %5208 = vmatprep.subr.bf16.mxu0 0
    %5209 = vmatpush1.bf16.msra.mxu0 %v5196
    %5210 = vmatprep.subr.bf16.mxu0 0
    %5211 = vmatpush1.bf16.msra.mxu0 %v5197
    %5212 = vmatprep.subr.bf16.mxu0 0
    %5213 = vmatpush1.bf16.msra.mxu0 %v5198
    %5214 = vmatprep.subr.bf16.mxu0 0
    %5215 = vmatpush1.bf16.msra.mxu0 0
    %5216 = vmatprep.subr.bf16.mxu0 0
    %5217 = vmatpush1.bf16.msra.mxu0 0
    %5218 = vmatprep.subr.bf16.mxu0 0
    %5219 = vmatpush1.bf16.msra.mxu0 0
    %5220 = vmatprep.subr.bf16.mxu0 0
    %5221 = vmatpush1.bf16.msra.mxu0 0
    %5222 = vmatprep.subr.bf16.mxu0 0
    %5223 = vmatpush1.bf16.msra.mxu0 0
    %5224 = vmatprep.subr.bf16.mxu0 0
    %5225 = vmatpush1.bf16.msra.mxu0 0
    %5226 = vmatprep.subr.bf16.mxu0 0
    %5227 = vmatpush1.bf16.msra.mxu0 0
    %5228 = vmatprep.subr.bf16.mxu0 0
    %5229 = vmatpush1.bf16.msra.mxu0 0
    %5230 = vmatprep.subr.bf16.mxu0 0
    %5231 = vmatpush1.bf16.msra.mxu0 0
    %5232 = vmatprep.subr.bf16.mxu0 0
    %5233 = vmatpush1.bf16.msra.mxu0 0
    %5234 = vmatprep.subr.bf16.mxu0 0
    %5235 = vmatpush1.bf16.msra.mxu0 0
    %5236 = vmatprep.subr.bf16.mxu0 0
    %5237 = vmatpush1.bf16.msra.mxu0 0
    %5238 = vmatprep.mubr.bf16.mxu0 0
    %5239 = vmatmul.mubr.bf16.gmra.mrb[0].mxu0 %v5204
    %v5240 = vpop.f32.mrb[0].mxu0
    %v5241 = vadd.f32 %v5177, %v5240
    %v5242 = vpop.f32.mrb[0].mxu0
    %v5243 = vpop.f32.mrb[0].mxu0
    %v5244 = vadd.f32 %v5177, %v5243
    %v5245 = vpop.f32.mrb[0].mxu0
    %5246 = vdwg.mxu0
    %v5247 = vmax.f32 %v5241, 0.0
    %v5248 = vmax.f32 %v5244, 0.0
    %v5249 = vpack.c.bf16 %v5248, %v5247
    %v5251 = vlaneseq
    %v5252 = vshrl.u32 %v5251, 7
    %v5253 = vsub.s32 0, %v5252
    %v5254 = vrot.slane %v5171, %v5253
    %v5272 = vunpack.c.l.b16 %v5154
    %v5273 = vunpack.c.l.b16 %v5155
    %v5274 = vunpack.c.l.b16 %v5156
    %v5275 = vunpack.c.l.b16 %v5157
    %v5276 = vunpack.c.l.b16 %v5158
    %v5277 = vunpack.c.l.b16 %v5159
    %v5278 = vunpack.c.l.b16 %v5160
    %v5279 = vunpack.c.l.b16 %v5161
    %v5280 = vunpack.c.l.b16 %v5162
    %v5281 = vunpack.c.l.b16 %v5163
    %v5282 = vunpack.c.l.b16 %v5164
    %v5283 = vunpack.c.l.b16 %v5165
    %v5284 = vunpack.c.l.b16 %v5166
    %v5285 = vunpack.c.l.b16 %v5167
    %v5286 = vunpack.c.l.b16 %v5168
    %v5287 = vunpack.c.l.b16 %v5169
    %v5288 = vpack.c.b16 %v5273, %v5272
    %v5289 = vpack.c.b16 %v5275, %v5274
    %v5290 = vpack.c.b16 %v5277, %v5276
    %v5291 = vpack.c.b16 %v5279, %v5278
    %v5292 = vpack.c.b16 %v5281, %v5280
    %v5293 = vpack.c.b16 %v5283, %v5282
    %v5294 = vpack.c.b16 %v5285, %v5284
    %v5295 = vpack.c.b16 %v5287, %v5286
    %5304 = vmatprep.subr.bf16.mxu0 0
    %5305 = vmatpush1.bf16.msra.mxu0 %v5288
    %5306 = vmatprep.subr.bf16.mxu0 0
    %5307 = vmatpush1.bf16.msra.mxu0 %v5289
    %5308 = vmatprep.subr.bf16.mxu0 0
    %5309 = vmatpush1.bf16.msra.mxu0 %v5290
    %5310 = vmatprep.subr.bf16.mxu0 0
    %5311 = vmatpush1.bf16.msra.mxu0 %v5291
    %5312 = vmatprep.subr.bf16.mxu0 0
    %5313 = vmatpush1.bf16.msra.mxu0 %v5292
    %5314 = vmatprep.subr.bf16.mxu0 0
    %5315 = vmatpush1.bf16.msra.mxu0 %v5293
    %5316 = vmatprep.subr.bf16.mxu0 0
    %5317 = vmatpush1.bf16.msra.mxu0 %v5294
    %5318 = vmatprep.subr.bf16.mxu0 0
    %5319 = vmatpush1.bf16.msra.mxu0 %v5295
    %5320 = vmatprep.subr.bf16.mxu0 0
    %5321 = vmatpush1.bf16.msra.mxu0 0
    %5322 = vmatprep.subr.bf16.mxu0 0
    %5323 = vmatpush1.bf16.msra.mxu0 0
    %5324 = vmatprep.subr.bf16.mxu0 0
    %5325 = vmatpush1.bf16.msra.mxu0 0
    %5326 = vmatprep.subr.bf16.mxu0 0
    %5327 = vmatpush1.bf16.msra.mxu0 0
    %5328 = vmatprep.subr.bf16.mxu0 0
    %5329 = vmatpush1.bf16.msra.mxu0 0
    %5330 = vmatprep.subr.bf16.mxu0 0
    %5331 = vmatpush1.bf16.msra.mxu0 0
    %5332 = vmatprep.subr.bf16.mxu0 0
    %5333 = vmatpush1.bf16.msra.mxu0 0
    %5334 = vmatprep.subr.bf16.mxu0 0
    %5335 = vmatpush1.bf16.msra.mxu0 0
    %5336 = vmatprep.mubr.bf16.mxu0 0
    %5337 = vmatmul.mubr.bf16.gmra.mrb[0].mxu0 %v5249
    %v5338 = vpop.f32.mrb[0].mxu0
    %v5339 = vadd.f32 %v5254, %v5338
    %v5340 = vpop.f32.mrb[0].mxu0
    %v5341 = vpop.f32.mrb[0].mxu0
    %v5342 = vadd.f32 %v5254, %v5341
    %v5343 = vpop.f32.mrb[0].mxu0
    %5344 = vdwg.mxu0
    %v5345 = vadd.f32 %v5140, %v5339
    %v5346 = vadd.f32 %v5141, %v5342
    %s5347 = scalar_lea.vmem %s25, 1
    %v5348 = vld [vmem:[%s5347] sm:$0x1]
    %s5349 = scalar_lea.vmem %s26, 1
    %v5350 = vld [vmem:[%s5349] sm:$0x1]
    %v5351 = vsel %vm277, %v5345, 0.0
    %5352 = vadd.xlane.f32.xlu0 %v5351
    %v5353 = vpop.xlane.xlu0 %5352
    %v5354 = vsel %vm277, %v5346, 0.0
    %5355 = vadd.xlane.f32.xlu0 %v5354
    %v5356 = vpop.xlane.xlu0 %5355
    %v5357 = vmul.f32 %v5353, %v734
    %v5358 = vmul.f32 %v5356, %v734
    %v5359 = vsub.f32 %v5345, %v5357
    %v5360 = vsub.f32 %v5346, %v5358
    %v5361 = vmul.f32 %v5359, %v5359
    %v5362 = vmul.f32 %v5360, %v5360
    %v5363 = vsel %vm277, %v5361, 0.0
    %5364 = vadd.xlane.f32.xlu0 %v5363
    %v5365 = vpop.xlane.xlu0 %5364
    %v5366 = vsel %vm277, %v5362, 0.0
    %5367 = vadd.xlane.f32.xlu0 %v5366
    %v5368 = vpop.xlane.xlu0 %5367
    %v5369 = vmul.f32 %v5365, %v734
    %v5370 = vmul.f32 %v5368, %v734
    %v5371 = vadd.f32 %v5369, 1e-05
    %v5372 = vadd.f32 %v5370, 1e-05
    %v5373 = vrsqrt.pop %v5371
    %v5374 = vrsqrt.pop %v5372
    %v5375 = vmul.f32 %v5359, %v5373
    %v5376 = vmul.f32 %v5360, %v5374
    %v5378 = vlaneseq
    %v5379 = vshrl.u32 %v5378, 7
    %v5380 = vsub.s32 0, %v5379
    %v5381 = vrot.slane %v5348, %v5380
    %v5383 = vmul.f32 %v5375, %v5381
    %v5384 = vmul.f32 %v5376, %v5381
    %v5386 = vlaneseq
    %v5387 = vshrl.u32 %v5386, 7
    %v5388 = vsub.s32 0, %v5387
    %v5389 = vrot.slane %v5350, %v5388
    %v5391 = vadd.f32 %v5383, %v5389
    %v5392 = vadd.f32 %v5384, %v5389
    %5393 = vst.msk [vmem:[#allocation19] sm:$0xff] %vm277, %v5391
    %5394 = vst.msk [vmem:[#allocation19 + $0x8] sm:$0xff] %vm277, %v5392
    // Predicated region
    $region150: #{tpu_custom_call.1} parent=1 // pred_check
      _
    $region151: #{tpu_custom_call.1} parent=1 // pred_check_branch
      %5396 = sbr.rel (0) target = $region153
    $region152: #{tpu_custom_call.1} parent=1 // pred_region
      %s5398 = ssub.s32 256, 256
      %5399 = vsyncadd [#allocation4], %s5398
      %s5400 = sshll.u32 [#allocation19], 4
      %s5401 = int_to_ptr.vmem [resolvable:$true] %s5400
      %5406 = dma.vmem_to_hbm [thread:$0]  %s5401, 256, %s27, [#allocation4], 128, 128, 8
    $region153: #{tpu_custom_call.1} parent=1 // pred_fallthru
      _
    // Predicated region
    $region154: #{tpu_custom_call.1} parent=1 // pred_check
      _
    $region155: #{tpu_custom_call.1} parent=1 // pred_check_branch
      %5408 = sbr.rel (0) target = $region157
    $region156: #{tpu_custom_call.1} parent=1 // pred_region
      %5409 = dma.done [#allocation4], 256
    $region157: #{tpu_custom_call.1} parent=1 // pred_fallthru
      _
    %5410 = vsyncpa [#allocation3], 1
    %5411 = vsyncpa [#allocation6], 1
    %5412 = vsyncpa [#allocation9], 1
    %5413 = vsyncpa [#allocation12], 1
    %5414 = vsyncpa [#allocation15], 1
    %5415 = vsyncpa [#allocation18], 1
    %5416 = vsyncpa [#allocation4], 1

</llo_original>
